<compile_context>
chip_gen: v6e
topology: v6e:2x2x1
jax: 0.10.0
libtpu: 0.0.40
codegen_flags: <defaults>
</compile_context>

<pallas_src>
import functools

import jax
import jax.numpy as jnp
from jax.experimental import pallas as pl
from jax.experimental.pallas import tpu as pltpu


def _leaky_relu(x, slope=0.01):
    return jnp.where(x > 0, x, slope * x)


def _round_up(n, m):
    return ((n + m - 1) // m) * m


def ae_forward_kernel(x_ref,
                      w1_ref, b1_ref, w2_ref, b2_ref, w3_ref, b3_ref,
                      w4_ref, b4_ref, w5_ref, b5_ref, w6_ref, b6_ref,
                      z_ref, xr_ref):
    """Fused encoder+decoder forward for one batch tile.

    Weights/x are bf16 (MXU native), biases f32, accumulation f32. Weights are
    resident in VMEM across the whole batch grid (constant index_map).
    """
    x = x_ref[...]                                        # (TB, D_pad) bf16

    # ----- Encoder -----  (Dropout in eval mode = identity)
    h = jnp.dot(x, w1_ref[...], preferred_element_type=jnp.float32) + b1_ref[...]
    h = _leaky_relu(h).astype(jnp.bfloat16)               # activation in f32, cast for next MXU
    h = jnp.dot(h, w2_ref[...], preferred_element_type=jnp.float32) + b2_ref[...]
    h = _leaky_relu(h).astype(jnp.bfloat16)
    z = jnp.dot(h, w3_ref[...], preferred_element_type=jnp.float32) + b3_ref[...]
    z_ref[...] = z.astype(z_ref.dtype)

    # ----- Decoder -----
    d = jnp.dot(z.astype(jnp.bfloat16), w4_ref[...],
                preferred_element_type=jnp.float32) + b4_ref[...]
    d = jnp.maximum(d, 0.0).astype(jnp.bfloat16)
    d = jnp.dot(d, w5_ref[...], preferred_element_type=jnp.float32) + b5_ref[...]
    d = jnp.maximum(d, 0.0).astype(jnp.bfloat16)
    xr = jnp.dot(d, w6_ref[...], preferred_element_type=jnp.float32) + b6_ref[...]
    xr = jnp.maximum(xr, 0.0)
    xr_ref[...] = xr.astype(xr_ref.dtype)


def model_forward(x, params):
    """One Model(x) -> (z, x_reconstructed) via the fused, batch-tiled Pallas kernel."""
    B, D = x.shape
    z_dim = params["w3"].shape[1]

    # Lane-dense padding of the narrow dims (z_dim, input_dim) up to 128.
    D_pad = _round_up(D, 128)
    Z_pad = _round_up(z_dim, 128)

    # Batch tile: multiple of 16 (bf16 sublane packing); 128 rows when available.
    TB = 128 if B >= 128 else _round_up(max(B, 8), 16)
    B_pad = _round_up(B, TB)

    def pad_to(a, shape):
        return jnp.pad(a, [(0, s - d) for d, s in zip(a.shape, shape)])

    xb = pad_to(x, (B_pad, D_pad)).astype(jnp.bfloat16)

    # Weights -> bf16 (zero-padded where a dim was widened); biases stay f32.
    w1 = pad_to(params["w1"], (D_pad, 2048)).astype(jnp.bfloat16)
    w2 = params["w2"].astype(jnp.bfloat16)
    w3 = pad_to(params["w3"], (256, Z_pad)).astype(jnp.bfloat16)
    w4 = pad_to(params["w4"], (Z_pad, 256)).astype(jnp.bfloat16)
    w5 = params["w5"].astype(jnp.bfloat16)
    w6 = pad_to(params["w6"], (2048, D_pad)).astype(jnp.bfloat16)
    b1 = params["b1"]
    b2 = params["b2"]
    b3 = pad_to(params["b3"], (1, Z_pad))
    b4 = params["b4"]
    b5 = params["b5"]
    b6 = pad_to(params["b6"], (1, D_pad))

    flat = (w1, b1, w2, b2, w3, b3, w4, b4, w5, b5, w6, b6)

    row_map = lambda i: (i, 0)     # batch-tiled operands
    fixed_map = lambda i: (0, 0)   # resident weights/biases: same block every step
    weight_specs = [pl.BlockSpec(a.shape, fixed_map) for a in flat]

    z_pad, xr_pad = pl.pallas_call(
        ae_forward_kernel,
        out_shape=(jax.ShapeDtypeStruct((B_pad, Z_pad), jnp.float32),
                   jax.ShapeDtypeStruct((B_pad, D_pad), jnp.float32)),
        grid_spec=pltpu.PrefetchScalarGridSpec(
            num_scalar_prefetch=0,
            grid=(B_pad // TB,),
            in_specs=[pl.BlockSpec((TB, D_pad), row_map)] + weight_specs,
            out_specs=(pl.BlockSpec((TB, Z_pad), row_map),
                       pl.BlockSpec((TB, D_pad), row_map))),
        compiler_params=pltpu.CompilerParams(
            dimension_semantics=("parallel",),       # batch tiles -> both v7x TCs
            vmem_limit_bytes=32 << 20),              # actual need ~8-10 MiB
    )(xb, *flat)

    # Slice away lane/batch padding.
    return z_pad[:B, :z_dim], xr_pad[:B, :D]


def ensemble_forward(x, params, n_models):
    """Ensemble.forward.

    The PyTorch module puts the SAME Model object in the ModuleList n_models
    times (shared parameters) and dropout is identity in eval mode, so all
    n_models passes are bit-identical and their mean equals a single pass.
    # TODO(synk): if per-model distinct parameters are ever used, switch to one
    # pallas_call with grid=(n_models,) over stacked weights and an in-kernel
    # running-mean accumulator instead of this dedup.
    """
    del n_models
    return model_forward(x, params)


def init_params(key, input_dim, z_dim):
    """Deterministic init mimicking nn.Linear defaults: U(-1/sqrt(fan_in), +)."""
    dims = [
        (input_dim, 2048),   # encoder fc1
        (2048, 256),         # encoder fc2
        (256, z_dim),        # encoder fc3
        (z_dim, 256),        # decoder fc1
        (256, 2048),         # decoder fc2
        (2048, input_dim),   # decoder fc3
    ]
    params = {}
    for i, (fan_in, fan_out) in enumerate(dims, start=1):
        key, kw, kb = jax.random.split(key, 3)
        bound = 1.0 / jnp.sqrt(float(fan_in))
        params[f"w{i}"] = jax.random.uniform(
            kw, (fan_in, fan_out), jnp.float32, -bound, bound)
        params[f"b{i}"] = jax.random.uniform(
            kb, (1, fan_out), jnp.float32, -bound, bound)
    return params


def reference_forward(x, params, n_models):
    """Pure-JAX reference with the same bf16-weight / f32-accumulate numerics."""
    del n_models  # identical ensemble members -> mean == single pass (exact)

    def dot(a, w):
        return jnp.dot(a.astype(jnp.bfloat16), w.astype(jnp.bfloat16),
                       preferred_element_type=jnp.float32)

    h = _leaky_relu(dot(x, params["w1"]) + params["b1"])
    h = _leaky_relu(dot(h, params["w2"]) + params["b2"])
    z = dot(h, params["w3"]) + params["b3"]
    d = jnp.maximum(dot(z, params["w4"]) + params["b4"], 0.0)
    d = jnp.maximum(dot(d, params["w5"]) + params["b5"], 0.0)
    xr = jnp.maximum(dot(d, params["w6"]) + params["b6"], 0.0)
    return z, xr


if __name__ == "__main__":
    key = jax.random.PRNGKey(0)
    batch, input_dim, z_dim, n_models = 256, 64, 20, 4

    key, kx, kp = jax.random.split(key, 3)
    x = jax.random.normal(kx, (batch, input_dim), jnp.float32)
    params = init_params(kp, input_dim, z_dim)

    fwd = jax.jit(functools.partial(ensemble_forward, n_models=n_models))
    z, x_recon = fwd(x, params)
    jax.block_until_ready((z, x_recon))

    z_ref, xr_ref = reference_forward(x, params, n_models)
    assert z.shape == (batch, z_dim) and x_recon.shape == (batch, input_dim)
    assert jnp.allclose(z, z_ref, atol=1e-3, rtol=1e-3), \
        float(jnp.max(jnp.abs(z - z_ref)))
    assert jnp.allclose(x_recon, xr_ref, atol=1e-3, rtol=1e-3), \
        float(jnp.max(jnp.abs(x_recon - xr_ref)))

    print("KERNEL_OK")
</pallas_src>

<mosaic_0001>
module attributes {stable_mosaic.version = 11 : i64} {
  func.func @ae_forward_kernel(%arg0: i32, %arg1: memref<128x128xbf16, #tpu.memory_space<vmem>>, %arg2: memref<128x2048xbf16, #tpu.memory_space<vmem>>, %arg3: memref<1x2048xf32, #tpu.memory_space<vmem>>, %arg4: memref<2048x256xbf16, #tpu.memory_space<vmem>>, %arg5: memref<1x256xf32, #tpu.memory_space<vmem>>, %arg6: memref<256x128xbf16, #tpu.memory_space<vmem>>, %arg7: memref<1x128xf32, #tpu.memory_space<vmem>>, %arg8: memref<128x256xbf16, #tpu.memory_space<vmem>>, %arg9: memref<1x256xf32, #tpu.memory_space<vmem>>, %arg10: memref<256x2048xbf16, #tpu.memory_space<vmem>>, %arg11: memref<1x2048xf32, #tpu.memory_space<vmem>>, %arg12: memref<2048x128xbf16, #tpu.memory_space<vmem>>, %arg13: memref<1x128xf32, #tpu.memory_space<vmem>>, %arg14: memref<128x128xf32, #tpu.memory_space<vmem>>, %arg15: memref<128x128xf32, #tpu.memory_space<vmem>>) attributes {dimension_semantics = [#tpu.dimension_semantics<parallel>], iteration_bounds = array<i64: 2>, scalar_prefetch = 0 : i64, scratch_operands = 0 : i64, tpu.core_type = #tpu.core_type<tc>, window_params = [{transform_indices = @transform_0, window_bounds = array<i64: 128, 128>}, {pipeline_mode = #tpu.pipeline_mode<synchronous>, transform_indices = @transform_1, window_bounds = array<i64: 128, 2048>}, {pipeline_mode = #tpu.pipeline_mode<synchronous>, transform_indices = @transform_2, window_bounds = array<i64: 1, 2048>}, {pipeline_mode = #tpu.pipeline_mode<synchronous>, transform_indices = @transform_3, window_bounds = array<i64: 2048, 256>}, {pipeline_mode = #tpu.pipeline_mode<synchronous>, transform_indices = @transform_4, window_bounds = array<i64: 1, 256>}, {pipeline_mode = #tpu.pipeline_mode<synchronous>, transform_indices = @transform_5, window_bounds = array<i64: 256, 128>}, {pipeline_mode = #tpu.pipeline_mode<synchronous>, transform_indices = @transform_6, window_bounds = array<i64: 1, 128>}, {pipeline_mode = #tpu.pipeline_mode<synchronous>, transform_indices = @transform_7, window_bounds = array<i64: 128, 256>}, {pipeline_mode = #tpu.pipeline_mode<synchronous>, transform_indices = @transform_8, window_bounds = array<i64: 1, 256>}, {pipeline_mode = #tpu.pipeline_mode<synchronous>, transform_indices = @transform_9, window_bounds = array<i64: 256, 2048>}, {pipeline_mode = #tpu.pipeline_mode<synchronous>, transform_indices = @transform_10, window_bounds = array<i64: 1, 2048>}, {pipeline_mode = #tpu.pipeline_mode<synchronous>, transform_indices = @transform_11, window_bounds = array<i64: 2048, 128>}, {pipeline_mode = #tpu.pipeline_mode<synchronous>, transform_indices = @transform_12, window_bounds = array<i64: 1, 128>}, {transform_indices = @transform_13, window_bounds = array<i64: 128, 128>}, {transform_indices = @transform_14, window_bounds = array<i64: 128, 128>}]} {
    %c0 = arith.constant 0 : index
    %c0_0 = arith.constant 0 : index
    %0 = vector.load %arg1[%c0, %c0_0] : memref<128x128xbf16, #tpu.memory_space<vmem>>, vector<128x128xbf16>
    %c0_1 = arith.constant 0 : index
    %c0_2 = arith.constant 0 : index
    %1 = vector.load %arg2[%c0_1, %c0_2] : memref<128x2048xbf16, #tpu.memory_space<vmem>>, vector<128x2048xbf16>
    %cst = arith.constant dense<0.000000e+00> : vector<128x2048xf32>
    %2 = tpu.matmul %0, %1, %cst {dimension_numbers = #tpu.dot_dimension_numbers<[1], [0], [0], [1], [0, 0, 1, 1], [], []>} : vector<128x128xbf16>, vector<128x2048xbf16>, vector<128x2048xf32> -> vector<128x2048xf32>
    %c0_3 = arith.constant 0 : index
    %c0_4 = arith.constant 0 : index
    %3 = vector.load %arg3[%c0_3, %c0_4] : memref<1x2048xf32, #tpu.memory_space<vmem>>, vector<1x2048xf32>
    %4 = vector.broadcast %3 : vector<1x2048xf32> to vector<128x2048xf32>
    %5 = arith.addf %2, %4 : vector<128x2048xf32>
    %cst_5 = arith.constant 0.000000e+00 : f32
    %6 = vector.broadcast %cst_5 : f32 to vector<128x2048xf32>
    %7 = arith.cmpf ogt, %5, %6 : vector<128x2048xf32>
    %cst_6 = arith.constant 0.00999999977 : f32
    %8 = vector.broadcast %cst_6 : f32 to vector<128x2048xf32>
    %9 = arith.mulf %8, %5 : vector<128x2048xf32>
    %10 = arith.select %7, %5, %9 : vector<128x2048xi1>, vector<128x2048xf32>
    %11 = arith.truncf %10 : vector<128x2048xf32> to vector<128x2048xbf16>
    %c0_7 = arith.constant 0 : index
    %c0_8 = arith.constant 0 : index
    %12 = vector.load %arg4[%c0_7, %c0_8] : memref<2048x256xbf16, #tpu.memory_space<vmem>>, vector<2048x256xbf16>
    %cst_9 = arith.constant dense<0.000000e+00> : vector<128x256xf32>
    %13 = tpu.matmul %11, %12, %cst_9 {dimension_numbers = #tpu.dot_dimension_numbers<[1], [0], [0], [1], [0, 0, 1, 1], [], []>} : vector<128x2048xbf16>, vector<2048x256xbf16>, vector<128x256xf32> -> vector<128x256xf32>
    %c0_10 = arith.constant 0 : index
    %c0_11 = arith.constant 0 : index
    %14 = vector.load %arg5[%c0_10, %c0_11] : memref<1x256xf32, #tpu.memory_space<vmem>>, vector<1x256xf32>
    %15 = vector.broadcast %14 : vector<1x256xf32> to vector<128x256xf32>
    %16 = arith.addf %13, %15 : vector<128x256xf32>
    %cst_12 = arith.constant 0.000000e+00 : f32
    %17 = vector.broadcast %cst_12 : f32 to vector<128x256xf32>
    %18 = arith.cmpf ogt, %16, %17 : vector<128x256xf32>
    %cst_13 = arith.constant 0.00999999977 : f32
    %19 = vector.broadcast %cst_13 : f32 to vector<128x256xf32>
    %20 = arith.mulf %19, %16 : vector<128x256xf32>
    %21 = arith.select %18, %16, %20 : vector<128x256xi1>, vector<128x256xf32>
    %22 = arith.truncf %21 : vector<128x256xf32> to vector<128x256xbf16>
    %c0_14 = arith.constant 0 : index
    %c0_15 = arith.constant 0 : index
    %23 = vector.load %arg6[%c0_14, %c0_15] : memref<256x128xbf16, #tpu.memory_space<vmem>>, vector<256x128xbf16>
    %cst_16 = arith.constant dense<0.000000e+00> : vector<128x128xf32>
    %24 = tpu.matmul %22, %23, %cst_16 {dimension_numbers = #tpu.dot_dimension_numbers<[1], [0], [0], [1], [0, 0, 1, 1], [], []>} : vector<128x256xbf16>, vector<256x128xbf16>, vector<128x128xf32> -> vector<128x128xf32>
    %c0_17 = arith.constant 0 : index
    %c0_18 = arith.constant 0 : index
    %25 = vector.load %arg7[%c0_17, %c0_18] : memref<1x128xf32, #tpu.memory_space<vmem>>, vector<1x128xf32>
    %26 = vector.broadcast %25 : vector<1x128xf32> to vector<128x128xf32>
    %27 = arith.addf %24, %26 : vector<128x128xf32>
    %c0_19 = arith.constant 0 : index
    %c0_20 = arith.constant 0 : index
    %28 = vector.load %arg14[%c0_19, %c0_20] : memref<128x128xf32, #tpu.memory_space<vmem>>, vector<128x128xf32>
    tpu.vector_store %arg14[%c0_19, %c0_20], %27 {strides = array<i32>} : memref<128x128xf32, #tpu.memory_space<vmem>>, vector<128x128xf32>,
    %29 = arith.truncf %27 : vector<128x128xf32> to vector<128x128xbf16>
    %c0_21 = arith.constant 0 : index
    %c0_22 = arith.constant 0 : index
    %30 = vector.load %arg8[%c0_21, %c0_22] : memref<128x256xbf16, #tpu.memory_space<vmem>>, vector<128x256xbf16>
    %cst_23 = arith.constant dense<0.000000e+00> : vector<128x256xf32>
    %31 = tpu.matmul %29, %30, %cst_23 {dimension_numbers = #tpu.dot_dimension_numbers<[1], [0], [0], [1], [0, 0, 1, 1], [], []>} : vector<128x128xbf16>, vector<128x256xbf16>, vector<128x256xf32> -> vector<128x256xf32>
    %c0_24 = arith.constant 0 : index
    %c0_25 = arith.constant 0 : index
    %32 = vector.load %arg9[%c0_24, %c0_25] : memref<1x256xf32, #tpu.memory_space<vmem>>, vector<1x256xf32>
    %33 = vector.broadcast %32 : vector<1x256xf32> to vector<128x256xf32>
    %34 = arith.addf %31, %33 : vector<128x256xf32>
    %cst_26 = arith.constant 0.000000e+00 : f32
    %35 = vector.broadcast %cst_26 : f32 to vector<128x256xf32>
    %36 = arith.maximumf %34, %35 : vector<128x256xf32>
    %37 = arith.truncf %36 : vector<128x256xf32> to vector<128x256xbf16>
    %c0_27 = arith.constant 0 : index
    %c0_28 = arith.constant 0 : index
    %38 = vector.load %arg10[%c0_27, %c0_28] : memref<256x2048xbf16, #tpu.memory_space<vmem>>, vector<256x2048xbf16>
    %cst_29 = arith.constant dense<0.000000e+00> : vector<128x2048xf32>
    %39 = tpu.matmul %37, %38, %cst_29 {dimension_numbers = #tpu.dot_dimension_numbers<[1], [0], [0], [1], [0, 0, 1, 1], [], []>} : vector<128x256xbf16>, vector<256x2048xbf16>, vector<128x2048xf32> -> vector<128x2048xf32>
    %c0_30 = arith.constant 0 : index
    %c0_31 = arith.constant 0 : index
    %40 = vector.load %arg11[%c0_30, %c0_31] : memref<1x2048xf32, #tpu.memory_space<vmem>>, vector<1x2048xf32>
    %41 = vector.broadcast %40 : vector<1x2048xf32> to vector<128x2048xf32>
    %42 = arith.addf %39, %41 : vector<128x2048xf32>
    %cst_32 = arith.constant 0.000000e+00 : f32
    %43 = vector.broadcast %cst_32 : f32 to vector<128x2048xf32>
    %44 = arith.maximumf %42, %43 : vector<128x2048xf32>
    %45 = arith.truncf %44 : vector<128x2048xf32> to vector<128x2048xbf16>
    %c0_33 = arith.constant 0 : index
    %c0_34 = arith.constant 0 : index
    %46 = vector.load %arg12[%c0_33, %c0_34] : memref<2048x128xbf16, #tpu.memory_space<vmem>>, vector<2048x128xbf16>
    %cst_35 = arith.constant dense<0.000000e+00> : vector<128x128xf32>
    %47 = tpu.matmul %45, %46, %cst_35 {dimension_numbers = #tpu.dot_dimension_numbers<[1], [0], [0], [1], [0, 0, 1, 1], [], []>} : vector<128x2048xbf16>, vector<2048x128xbf16>, vector<128x128xf32> -> vector<128x128xf32>
    %c0_36 = arith.constant 0 : index
    %c0_37 = arith.constant 0 : index
    %48 = vector.load %arg13[%c0_36, %c0_37] : memref<1x128xf32, #tpu.memory_space<vmem>>, vector<1x128xf32>
    %49 = vector.broadcast %48 : vector<1x128xf32> to vector<128x128xf32>
    %50 = arith.addf %47, %49 : vector<128x128xf32>
    %cst_38 = arith.constant 0.000000e+00 : f32
    %51 = vector.broadcast %cst_38 : f32 to vector<128x128xf32>
    %52 = arith.maximumf %50, %51 : vector<128x128xf32>
    %c0_39 = arith.constant 0 : index
    %c0_40 = arith.constant 0 : index
    %53 = vector.load %arg15[%c0_39, %c0_40] : memref<128x128xf32, #tpu.memory_space<vmem>>, vector<128x128xf32>
    tpu.vector_store %arg15[%c0_39, %c0_40], %52 {strides = array<i32>} : memref<128x128xf32, #tpu.memory_space<vmem>>, vector<128x128xf32>,
    return
  }
  func.func @transform_0(%arg0: i32) -> (i32, i32) {
    %c0_i32 = arith.constant 0 : i32
    %c0_i32_0 = arith.constant 0 : i32
    return %arg0, %c0_i32 : i32, i32
  }
  func.func @transform_1(%arg0: i32) -> (i32, i32) {
    %c0_i32 = arith.constant 0 : i32
    %c0_i32_0 = arith.constant 0 : i32
    %c0_i32_1 = arith.constant 0 : i32
    return %c0_i32, %c0_i32_0 : i32, i32
  }
  func.func @transform_2(%arg0: i32) -> (i32, i32) {
    %c0_i32 = arith.constant 0 : i32
    %c0_i32_0 = arith.constant 0 : i32
    %c0_i32_1 = arith.constant 0 : i32
    return %c0_i32, %c0_i32_0 : i32, i32
  }
  func.func @transform_3(%arg0: i32) -> (i32, i32) {
    %c0_i32 = arith.constant 0 : i32
    %c0_i32_0 = arith.constant 0 : i32
    %c0_i32_1 = arith.constant 0 : i32
    return %c0_i32, %c0_i32_0 : i32, i32
  }
  func.func @transform_4(%arg0: i32) -> (i32, i32) {
    %c0_i32 = arith.constant 0 : i32
    %c0_i32_0 = arith.constant 0 : i32
    %c0_i32_1 = arith.constant 0 : i32
    return %c0_i32, %c0_i32_0 : i32, i32
  }
  func.func @transform_5(%arg0: i32) -> (i32, i32) {
    %c0_i32 = arith.constant 0 : i32
    %c0_i32_0 = arith.constant 0 : i32
    %c0_i32_1 = arith.constant 0 : i32
    return %c0_i32, %c0_i32_0 : i32, i32
  }
  func.func @transform_6(%arg0: i32) -> (i32, i32) {
    %c0_i32 = arith.constant 0 : i32
    %c0_i32_0 = arith.constant 0 : i32
    %c0_i32_1 = arith.constant 0 : i32
    return %c0_i32, %c0_i32_0 : i32, i32
  }
  func.func @transform_7(%arg0: i32) -> (i32, i32) {
    %c0_i32 = arith.constant 0 : i32
    %c0_i32_0 = arith.constant 0 : i32
    %c0_i32_1 = arith.constant 0 : i32
    return %c0_i32, %c0_i32_0 : i32, i32
  }
  func.func @transform_8(%arg0: i32) -> (i32, i32) {
    %c0_i32 = arith.constant 0 : i32
    %c0_i32_0 = arith.constant 0 : i32
    %c0_i32_1 = arith.constant 0 : i32
    return %c0_i32, %c0_i32_0 : i32, i32
  }
  func.func @transform_9(%arg0: i32) -> (i32, i32) {
    %c0_i32 = arith.constant 0 : i32
    %c0_i32_0 = arith.constant 0 : i32
    %c0_i32_1 = arith.constant 0 : i32
    return %c0_i32, %c0_i32_0 : i32, i32
  }
  func.func @transform_10(%arg0: i32) -> (i32, i32) {
    %c0_i32 = arith.constant 0 : i32
    %c0_i32_0 = arith.constant 0 : i32
    %c0_i32_1 = arith.constant 0 : i32
    return %c0_i32, %c0_i32_0 : i32, i32
  }
  func.func @transform_11(%arg0: i32) -> (i32, i32) {
    %c0_i32 = arith.constant 0 : i32
    %c0_i32_0 = arith.constant 0 : i32
    %c0_i32_1 = arith.constant 0 : i32
    return %c0_i32, %c0_i32_0 : i32, i32
  }
  func.func @transform_12(%arg0: i32) -> (i32, i32) {
    %c0_i32 = arith.constant 0 : i32
    %c0_i32_0 = arith.constant 0 : i32
    %c0_i32_1 = arith.constant 0 : i32
    return %c0_i32, %c0_i32_0 : i32, i32
  }
  func.func @transform_13(%arg0: i32) -> (i32, i32) {
    %c0_i32 = arith.constant 0 : i32
    %c0_i32_0 = arith.constant 0 : i32
    return %arg0, %c0_i32 : i32, i32
  }
  func.func @transform_14(%arg0: i32) -> (i32, i32) {
    %c0_i32 = arith.constant 0 : i32
    %c0_i32_0 = arith.constant 0 : i32
    return %arg0, %c0_i32 : i32, i32
  }
}

</mosaic_0001>

<llo_original>
// kernel: ensemble_forward.1
$region0: #{ensemble_forward.1}
  #allocation0 [shape = 'u32[]', space=smem, size = 0x4, offset = 0x4, fixed_abs, tag = 'smem constant byte address 0x4 - core index']
  #allocation1 [shape = 'u32[144,128]{1,0:T(1,128)}', space=vmem, size = 0x12000, scoped, tag = 'internal scratch']
  %s0 = inlined_call_operand.vmem [shape: bf16[256,128], index: 0, kind: input, shape index: {}]
  %s1 = inlined_call_operand.vmem [shape: bf16[128,2048], index: 1, kind: input, shape index: {}]
  %s2 = inlined_call_operand.vmem [shape: f32[1,2048], index: 2, kind: input, shape index: {}]
  %s3 = inlined_call_operand.vmem [shape: bf16[2048,256], index: 3, kind: input, shape index: {}]
  %s4 = inlined_call_operand.vmem [shape: f32[1,256], index: 4, kind: input, shape index: {}]
  %s5 = inlined_call_operand.vmem [shape: bf16[256,128], index: 5, kind: input, shape index: {}]
  %s6 = inlined_call_operand.vmem [shape: f32[1,128], index: 6, kind: input, shape index: {}]
  %s7 = inlined_call_operand.vmem [shape: bf16[128,256], index: 7, kind: input, shape index: {}]
  %s8 = inlined_call_operand.vmem [shape: f32[1,256], index: 8, kind: input, shape index: {}]
  %s9 = inlined_call_operand.vmem [shape: bf16[256,2048], index: 9, kind: input, shape index: {}]
  %s10 = inlined_call_operand.vmem [shape: f32[1,2048], index: 10, kind: input, shape index: {}]
  %s11 = inlined_call_operand.vmem [shape: bf16[2048,128], index: 11, kind: input, shape index: {}]
  %s12 = inlined_call_operand.vmem [shape: f32[1,128], index: 12, kind: input, shape index: {}]
  %s13 = inlined_call_operand.vmem [shape: f32[256,128], index: 13, kind: output, shape index: {0}]
  %s14 = inlined_call_operand.vmem [shape: f32[256,128], index: 14, kind: output, shape index: {1}]
  %15 = xla_tuple %s13, %s14
  %s16 = sld [smem:[#allocation0]]
  $region93: #{ensemble_forward.1} parent=0
    _
  %s18 = ssub.s32 1, %s16
  %s19 = scalar_select 0, %s18, %s16
  loop: start=0, step=1, limit=4
  $region2: #{ensemble_forward.1} parent=0 // loop_pre_header
    _
  $region3: #{ensemble_forward.1} parent=0 // loop_header
    %s21 = sphi 0, %s25
    %p22 = scmp.ge.s32.totalorder %s21, 4
    %s31 = sphi 0, %s33
    %s34 = sphi 0, %s31
    %s35 = sphi 0, %s34
    %s51 = sphi 0, %s35
    %s55 = sphi 0, %s55
    %s57 = sphi 0, %s55
    %s58 = sphi 0, %s57
    %s72 = sphi 0, %s58
    %s76 = sphi 0, %s76
    %s78 = sphi 0, %s76
    %s79 = sphi 0, %s78
    %s93 = sphi 0, %s79
    %s97 = sphi 0, %s97
    %s99 = sphi 0, %s97
    %s100 = sphi 0, %s99
    %s114 = sphi 0, %s100
    %s118 = sphi 0, %s118
    %s120 = sphi 0, %s118
    %s121 = sphi 0, %s120
    %s135 = sphi 0, %s121
    %s139 = sphi 0, %s139
    %s141 = sphi 0, %s139
    %s142 = sphi 0, %s141
    %s156 = sphi 0, %s142
    %s160 = sphi 0, %s160
    %s162 = sphi 0, %s160
    %s163 = sphi 0, %s162
    %s177 = sphi 0, %s163
    %s181 = sphi 0, %s181
    %s183 = sphi 0, %s181
    %s184 = sphi 0, %s183
    %s198 = sphi 0, %s184
    %s202 = sphi 0, %s202
    %s204 = sphi 0, %s202
    %s205 = sphi 0, %s204
    %s219 = sphi 0, %s205
    %s223 = sphi 0, %s223
    %s225 = sphi 0, %s223
    %s226 = sphi 0, %s225
    %s240 = sphi 0, %s226
    %s244 = sphi 0, %s244
    %s246 = sphi 0, %s244
    %s247 = sphi 0, %s246
    %s261 = sphi 0, %s247
    %s265 = sphi 0, %s265
    %s267 = sphi 0, %s265
    %s268 = sphi 0, %s267
    %s282 = sphi 0, %s268
    %s286 = sphi 0, %s286
    %s288 = sphi 0, %s286
    %s289 = sphi 0, %s288
    %s303 = sphi 0, %s289
    %s309 = sphi 0, %s311
    %s312 = sphi 0, %s309
    %s313 = sphi 0, %s312
    %s329 = sphi 0, %s313
    %s335 = sphi 0, %s337
    %s338 = sphi 0, %s335
    %s339 = sphi 0, %s338
    %s355 = sphi 0, %s339
  $region4: #{ensemble_forward.1} parent=0 // loop_header_branch
    %24 = sbr.rel (%p22) target = $region8
  $region5: #{ensemble_forward.1} parent=0 // loop_body
    %s26 = ssub.s32 %s21, 1
    %s27 = ssub.s32 %s21, 2
    %s28 = sadd.s32 %s21, 1
    %s29 = ssub.s32 %s21, %s28
    %p30 = scmp.eq.s32.totalorder %s29, 0
    %s32 = sadd.s32 %s31, 1
    %s33 = scalar_select %p30, %s31, %s32
    %p36 = pneg %p30
    %p37 = scmp.eq.s32.totalorder %s21, 1
    %p38 = por %p36, %p37
    %p39 = scmp.ne.s32.totalorder %s31, %s34
    %p40 = scmp.eq.s32.totalorder %s21, 0
    %p41 = por %p39, %p40
    %p42 = scmp.ne.s32.totalorder %s31, %s34
    %p43 = scmp.eq.s32.totalorder %s26, 1
    %p44 = por %p42, %p43
    %p45 = scmp.ne.s32.totalorder %s34, %s35
    %p46 = scmp.eq.s32.totalorder %s26, 0
    %p47 = por %p45, %p46
    %p48 = scmp.ne.s32.totalorder %s34, %s35
    %p49 = scmp.eq.s32.totalorder %s27, 1
    %p50 = por %p48, %p49
    %p52 = scmp.ne.s32.totalorder %s35, %s51
    %p53 = scmp.eq.s32.totalorder %s27, 0
    %p54 = por %p52, %p53
    %s56 = sadd.s32 %s55, 1
    %p59 = scmp.eq.s32.totalorder %s21, 1
    %p60 = scmp.ne.s32.totalorder %s55, %s57
    %p61 = scmp.eq.s32.totalorder %s21, 0
    %p62 = por %p60, %p61
    %p63 = scmp.ne.s32.totalorder %s55, %s57
    %p64 = scmp.eq.s32.totalorder %s26, 1
    %p65 = por %p63, %p64
    %p66 = scmp.ne.s32.totalorder %s57, %s58
    %p67 = scmp.eq.s32.totalorder %s26, 0
    %p68 = por %p66, %p67
    %p69 = scmp.ne.s32.totalorder %s57, %s58
    %p70 = scmp.eq.s32.totalorder %s27, 1
    %p71 = por %p69, %p70
    %p73 = scmp.ne.s32.totalorder %s58, %s72
    %p74 = scmp.eq.s32.totalorder %s27, 0
    %p75 = por %p73, %p74
    %s77 = sadd.s32 %s76, 1
    %p80 = scmp.eq.s32.totalorder %s21, 1
    %p81 = scmp.ne.s32.totalorder %s76, %s78
    %p82 = scmp.eq.s32.totalorder %s21, 0
    %p83 = por %p81, %p82
    %p84 = scmp.ne.s32.totalorder %s76, %s78
    %p85 = scmp.eq.s32.totalorder %s26, 1
    %p86 = por %p84, %p85
    %p87 = scmp.ne.s32.totalorder %s78, %s79
    %p88 = scmp.eq.s32.totalorder %s26, 0
    %p89 = por %p87, %p88
    %p90 = scmp.ne.s32.totalorder %s78, %s79
    %p91 = scmp.eq.s32.totalorder %s27, 1
    %p92 = por %p90, %p91
    %p94 = scmp.ne.s32.totalorder %s79, %s93
    %p95 = scmp.eq.s32.totalorder %s27, 0
    %p96 = por %p94, %p95
    %s98 = sadd.s32 %s97, 1
    %p101 = scmp.eq.s32.totalorder %s21, 1
    %p102 = scmp.ne.s32.totalorder %s97, %s99
    %p103 = scmp.eq.s32.totalorder %s21, 0
    %p104 = por %p102, %p103
    %p105 = scmp.ne.s32.totalorder %s97, %s99
    %p106 = scmp.eq.s32.totalorder %s26, 1
    %p107 = por %p105, %p106
    %p108 = scmp.ne.s32.totalorder %s99, %s100
    %p109 = scmp.eq.s32.totalorder %s26, 0
    %p110 = por %p108, %p109
    %p111 = scmp.ne.s32.totalorder %s99, %s100
    %p112 = scmp.eq.s32.totalorder %s27, 1
    %p113 = por %p111, %p112
    %p115 = scmp.ne.s32.totalorder %s100, %s114
    %p116 = scmp.eq.s32.totalorder %s27, 0
    %p117 = por %p115, %p116
    %s119 = sadd.s32 %s118, 1
    %p122 = scmp.eq.s32.totalorder %s21, 1
    %p123 = scmp.ne.s32.totalorder %s118, %s120
    %p124 = scmp.eq.s32.totalorder %s21, 0
    %p125 = por %p123, %p124
    %p126 = scmp.ne.s32.totalorder %s118, %s120
    %p127 = scmp.eq.s32.totalorder %s26, 1
    %p128 = por %p126, %p127
    %p129 = scmp.ne.s32.totalorder %s120, %s121
    %p130 = scmp.eq.s32.totalorder %s26, 0
    %p131 = por %p129, %p130
    %p132 = scmp.ne.s32.totalorder %s120, %s121
    %p133 = scmp.eq.s32.totalorder %s27, 1
    %p134 = por %p132, %p133
    %p136 = scmp.ne.s32.totalorder %s121, %s135
    %p137 = scmp.eq.s32.totalorder %s27, 0
    %p138 = por %p136, %p137
    %s140 = sadd.s32 %s139, 1
    %p143 = scmp.eq.s32.totalorder %s21, 1
    %p144 = scmp.ne.s32.totalorder %s139, %s141
    %p145 = scmp.eq.s32.totalorder %s21, 0
    %p146 = por %p144, %p145
    %p147 = scmp.ne.s32.totalorder %s139, %s141
    %p148 = scmp.eq.s32.totalorder %s26, 1
    %p149 = por %p147, %p148
    %p150 = scmp.ne.s32.totalorder %s141, %s142
    %p151 = scmp.eq.s32.totalorder %s26, 0
    %p152 = por %p150, %p151
    %p153 = scmp.ne.s32.totalorder %s141, %s142
    %p154 = scmp.eq.s32.totalorder %s27, 1
    %p155 = por %p153, %p154
    %p157 = scmp.ne.s32.totalorder %s142, %s156
    %p158 = scmp.eq.s32.totalorder %s27, 0
    %p159 = por %p157, %p158
    %s161 = sadd.s32 %s160, 1
    %p164 = scmp.eq.s32.totalorder %s21, 1
    %p165 = scmp.ne.s32.totalorder %s160, %s162
    %p166 = scmp.eq.s32.totalorder %s21, 0
    %p167 = por %p165, %p166
    %p168 = scmp.ne.s32.totalorder %s160, %s162
    %p169 = scmp.eq.s32.totalorder %s26, 1
    %p170 = por %p168, %p169
    %p171 = scmp.ne.s32.totalorder %s162, %s163
    %p172 = scmp.eq.s32.totalorder %s26, 0
    %p173 = por %p171, %p172
    %p174 = scmp.ne.s32.totalorder %s162, %s163
    %p175 = scmp.eq.s32.totalorder %s27, 1
    %p176 = por %p174, %p175
    %p178 = scmp.ne.s32.totalorder %s163, %s177
    %p179 = scmp.eq.s32.totalorder %s27, 0
    %p180 = por %p178, %p179
    %s182 = sadd.s32 %s181, 1
    %p185 = scmp.eq.s32.totalorder %s21, 1
    %p186 = scmp.ne.s32.totalorder %s181, %s183
    %p187 = scmp.eq.s32.totalorder %s21, 0
    %p188 = por %p186, %p187
    %p189 = scmp.ne.s32.totalorder %s181, %s183
    %p190 = scmp.eq.s32.totalorder %s26, 1
    %p191 = por %p189, %p190
    %p192 = scmp.ne.s32.totalorder %s183, %s184
    %p193 = scmp.eq.s32.totalorder %s26, 0
    %p194 = por %p192, %p193
    %p195 = scmp.ne.s32.totalorder %s183, %s184
    %p196 = scmp.eq.s32.totalorder %s27, 1
    %p197 = por %p195, %p196
    %p199 = scmp.ne.s32.totalorder %s184, %s198
    %p200 = scmp.eq.s32.totalorder %s27, 0
    %p201 = por %p199, %p200
    %s203 = sadd.s32 %s202, 1
    %p206 = scmp.eq.s32.totalorder %s21, 1
    %p207 = scmp.ne.s32.totalorder %s202, %s204
    %p208 = scmp.eq.s32.totalorder %s21, 0
    %p209 = por %p207, %p208
    %p210 = scmp.ne.s32.totalorder %s202, %s204
    %p211 = scmp.eq.s32.totalorder %s26, 1
    %p212 = por %p210, %p211
    %p213 = scmp.ne.s32.totalorder %s204, %s205
    %p214 = scmp.eq.s32.totalorder %s26, 0
    %p215 = por %p213, %p214
    %p216 = scmp.ne.s32.totalorder %s204, %s205
    %p217 = scmp.eq.s32.totalorder %s27, 1
    %p218 = por %p216, %p217
    %p220 = scmp.ne.s32.totalorder %s205, %s219
    %p221 = scmp.eq.s32.totalorder %s27, 0
    %p222 = por %p220, %p221
    %s224 = sadd.s32 %s223, 1
    %p227 = scmp.eq.s32.totalorder %s21, 1
    %p228 = scmp.ne.s32.totalorder %s223, %s225
    %p229 = scmp.eq.s32.totalorder %s21, 0
    %p230 = por %p228, %p229
    %p231 = scmp.ne.s32.totalorder %s223, %s225
    %p232 = scmp.eq.s32.totalorder %s26, 1
    %p233 = por %p231, %p232
    %p234 = scmp.ne.s32.totalorder %s225, %s226
    %p235 = scmp.eq.s32.totalorder %s26, 0
    %p236 = por %p234, %p235
    %p237 = scmp.ne.s32.totalorder %s225, %s226
    %p238 = scmp.eq.s32.totalorder %s27, 1
    %p239 = por %p237, %p238
    %p241 = scmp.ne.s32.totalorder %s226, %s240
    %p242 = scmp.eq.s32.totalorder %s27, 0
    %p243 = por %p241, %p242
    %s245 = sadd.s32 %s244, 1
    %p248 = scmp.eq.s32.totalorder %s21, 1
    %p249 = scmp.ne.s32.totalorder %s244, %s246
    %p250 = scmp.eq.s32.totalorder %s21, 0
    %p251 = por %p249, %p250
    %p252 = scmp.ne.s32.totalorder %s244, %s246
    %p253 = scmp.eq.s32.totalorder %s26, 1
    %p254 = por %p252, %p253
    %p255 = scmp.ne.s32.totalorder %s246, %s247
    %p256 = scmp.eq.s32.totalorder %s26, 0
    %p257 = por %p255, %p256
    %p258 = scmp.ne.s32.totalorder %s246, %s247
    %p259 = scmp.eq.s32.totalorder %s27, 1
    %p260 = por %p258, %p259
    %p262 = scmp.ne.s32.totalorder %s247, %s261
    %p263 = scmp.eq.s32.totalorder %s27, 0
    %p264 = por %p262, %p263
    %s266 = sadd.s32 %s265, 1
    %p269 = scmp.eq.s32.totalorder %s21, 1
    %p270 = scmp.ne.s32.totalorder %s265, %s267
    %p271 = scmp.eq.s32.totalorder %s21, 0
    %p272 = por %p270, %p271
    %p273 = scmp.ne.s32.totalorder %s265, %s267
    %p274 = scmp.eq.s32.totalorder %s26, 1
    %p275 = por %p273, %p274
    %p276 = scmp.ne.s32.totalorder %s267, %s268
    %p277 = scmp.eq.s32.totalorder %s26, 0
    %p278 = por %p276, %p277
    %p279 = scmp.ne.s32.totalorder %s267, %s268
    %p280 = scmp.eq.s32.totalorder %s27, 1
    %p281 = por %p279, %p280
    %p283 = scmp.ne.s32.totalorder %s268, %s282
    %p284 = scmp.eq.s32.totalorder %s27, 0
    %p285 = por %p283, %p284
    %s287 = sadd.s32 %s286, 1
    %p290 = scmp.eq.s32.totalorder %s21, 1
    %p291 = scmp.ne.s32.totalorder %s286, %s288
    %p292 = scmp.eq.s32.totalorder %s21, 0
    %p293 = por %p291, %p292
    %p294 = scmp.ne.s32.totalorder %s286, %s288
    %p295 = scmp.eq.s32.totalorder %s26, 1
    %p296 = por %p294, %p295
    %p297 = scmp.ne.s32.totalorder %s288, %s289
    %p298 = scmp.eq.s32.totalorder %s26, 0
    %p299 = por %p297, %p298
    %p300 = scmp.ne.s32.totalorder %s288, %s289
    %p301 = scmp.eq.s32.totalorder %s27, 1
    %p302 = por %p300, %p301
    %p304 = scmp.ne.s32.totalorder %s289, %s303
    %p305 = scmp.eq.s32.totalorder %s27, 0
    %p306 = por %p304, %p305
    %s307 = ssub.s32 %s21, %s28
    %p308 = scmp.eq.s32.totalorder %s307, 0
    %s310 = sadd.s32 %s309, 1
    %s311 = scalar_select %p308, %s309, %s310
    %p314 = pneg %p308
    %p315 = scmp.eq.s32.totalorder %s21, 1
    %p316 = por %p314, %p315
    %p317 = scmp.ne.s32.totalorder %s309, %s312
    %p318 = scmp.eq.s32.totalorder %s21, 0
    %p319 = por %p317, %p318
    %p320 = scmp.ne.s32.totalorder %s309, %s312
    %p321 = scmp.eq.s32.totalorder %s26, 1
    %p322 = por %p320, %p321
    %p323 = scmp.ne.s32.totalorder %s312, %s313
    %p324 = scmp.eq.s32.totalorder %s26, 0
    %p325 = por %p323, %p324
    %p326 = scmp.ne.s32.totalorder %s312, %s313
    %p327 = scmp.eq.s32.totalorder %s27, 1
    %p328 = por %p326, %p327
    %p330 = scmp.ne.s32.totalorder %s313, %s329
    %p331 = scmp.eq.s32.totalorder %s27, 0
    %p332 = por %p330, %p331
    %s333 = ssub.s32 %s21, %s28
    %p334 = scmp.eq.s32.totalorder %s333, 0
    %s336 = sadd.s32 %s335, 1
    %s337 = scalar_select %p334, %s335, %s336
    %p340 = pneg %p334
    %p341 = scmp.eq.s32.totalorder %s21, 1
    %p342 = por %p340, %p341
    %p343 = scmp.ne.s32.totalorder %s335, %s338
    %p344 = scmp.eq.s32.totalorder %s21, 0
    %p345 = por %p343, %p344
    %p346 = scmp.ne.s32.totalorder %s335, %s338
    %p347 = scmp.eq.s32.totalorder %s26, 1
    %p348 = por %p346, %p347
    %p349 = scmp.ne.s32.totalorder %s338, %s339
    %p350 = scmp.eq.s32.totalorder %s26, 0
    %p351 = por %p349, %p350
    %p352 = scmp.ne.s32.totalorder %s338, %s339
    %p353 = scmp.eq.s32.totalorder %s27, 1
    %p354 = por %p352, %p353
    %p356 = scmp.ne.s32.totalorder %s339, %s355
    %p357 = scmp.eq.s32.totalorder %s27, 0
    %p358 = por %p356, %p357
    %p359 = scmp.le.s32.totalorder 1, %s21
    %p360 = scmp.lt.s32.totalorder %s21, 3
    %p361 = pnand %p359, %p360
    %p362 = pneg %p361
    // Predicated region
    $region9: #{ensemble_forward.1} parent=5 // pred_check
      _
    $region10: #{ensemble_forward.1} parent=5 // pred_check_branch
      %364 = sbr.rel (%p361) target = $region12
    $region11: #{ensemble_forward.1} parent=5 // pred_region
      %s365 = ssub.s32 %s21, 1
      // Predicated region
      $region13: #{ensemble_forward.1} parent=11 // pred_check
        %p366 = pneg %p68
      $region14: #{ensemble_forward.1} parent=11 // pred_check_branch
        %368 = sbr.rel (%p366) target = $region16
      $region15: #{ensemble_forward.1} parent=11 // pred_region
        _
      $region16: #{ensemble_forward.1} parent=11 // pred_fallthru
        _
      // Predicated region
      $region17: #{ensemble_forward.1} parent=11 // pred_check
        %p369 = pneg %p89
      $region18: #{ensemble_forward.1} parent=11 // pred_check_branch
        %371 = sbr.rel (%p369) target = $region20
      $region19: #{ensemble_forward.1} parent=11 // pred_region
        _
      $region20: #{ensemble_forward.1} parent=11 // pred_fallthru
        _
      // Predicated region
      $region21: #{ensemble_forward.1} parent=11 // pred_check
        %p372 = pneg %p110
      $region22: #{ensemble_forward.1} parent=11 // pred_check_branch
        %374 = sbr.rel (%p372) target = $region24
      $region23: #{ensemble_forward.1} parent=11 // pred_region
        _
      $region24: #{ensemble_forward.1} parent=11 // pred_fallthru
        _
      // Predicated region
      $region25: #{ensemble_forward.1} parent=11 // pred_check
        %p375 = pneg %p131
      $region26: #{ensemble_forward.1} parent=11 // pred_check_branch
        %377 = sbr.rel (%p375) target = $region28
      $region27: #{ensemble_forward.1} parent=11 // pred_region
        _
      $region28: #{ensemble_forward.1} parent=11 // pred_fallthru
        _
      // Predicated region
      $region29: #{ensemble_forward.1} parent=11 // pred_check
        %p378 = pneg %p152
      $region30: #{ensemble_forward.1} parent=11 // pred_check_branch
        %380 = sbr.rel (%p378) target = $region32
      $region31: #{ensemble_forward.1} parent=11 // pred_region
        _
      $region32: #{ensemble_forward.1} parent=11 // pred_fallthru
        _
      // Predicated region
      $region33: #{ensemble_forward.1} parent=11 // pred_check
        %p381 = pneg %p173
      $region34: #{ensemble_forward.1} parent=11 // pred_check_branch
        %383 = sbr.rel (%p381) target = $region36
      $region35: #{ensemble_forward.1} parent=11 // pred_region
        _
      $region36: #{ensemble_forward.1} parent=11 // pred_fallthru
        _
      // Predicated region
      $region37: #{ensemble_forward.1} parent=11 // pred_check
        %p384 = pneg %p194
      $region38: #{ensemble_forward.1} parent=11 // pred_check_branch
        %386 = sbr.rel (%p384) target = $region40
      $region39: #{ensemble_forward.1} parent=11 // pred_region
        _
      $region40: #{ensemble_forward.1} parent=11 // pred_fallthru
        _
      // Predicated region
      $region41: #{ensemble_forward.1} parent=11 // pred_check
        %p387 = pneg %p215
      $region42: #{ensemble_forward.1} parent=11 // pred_check_branch
        %389 = sbr.rel (%p387) target = $region44
      $region43: #{ensemble_forward.1} parent=11 // pred_region
        _
      $region44: #{ensemble_forward.1} parent=11 // pred_fallthru
        _
      // Predicated region
      $region45: #{ensemble_forward.1} parent=11 // pred_check
        %p390 = pneg %p236
      $region46: #{ensemble_forward.1} parent=11 // pred_check_branch
        %392 = sbr.rel (%p390) target = $region48
      $region47: #{ensemble_forward.1} parent=11 // pred_region
        _
      $region48: #{ensemble_forward.1} parent=11 // pred_fallthru
        _
      // Predicated region
      $region49: #{ensemble_forward.1} parent=11 // pred_check
        %p393 = pneg %p257
      $region50: #{ensemble_forward.1} parent=11 // pred_check_branch
        %395 = sbr.rel (%p393) target = $region52
      $region51: #{ensemble_forward.1} parent=11 // pred_region
        _
      $region52: #{ensemble_forward.1} parent=11 // pred_fallthru
        _
      // Predicated region
      $region53: #{ensemble_forward.1} parent=11 // pred_check
        %p396 = pneg %p278
      $region54: #{ensemble_forward.1} parent=11 // pred_check_branch
        %398 = sbr.rel (%p396) target = $region56
      $region55: #{ensemble_forward.1} parent=11 // pred_region
        _
      $region56: #{ensemble_forward.1} parent=11 // pred_fallthru
        _
      // Predicated region
      $region57: #{ensemble_forward.1} parent=11 // pred_check
        %p399 = pneg %p299
      $region58: #{ensemble_forward.1} parent=11 // pred_check_branch
        %401 = sbr.rel (%p399) target = $region60
      $region59: #{ensemble_forward.1} parent=11 // pred_region
        _
      $region60: #{ensemble_forward.1} parent=11 // pred_fallthru
        _
    $region12: #{ensemble_forward.1} parent=5 // pred_fallthru
      _
    %p402 = scmp.lt.s32.totalorder %s21, 2
    // Predicated region
    $region61: #{ensemble_forward.1} parent=5 // pred_check
      %p403 = pneg %p402
    $region62: #{ensemble_forward.1} parent=5 // pred_check_branch
      %405 = sbr.rel (%p403) target = $region64
    $region63: #{ensemble_forward.1} parent=5 // pred_region
      // Predicated region
      $region65: #{ensemble_forward.1} parent=63 // pred_check
        %p406 = pneg %p41
      $region66: #{ensemble_forward.1} parent=63 // pred_check_branch
        %408 = sbr.rel (%p406) target = $region68
      $region67: #{ensemble_forward.1} parent=63 // pred_region
        %s409 = smul.u32 16, %s21
        %p410 = scmp.lt.s32.totalorder %s409, 31
        %s411 = scalar_select %p410, %s409, 31
        %s412 = smul.addr %s411, 4
        %s413 = scalar_lea.vmem %s0, %s412
        %s414 = smul.u32 16, %s21
      $region68: #{ensemble_forward.1} parent=63 // pred_fallthru
        _
    $region64: #{ensemble_forward.1} parent=5 // pred_fallthru
      _
    %p415 = scmp.le.s32.totalorder 1, %s21
    %p416 = scmp.lt.s32.totalorder %s21, 3
    %p417 = pnand %p415, %p416
    %p418 = pneg %p417
    // Predicated region
    $region69: #{ensemble_forward.1} parent=5 // pred_check
      _
    $region70: #{ensemble_forward.1} parent=5 // pred_check_branch
      %420 = sbr.rel (%p417) target = $region72
    $region71: #{ensemble_forward.1} parent=5 // pred_region
      %s421 = ssub.s32 %s21, 1
      %s422 = smul.u32 16, %s26
      %p423 = scmp.lt.s32.totalorder %s422, 31
      %s424 = scalar_select %p423, %s422, 31
      %s425 = smul.addr %s424, 4
      %s426 = scalar_lea.vmem %s0, %s425
      %p427 = pneg %p47
      %p428 = pneg %p44
      %p429 = pneg %p68
      %p430 = pneg %p65
      %p431 = pneg %p89
      %p432 = pneg %p86
      %p433 = pneg %p110
      %p434 = pneg %p107
      %p435 = pneg %p131
      %p436 = pneg %p128
      %p437 = pneg %p152
      %p438 = pneg %p149
      %p439 = pneg %p173
      %p440 = pneg %p170
      %p441 = pneg %p194
      %p442 = pneg %p191
      %p443 = pneg %p215
      %p444 = pneg %p212
      %p445 = pneg %p236
      %p446 = pneg %p233
      %p447 = pneg %p257
      %p448 = pneg %p254
      %p449 = pneg %p278
      %p450 = pneg %p275
      %p451 = pneg %p299
      %p452 = pneg %p296
      %p453 = pneg %p325
      %p454 = pneg %p322
      %s455 = smul.u32 16, %s26
      %p456 = scmp.lt.s32.totalorder %s455, 31
      %s457 = scalar_select %p456, %s455, 31
      %s458 = smul.addr %s457, 8
      %s459 = scalar_lea.vmem %s13, %s458
      %p460 = pneg %p351
      %p461 = pneg %p348
      %s462 = smul.u32 16, %s26
      %p463 = scmp.lt.s32.totalorder %s462, 31
      %s464 = scalar_select %p463, %s462, 31
      %s465 = smul.addr %s464, 8
      %s466 = scalar_lea.vmem %s14, %s465
      %s467 = smul.u32 16, %s26
      %p468 = scmp.lt.s32.totalorder %s467, 31
      %s469 = scalar_select %p468, %s467, 31
      %s470 = smul.addr %s469, 4
      %s471 = scalar_lea.vmem %s0, %s470
      %s472 = smul.u32 16, %s26
      %s473 = smul.u32 16, %s26
      %p474 = scmp.lt.s32.totalorder %s473, 31
      %s475 = scalar_select %p474, %s473, 31
      %s476 = smul.addr %s475, 8
      %s477 = scalar_lea.vmem %s13, %s476
      %s478 = smul.u32 16, %s26
      %s479 = smul.u32 16, %s26
      %p480 = scmp.lt.s32.totalorder %s479, 31
      %s481 = scalar_select %p480, %s479, 31
      %s482 = smul.addr %s481, 8
      %s483 = scalar_lea.vmem %s14, %s482
      %s484 = smul.u32 16, %s26
      %v486 = vld [vmem:[%s471] sm:$0xf]
      %v487 = vld [vmem:[%s471 + $0x4] sm:$0xf]
      %v488 = vld [vmem:[%s471 + $0x8] sm:$0xf]
      %v489 = vld [vmem:[%s471 + $0xc] sm:$0xf]
      %v490 = vld [vmem:[%s471 + $0x10] sm:$0xf]
      %v491 = vld [vmem:[%s471 + $0x14] sm:$0xf]
      %v492 = vld [vmem:[%s471 + $0x18] sm:$0xf]
      %v493 = vld [vmem:[%s471 + $0x1c] sm:$0xf]
      %v494 = vld [vmem:[%s471 + $0x20] sm:$0xf]
      %v495 = vld [vmem:[%s471 + $0x24] sm:$0xf]
      %v496 = vld [vmem:[%s471 + $0x28] sm:$0xf]
      %v497 = vld [vmem:[%s471 + $0x2c] sm:$0xf]
      %v498 = vld [vmem:[%s471 + $0x30] sm:$0xf]
      %v499 = vld [vmem:[%s471 + $0x34] sm:$0xf]
      %v500 = vld [vmem:[%s471 + $0x38] sm:$0xf]
      %v501 = vld [vmem:[%s471 + $0x3c] sm:$0xf]
      %v502 = vld [vmem:[%s1] sm:$0xff]
      %v503 = vld [vmem:[%s1 + $0x8] sm:$0xff]
      %v504 = vld [vmem:[%s1 + $0x10] sm:$0xff]
      %v505 = vld [vmem:[%s1 + $0x18] sm:$0xff]
      %v506 = vld [vmem:[%s1 + $0x20] sm:$0xff]
      %v507 = vld [vmem:[%s1 + $0x28] sm:$0xff]
      %v508 = vld [vmem:[%s1 + $0x30] sm:$0xff]
      %v509 = vld [vmem:[%s1 + $0x38] sm:$0xff]
      %v510 = vld [vmem:[%s1 + $0x40] sm:$0xff]
      %v511 = vld [vmem:[%s1 + $0x48] sm:$0xff]
      %v512 = vld [vmem:[%s1 + $0x50] sm:$0xff]
      %v513 = vld [vmem:[%s1 + $0x58] sm:$0xff]
      %v514 = vld [vmem:[%s1 + $0x60] sm:$0xff]
      %v515 = vld [vmem:[%s1 + $0x68] sm:$0xff]
      %v516 = vld [vmem:[%s1 + $0x70] sm:$0xff]
      %v517 = vld [vmem:[%s1 + $0x78] sm:$0xff]
      %v518 = vld [vmem:[%s1 + $0x80] sm:$0xff]
      %v519 = vld [vmem:[%s1 + $0x88] sm:$0xff]
      %v520 = vld [vmem:[%s1 + $0x90] sm:$0xff]
      %v521 = vld [vmem:[%s1 + $0x98] sm:$0xff]
      %v522 = vld [vmem:[%s1 + $0xa0] sm:$0xff]
      %v523 = vld [vmem:[%s1 + $0xa8] sm:$0xff]
      %v524 = vld [vmem:[%s1 + $0xb0] sm:$0xff]
      %v525 = vld [vmem:[%s1 + $0xb8] sm:$0xff]
      %v526 = vld [vmem:[%s1 + $0xc0] sm:$0xff]
      %v527 = vld [vmem:[%s1 + $0xc8] sm:$0xff]
      %v528 = vld [vmem:[%s1 + $0xd0] sm:$0xff]
      %v529 = vld [vmem:[%s1 + $0xd8] sm:$0xff]
      %v530 = vld [vmem:[%s1 + $0xe0] sm:$0xff]
      %v531 = vld [vmem:[%s1 + $0xe8] sm:$0xff]
      %v532 = vld [vmem:[%s1 + $0xf0] sm:$0xff]
      %v533 = vld [vmem:[%s1 + $0xf8] sm:$0xff]
      %v534 = vld [vmem:[%s1 + $0x100] sm:$0xff]
      %v535 = vld [vmem:[%s1 + $0x108] sm:$0xff]
      %v536 = vld [vmem:[%s1 + $0x110] sm:$0xff]
      %v537 = vld [vmem:[%s1 + $0x118] sm:$0xff]
      %v538 = vld [vmem:[%s1 + $0x120] sm:$0xff]
      %v539 = vld [vmem:[%s1 + $0x128] sm:$0xff]
      %v540 = vld [vmem:[%s1 + $0x130] sm:$0xff]
      %v541 = vld [vmem:[%s1 + $0x138] sm:$0xff]
      %v542 = vld [vmem:[%s1 + $0x140] sm:$0xff]
      %v543 = vld [vmem:[%s1 + $0x148] sm:$0xff]
      %v544 = vld [vmem:[%s1 + $0x150] sm:$0xff]
      %v545 = vld [vmem:[%s1 + $0x158] sm:$0xff]
      %v546 = vld [vmem:[%s1 + $0x160] sm:$0xff]
      %v547 = vld [vmem:[%s1 + $0x168] sm:$0xff]
      %v548 = vld [vmem:[%s1 + $0x170] sm:$0xff]
      %v549 = vld [vmem:[%s1 + $0x178] sm:$0xff]
      %v550 = vld [vmem:[%s1 + $0x180] sm:$0xff]
      %v551 = vld [vmem:[%s1 + $0x188] sm:$0xff]
      %v552 = vld [vmem:[%s1 + $0x190] sm:$0xff]
      %v553 = vld [vmem:[%s1 + $0x198] sm:$0xff]
      %v554 = vld [vmem:[%s1 + $0x1a0] sm:$0xff]
      %v555 = vld [vmem:[%s1 + $0x1a8] sm:$0xff]
      %v556 = vld [vmem:[%s1 + $0x1b0] sm:$0xff]
      %v557 = vld [vmem:[%s1 + $0x1b8] sm:$0xff]
      %v558 = vld [vmem:[%s1 + $0x1c0] sm:$0xff]
      %v559 = vld [vmem:[%s1 + $0x1c8] sm:$0xff]
      %v560 = vld [vmem:[%s1 + $0x1d0] sm:$0xff]
      %v561 = vld [vmem:[%s1 + $0x1d8] sm:$0xff]
      %v562 = vld [vmem:[%s1 + $0x1e0] sm:$0xff]
      %v563 = vld [vmem:[%s1 + $0x1e8] sm:$0xff]
      %v564 = vld [vmem:[%s1 + $0x1f0] sm:$0xff]
      %v565 = vld [vmem:[%s1 + $0x1f8] sm:$0xff]
      %v566 = vld [vmem:[%s1 + $0x200] sm:$0xff]
      %v567 = vld [vmem:[%s1 + $0x208] sm:$0xff]
      %v568 = vld [vmem:[%s1 + $0x210] sm:$0xff]
      %v569 = vld [vmem:[%s1 + $0x218] sm:$0xff]
      %v570 = vld [vmem:[%s1 + $0x220] sm:$0xff]
      %v571 = vld [vmem:[%s1 + $0x228] sm:$0xff]
      %v572 = vld [vmem:[%s1 + $0x230] sm:$0xff]
      %v573 = vld [vmem:[%s1 + $0x238] sm:$0xff]
      %v574 = vld [vmem:[%s1 + $0x240] sm:$0xff]
      %v575 = vld [vmem:[%s1 + $0x248] sm:$0xff]
      %v576 = vld [vmem:[%s1 + $0x250] sm:$0xff]
      %v577 = vld [vmem:[%s1 + $0x258] sm:$0xff]
      %v578 = vld [vmem:[%s1 + $0x260] sm:$0xff]
      %v579 = vld [vmem:[%s1 + $0x268] sm:$0xff]
      %v580 = vld [vmem:[%s1 + $0x270] sm:$0xff]
      %v581 = vld [vmem:[%s1 + $0x278] sm:$0xff]
      %v582 = vld [vmem:[%s1 + $0x280] sm:$0xff]
      %v583 = vld [vmem:[%s1 + $0x288] sm:$0xff]
      %v584 = vld [vmem:[%s1 + $0x290] sm:$0xff]
      %v585 = vld [vmem:[%s1 + $0x298] sm:$0xff]
      %v586 = vld [vmem:[%s1 + $0x2a0] sm:$0xff]
      %v587 = vld [vmem:[%s1 + $0x2a8] sm:$0xff]
      %v588 = vld [vmem:[%s1 + $0x2b0] sm:$0xff]
      %v589 = vld [vmem:[%s1 + $0x2b8] sm:$0xff]
      %v590 = vld [vmem:[%s1 + $0x2c0] sm:$0xff]
      %v591 = vld [vmem:[%s1 + $0x2c8] sm:$0xff]
      %v592 = vld [vmem:[%s1 + $0x2d0] sm:$0xff]
      %v593 = vld [vmem:[%s1 + $0x2d8] sm:$0xff]
      %v594 = vld [vmem:[%s1 + $0x2e0] sm:$0xff]
      %v595 = vld [vmem:[%s1 + $0x2e8] sm:$0xff]
      %v596 = vld [vmem:[%s1 + $0x2f0] sm:$0xff]
      %v597 = vld [vmem:[%s1 + $0x2f8] sm:$0xff]
      %v598 = vld [vmem:[%s1 + $0x300] sm:$0xff]
      %v599 = vld [vmem:[%s1 + $0x308] sm:$0xff]
      %v600 = vld [vmem:[%s1 + $0x310] sm:$0xff]
      %v601 = vld [vmem:[%s1 + $0x318] sm:$0xff]
      %v602 = vld [vmem:[%s1 + $0x320] sm:$0xff]
      %v603 = vld [vmem:[%s1 + $0x328] sm:$0xff]
      %v604 = vld [vmem:[%s1 + $0x330] sm:$0xff]
      %v605 = vld [vmem:[%s1 + $0x338] sm:$0xff]
      %v606 = vld [vmem:[%s1 + $0x340] sm:$0xff]
      %v607 = vld [vmem:[%s1 + $0x348] sm:$0xff]
      %v608 = vld [vmem:[%s1 + $0x350] sm:$0xff]
      %v609 = vld [vmem:[%s1 + $0x358] sm:$0xff]
      %v610 = vld [vmem:[%s1 + $0x360] sm:$0xff]
      %v611 = vld [vmem:[%s1 + $0x368] sm:$0xff]
      %v612 = vld [vmem:[%s1 + $0x370] sm:$0xff]
      %v613 = vld [vmem:[%s1 + $0x378] sm:$0xff]
      %v614 = vld [vmem:[%s1 + $0x380] sm:$0xff]
      %v615 = vld [vmem:[%s1 + $0x388] sm:$0xff]
      %v616 = vld [vmem:[%s1 + $0x390] sm:$0xff]
      %v617 = vld [vmem:[%s1 + $0x398] sm:$0xff]
      %v618 = vld [vmem:[%s1 + $0x3a0] sm:$0xff]
      %v619 = vld [vmem:[%s1 + $0x3a8] sm:$0xff]
      %v620 = vld [vmem:[%s1 + $0x3b0] sm:$0xff]
      %v621 = vld [vmem:[%s1 + $0x3b8] sm:$0xff]
      %v622 = vld [vmem:[%s1 + $0x3c0] sm:$0xff]
      %v623 = vld [vmem:[%s1 + $0x3c8] sm:$0xff]
      %v624 = vld [vmem:[%s1 + $0x3d0] sm:$0xff]
      %v625 = vld [vmem:[%s1 + $0x3d8] sm:$0xff]
      %v626 = vld [vmem:[%s1 + $0x3e0] sm:$0xff]
      %v627 = vld [vmem:[%s1 + $0x3e8] sm:$0xff]
      %v628 = vld [vmem:[%s1 + $0x3f0] sm:$0xff]
      %v629 = vld [vmem:[%s1 + $0x3f8] sm:$0xff]
      %v630 = vld [vmem:[%s2] sm:$0xff]
      %v631 = vld [vmem:[%s2 + $0x8] sm:$0xff]
      %v634 = vlaneseq
      %v635 = vshrl.u32 %v634, 7
      %v636 = vsub.s32 0, %v635
      %v637 = vrot.slane %v630, %v636
      %v638 = vlaneseq
      %v639 = vshrl.u32 %v638, 7
      %v640 = vsub.s32 1, %v639
      %v641 = vrot.slane %v630, %v640
      %v642 = vlaneseq
      %v643 = vshrl.u32 %v642, 7
      %v644 = vsub.s32 2, %v643
      %v645 = vrot.slane %v630, %v644
      %v646 = vlaneseq
      %v647 = vshrl.u32 %v646, 7
      %v648 = vsub.s32 3, %v647
      %v649 = vrot.slane %v630, %v648
      %v650 = vlaneseq
      %v651 = vshrl.u32 %v650, 7
      %v652 = vsub.s32 4, %v651
      %v653 = vrot.slane %v630, %v652
      %v654 = vlaneseq
      %v655 = vshrl.u32 %v654, 7
      %v656 = vsub.s32 5, %v655
      %v657 = vrot.slane %v630, %v656
      %v658 = vlaneseq
      %v659 = vshrl.u32 %v658, 7
      %v660 = vsub.s32 6, %v659
      %v661 = vrot.slane %v630, %v660
      %v662 = vlaneseq
      %v663 = vshrl.u32 %v662, 7
      %v664 = vsub.s32 7, %v663
      %v665 = vrot.slane %v630, %v664
      %v666 = vlaneseq
      %v667 = vshrl.u32 %v666, 7
      %v668 = vsub.s32 0, %v667
      %v669 = vrot.slane %v631, %v668
      %v670 = vlaneseq
      %v671 = vshrl.u32 %v670, 7
      %v672 = vsub.s32 1, %v671
      %v673 = vrot.slane %v631, %v672
      %v674 = vlaneseq
      %v675 = vshrl.u32 %v674, 7
      %v676 = vsub.s32 2, %v675
      %v677 = vrot.slane %v631, %v676
      %v678 = vlaneseq
      %v679 = vshrl.u32 %v678, 7
      %v680 = vsub.s32 3, %v679
      %v681 = vrot.slane %v631, %v680
      %v682 = vlaneseq
      %v683 = vshrl.u32 %v682, 7
      %v684 = vsub.s32 4, %v683
      %v685 = vrot.slane %v631, %v684
      %v686 = vlaneseq
      %v687 = vshrl.u32 %v686, 7
      %v688 = vsub.s32 5, %v687
      %v689 = vrot.slane %v631, %v688
      %v690 = vlaneseq
      %v691 = vshrl.u32 %v690, 7
      %v692 = vsub.s32 6, %v691
      %v693 = vrot.slane %v631, %v692
      %v694 = vlaneseq
      %v695 = vshrl.u32 %v694, 7
      %v696 = vsub.s32 7, %v695
      %v697 = vrot.slane %v631, %v696
      %v730 = vunpack.c.l.b16 %v486
      %v731 = vunpack.c.l.b16 %v487
      %v732 = vunpack.c.l.b16 %v488
      %v733 = vunpack.c.l.b16 %v489
      %v734 = vunpack.c.l.b16 %v490
      %v735 = vunpack.c.l.b16 %v491
      %v736 = vunpack.c.l.b16 %v492
      %v737 = vunpack.c.l.b16 %v493
      %v738 = vunpack.c.l.b16 %v494
      %v739 = vunpack.c.l.b16 %v495
      %v740 = vunpack.c.l.b16 %v496
      %v741 = vunpack.c.l.b16 %v497
      %v742 = vunpack.c.l.b16 %v498
      %v743 = vunpack.c.l.b16 %v499
      %v744 = vunpack.c.l.b16 %v500
      %v745 = vunpack.c.l.b16 %v501
      %v746 = vpack.c.b16 %v731, %v730
      %v747 = vpack.c.b16 %v733, %v732
      %v748 = vpack.c.b16 %v735, %v734
      %v749 = vpack.c.b16 %v737, %v736
      %v750 = vpack.c.b16 %v739, %v738
      %v751 = vpack.c.b16 %v741, %v740
      %v752 = vpack.c.b16 %v743, %v742
      %v753 = vpack.c.b16 %v745, %v744
      %v890 = vunpack.c.l.b16 %v502
      %v891 = vunpack.c.h.b16 %v502
      %v892 = vunpack.c.l.b16 %v503
      %v893 = vunpack.c.h.b16 %v503
      %v894 = vunpack.c.l.b16 %v504
      %v895 = vunpack.c.h.b16 %v504
      %v896 = vunpack.c.l.b16 %v505
      %v897 = vunpack.c.h.b16 %v505
      %v898 = vunpack.c.l.b16 %v506
      %v899 = vunpack.c.h.b16 %v506
      %v900 = vunpack.c.l.b16 %v507
      %v901 = vunpack.c.h.b16 %v507
      %v902 = vunpack.c.l.b16 %v508
      %v903 = vunpack.c.h.b16 %v508
      %v904 = vunpack.c.l.b16 %v509
      %v905 = vunpack.c.h.b16 %v509
      %v906 = vunpack.c.l.b16 %v510
      %v907 = vunpack.c.h.b16 %v510
      %v908 = vunpack.c.l.b16 %v511
      %v909 = vunpack.c.h.b16 %v511
      %v910 = vunpack.c.l.b16 %v512
      %v911 = vunpack.c.h.b16 %v512
      %v912 = vunpack.c.l.b16 %v513
      %v913 = vunpack.c.h.b16 %v513
      %v914 = vunpack.c.l.b16 %v514
      %v915 = vunpack.c.h.b16 %v514
      %v916 = vunpack.c.l.b16 %v515
      %v917 = vunpack.c.h.b16 %v515
      %v918 = vunpack.c.l.b16 %v516
      %v919 = vunpack.c.h.b16 %v516
      %v920 = vunpack.c.l.b16 %v517
      %v921 = vunpack.c.h.b16 %v517
      %v922 = vunpack.c.l.b16 %v518
      %v923 = vunpack.c.h.b16 %v518
      %v924 = vunpack.c.l.b16 %v519
      %v925 = vunpack.c.h.b16 %v519
      %v926 = vunpack.c.l.b16 %v520
      %v927 = vunpack.c.h.b16 %v520
      %v928 = vunpack.c.l.b16 %v521
      %v929 = vunpack.c.h.b16 %v521
      %v930 = vunpack.c.l.b16 %v522
      %v931 = vunpack.c.h.b16 %v522
      %v932 = vunpack.c.l.b16 %v523
      %v933 = vunpack.c.h.b16 %v523
      %v934 = vunpack.c.l.b16 %v524
      %v935 = vunpack.c.h.b16 %v524
      %v936 = vunpack.c.l.b16 %v525
      %v937 = vunpack.c.h.b16 %v525
      %v938 = vunpack.c.l.b16 %v526
      %v939 = vunpack.c.h.b16 %v526
      %v940 = vunpack.c.l.b16 %v527
      %v941 = vunpack.c.h.b16 %v527
      %v942 = vunpack.c.l.b16 %v528
      %v943 = vunpack.c.h.b16 %v528
      %v944 = vunpack.c.l.b16 %v529
      %v945 = vunpack.c.h.b16 %v529
      %v946 = vunpack.c.l.b16 %v530
      %v947 = vunpack.c.h.b16 %v530
      %v948 = vunpack.c.l.b16 %v531
      %v949 = vunpack.c.h.b16 %v531
      %v950 = vunpack.c.l.b16 %v532
      %v951 = vunpack.c.h.b16 %v532
      %v952 = vunpack.c.l.b16 %v533
      %v953 = vunpack.c.h.b16 %v533
      %v954 = vunpack.c.l.b16 %v534
      %v955 = vunpack.c.h.b16 %v534
      %v956 = vunpack.c.l.b16 %v535
      %v957 = vunpack.c.h.b16 %v535
      %v958 = vunpack.c.l.b16 %v536
      %v959 = vunpack.c.h.b16 %v536
      %v960 = vunpack.c.l.b16 %v537
      %v961 = vunpack.c.h.b16 %v537
      %v962 = vunpack.c.l.b16 %v538
      %v963 = vunpack.c.h.b16 %v538
      %v964 = vunpack.c.l.b16 %v539
      %v965 = vunpack.c.h.b16 %v539
      %v966 = vunpack.c.l.b16 %v540
      %v967 = vunpack.c.h.b16 %v540
      %v968 = vunpack.c.l.b16 %v541
      %v969 = vunpack.c.h.b16 %v541
      %v970 = vunpack.c.l.b16 %v542
      %v971 = vunpack.c.h.b16 %v542
      %v972 = vunpack.c.l.b16 %v543
      %v973 = vunpack.c.h.b16 %v543
      %v974 = vunpack.c.l.b16 %v544
      %v975 = vunpack.c.h.b16 %v544
      %v976 = vunpack.c.l.b16 %v545
      %v977 = vunpack.c.h.b16 %v545
      %v978 = vunpack.c.l.b16 %v546
      %v979 = vunpack.c.h.b16 %v546
      %v980 = vunpack.c.l.b16 %v547
      %v981 = vunpack.c.h.b16 %v547
      %v982 = vunpack.c.l.b16 %v548
      %v983 = vunpack.c.h.b16 %v548
      %v984 = vunpack.c.l.b16 %v549
      %v985 = vunpack.c.h.b16 %v549
      %v986 = vunpack.c.l.b16 %v550
      %v987 = vunpack.c.h.b16 %v550
      %v988 = vunpack.c.l.b16 %v551
      %v989 = vunpack.c.h.b16 %v551
      %v990 = vunpack.c.l.b16 %v552
      %v991 = vunpack.c.h.b16 %v552
      %v992 = vunpack.c.l.b16 %v553
      %v993 = vunpack.c.h.b16 %v553
      %v994 = vunpack.c.l.b16 %v554
      %v995 = vunpack.c.h.b16 %v554
      %v996 = vunpack.c.l.b16 %v555
      %v997 = vunpack.c.h.b16 %v555
      %v998 = vunpack.c.l.b16 %v556
      %v999 = vunpack.c.h.b16 %v556
      %v1000 = vunpack.c.l.b16 %v557
      %v1001 = vunpack.c.h.b16 %v557
      %v1002 = vunpack.c.l.b16 %v558
      %v1003 = vunpack.c.h.b16 %v558
      %v1004 = vunpack.c.l.b16 %v559
      %v1005 = vunpack.c.h.b16 %v559
      %v1006 = vunpack.c.l.b16 %v560
      %v1007 = vunpack.c.h.b16 %v560
      %v1008 = vunpack.c.l.b16 %v561
      %v1009 = vunpack.c.h.b16 %v561
      %v1010 = vunpack.c.l.b16 %v562
      %v1011 = vunpack.c.h.b16 %v562
      %v1012 = vunpack.c.l.b16 %v563
      %v1013 = vunpack.c.h.b16 %v563
      %v1014 = vunpack.c.l.b16 %v564
      %v1015 = vunpack.c.h.b16 %v564
      %v1016 = vunpack.c.l.b16 %v565
      %v1017 = vunpack.c.h.b16 %v565
      %v1018 = vunpack.c.l.b16 %v566
      %v1019 = vunpack.c.h.b16 %v566
      %v1020 = vunpack.c.l.b16 %v567
      %v1021 = vunpack.c.h.b16 %v567
      %v1022 = vunpack.c.l.b16 %v568
      %v1023 = vunpack.c.h.b16 %v568
      %v1024 = vunpack.c.l.b16 %v569
      %v1025 = vunpack.c.h.b16 %v569
      %v1026 = vunpack.c.l.b16 %v570
      %v1027 = vunpack.c.h.b16 %v570
      %v1028 = vunpack.c.l.b16 %v571
      %v1029 = vunpack.c.h.b16 %v571
      %v1030 = vunpack.c.l.b16 %v572
      %v1031 = vunpack.c.h.b16 %v572
      %v1032 = vunpack.c.l.b16 %v573
      %v1033 = vunpack.c.h.b16 %v573
      %v1034 = vunpack.c.l.b16 %v574
      %v1035 = vunpack.c.h.b16 %v574
      %v1036 = vunpack.c.l.b16 %v575
      %v1037 = vunpack.c.h.b16 %v575
      %v1038 = vunpack.c.l.b16 %v576
      %v1039 = vunpack.c.h.b16 %v576
      %v1040 = vunpack.c.l.b16 %v577
      %v1041 = vunpack.c.h.b16 %v577
      %v1042 = vunpack.c.l.b16 %v578
      %v1043 = vunpack.c.h.b16 %v578
      %v1044 = vunpack.c.l.b16 %v579
      %v1045 = vunpack.c.h.b16 %v579
      %v1046 = vunpack.c.l.b16 %v580
      %v1047 = vunpack.c.h.b16 %v580
      %v1048 = vunpack.c.l.b16 %v581
      %v1049 = vunpack.c.h.b16 %v581
      %v1050 = vunpack.c.l.b16 %v582
      %v1051 = vunpack.c.h.b16 %v582
      %v1052 = vunpack.c.l.b16 %v583
      %v1053 = vunpack.c.h.b16 %v583
      %v1054 = vunpack.c.l.b16 %v584
      %v1055 = vunpack.c.h.b16 %v584
      %v1056 = vunpack.c.l.b16 %v585
      %v1057 = vunpack.c.h.b16 %v585
      %v1058 = vunpack.c.l.b16 %v586
      %v1059 = vunpack.c.h.b16 %v586
      %v1060 = vunpack.c.l.b16 %v587
      %v1061 = vunpack.c.h.b16 %v587
      %v1062 = vunpack.c.l.b16 %v588
      %v1063 = vunpack.c.h.b16 %v588
      %v1064 = vunpack.c.l.b16 %v589
      %v1065 = vunpack.c.h.b16 %v589
      %v1066 = vunpack.c.l.b16 %v590
      %v1067 = vunpack.c.h.b16 %v590
      %v1068 = vunpack.c.l.b16 %v591
      %v1069 = vunpack.c.h.b16 %v591
      %v1070 = vunpack.c.l.b16 %v592
      %v1071 = vunpack.c.h.b16 %v592
      %v1072 = vunpack.c.l.b16 %v593
      %v1073 = vunpack.c.h.b16 %v593
      %v1074 = vunpack.c.l.b16 %v594
      %v1075 = vunpack.c.h.b16 %v594
      %v1076 = vunpack.c.l.b16 %v595
      %v1077 = vunpack.c.h.b16 %v595
      %v1078 = vunpack.c.l.b16 %v596
      %v1079 = vunpack.c.h.b16 %v596
      %v1080 = vunpack.c.l.b16 %v597
      %v1081 = vunpack.c.h.b16 %v597
      %v1082 = vunpack.c.l.b16 %v598
      %v1083 = vunpack.c.h.b16 %v598
      %v1084 = vunpack.c.l.b16 %v599
      %v1085 = vunpack.c.h.b16 %v599
      %v1086 = vunpack.c.l.b16 %v600
      %v1087 = vunpack.c.h.b16 %v600
      %v1088 = vunpack.c.l.b16 %v601
      %v1089 = vunpack.c.h.b16 %v601
      %v1090 = vunpack.c.l.b16 %v602
      %v1091 = vunpack.c.h.b16 %v602
      %v1092 = vunpack.c.l.b16 %v603
      %v1093 = vunpack.c.h.b16 %v603
      %v1094 = vunpack.c.l.b16 %v604
      %v1095 = vunpack.c.h.b16 %v604
      %v1096 = vunpack.c.l.b16 %v605
      %v1097 = vunpack.c.h.b16 %v605
      %v1098 = vunpack.c.l.b16 %v606
      %v1099 = vunpack.c.h.b16 %v606
      %v1100 = vunpack.c.l.b16 %v607
      %v1101 = vunpack.c.h.b16 %v607
      %v1102 = vunpack.c.l.b16 %v608
      %v1103 = vunpack.c.h.b16 %v608
      %v1104 = vunpack.c.l.b16 %v609
      %v1105 = vunpack.c.h.b16 %v609
      %v1106 = vunpack.c.l.b16 %v610
      %v1107 = vunpack.c.h.b16 %v610
      %v1108 = vunpack.c.l.b16 %v611
      %v1109 = vunpack.c.h.b16 %v611
      %v1110 = vunpack.c.l.b16 %v612
      %v1111 = vunpack.c.h.b16 %v612
      %v1112 = vunpack.c.l.b16 %v613
      %v1113 = vunpack.c.h.b16 %v613
      %v1114 = vunpack.c.l.b16 %v614
      %v1115 = vunpack.c.h.b16 %v614
      %v1116 = vunpack.c.l.b16 %v615
      %v1117 = vunpack.c.h.b16 %v615
      %v1118 = vunpack.c.l.b16 %v616
      %v1119 = vunpack.c.h.b16 %v616
      %v1120 = vunpack.c.l.b16 %v617
      %v1121 = vunpack.c.h.b16 %v617
      %v1122 = vunpack.c.l.b16 %v618
      %v1123 = vunpack.c.h.b16 %v618
      %v1124 = vunpack.c.l.b16 %v619
      %v1125 = vunpack.c.h.b16 %v619
      %v1126 = vunpack.c.l.b16 %v620
      %v1127 = vunpack.c.h.b16 %v620
      %v1128 = vunpack.c.l.b16 %v621
      %v1129 = vunpack.c.h.b16 %v621
      %v1130 = vunpack.c.l.b16 %v622
      %v1131 = vunpack.c.h.b16 %v622
      %v1132 = vunpack.c.l.b16 %v623
      %v1133 = vunpack.c.h.b16 %v623
      %v1134 = vunpack.c.l.b16 %v624
      %v1135 = vunpack.c.h.b16 %v624
      %v1136 = vunpack.c.l.b16 %v625
      %v1137 = vunpack.c.h.b16 %v625
      %v1138 = vunpack.c.l.b16 %v626
      %v1139 = vunpack.c.h.b16 %v626
      %v1140 = vunpack.c.l.b16 %v627
      %v1141 = vunpack.c.h.b16 %v627
      %v1142 = vunpack.c.l.b16 %v628
      %v1143 = vunpack.c.h.b16 %v628
      %v1144 = vunpack.c.l.b16 %v629
      %v1145 = vunpack.c.h.b16 %v629
      %v1146 = vpack.c.b16 %v906, %v890
      %v1147 = vpack.c.b16 %v907, %v891
      %v1148 = vpack.c.b16 %v908, %v892
      %v1149 = vpack.c.b16 %v909, %v893
      %v1150 = vpack.c.b16 %v910, %v894
      %v1151 = vpack.c.b16 %v911, %v895
      %v1152 = vpack.c.b16 %v912, %v896
      %v1153 = vpack.c.b16 %v913, %v897
      %v1154 = vpack.c.b16 %v914, %v898
      %v1155 = vpack.c.b16 %v915, %v899
      %v1156 = vpack.c.b16 %v916, %v900
      %v1157 = vpack.c.b16 %v917, %v901
      %v1158 = vpack.c.b16 %v918, %v902
      %v1159 = vpack.c.b16 %v919, %v903
      %v1160 = vpack.c.b16 %v920, %v904
      %v1161 = vpack.c.b16 %v921, %v905
      %v1162 = vpack.c.b16 %v938, %v922
      %v1163 = vpack.c.b16 %v939, %v923
      %v1164 = vpack.c.b16 %v940, %v924
      %v1165 = vpack.c.b16 %v941, %v925
      %v1166 = vpack.c.b16 %v942, %v926
      %v1167 = vpack.c.b16 %v943, %v927
      %v1168 = vpack.c.b16 %v944, %v928
      %v1169 = vpack.c.b16 %v945, %v929
      %v1170 = vpack.c.b16 %v946, %v930
      %v1171 = vpack.c.b16 %v947, %v931
      %v1172 = vpack.c.b16 %v948, %v932
      %v1173 = vpack.c.b16 %v949, %v933
      %v1174 = vpack.c.b16 %v950, %v934
      %v1175 = vpack.c.b16 %v951, %v935
      %v1176 = vpack.c.b16 %v952, %v936
      %v1177 = vpack.c.b16 %v953, %v937
      %v1178 = vpack.c.b16 %v970, %v954
      %v1179 = vpack.c.b16 %v971, %v955
      %v1180 = vpack.c.b16 %v972, %v956
      %v1181 = vpack.c.b16 %v973, %v957
      %v1182 = vpack.c.b16 %v974, %v958
      %v1183 = vpack.c.b16 %v975, %v959
      %v1184 = vpack.c.b16 %v976, %v960
      %v1185 = vpack.c.b16 %v977, %v961
      %v1186 = vpack.c.b16 %v978, %v962
      %v1187 = vpack.c.b16 %v979, %v963
      %v1188 = vpack.c.b16 %v980, %v964
      %v1189 = vpack.c.b16 %v981, %v965
      %v1190 = vpack.c.b16 %v982, %v966
      %v1191 = vpack.c.b16 %v983, %v967
      %v1192 = vpack.c.b16 %v984, %v968
      %v1193 = vpack.c.b16 %v985, %v969
      %v1194 = vpack.c.b16 %v1002, %v986
      %v1195 = vpack.c.b16 %v1003, %v987
      %v1196 = vpack.c.b16 %v1004, %v988
      %v1197 = vpack.c.b16 %v1005, %v989
      %v1198 = vpack.c.b16 %v1006, %v990
      %v1199 = vpack.c.b16 %v1007, %v991
      %v1200 = vpack.c.b16 %v1008, %v992
      %v1201 = vpack.c.b16 %v1009, %v993
      %v1202 = vpack.c.b16 %v1010, %v994
      %v1203 = vpack.c.b16 %v1011, %v995
      %v1204 = vpack.c.b16 %v1012, %v996
      %v1205 = vpack.c.b16 %v1013, %v997
      %v1206 = vpack.c.b16 %v1014, %v998
      %v1207 = vpack.c.b16 %v1015, %v999
      %v1208 = vpack.c.b16 %v1016, %v1000
      %v1209 = vpack.c.b16 %v1017, %v1001
      %v1210 = vpack.c.b16 %v1034, %v1018
      %v1211 = vpack.c.b16 %v1035, %v1019
      %v1212 = vpack.c.b16 %v1036, %v1020
      %v1213 = vpack.c.b16 %v1037, %v1021
      %v1214 = vpack.c.b16 %v1038, %v1022
      %v1215 = vpack.c.b16 %v1039, %v1023
      %v1216 = vpack.c.b16 %v1040, %v1024
      %v1217 = vpack.c.b16 %v1041, %v1025
      %v1218 = vpack.c.b16 %v1042, %v1026
      %v1219 = vpack.c.b16 %v1043, %v1027
      %v1220 = vpack.c.b16 %v1044, %v1028
      %v1221 = vpack.c.b16 %v1045, %v1029
      %v1222 = vpack.c.b16 %v1046, %v1030
      %v1223 = vpack.c.b16 %v1047, %v1031
      %v1224 = vpack.c.b16 %v1048, %v1032
      %v1225 = vpack.c.b16 %v1049, %v1033
      %v1226 = vpack.c.b16 %v1066, %v1050
      %v1227 = vpack.c.b16 %v1067, %v1051
      %v1228 = vpack.c.b16 %v1068, %v1052
      %v1229 = vpack.c.b16 %v1069, %v1053
      %v1230 = vpack.c.b16 %v1070, %v1054
      %v1231 = vpack.c.b16 %v1071, %v1055
      %v1232 = vpack.c.b16 %v1072, %v1056
      %v1233 = vpack.c.b16 %v1073, %v1057
      %v1234 = vpack.c.b16 %v1074, %v1058
      %v1235 = vpack.c.b16 %v1075, %v1059
      %v1236 = vpack.c.b16 %v1076, %v1060
      %v1237 = vpack.c.b16 %v1077, %v1061
      %v1238 = vpack.c.b16 %v1078, %v1062
      %v1239 = vpack.c.b16 %v1079, %v1063
      %v1240 = vpack.c.b16 %v1080, %v1064
      %v1241 = vpack.c.b16 %v1081, %v1065
      %v1242 = vpack.c.b16 %v1098, %v1082
      %v1243 = vpack.c.b16 %v1099, %v1083
      %v1244 = vpack.c.b16 %v1100, %v1084
      %v1245 = vpack.c.b16 %v1101, %v1085
      %v1246 = vpack.c.b16 %v1102, %v1086
      %v1247 = vpack.c.b16 %v1103, %v1087
      %v1248 = vpack.c.b16 %v1104, %v1088
      %v1249 = vpack.c.b16 %v1105, %v1089
      %v1250 = vpack.c.b16 %v1106, %v1090
      %v1251 = vpack.c.b16 %v1107, %v1091
      %v1252 = vpack.c.b16 %v1108, %v1092
      %v1253 = vpack.c.b16 %v1109, %v1093
      %v1254 = vpack.c.b16 %v1110, %v1094
      %v1255 = vpack.c.b16 %v1111, %v1095
      %v1256 = vpack.c.b16 %v1112, %v1096
      %v1257 = vpack.c.b16 %v1113, %v1097
      %v1258 = vpack.c.b16 %v1130, %v1114
      %v1259 = vpack.c.b16 %v1131, %v1115
      %v1260 = vpack.c.b16 %v1132, %v1116
      %v1261 = vpack.c.b16 %v1133, %v1117
      %v1262 = vpack.c.b16 %v1134, %v1118
      %v1263 = vpack.c.b16 %v1135, %v1119
      %v1264 = vpack.c.b16 %v1136, %v1120
      %v1265 = vpack.c.b16 %v1137, %v1121
      %v1266 = vpack.c.b16 %v1138, %v1122
      %v1267 = vpack.c.b16 %v1139, %v1123
      %v1268 = vpack.c.b16 %v1140, %v1124
      %v1269 = vpack.c.b16 %v1141, %v1125
      %v1270 = vpack.c.b16 %v1142, %v1126
      %v1271 = vpack.c.b16 %v1143, %v1127
      %v1272 = vpack.c.b16 %v1144, %v1128
      %v1273 = vpack.c.b16 %v1145, %v1129
      %1402 = vmatprep.subr.bf16.mxu0 %v1259
      %1403 = vmatpush1.bf16.msra.mxu0 %v1258
      %1404 = vmatprep.subr.bf16.mxu0 %v1243
      %1405 = vmatpush1.bf16.msra.mxu0 %v1242
      %1406 = vmatprep.subr.bf16.mxu0 %v1227
      %1407 = vmatpush1.bf16.msra.mxu0 %v1226
      %1408 = vmatprep.subr.bf16.mxu0 %v1211
      %1409 = vmatpush1.bf16.msra.mxu0 %v1210
      %1410 = vmatprep.subr.bf16.mxu0 %v1195
      %1411 = vmatpush1.bf16.msra.mxu0 %v1194
      %1412 = vmatprep.subr.bf16.mxu0 %v1179
      %1413 = vmatpush1.bf16.msra.mxu0 %v1178
      %1414 = vmatprep.subr.bf16.mxu0 %v1163
      %1415 = vmatpush1.bf16.msra.mxu0 %v1162
      %1416 = vmatprep.subr.bf16.mxu0 %v1147
      %1417 = vmatpush1.bf16.msra.mxu0 %v1146
      %1418 = vmatprep.subr.bf16.mxu0 0
      %1419 = vmatpush2.bf16.msra.mxu0 0
      %1420 = vmatprep.subr.bf16.mxu0 0
      %1421 = vmatpush2.bf16.msra.mxu0 0
      %1422 = vmatprep.subr.bf16.mxu0 0
      %1423 = vmatpush2.bf16.msra.mxu0 0
      %1424 = vmatprep.subr.bf16.mxu0 0
      %1425 = vmatpush2.bf16.msra.mxu0 0
      %1426 = vmatprep.subr.bf16.mxu0 0
      %1427 = vmatpush2.bf16.msra.mxu0 0
      %1428 = vmatprep.subr.bf16.mxu0 0
      %1429 = vmatpush2.bf16.msra.mxu0 0
      %1430 = vmatprep.subr.bf16.mxu0 0
      %1431 = vmatpush2.bf16.msra.mxu0 0
      %1432 = vmatprep.subr.bf16.mxu0 0
      %1433 = vmatpush2.bf16.msra.mxu0 0
      %1434 = vmatprep.mubr.bf16.mxu0 0
      %1435 = vmatmul.mubr.bf16.gmra.mxu0 %v746
      %v1436 = vpop.f32.mrf.mxu0
      %v1437 = vadd.f32 %v637, %v1436
      %v1438 = vpop.f32.mrf.mxu0
      %v1439 = vadd.f32 %v641, %v1438
      %v1440 = vpop.f32.mrf.mxu0
      %v1441 = vadd.f32 %v637, %v1440
      %v1442 = vpop.f32.mrf.mxu0
      %v1443 = vadd.f32 %v641, %v1442
      %1444 = vmatprep.mubr.bf16.mxu0 0
      %1445 = vmatmul.mubr.bf16.gmra.mxu0 %v747
      %v1446 = vpop.f32.mrf.mxu0
      %v1447 = vadd.f32 %v637, %v1446
      %v1448 = vpop.f32.mrf.mxu0
      %v1449 = vadd.f32 %v641, %v1448
      %v1450 = vpop.f32.mrf.mxu0
      %v1451 = vadd.f32 %v637, %v1450
      %v1452 = vpop.f32.mrf.mxu0
      %v1453 = vadd.f32 %v641, %v1452
      %1454 = vmatprep.mubr.bf16.mxu0 0
      %1455 = vmatmul.mubr.bf16.gmra.mxu0 %v748
      %v1456 = vpop.f32.mrf.mxu0
      %v1457 = vadd.f32 %v637, %v1456
      %v1458 = vpop.f32.mrf.mxu0
      %v1459 = vadd.f32 %v641, %v1458
      %v1460 = vpop.f32.mrf.mxu0
      %v1461 = vadd.f32 %v637, %v1460
      %v1462 = vpop.f32.mrf.mxu0
      %v1463 = vadd.f32 %v641, %v1462
      %1464 = vmatprep.mubr.bf16.mxu0 0
      %1465 = vmatmul.mubr.bf16.gmra.mxu0 %v749
      %v1466 = vpop.f32.mrf.mxu0
      %v1467 = vadd.f32 %v637, %v1466
      %v1468 = vpop.f32.mrf.mxu0
      %v1469 = vadd.f32 %v641, %v1468
      %v1470 = vpop.f32.mrf.mxu0
      %v1471 = vadd.f32 %v637, %v1470
      %v1472 = vpop.f32.mrf.mxu0
      %v1473 = vadd.f32 %v641, %v1472
      %1474 = vmatprep.mubr.bf16.mxu0 0
      %1475 = vmatmul.mubr.bf16.gmra.mxu0 %v750
      %v1476 = vpop.f32.mrf.mxu0
      %v1477 = vadd.f32 %v637, %v1476
      %v1478 = vpop.f32.mrf.mxu0
      %v1479 = vadd.f32 %v641, %v1478
      %v1480 = vpop.f32.mrf.mxu0
      %v1481 = vadd.f32 %v637, %v1480
      %v1482 = vpop.f32.mrf.mxu0
      %v1483 = vadd.f32 %v641, %v1482
      %1484 = vmatprep.mubr.bf16.mxu0 0
      %1485 = vmatmul.mubr.bf16.gmra.mxu0 %v751
      %v1486 = vpop.f32.mrf.mxu0
      %v1487 = vadd.f32 %v637, %v1486
      %v1488 = vpop.f32.mrf.mxu0
      %v1489 = vadd.f32 %v641, %v1488
      %v1490 = vpop.f32.mrf.mxu0
      %v1491 = vadd.f32 %v637, %v1490
      %v1492 = vpop.f32.mrf.mxu0
      %v1493 = vadd.f32 %v641, %v1492
      %1494 = vmatprep.mubr.bf16.mxu0 0
      %1495 = vmatmul.mubr.bf16.gmra.mxu0 %v752
      %v1496 = vpop.f32.mrf.mxu0
      %v1497 = vadd.f32 %v637, %v1496
      %v1498 = vpop.f32.mrf.mxu0
      %v1499 = vadd.f32 %v641, %v1498
      %v1500 = vpop.f32.mrf.mxu0
      %v1501 = vadd.f32 %v637, %v1500
      %v1502 = vpop.f32.mrf.mxu0
      %v1503 = vadd.f32 %v641, %v1502
      %1504 = vmatprep.mubr.bf16.mxu0 0
      %1505 = vmatmul.mubr.bf16.gmra.mxu0 %v753
      %v1506 = vpop.f32.mrf.mxu0
      %v1507 = vadd.f32 %v637, %v1506
      %v1508 = vpop.f32.mrf.mxu0
      %v1509 = vadd.f32 %v641, %v1508
      %v1510 = vpop.f32.mrf.mxu0
      %v1511 = vadd.f32 %v637, %v1510
      %v1512 = vpop.f32.mrf.mxu0
      %v1513 = vadd.f32 %v641, %v1512
      %1514 = vdwg.mxu0
      %1515 = vmatprep.subr.bf16.mxu0 %v1261
      %1516 = vmatpush1.bf16.msra.mxu0 %v1260
      %1517 = vmatprep.subr.bf16.mxu0 %v1245
      %1518 = vmatpush1.bf16.msra.mxu0 %v1244
      %1519 = vmatprep.subr.bf16.mxu0 %v1229
      %1520 = vmatpush1.bf16.msra.mxu0 %v1228
      %1521 = vmatprep.subr.bf16.mxu0 %v1213
      %1522 = vmatpush1.bf16.msra.mxu0 %v1212
      %1523 = vmatprep.subr.bf16.mxu0 %v1197
      %1524 = vmatpush1.bf16.msra.mxu0 %v1196
      %1525 = vmatprep.subr.bf16.mxu0 %v1181
      %1526 = vmatpush1.bf16.msra.mxu0 %v1180
      %1527 = vmatprep.subr.bf16.mxu0 %v1165
      %1528 = vmatpush1.bf16.msra.mxu0 %v1164
      %1529 = vmatprep.subr.bf16.mxu0 %v1149
      %1530 = vmatpush1.bf16.msra.mxu0 %v1148
      %1531 = vmatprep.subr.bf16.mxu0 0
      %1532 = vmatpush2.bf16.msra.mxu0 0
      %1533 = vmatprep.subr.bf16.mxu0 0
      %1534 = vmatpush2.bf16.msra.mxu0 0
      %1535 = vmatprep.subr.bf16.mxu0 0
      %1536 = vmatpush2.bf16.msra.mxu0 0
      %1537 = vmatprep.subr.bf16.mxu0 0
      %1538 = vmatpush2.bf16.msra.mxu0 0
      %1539 = vmatprep.subr.bf16.mxu0 0
      %1540 = vmatpush2.bf16.msra.mxu0 0
      %1541 = vmatprep.subr.bf16.mxu0 0
      %1542 = vmatpush2.bf16.msra.mxu0 0
      %1543 = vmatprep.subr.bf16.mxu0 0
      %1544 = vmatpush2.bf16.msra.mxu0 0
      %1545 = vmatprep.subr.bf16.mxu0 0
      %1546 = vmatpush2.bf16.msra.mxu0 0
      %1547 = vmatprep.mubr.bf16.mxu0 0
      %1548 = vmatmul.mubr.bf16.gmra.mxu0 %v746
      %v1549 = vpop.f32.mrf.mxu0
      %v1550 = vadd.f32 %v645, %v1549
      %v1551 = vpop.f32.mrf.mxu0
      %v1552 = vadd.f32 %v649, %v1551
      %v1553 = vpop.f32.mrf.mxu0
      %v1554 = vadd.f32 %v645, %v1553
      %v1555 = vpop.f32.mrf.mxu0
      %v1556 = vadd.f32 %v649, %v1555
      %1557 = vmatprep.mubr.bf16.mxu0 0
      %1558 = vmatmul.mubr.bf16.gmra.mxu0 %v747
      %v1559 = vpop.f32.mrf.mxu0
      %v1560 = vadd.f32 %v645, %v1559
      %v1561 = vpop.f32.mrf.mxu0
      %v1562 = vadd.f32 %v649, %v1561
      %v1563 = vpop.f32.mrf.mxu0
      %v1564 = vadd.f32 %v645, %v1563
      %v1565 = vpop.f32.mrf.mxu0
      %v1566 = vadd.f32 %v649, %v1565
      %1567 = vmatprep.mubr.bf16.mxu0 0
      %1568 = vmatmul.mubr.bf16.gmra.mxu0 %v748
      %v1569 = vpop.f32.mrf.mxu0
      %v1570 = vadd.f32 %v645, %v1569
      %v1571 = vpop.f32.mrf.mxu0
      %v1572 = vadd.f32 %v649, %v1571
      %v1573 = vpop.f32.mrf.mxu0
      %v1574 = vadd.f32 %v645, %v1573
      %v1575 = vpop.f32.mrf.mxu0
      %v1576 = vadd.f32 %v649, %v1575
      %1577 = vmatprep.mubr.bf16.mxu0 0
      %1578 = vmatmul.mubr.bf16.gmra.mxu0 %v749
      %v1579 = vpop.f32.mrf.mxu0
      %v1580 = vadd.f32 %v645, %v1579
      %v1581 = vpop.f32.mrf.mxu0
      %v1582 = vadd.f32 %v649, %v1581
      %v1583 = vpop.f32.mrf.mxu0
      %v1584 = vadd.f32 %v645, %v1583
      %v1585 = vpop.f32.mrf.mxu0
      %v1586 = vadd.f32 %v649, %v1585
      %1587 = vmatprep.mubr.bf16.mxu0 0
      %1588 = vmatmul.mubr.bf16.gmra.mxu0 %v750
      %v1589 = vpop.f32.mrf.mxu0
      %v1590 = vadd.f32 %v645, %v1589
      %v1591 = vpop.f32.mrf.mxu0
      %v1592 = vadd.f32 %v649, %v1591
      %v1593 = vpop.f32.mrf.mxu0
      %v1594 = vadd.f32 %v645, %v1593
      %v1595 = vpop.f32.mrf.mxu0
      %v1596 = vadd.f32 %v649, %v1595
      %1597 = vmatprep.mubr.bf16.mxu0 0
      %1598 = vmatmul.mubr.bf16.gmra.mxu0 %v751
      %v1599 = vpop.f32.mrf.mxu0
      %v1600 = vadd.f32 %v645, %v1599
      %v1601 = vpop.f32.mrf.mxu0
      %v1602 = vadd.f32 %v649, %v1601
      %v1603 = vpop.f32.mrf.mxu0
      %v1604 = vadd.f32 %v645, %v1603
      %v1605 = vpop.f32.mrf.mxu0
      %v1606 = vadd.f32 %v649, %v1605
      %1607 = vmatprep.mubr.bf16.mxu0 0
      %1608 = vmatmul.mubr.bf16.gmra.mxu0 %v752
      %v1609 = vpop.f32.mrf.mxu0
      %v1610 = vadd.f32 %v645, %v1609
      %v1611 = vpop.f32.mrf.mxu0
      %v1612 = vadd.f32 %v649, %v1611
      %v1613 = vpop.f32.mrf.mxu0
      %v1614 = vadd.f32 %v645, %v1613
      %v1615 = vpop.f32.mrf.mxu0
      %v1616 = vadd.f32 %v649, %v1615
      %1617 = vmatprep.mubr.bf16.mxu0 0
      %1618 = vmatmul.mubr.bf16.gmra.mxu0 %v753
      %v1619 = vpop.f32.mrf.mxu0
      %v1620 = vadd.f32 %v645, %v1619
      %v1621 = vpop.f32.mrf.mxu0
      %v1622 = vadd.f32 %v649, %v1621
      %v1623 = vpop.f32.mrf.mxu0
      %v1624 = vadd.f32 %v645, %v1623
      %v1625 = vpop.f32.mrf.mxu0
      %v1626 = vadd.f32 %v649, %v1625
      %1627 = vdwg.mxu0
      %1628 = vmatprep.subr.bf16.mxu0 %v1263
      %1629 = vmatpush1.bf16.msra.mxu0 %v1262
      %1630 = vmatprep.subr.bf16.mxu0 %v1247
      %1631 = vmatpush1.bf16.msra.mxu0 %v1246
      %1632 = vmatprep.subr.bf16.mxu0 %v1231
      %1633 = vmatpush1.bf16.msra.mxu0 %v1230
      %1634 = vmatprep.subr.bf16.mxu0 %v1215
      %1635 = vmatpush1.bf16.msra.mxu0 %v1214
      %1636 = vmatprep.subr.bf16.mxu0 %v1199
      %1637 = vmatpush1.bf16.msra.mxu0 %v1198
      %1638 = vmatprep.subr.bf16.mxu0 %v1183
      %1639 = vmatpush1.bf16.msra.mxu0 %v1182
      %1640 = vmatprep.subr.bf16.mxu0 %v1167
      %1641 = vmatpush1.bf16.msra.mxu0 %v1166
      %1642 = vmatprep.subr.bf16.mxu0 %v1151
      %1643 = vmatpush1.bf16.msra.mxu0 %v1150
      %1644 = vmatprep.subr.bf16.mxu0 0
      %1645 = vmatpush2.bf16.msra.mxu0 0
      %1646 = vmatprep.subr.bf16.mxu0 0
      %1647 = vmatpush2.bf16.msra.mxu0 0
      %1648 = vmatprep.subr.bf16.mxu0 0
      %1649 = vmatpush2.bf16.msra.mxu0 0
      %1650 = vmatprep.subr.bf16.mxu0 0
      %1651 = vmatpush2.bf16.msra.mxu0 0
      %1652 = vmatprep.subr.bf16.mxu0 0
      %1653 = vmatpush2.bf16.msra.mxu0 0
      %1654 = vmatprep.subr.bf16.mxu0 0
      %1655 = vmatpush2.bf16.msra.mxu0 0
      %1656 = vmatprep.subr.bf16.mxu0 0
      %1657 = vmatpush2.bf16.msra.mxu0 0
      %1658 = vmatprep.subr.bf16.mxu0 0
      %1659 = vmatpush2.bf16.msra.mxu0 0
      %1660 = vmatprep.mubr.bf16.mxu0 0
      %1661 = vmatmul.mubr.bf16.gmra.mxu0 %v746
      %v1662 = vpop.f32.mrf.mxu0
      %v1663 = vadd.f32 %v653, %v1662
      %v1664 = vpop.f32.mrf.mxu0
      %v1665 = vadd.f32 %v657, %v1664
      %v1666 = vpop.f32.mrf.mxu0
      %v1667 = vadd.f32 %v653, %v1666
      %v1668 = vpop.f32.mrf.mxu0
      %v1669 = vadd.f32 %v657, %v1668
      %1670 = vmatprep.mubr.bf16.mxu0 0
      %1671 = vmatmul.mubr.bf16.gmra.mxu0 %v747
      %v1672 = vpop.f32.mrf.mxu0
      %v1673 = vadd.f32 %v653, %v1672
      %v1674 = vpop.f32.mrf.mxu0
      %v1675 = vadd.f32 %v657, %v1674
      %v1676 = vpop.f32.mrf.mxu0
      %v1677 = vadd.f32 %v653, %v1676
      %v1678 = vpop.f32.mrf.mxu0
      %v1679 = vadd.f32 %v657, %v1678
      %1680 = vmatprep.mubr.bf16.mxu0 0
      %1681 = vmatmul.mubr.bf16.gmra.mxu0 %v748
      %v1682 = vpop.f32.mrf.mxu0
      %v1683 = vadd.f32 %v653, %v1682
      %v1684 = vpop.f32.mrf.mxu0
      %v1685 = vadd.f32 %v657, %v1684
      %v1686 = vpop.f32.mrf.mxu0
      %v1687 = vadd.f32 %v653, %v1686
      %v1688 = vpop.f32.mrf.mxu0
      %v1689 = vadd.f32 %v657, %v1688
      %1690 = vmatprep.mubr.bf16.mxu0 0
      %1691 = vmatmul.mubr.bf16.gmra.mxu0 %v749
      %v1692 = vpop.f32.mrf.mxu0
      %v1693 = vadd.f32 %v653, %v1692
      %v1694 = vpop.f32.mrf.mxu0
      %v1695 = vadd.f32 %v657, %v1694
      %v1696 = vpop.f32.mrf.mxu0
      %v1697 = vadd.f32 %v653, %v1696
      %v1698 = vpop.f32.mrf.mxu0
      %v1699 = vadd.f32 %v657, %v1698
      %1700 = vmatprep.mubr.bf16.mxu0 0
      %1701 = vmatmul.mubr.bf16.gmra.mxu0 %v750
      %v1702 = vpop.f32.mrf.mxu0
      %v1703 = vadd.f32 %v653, %v1702
      %v1704 = vpop.f32.mrf.mxu0
      %v1705 = vadd.f32 %v657, %v1704
      %v1706 = vpop.f32.mrf.mxu0
      %v1707 = vadd.f32 %v653, %v1706
      %v1708 = vpop.f32.mrf.mxu0
      %v1709 = vadd.f32 %v657, %v1708
      %1710 = vmatprep.mubr.bf16.mxu0 0
      %1711 = vmatmul.mubr.bf16.gmra.mxu0 %v751
      %v1712 = vpop.f32.mrf.mxu0
      %v1713 = vadd.f32 %v653, %v1712
      %v1714 = vpop.f32.mrf.mxu0
      %v1715 = vadd.f32 %v657, %v1714
      %v1716 = vpop.f32.mrf.mxu0
      %v1717 = vadd.f32 %v653, %v1716
      %v1718 = vpop.f32.mrf.mxu0
      %v1719 = vadd.f32 %v657, %v1718
      %1720 = vmatprep.mubr.bf16.mxu0 0
      %1721 = vmatmul.mubr.bf16.gmra.mxu0 %v752
      %v1722 = vpop.f32.mrf.mxu0
      %v1723 = vadd.f32 %v653, %v1722
      %v1724 = vpop.f32.mrf.mxu0
      %v1725 = vadd.f32 %v657, %v1724
      %v1726 = vpop.f32.mrf.mxu0
      %v1727 = vadd.f32 %v653, %v1726
      %v1728 = vpop.f32.mrf.mxu0
      %v1729 = vadd.f32 %v657, %v1728
      %1730 = vmatprep.mubr.bf16.mxu0 0
      %1731 = vmatmul.mubr.bf16.gmra.mxu0 %v753
      %v1732 = vpop.f32.mrf.mxu0
      %v1733 = vadd.f32 %v653, %v1732
      %v1734 = vpop.f32.mrf.mxu0
      %v1735 = vadd.f32 %v657, %v1734
      %v1736 = vpop.f32.mrf.mxu0
      %v1737 = vadd.f32 %v653, %v1736
      %v1738 = vpop.f32.mrf.mxu0
      %v1739 = vadd.f32 %v657, %v1738
      %1740 = vdwg.mxu0
      %1741 = vmatprep.subr.bf16.mxu0 %v1265
      %1742 = vmatpush1.bf16.msra.mxu0 %v1264
      %1743 = vmatprep.subr.bf16.mxu0 %v1249
      %1744 = vmatpush1.bf16.msra.mxu0 %v1248
      %1745 = vmatprep.subr.bf16.mxu0 %v1233
      %1746 = vmatpush1.bf16.msra.mxu0 %v1232
      %1747 = vmatprep.subr.bf16.mxu0 %v1217
      %1748 = vmatpush1.bf16.msra.mxu0 %v1216
      %1749 = vmatprep.subr.bf16.mxu0 %v1201
      %1750 = vmatpush1.bf16.msra.mxu0 %v1200
      %1751 = vmatprep.subr.bf16.mxu0 %v1185
      %1752 = vmatpush1.bf16.msra.mxu0 %v1184
      %1753 = vmatprep.subr.bf16.mxu0 %v1169
      %1754 = vmatpush1.bf16.msra.mxu0 %v1168
      %1755 = vmatprep.subr.bf16.mxu0 %v1153
      %1756 = vmatpush1.bf16.msra.mxu0 %v1152
      %1757 = vmatprep.subr.bf16.mxu0 0
      %1758 = vmatpush2.bf16.msra.mxu0 0
      %1759 = vmatprep.subr.bf16.mxu0 0
      %1760 = vmatpush2.bf16.msra.mxu0 0
      %1761 = vmatprep.subr.bf16.mxu0 0
      %1762 = vmatpush2.bf16.msra.mxu0 0
      %1763 = vmatprep.subr.bf16.mxu0 0
      %1764 = vmatpush2.bf16.msra.mxu0 0
      %1765 = vmatprep.subr.bf16.mxu0 0
      %1766 = vmatpush2.bf16.msra.mxu0 0
      %1767 = vmatprep.subr.bf16.mxu0 0
      %1768 = vmatpush2.bf16.msra.mxu0 0
      %1769 = vmatprep.subr.bf16.mxu0 0
      %1770 = vmatpush2.bf16.msra.mxu0 0
      %1771 = vmatprep.subr.bf16.mxu0 0
      %1772 = vmatpush2.bf16.msra.mxu0 0
      %1773 = vmatprep.mubr.bf16.mxu0 0
      %1774 = vmatmul.mubr.bf16.gmra.mxu0 %v746
      %v1775 = vpop.f32.mrf.mxu0
      %v1776 = vadd.f32 %v661, %v1775
      %v1777 = vpop.f32.mrf.mxu0
      %v1778 = vadd.f32 %v665, %v1777
      %v1779 = vpop.f32.mrf.mxu0
      %v1780 = vadd.f32 %v661, %v1779
      %v1781 = vpop.f32.mrf.mxu0
      %v1782 = vadd.f32 %v665, %v1781
      %1783 = vmatprep.mubr.bf16.mxu0 0
      %1784 = vmatmul.mubr.bf16.gmra.mxu0 %v747
      %v1785 = vpop.f32.mrf.mxu0
      %v1786 = vadd.f32 %v661, %v1785
      %v1787 = vpop.f32.mrf.mxu0
      %v1788 = vadd.f32 %v665, %v1787
      %v1789 = vpop.f32.mrf.mxu0
      %v1790 = vadd.f32 %v661, %v1789
      %v1791 = vpop.f32.mrf.mxu0
      %v1792 = vadd.f32 %v665, %v1791
      %1793 = vmatprep.mubr.bf16.mxu0 0
      %1794 = vmatmul.mubr.bf16.gmra.mxu0 %v748
      %v1795 = vpop.f32.mrf.mxu0
      %v1796 = vadd.f32 %v661, %v1795
      %v1797 = vpop.f32.mrf.mxu0
      %v1798 = vadd.f32 %v665, %v1797
      %v1799 = vpop.f32.mrf.mxu0
      %v1800 = vadd.f32 %v661, %v1799
      %v1801 = vpop.f32.mrf.mxu0
      %v1802 = vadd.f32 %v665, %v1801
      %1803 = vmatprep.mubr.bf16.mxu0 0
      %1804 = vmatmul.mubr.bf16.gmra.mxu0 %v749
      %v1805 = vpop.f32.mrf.mxu0
      %v1806 = vadd.f32 %v661, %v1805
      %v1807 = vpop.f32.mrf.mxu0
      %v1808 = vadd.f32 %v665, %v1807
      %v1809 = vpop.f32.mrf.mxu0
      %v1810 = vadd.f32 %v661, %v1809
      %v1811 = vpop.f32.mrf.mxu0
      %v1812 = vadd.f32 %v665, %v1811
      %1813 = vmatprep.mubr.bf16.mxu0 0
      %1814 = vmatmul.mubr.bf16.gmra.mxu0 %v750
      %v1815 = vpop.f32.mrf.mxu0
      %v1816 = vadd.f32 %v661, %v1815
      %v1817 = vpop.f32.mrf.mxu0
      %v1818 = vadd.f32 %v665, %v1817
      %v1819 = vpop.f32.mrf.mxu0
      %v1820 = vadd.f32 %v661, %v1819
      %v1821 = vpop.f32.mrf.mxu0
      %v1822 = vadd.f32 %v665, %v1821
      %1823 = vmatprep.mubr.bf16.mxu0 0
      %1824 = vmatmul.mubr.bf16.gmra.mxu0 %v751
      %v1825 = vpop.f32.mrf.mxu0
      %v1826 = vadd.f32 %v661, %v1825
      %v1827 = vpop.f32.mrf.mxu0
      %v1828 = vadd.f32 %v665, %v1827
      %v1829 = vpop.f32.mrf.mxu0
      %v1830 = vadd.f32 %v661, %v1829
      %v1831 = vpop.f32.mrf.mxu0
      %v1832 = vadd.f32 %v665, %v1831
      %1833 = vmatprep.mubr.bf16.mxu0 0
      %1834 = vmatmul.mubr.bf16.gmra.mxu0 %v752
      %v1835 = vpop.f32.mrf.mxu0
      %v1836 = vadd.f32 %v661, %v1835
      %v1837 = vpop.f32.mrf.mxu0
      %v1838 = vadd.f32 %v665, %v1837
      %v1839 = vpop.f32.mrf.mxu0
      %v1840 = vadd.f32 %v661, %v1839
      %v1841 = vpop.f32.mrf.mxu0
      %v1842 = vadd.f32 %v665, %v1841
      %1843 = vmatprep.mubr.bf16.mxu0 0
      %1844 = vmatmul.mubr.bf16.gmra.mxu0 %v753
      %v1845 = vpop.f32.mrf.mxu0
      %v1846 = vadd.f32 %v661, %v1845
      %v1847 = vpop.f32.mrf.mxu0
      %v1848 = vadd.f32 %v665, %v1847
      %v1849 = vpop.f32.mrf.mxu0
      %v1850 = vadd.f32 %v661, %v1849
      %v1851 = vpop.f32.mrf.mxu0
      %v1852 = vadd.f32 %v665, %v1851
      %1853 = vdwg.mxu0
      %1854 = vmatprep.subr.bf16.mxu0 %v1267
      %1855 = vmatpush1.bf16.msra.mxu0 %v1266
      %1856 = vmatprep.subr.bf16.mxu0 %v1251
      %1857 = vmatpush1.bf16.msra.mxu0 %v1250
      %1858 = vmatprep.subr.bf16.mxu0 %v1235
      %1859 = vmatpush1.bf16.msra.mxu0 %v1234
      %1860 = vmatprep.subr.bf16.mxu0 %v1219
      %1861 = vmatpush1.bf16.msra.mxu0 %v1218
      %1862 = vmatprep.subr.bf16.mxu0 %v1203
      %1863 = vmatpush1.bf16.msra.mxu0 %v1202
      %1864 = vmatprep.subr.bf16.mxu0 %v1187
      %1865 = vmatpush1.bf16.msra.mxu0 %v1186
      %1866 = vmatprep.subr.bf16.mxu0 %v1171
      %1867 = vmatpush1.bf16.msra.mxu0 %v1170
      %1868 = vmatprep.subr.bf16.mxu0 %v1155
      %1869 = vmatpush1.bf16.msra.mxu0 %v1154
      %1870 = vmatprep.subr.bf16.mxu0 0
      %1871 = vmatpush2.bf16.msra.mxu0 0
      %1872 = vmatprep.subr.bf16.mxu0 0
      %1873 = vmatpush2.bf16.msra.mxu0 0
      %1874 = vmatprep.subr.bf16.mxu0 0
      %1875 = vmatpush2.bf16.msra.mxu0 0
      %1876 = vmatprep.subr.bf16.mxu0 0
      %1877 = vmatpush2.bf16.msra.mxu0 0
      %1878 = vmatprep.subr.bf16.mxu0 0
      %1879 = vmatpush2.bf16.msra.mxu0 0
      %1880 = vmatprep.subr.bf16.mxu0 0
      %1881 = vmatpush2.bf16.msra.mxu0 0
      %1882 = vmatprep.subr.bf16.mxu0 0
      %1883 = vmatpush2.bf16.msra.mxu0 0
      %1884 = vmatprep.subr.bf16.mxu0 0
      %1885 = vmatpush2.bf16.msra.mxu0 0
      %1886 = vmatprep.mubr.bf16.mxu0 0
      %1887 = vmatmul.mubr.bf16.gmra.mxu0 %v746
      %v1888 = vpop.f32.mrf.mxu0
      %v1889 = vadd.f32 %v669, %v1888
      %v1890 = vpop.f32.mrf.mxu0
      %v1891 = vadd.f32 %v673, %v1890
      %v1892 = vpop.f32.mrf.mxu0
      %v1893 = vadd.f32 %v669, %v1892
      %v1894 = vpop.f32.mrf.mxu0
      %v1895 = vadd.f32 %v673, %v1894
      %1896 = vmatprep.mubr.bf16.mxu0 0
      %1897 = vmatmul.mubr.bf16.gmra.mxu0 %v747
      %v1898 = vpop.f32.mrf.mxu0
      %v1899 = vadd.f32 %v669, %v1898
      %v1900 = vpop.f32.mrf.mxu0
      %v1901 = vadd.f32 %v673, %v1900
      %v1902 = vpop.f32.mrf.mxu0
      %v1903 = vadd.f32 %v669, %v1902
      %v1904 = vpop.f32.mrf.mxu0
      %v1905 = vadd.f32 %v673, %v1904
      %1906 = vmatprep.mubr.bf16.mxu0 0
      %1907 = vmatmul.mubr.bf16.gmra.mxu0 %v748
      %v1908 = vpop.f32.mrf.mxu0
      %v1909 = vadd.f32 %v669, %v1908
      %v1910 = vpop.f32.mrf.mxu0
      %v1911 = vadd.f32 %v673, %v1910
      %v1912 = vpop.f32.mrf.mxu0
      %v1913 = vadd.f32 %v669, %v1912
      %v1914 = vpop.f32.mrf.mxu0
      %v1915 = vadd.f32 %v673, %v1914
      %1916 = vmatprep.mubr.bf16.mxu0 0
      %1917 = vmatmul.mubr.bf16.gmra.mxu0 %v749
      %v1918 = vpop.f32.mrf.mxu0
      %v1919 = vadd.f32 %v669, %v1918
      %v1920 = vpop.f32.mrf.mxu0
      %v1921 = vadd.f32 %v673, %v1920
      %v1922 = vpop.f32.mrf.mxu0
      %v1923 = vadd.f32 %v669, %v1922
      %v1924 = vpop.f32.mrf.mxu0
      %v1925 = vadd.f32 %v673, %v1924
      %1926 = vmatprep.mubr.bf16.mxu0 0
      %1927 = vmatmul.mubr.bf16.gmra.mxu0 %v750
      %v1928 = vpop.f32.mrf.mxu0
      %v1929 = vadd.f32 %v669, %v1928
      %v1930 = vpop.f32.mrf.mxu0
      %v1931 = vadd.f32 %v673, %v1930
      %v1932 = vpop.f32.mrf.mxu0
      %v1933 = vadd.f32 %v669, %v1932
      %v1934 = vpop.f32.mrf.mxu0
      %v1935 = vadd.f32 %v673, %v1934
      %1936 = vmatprep.mubr.bf16.mxu0 0
      %1937 = vmatmul.mubr.bf16.gmra.mxu0 %v751
      %v1938 = vpop.f32.mrf.mxu0
      %v1939 = vadd.f32 %v669, %v1938
      %v1940 = vpop.f32.mrf.mxu0
      %v1941 = vadd.f32 %v673, %v1940
      %v1942 = vpop.f32.mrf.mxu0
      %v1943 = vadd.f32 %v669, %v1942
      %v1944 = vpop.f32.mrf.mxu0
      %v1945 = vadd.f32 %v673, %v1944
      %1946 = vmatprep.mubr.bf16.mxu0 0
      %1947 = vmatmul.mubr.bf16.gmra.mxu0 %v752
      %v1948 = vpop.f32.mrf.mxu0
      %v1949 = vadd.f32 %v669, %v1948
      %v1950 = vpop.f32.mrf.mxu0
      %v1951 = vadd.f32 %v673, %v1950
      %v1952 = vpop.f32.mrf.mxu0
      %v1953 = vadd.f32 %v669, %v1952
      %v1954 = vpop.f32.mrf.mxu0
      %v1955 = vadd.f32 %v673, %v1954
      %1956 = vmatprep.mubr.bf16.mxu0 0
      %1957 = vmatmul.mubr.bf16.gmra.mxu0 %v753
      %v1958 = vpop.f32.mrf.mxu0
      %v1959 = vadd.f32 %v669, %v1958
      %v1960 = vpop.f32.mrf.mxu0
      %v1961 = vadd.f32 %v673, %v1960
      %v1962 = vpop.f32.mrf.mxu0
      %v1963 = vadd.f32 %v669, %v1962
      %v1964 = vpop.f32.mrf.mxu0
      %v1965 = vadd.f32 %v673, %v1964
      %1966 = vdwg.mxu0
      %1967 = vmatprep.subr.bf16.mxu0 %v1269
      %1968 = vmatpush1.bf16.msra.mxu0 %v1268
      %1969 = vmatprep.subr.bf16.mxu0 %v1253
      %1970 = vmatpush1.bf16.msra.mxu0 %v1252
      %1971 = vmatprep.subr.bf16.mxu0 %v1237
      %1972 = vmatpush1.bf16.msra.mxu0 %v1236
      %1973 = vmatprep.subr.bf16.mxu0 %v1221
      %1974 = vmatpush1.bf16.msra.mxu0 %v1220
      %1975 = vmatprep.subr.bf16.mxu0 %v1205
      %1976 = vmatpush1.bf16.msra.mxu0 %v1204
      %1977 = vmatprep.subr.bf16.mxu0 %v1189
      %1978 = vmatpush1.bf16.msra.mxu0 %v1188
      %1979 = vmatprep.subr.bf16.mxu0 %v1173
      %1980 = vmatpush1.bf16.msra.mxu0 %v1172
      %1981 = vmatprep.subr.bf16.mxu0 %v1157
      %1982 = vmatpush1.bf16.msra.mxu0 %v1156
      %1983 = vmatprep.subr.bf16.mxu0 0
      %1984 = vmatpush2.bf16.msra.mxu0 0
      %1985 = vmatprep.subr.bf16.mxu0 0
      %1986 = vmatpush2.bf16.msra.mxu0 0
      %1987 = vmatprep.subr.bf16.mxu0 0
      %1988 = vmatpush2.bf16.msra.mxu0 0
      %1989 = vmatprep.subr.bf16.mxu0 0
      %1990 = vmatpush2.bf16.msra.mxu0 0
      %1991 = vmatprep.subr.bf16.mxu0 0
      %1992 = vmatpush2.bf16.msra.mxu0 0
      %1993 = vmatprep.subr.bf16.mxu0 0
      %1994 = vmatpush2.bf16.msra.mxu0 0
      %1995 = vmatprep.subr.bf16.mxu0 0
      %1996 = vmatpush2.bf16.msra.mxu0 0
      %1997 = vmatprep.subr.bf16.mxu0 0
      %1998 = vmatpush2.bf16.msra.mxu0 0
      %1999 = vmatprep.mubr.bf16.mxu0 0
      %2000 = vmatmul.mubr.bf16.gmra.mxu0 %v746
      %v2001 = vpop.f32.mrf.mxu0
      %v2002 = vadd.f32 %v677, %v2001
      %v2003 = vpop.f32.mrf.mxu0
      %v2004 = vadd.f32 %v681, %v2003
      %v2005 = vpop.f32.mrf.mxu0
      %v2006 = vadd.f32 %v677, %v2005
      %v2007 = vpop.f32.mrf.mxu0
      %v2008 = vadd.f32 %v681, %v2007
      %2009 = vmatprep.mubr.bf16.mxu0 0
      %2010 = vmatmul.mubr.bf16.gmra.mxu0 %v747
      %v2011 = vpop.f32.mrf.mxu0
      %v2012 = vadd.f32 %v677, %v2011
      %v2013 = vpop.f32.mrf.mxu0
      %v2014 = vadd.f32 %v681, %v2013
      %v2015 = vpop.f32.mrf.mxu0
      %v2016 = vadd.f32 %v677, %v2015
      %v2017 = vpop.f32.mrf.mxu0
      %v2018 = vadd.f32 %v681, %v2017
      %2019 = vmatprep.mubr.bf16.mxu0 0
      %2020 = vmatmul.mubr.bf16.gmra.mxu0 %v748
      %v2021 = vpop.f32.mrf.mxu0
      %v2022 = vadd.f32 %v677, %v2021
      %v2023 = vpop.f32.mrf.mxu0
      %v2024 = vadd.f32 %v681, %v2023
      %v2025 = vpop.f32.mrf.mxu0
      %v2026 = vadd.f32 %v677, %v2025
      %v2027 = vpop.f32.mrf.mxu0
      %v2028 = vadd.f32 %v681, %v2027
      %2029 = vmatprep.mubr.bf16.mxu0 0
      %2030 = vmatmul.mubr.bf16.gmra.mxu0 %v749
      %v2031 = vpop.f32.mrf.mxu0
      %v2032 = vadd.f32 %v677, %v2031
      %v2033 = vpop.f32.mrf.mxu0
      %v2034 = vadd.f32 %v681, %v2033
      %v2035 = vpop.f32.mrf.mxu0
      %v2036 = vadd.f32 %v677, %v2035
      %v2037 = vpop.f32.mrf.mxu0
      %v2038 = vadd.f32 %v681, %v2037
      %2039 = vmatprep.mubr.bf16.mxu0 0
      %2040 = vmatmul.mubr.bf16.gmra.mxu0 %v750
      %v2041 = vpop.f32.mrf.mxu0
      %v2042 = vadd.f32 %v677, %v2041
      %v2043 = vpop.f32.mrf.mxu0
      %v2044 = vadd.f32 %v681, %v2043
      %v2045 = vpop.f32.mrf.mxu0
      %v2046 = vadd.f32 %v677, %v2045
      %v2047 = vpop.f32.mrf.mxu0
      %v2048 = vadd.f32 %v681, %v2047
      %2049 = vmatprep.mubr.bf16.mxu0 0
      %2050 = vmatmul.mubr.bf16.gmra.mxu0 %v751
      %v2051 = vpop.f32.mrf.mxu0
      %v2052 = vadd.f32 %v677, %v2051
      %v2053 = vpop.f32.mrf.mxu0
      %v2054 = vadd.f32 %v681, %v2053
      %v2055 = vpop.f32.mrf.mxu0
      %v2056 = vadd.f32 %v677, %v2055
      %v2057 = vpop.f32.mrf.mxu0
      %v2058 = vadd.f32 %v681, %v2057
      %2059 = vmatprep.mubr.bf16.mxu0 0
      %2060 = vmatmul.mubr.bf16.gmra.mxu0 %v752
      %v2061 = vpop.f32.mrf.mxu0
      %v2062 = vadd.f32 %v677, %v2061
      %v2063 = vpop.f32.mrf.mxu0
      %v2064 = vadd.f32 %v681, %v2063
      %v2065 = vpop.f32.mrf.mxu0
      %v2066 = vadd.f32 %v677, %v2065
      %v2067 = vpop.f32.mrf.mxu0
      %v2068 = vadd.f32 %v681, %v2067
      %2069 = vmatprep.mubr.bf16.mxu0 0
      %2070 = vmatmul.mubr.bf16.gmra.mxu0 %v753
      %v2071 = vpop.f32.mrf.mxu0
      %v2072 = vadd.f32 %v677, %v2071
      %v2073 = vpop.f32.mrf.mxu0
      %v2074 = vadd.f32 %v681, %v2073
      %v2075 = vpop.f32.mrf.mxu0
      %v2076 = vadd.f32 %v677, %v2075
      %v2077 = vpop.f32.mrf.mxu0
      %v2078 = vadd.f32 %v681, %v2077
      %2079 = vdwg.mxu0
      %2080 = vmatprep.subr.bf16.mxu0 %v1271
      %2081 = vmatpush1.bf16.msra.mxu0 %v1270
      %2082 = vmatprep.subr.bf16.mxu0 %v1255
      %2083 = vmatpush1.bf16.msra.mxu0 %v1254
      %2084 = vmatprep.subr.bf16.mxu0 %v1239
      %2085 = vmatpush1.bf16.msra.mxu0 %v1238
      %2086 = vmatprep.subr.bf16.mxu0 %v1223
      %2087 = vmatpush1.bf16.msra.mxu0 %v1222
      %2088 = vmatprep.subr.bf16.mxu0 %v1207
      %2089 = vmatpush1.bf16.msra.mxu0 %v1206
      %2090 = vmatprep.subr.bf16.mxu0 %v1191
      %2091 = vmatpush1.bf16.msra.mxu0 %v1190
      %2092 = vmatprep.subr.bf16.mxu0 %v1175
      %2093 = vmatpush1.bf16.msra.mxu0 %v1174
      %2094 = vmatprep.subr.bf16.mxu0 %v1159
      %2095 = vmatpush1.bf16.msra.mxu0 %v1158
      %2096 = vmatprep.subr.bf16.mxu0 0
      %2097 = vmatpush2.bf16.msra.mxu0 0
      %2098 = vmatprep.subr.bf16.mxu0 0
      %2099 = vmatpush2.bf16.msra.mxu0 0
      %2100 = vmatprep.subr.bf16.mxu0 0
      %2101 = vmatpush2.bf16.msra.mxu0 0
      %2102 = vmatprep.subr.bf16.mxu0 0
      %2103 = vmatpush2.bf16.msra.mxu0 0
      %2104 = vmatprep.subr.bf16.mxu0 0
      %2105 = vmatpush2.bf16.msra.mxu0 0
      %2106 = vmatprep.subr.bf16.mxu0 0
      %2107 = vmatpush2.bf16.msra.mxu0 0
      %2108 = vmatprep.subr.bf16.mxu0 0
      %2109 = vmatpush2.bf16.msra.mxu0 0
      %2110 = vmatprep.subr.bf16.mxu0 0
      %2111 = vmatpush2.bf16.msra.mxu0 0
      %2112 = vmatprep.mubr.bf16.mxu0 0
      %2113 = vmatmul.mubr.bf16.gmra.mxu0 %v746
      %v2114 = vpop.f32.mrf.mxu0
      %v2115 = vadd.f32 %v685, %v2114
      %v2116 = vpop.f32.mrf.mxu0
      %v2117 = vadd.f32 %v689, %v2116
      %v2118 = vpop.f32.mrf.mxu0
      %v2119 = vadd.f32 %v685, %v2118
      %v2120 = vpop.f32.mrf.mxu0
      %v2121 = vadd.f32 %v689, %v2120
      %2122 = vmatprep.mubr.bf16.mxu0 0
      %2123 = vmatmul.mubr.bf16.gmra.mxu0 %v747
      %v2124 = vpop.f32.mrf.mxu0
      %v2125 = vadd.f32 %v685, %v2124
      %v2126 = vpop.f32.mrf.mxu0
      %v2127 = vadd.f32 %v689, %v2126
      %v2128 = vpop.f32.mrf.mxu0
      %v2129 = vadd.f32 %v685, %v2128
      %v2130 = vpop.f32.mrf.mxu0
      %v2131 = vadd.f32 %v689, %v2130
      %2132 = vmatprep.mubr.bf16.mxu0 0
      %2133 = vmatmul.mubr.bf16.gmra.mxu0 %v748
      %v2134 = vpop.f32.mrf.mxu0
      %v2135 = vadd.f32 %v685, %v2134
      %v2136 = vpop.f32.mrf.mxu0
      %v2137 = vadd.f32 %v689, %v2136
      %v2138 = vpop.f32.mrf.mxu0
      %v2139 = vadd.f32 %v685, %v2138
      %v2140 = vpop.f32.mrf.mxu0
      %v2141 = vadd.f32 %v689, %v2140
      %2142 = vmatprep.mubr.bf16.mxu0 0
      %2143 = vmatmul.mubr.bf16.gmra.mxu0 %v749
      %v2144 = vpop.f32.mrf.mxu0
      %v2145 = vadd.f32 %v685, %v2144
      %v2146 = vpop.f32.mrf.mxu0
      %v2147 = vadd.f32 %v689, %v2146
      %v2148 = vpop.f32.mrf.mxu0
      %v2149 = vadd.f32 %v685, %v2148
      %v2150 = vpop.f32.mrf.mxu0
      %v2151 = vadd.f32 %v689, %v2150
      %2152 = vmatprep.mubr.bf16.mxu0 0
      %2153 = vmatmul.mubr.bf16.gmra.mxu0 %v750
      %v2154 = vpop.f32.mrf.mxu0
      %v2155 = vadd.f32 %v685, %v2154
      %v2156 = vpop.f32.mrf.mxu0
      %v2157 = vadd.f32 %v689, %v2156
      %v2158 = vpop.f32.mrf.mxu0
      %v2159 = vadd.f32 %v685, %v2158
      %v2160 = vpop.f32.mrf.mxu0
      %v2161 = vadd.f32 %v689, %v2160
      %2162 = vmatprep.mubr.bf16.mxu0 0
      %2163 = vmatmul.mubr.bf16.gmra.mxu0 %v751
      %v2164 = vpop.f32.mrf.mxu0
      %v2165 = vadd.f32 %v685, %v2164
      %v2166 = vpop.f32.mrf.mxu0
      %v2167 = vadd.f32 %v689, %v2166
      %v2168 = vpop.f32.mrf.mxu0
      %v2169 = vadd.f32 %v685, %v2168
      %v2170 = vpop.f32.mrf.mxu0
      %v2171 = vadd.f32 %v689, %v2170
      %2172 = vmatprep.mubr.bf16.mxu0 0
      %2173 = vmatmul.mubr.bf16.gmra.mxu0 %v752
      %v2174 = vpop.f32.mrf.mxu0
      %v2175 = vadd.f32 %v685, %v2174
      %v2176 = vpop.f32.mrf.mxu0
      %v2177 = vadd.f32 %v689, %v2176
      %v2178 = vpop.f32.mrf.mxu0
      %v2179 = vadd.f32 %v685, %v2178
      %v2180 = vpop.f32.mrf.mxu0
      %v2181 = vadd.f32 %v689, %v2180
      %2182 = vmatprep.mubr.bf16.mxu0 0
      %2183 = vmatmul.mubr.bf16.gmra.mxu0 %v753
      %v2184 = vpop.f32.mrf.mxu0
      %v2185 = vadd.f32 %v685, %v2184
      %v2186 = vpop.f32.mrf.mxu0
      %v2187 = vadd.f32 %v689, %v2186
      %v2188 = vpop.f32.mrf.mxu0
      %v2189 = vadd.f32 %v685, %v2188
      %v2190 = vpop.f32.mrf.mxu0
      %v2191 = vadd.f32 %v689, %v2190
      %2192 = vdwg.mxu0
      %2193 = vmatprep.subr.bf16.mxu0 %v1273
      %2194 = vmatpush1.bf16.msra.mxu0 %v1272
      %2195 = vmatprep.subr.bf16.mxu0 %v1257
      %2196 = vmatpush1.bf16.msra.mxu0 %v1256
      %2197 = vmatprep.subr.bf16.mxu0 %v1241
      %2198 = vmatpush1.bf16.msra.mxu0 %v1240
      %2199 = vmatprep.subr.bf16.mxu0 %v1225
      %2200 = vmatpush1.bf16.msra.mxu0 %v1224
      %2201 = vmatprep.subr.bf16.mxu0 %v1209
      %2202 = vmatpush1.bf16.msra.mxu0 %v1208
      %2203 = vmatprep.subr.bf16.mxu0 %v1193
      %2204 = vmatpush1.bf16.msra.mxu0 %v1192
      %2205 = vmatprep.subr.bf16.mxu0 %v1177
      %2206 = vmatpush1.bf16.msra.mxu0 %v1176
      %2207 = vmatprep.subr.bf16.mxu0 %v1161
      %2208 = vmatpush1.bf16.msra.mxu0 %v1160
      %2209 = vmatprep.subr.bf16.mxu0 0
      %2210 = vmatpush2.bf16.msra.mxu0 0
      %2211 = vmatprep.subr.bf16.mxu0 0
      %2212 = vmatpush2.bf16.msra.mxu0 0
      %2213 = vmatprep.subr.bf16.mxu0 0
      %2214 = vmatpush2.bf16.msra.mxu0 0
      %2215 = vmatprep.subr.bf16.mxu0 0
      %2216 = vmatpush2.bf16.msra.mxu0 0
      %2217 = vmatprep.subr.bf16.mxu0 0
      %2218 = vmatpush2.bf16.msra.mxu0 0
      %2219 = vmatprep.subr.bf16.mxu0 0
      %2220 = vmatpush2.bf16.msra.mxu0 0
      %2221 = vmatprep.subr.bf16.mxu0 0
      %2222 = vmatpush2.bf16.msra.mxu0 0
      %2223 = vmatprep.subr.bf16.mxu0 0
      %2224 = vmatpush2.bf16.msra.mxu0 0
      %2225 = vmatprep.mubr.bf16.mxu0 0
      %2226 = vmatmul.mubr.bf16.gmra.mxu0 %v746
      %v2227 = vpop.f32.mrf.mxu0
      %v2228 = vadd.f32 %v693, %v2227
      %v2229 = vpop.f32.mrf.mxu0
      %v2230 = vadd.f32 %v697, %v2229
      %v2231 = vpop.f32.mrf.mxu0
      %v2232 = vadd.f32 %v693, %v2231
      %v2233 = vpop.f32.mrf.mxu0
      %v2234 = vadd.f32 %v697, %v2233
      %2235 = vmatprep.mubr.bf16.mxu0 0
      %2236 = vmatmul.mubr.bf16.gmra.mxu0 %v747
      %v2237 = vpop.f32.mrf.mxu0
      %v2238 = vadd.f32 %v693, %v2237
      %v2239 = vpop.f32.mrf.mxu0
      %v2240 = vadd.f32 %v697, %v2239
      %v2241 = vpop.f32.mrf.mxu0
      %v2242 = vadd.f32 %v693, %v2241
      %v2243 = vpop.f32.mrf.mxu0
      %v2244 = vadd.f32 %v697, %v2243
      %2245 = vmatprep.mubr.bf16.mxu0 0
      %2246 = vmatmul.mubr.bf16.gmra.mxu0 %v748
      %v2247 = vpop.f32.mrf.mxu0
      %v2248 = vadd.f32 %v693, %v2247
      %v2249 = vpop.f32.mrf.mxu0
      %v2250 = vadd.f32 %v697, %v2249
      %v2251 = vpop.f32.mrf.mxu0
      %v2252 = vadd.f32 %v693, %v2251
      %v2253 = vpop.f32.mrf.mxu0
      %v2254 = vadd.f32 %v697, %v2253
      %2255 = vmatprep.mubr.bf16.mxu0 0
      %2256 = vmatmul.mubr.bf16.gmra.mxu0 %v749
      %v2257 = vpop.f32.mrf.mxu0
      %v2258 = vadd.f32 %v693, %v2257
      %v2259 = vpop.f32.mrf.mxu0
      %v2260 = vadd.f32 %v697, %v2259
      %v2261 = vpop.f32.mrf.mxu0
      %v2262 = vadd.f32 %v693, %v2261
      %v2263 = vpop.f32.mrf.mxu0
      %v2264 = vadd.f32 %v697, %v2263
      %2265 = vmatprep.mubr.bf16.mxu0 0
      %2266 = vmatmul.mubr.bf16.gmra.mxu0 %v750
      %v2267 = vpop.f32.mrf.mxu0
      %v2268 = vadd.f32 %v693, %v2267
      %v2269 = vpop.f32.mrf.mxu0
      %v2270 = vadd.f32 %v697, %v2269
      %v2271 = vpop.f32.mrf.mxu0
      %v2272 = vadd.f32 %v693, %v2271
      %v2273 = vpop.f32.mrf.mxu0
      %v2274 = vadd.f32 %v697, %v2273
      %2275 = vmatprep.mubr.bf16.mxu0 0
      %2276 = vmatmul.mubr.bf16.gmra.mxu0 %v751
      %v2277 = vpop.f32.mrf.mxu0
      %v2278 = vadd.f32 %v693, %v2277
      %v2279 = vpop.f32.mrf.mxu0
      %v2280 = vadd.f32 %v697, %v2279
      %v2281 = vpop.f32.mrf.mxu0
      %v2282 = vadd.f32 %v693, %v2281
      %v2283 = vpop.f32.mrf.mxu0
      %v2284 = vadd.f32 %v697, %v2283
      %2285 = vmatprep.mubr.bf16.mxu0 0
      %2286 = vmatmul.mubr.bf16.gmra.mxu0 %v752
      %v2287 = vpop.f32.mrf.mxu0
      %v2288 = vadd.f32 %v693, %v2287
      %v2289 = vpop.f32.mrf.mxu0
      %v2290 = vadd.f32 %v697, %v2289
      %v2291 = vpop.f32.mrf.mxu0
      %v2292 = vadd.f32 %v693, %v2291
      %v2293 = vpop.f32.mrf.mxu0
      %v2294 = vadd.f32 %v697, %v2293
      %2295 = vmatprep.mubr.bf16.mxu0 0
      %2296 = vmatmul.mubr.bf16.gmra.mxu0 %v753
      %v2297 = vpop.f32.mrf.mxu0
      %v2298 = vadd.f32 %v693, %v2297
      %v2299 = vpop.f32.mrf.mxu0
      %v2300 = vadd.f32 %v697, %v2299
      %v2301 = vpop.f32.mrf.mxu0
      %v2302 = vadd.f32 %v693, %v2301
      %v2303 = vpop.f32.mrf.mxu0
      %v2304 = vadd.f32 %v697, %v2303
      %2305 = vdwg.mxu0
      %vm2306 = vcmp.gt.f32.partialorder %v1437, 0.0
      %vm2307 = vcmp.gt.f32.partialorder %v1439, 0.0
      %vm2308 = vcmp.gt.f32.partialorder %v1550, 0.0
      %vm2309 = vcmp.gt.f32.partialorder %v1552, 0.0
      %vm2310 = vcmp.gt.f32.partialorder %v1663, 0.0
      %vm2311 = vcmp.gt.f32.partialorder %v1665, 0.0
      %vm2312 = vcmp.gt.f32.partialorder %v1776, 0.0
      %vm2313 = vcmp.gt.f32.partialorder %v1778, 0.0
      %vm2314 = vcmp.gt.f32.partialorder %v1889, 0.0
      %vm2315 = vcmp.gt.f32.partialorder %v1891, 0.0
      %vm2316 = vcmp.gt.f32.partialorder %v2002, 0.0
      %vm2317 = vcmp.gt.f32.partialorder %v2004, 0.0
      %vm2318 = vcmp.gt.f32.partialorder %v2115, 0.0
      %vm2319 = vcmp.gt.f32.partialorder %v2117, 0.0
      %vm2320 = vcmp.gt.f32.partialorder %v2228, 0.0
      %vm2321 = vcmp.gt.f32.partialorder %v2230, 0.0
      %vm2322 = vcmp.gt.f32.partialorder %v1441, 0.0
      %vm2323 = vcmp.gt.f32.partialorder %v1443, 0.0
      %vm2324 = vcmp.gt.f32.partialorder %v1554, 0.0
      %vm2325 = vcmp.gt.f32.partialorder %v1556, 0.0
      %vm2326 = vcmp.gt.f32.partialorder %v1667, 0.0
      %vm2327 = vcmp.gt.f32.partialorder %v1669, 0.0
      %vm2328 = vcmp.gt.f32.partialorder %v1780, 0.0
      %vm2329 = vcmp.gt.f32.partialorder %v1782, 0.0
      %vm2330 = vcmp.gt.f32.partialorder %v1893, 0.0
      %vm2331 = vcmp.gt.f32.partialorder %v1895, 0.0
      %vm2332 = vcmp.gt.f32.partialorder %v2006, 0.0
      %vm2333 = vcmp.gt.f32.partialorder %v2008, 0.0
      %vm2334 = vcmp.gt.f32.partialorder %v2119, 0.0
      %vm2335 = vcmp.gt.f32.partialorder %v2121, 0.0
      %vm2336 = vcmp.gt.f32.partialorder %v2232, 0.0
      %vm2337 = vcmp.gt.f32.partialorder %v2234, 0.0
      %vm2338 = vcmp.gt.f32.partialorder %v1447, 0.0
      %vm2339 = vcmp.gt.f32.partialorder %v1449, 0.0
      %vm2340 = vcmp.gt.f32.partialorder %v1560, 0.0
      %vm2341 = vcmp.gt.f32.partialorder %v1562, 0.0
      %vm2342 = vcmp.gt.f32.partialorder %v1673, 0.0
      %vm2343 = vcmp.gt.f32.partialorder %v1675, 0.0
      %vm2344 = vcmp.gt.f32.partialorder %v1786, 0.0
      %vm2345 = vcmp.gt.f32.partialorder %v1788, 0.0
      %vm2346 = vcmp.gt.f32.partialorder %v1899, 0.0
      %vm2347 = vcmp.gt.f32.partialorder %v1901, 0.0
      %vm2348 = vcmp.gt.f32.partialorder %v2012, 0.0
      %vm2349 = vcmp.gt.f32.partialorder %v2014, 0.0
      %vm2350 = vcmp.gt.f32.partialorder %v2125, 0.0
      %vm2351 = vcmp.gt.f32.partialorder %v2127, 0.0
      %vm2352 = vcmp.gt.f32.partialorder %v2238, 0.0
      %vm2353 = vcmp.gt.f32.partialorder %v2240, 0.0
      %vm2354 = vcmp.gt.f32.partialorder %v1451, 0.0
      %vm2355 = vcmp.gt.f32.partialorder %v1453, 0.0
      %vm2356 = vcmp.gt.f32.partialorder %v1564, 0.0
      %vm2357 = vcmp.gt.f32.partialorder %v1566, 0.0
      %vm2358 = vcmp.gt.f32.partialorder %v1677, 0.0
      %vm2359 = vcmp.gt.f32.partialorder %v1679, 0.0
      %vm2360 = vcmp.gt.f32.partialorder %v1790, 0.0
      %vm2361 = vcmp.gt.f32.partialorder %v1792, 0.0
      %vm2362 = vcmp.gt.f32.partialorder %v1903, 0.0
      %vm2363 = vcmp.gt.f32.partialorder %v1905, 0.0
      %vm2364 = vcmp.gt.f32.partialorder %v2016, 0.0
      %vm2365 = vcmp.gt.f32.partialorder %v2018, 0.0
      %vm2366 = vcmp.gt.f32.partialorder %v2129, 0.0
      %vm2367 = vcmp.gt.f32.partialorder %v2131, 0.0
      %vm2368 = vcmp.gt.f32.partialorder %v2242, 0.0
      %vm2369 = vcmp.gt.f32.partialorder %v2244, 0.0
      %vm2370 = vcmp.gt.f32.partialorder %v1457, 0.0
      %vm2371 = vcmp.gt.f32.partialorder %v1459, 0.0
      %vm2372 = vcmp.gt.f32.partialorder %v1570, 0.0
      %vm2373 = vcmp.gt.f32.partialorder %v1572, 0.0
      %vm2374 = vcmp.gt.f32.partialorder %v1683, 0.0
      %vm2375 = vcmp.gt.f32.partialorder %v1685, 0.0
      %vm2376 = vcmp.gt.f32.partialorder %v1796, 0.0
      %vm2377 = vcmp.gt.f32.partialorder %v1798, 0.0
      %vm2378 = vcmp.gt.f32.partialorder %v1909, 0.0
      %vm2379 = vcmp.gt.f32.partialorder %v1911, 0.0
      %vm2380 = vcmp.gt.f32.partialorder %v2022, 0.0
      %vm2381 = vcmp.gt.f32.partialorder %v2024, 0.0
      %vm2382 = vcmp.gt.f32.partialorder %v2135, 0.0
      %vm2383 = vcmp.gt.f32.partialorder %v2137, 0.0
      %vm2384 = vcmp.gt.f32.partialorder %v2248, 0.0
      %vm2385 = vcmp.gt.f32.partialorder %v2250, 0.0
      %vm2386 = vcmp.gt.f32.partialorder %v1461, 0.0
      %vm2387 = vcmp.gt.f32.partialorder %v1463, 0.0
      %vm2388 = vcmp.gt.f32.partialorder %v1574, 0.0
      %vm2389 = vcmp.gt.f32.partialorder %v1576, 0.0
      %vm2390 = vcmp.gt.f32.partialorder %v1687, 0.0
      %vm2391 = vcmp.gt.f32.partialorder %v1689, 0.0
      %vm2392 = vcmp.gt.f32.partialorder %v1800, 0.0
      %vm2393 = vcmp.gt.f32.partialorder %v1802, 0.0
      %vm2394 = vcmp.gt.f32.partialorder %v1913, 0.0
      %vm2395 = vcmp.gt.f32.partialorder %v1915, 0.0
      %vm2396 = vcmp.gt.f32.partialorder %v2026, 0.0
      %vm2397 = vcmp.gt.f32.partialorder %v2028, 0.0
      %vm2398 = vcmp.gt.f32.partialorder %v2139, 0.0
      %vm2399 = vcmp.gt.f32.partialorder %v2141, 0.0
      %vm2400 = vcmp.gt.f32.partialorder %v2252, 0.0
      %vm2401 = vcmp.gt.f32.partialorder %v2254, 0.0
      %vm2402 = vcmp.gt.f32.partialorder %v1467, 0.0
      %vm2403 = vcmp.gt.f32.partialorder %v1469, 0.0
      %vm2404 = vcmp.gt.f32.partialorder %v1580, 0.0
      %vm2405 = vcmp.gt.f32.partialorder %v1582, 0.0
      %vm2406 = vcmp.gt.f32.partialorder %v1693, 0.0
      %vm2407 = vcmp.gt.f32.partialorder %v1695, 0.0
      %vm2408 = vcmp.gt.f32.partialorder %v1806, 0.0
      %vm2409 = vcmp.gt.f32.partialorder %v1808, 0.0
      %vm2410 = vcmp.gt.f32.partialorder %v1919, 0.0
      %vm2411 = vcmp.gt.f32.partialorder %v1921, 0.0
      %vm2412 = vcmp.gt.f32.partialorder %v2032, 0.0
      %vm2413 = vcmp.gt.f32.partialorder %v2034, 0.0
      %vm2414 = vcmp.gt.f32.partialorder %v2145, 0.0
      %vm2415 = vcmp.gt.f32.partialorder %v2147, 0.0
      %vm2416 = vcmp.gt.f32.partialorder %v2258, 0.0
      %vm2417 = vcmp.gt.f32.partialorder %v2260, 0.0
      %vm2418 = vcmp.gt.f32.partialorder %v1471, 0.0
      %vm2419 = vcmp.gt.f32.partialorder %v1473, 0.0
      %vm2420 = vcmp.gt.f32.partialorder %v1584, 0.0
      %vm2421 = vcmp.gt.f32.partialorder %v1586, 0.0
      %vm2422 = vcmp.gt.f32.partialorder %v1697, 0.0
      %vm2423 = vcmp.gt.f32.partialorder %v1699, 0.0
      %vm2424 = vcmp.gt.f32.partialorder %v1810, 0.0
      %vm2425 = vcmp.gt.f32.partialorder %v1812, 0.0
      %vm2426 = vcmp.gt.f32.partialorder %v1923, 0.0
      %vm2427 = vcmp.gt.f32.partialorder %v1925, 0.0
      %vm2428 = vcmp.gt.f32.partialorder %v2036, 0.0
      %vm2429 = vcmp.gt.f32.partialorder %v2038, 0.0
      %vm2430 = vcmp.gt.f32.partialorder %v2149, 0.0
      %vm2431 = vcmp.gt.f32.partialorder %v2151, 0.0
      %vm2432 = vcmp.gt.f32.partialorder %v2262, 0.0
      %vm2433 = vcmp.gt.f32.partialorder %v2264, 0.0
      %vm2434 = vcmp.gt.f32.partialorder %v1477, 0.0
      %vm2435 = vcmp.gt.f32.partialorder %v1479, 0.0
      %vm2436 = vcmp.gt.f32.partialorder %v1590, 0.0
      %vm2437 = vcmp.gt.f32.partialorder %v1592, 0.0
      %vm2438 = vcmp.gt.f32.partialorder %v1703, 0.0
      %vm2439 = vcmp.gt.f32.partialorder %v1705, 0.0
      %vm2440 = vcmp.gt.f32.partialorder %v1816, 0.0
      %vm2441 = vcmp.gt.f32.partialorder %v1818, 0.0
      %vm2442 = vcmp.gt.f32.partialorder %v1929, 0.0
      %vm2443 = vcmp.gt.f32.partialorder %v1931, 0.0
      %vm2444 = vcmp.gt.f32.partialorder %v2042, 0.0
      %vm2445 = vcmp.gt.f32.partialorder %v2044, 0.0
      %vm2446 = vcmp.gt.f32.partialorder %v2155, 0.0
      %vm2447 = vcmp.gt.f32.partialorder %v2157, 0.0
      %vm2448 = vcmp.gt.f32.partialorder %v2268, 0.0
      %vm2449 = vcmp.gt.f32.partialorder %v2270, 0.0
      %vm2450 = vcmp.gt.f32.partialorder %v1481, 0.0
      %vm2451 = vcmp.gt.f32.partialorder %v1483, 0.0
      %vm2452 = vcmp.gt.f32.partialorder %v1594, 0.0
      %vm2453 = vcmp.gt.f32.partialorder %v1596, 0.0
      %vm2454 = vcmp.gt.f32.partialorder %v1707, 0.0
      %vm2455 = vcmp.gt.f32.partialorder %v1709, 0.0
      %vm2456 = vcmp.gt.f32.partialorder %v1820, 0.0
      %vm2457 = vcmp.gt.f32.partialorder %v1822, 0.0
      %vm2458 = vcmp.gt.f32.partialorder %v1933, 0.0
      %vm2459 = vcmp.gt.f32.partialorder %v1935, 0.0
      %vm2460 = vcmp.gt.f32.partialorder %v2046, 0.0
      %vm2461 = vcmp.gt.f32.partialorder %v2048, 0.0
      %vm2462 = vcmp.gt.f32.partialorder %v2159, 0.0
      %vm2463 = vcmp.gt.f32.partialorder %v2161, 0.0
      %vm2464 = vcmp.gt.f32.partialorder %v2272, 0.0
      %vm2465 = vcmp.gt.f32.partialorder %v2274, 0.0
      %vm2466 = vcmp.gt.f32.partialorder %v1487, 0.0
      %vm2467 = vcmp.gt.f32.partialorder %v1489, 0.0
      %vm2468 = vcmp.gt.f32.partialorder %v1600, 0.0
      %vm2469 = vcmp.gt.f32.partialorder %v1602, 0.0
      %vm2470 = vcmp.gt.f32.partialorder %v1713, 0.0
      %vm2471 = vcmp.gt.f32.partialorder %v1715, 0.0
      %vm2472 = vcmp.gt.f32.partialorder %v1826, 0.0
      %vm2473 = vcmp.gt.f32.partialorder %v1828, 0.0
      %vm2474 = vcmp.gt.f32.partialorder %v1939, 0.0
      %vm2475 = vcmp.gt.f32.partialorder %v1941, 0.0
      %vm2476 = vcmp.gt.f32.partialorder %v2052, 0.0
      %vm2477 = vcmp.gt.f32.partialorder %v2054, 0.0
      %vm2478 = vcmp.gt.f32.partialorder %v2165, 0.0
      %vm2479 = vcmp.gt.f32.partialorder %v2167, 0.0
      %vm2480 = vcmp.gt.f32.partialorder %v2278, 0.0
      %vm2481 = vcmp.gt.f32.partialorder %v2280, 0.0
      %vm2482 = vcmp.gt.f32.partialorder %v1491, 0.0
      %vm2483 = vcmp.gt.f32.partialorder %v1493, 0.0
      %vm2484 = vcmp.gt.f32.partialorder %v1604, 0.0
      %vm2485 = vcmp.gt.f32.partialorder %v1606, 0.0
      %vm2486 = vcmp.gt.f32.partialorder %v1717, 0.0
      %vm2487 = vcmp.gt.f32.partialorder %v1719, 0.0
      %vm2488 = vcmp.gt.f32.partialorder %v1830, 0.0
      %vm2489 = vcmp.gt.f32.partialorder %v1832, 0.0
      %vm2490 = vcmp.gt.f32.partialorder %v1943, 0.0
      %vm2491 = vcmp.gt.f32.partialorder %v1945, 0.0
      %vm2492 = vcmp.gt.f32.partialorder %v2056, 0.0
      %vm2493 = vcmp.gt.f32.partialorder %v2058, 0.0
      %vm2494 = vcmp.gt.f32.partialorder %v2169, 0.0
      %vm2495 = vcmp.gt.f32.partialorder %v2171, 0.0
      %vm2496 = vcmp.gt.f32.partialorder %v2282, 0.0
      %vm2497 = vcmp.gt.f32.partialorder %v2284, 0.0
      %vm2498 = vcmp.gt.f32.partialorder %v1497, 0.0
      %vm2499 = vcmp.gt.f32.partialorder %v1499, 0.0
      %vm2500 = vcmp.gt.f32.partialorder %v1610, 0.0
      %vm2501 = vcmp.gt.f32.partialorder %v1612, 0.0
      %vm2502 = vcmp.gt.f32.partialorder %v1723, 0.0
      %vm2503 = vcmp.gt.f32.partialorder %v1725, 0.0
      %vm2504 = vcmp.gt.f32.partialorder %v1836, 0.0
      %vm2505 = vcmp.gt.f32.partialorder %v1838, 0.0
      %vm2506 = vcmp.gt.f32.partialorder %v1949, 0.0
      %vm2507 = vcmp.gt.f32.partialorder %v1951, 0.0
      %vm2508 = vcmp.gt.f32.partialorder %v2062, 0.0
      %vm2509 = vcmp.gt.f32.partialorder %v2064, 0.0
      %vm2510 = vcmp.gt.f32.partialorder %v2175, 0.0
      %vm2511 = vcmp.gt.f32.partialorder %v2177, 0.0
      %vm2512 = vcmp.gt.f32.partialorder %v2288, 0.0
      %vm2513 = vcmp.gt.f32.partialorder %v2290, 0.0
      %vm2514 = vcmp.gt.f32.partialorder %v1501, 0.0
      %vm2515 = vcmp.gt.f32.partialorder %v1503, 0.0
      %vm2516 = vcmp.gt.f32.partialorder %v1614, 0.0
      %vm2517 = vcmp.gt.f32.partialorder %v1616, 0.0
      %vm2518 = vcmp.gt.f32.partialorder %v1727, 0.0
      %vm2519 = vcmp.gt.f32.partialorder %v1729, 0.0
      %vm2520 = vcmp.gt.f32.partialorder %v1840, 0.0
      %vm2521 = vcmp.gt.f32.partialorder %v1842, 0.0
      %vm2522 = vcmp.gt.f32.partialorder %v1953, 0.0
      %vm2523 = vcmp.gt.f32.partialorder %v1955, 0.0
      %vm2524 = vcmp.gt.f32.partialorder %v2066, 0.0
      %vm2525 = vcmp.gt.f32.partialorder %v2068, 0.0
      %vm2526 = vcmp.gt.f32.partialorder %v2179, 0.0
      %vm2527 = vcmp.gt.f32.partialorder %v2181, 0.0
      %vm2528 = vcmp.gt.f32.partialorder %v2292, 0.0
      %vm2529 = vcmp.gt.f32.partialorder %v2294, 0.0
      %vm2530 = vcmp.gt.f32.partialorder %v1507, 0.0
      %vm2531 = vcmp.gt.f32.partialorder %v1509, 0.0
      %vm2532 = vcmp.gt.f32.partialorder %v1620, 0.0
      %vm2533 = vcmp.gt.f32.partialorder %v1622, 0.0
      %vm2534 = vcmp.gt.f32.partialorder %v1733, 0.0
      %vm2535 = vcmp.gt.f32.partialorder %v1735, 0.0
      %vm2536 = vcmp.gt.f32.partialorder %v1846, 0.0
      %vm2537 = vcmp.gt.f32.partialorder %v1848, 0.0
      %vm2538 = vcmp.gt.f32.partialorder %v1959, 0.0
      %vm2539 = vcmp.gt.f32.partialorder %v1961, 0.0
      %vm2540 = vcmp.gt.f32.partialorder %v2072, 0.0
      %vm2541 = vcmp.gt.f32.partialorder %v2074, 0.0
      %vm2542 = vcmp.gt.f32.partialorder %v2185, 0.0
      %vm2543 = vcmp.gt.f32.partialorder %v2187, 0.0
      %vm2544 = vcmp.gt.f32.partialorder %v2298, 0.0
      %vm2545 = vcmp.gt.f32.partialorder %v2300, 0.0
      %vm2546 = vcmp.gt.f32.partialorder %v1511, 0.0
      %vm2547 = vcmp.gt.f32.partialorder %v1513, 0.0
      %vm2548 = vcmp.gt.f32.partialorder %v1624, 0.0
      %vm2549 = vcmp.gt.f32.partialorder %v1626, 0.0
      %vm2550 = vcmp.gt.f32.partialorder %v1737, 0.0
      %vm2551 = vcmp.gt.f32.partialorder %v1739, 0.0
      %vm2552 = vcmp.gt.f32.partialorder %v1850, 0.0
      %vm2553 = vcmp.gt.f32.partialorder %v1852, 0.0
      %vm2554 = vcmp.gt.f32.partialorder %v1963, 0.0
      %vm2555 = vcmp.gt.f32.partialorder %v1965, 0.0
      %vm2556 = vcmp.gt.f32.partialorder %v2076, 0.0
      %vm2557 = vcmp.gt.f32.partialorder %v2078, 0.0
      %vm2558 = vcmp.gt.f32.partialorder %v2189, 0.0
      %vm2559 = vcmp.gt.f32.partialorder %v2191, 0.0
      %vm2560 = vcmp.gt.f32.partialorder %v2302, 0.0
      %vm2561 = vcmp.gt.f32.partialorder %v2304, 0.0
      %v2562 = vmul.f32 %v1437, 0.01
      %v2563 = vmul.f32 %v1439, 0.01
      %v2564 = vmul.f32 %v1550, 0.01
      %v2565 = vmul.f32 %v1552, 0.01
      %v2566 = vmul.f32 %v1663, 0.01
      %v2567 = vmul.f32 %v1665, 0.01
      %v2568 = vmul.f32 %v1776, 0.01
      %v2569 = vmul.f32 %v1778, 0.01
      %v2570 = vmul.f32 %v1889, 0.01
      %v2571 = vmul.f32 %v1891, 0.01
      %v2572 = vmul.f32 %v2002, 0.01
      %v2573 = vmul.f32 %v2004, 0.01
      %v2574 = vmul.f32 %v2115, 0.01
      %v2575 = vmul.f32 %v2117, 0.01
      %v2576 = vmul.f32 %v2228, 0.01
      %v2577 = vmul.f32 %v2230, 0.01
      %v2578 = vmul.f32 %v1441, 0.01
      %v2579 = vmul.f32 %v1443, 0.01
      %v2580 = vmul.f32 %v1554, 0.01
      %v2581 = vmul.f32 %v1556, 0.01
      %v2582 = vmul.f32 %v1667, 0.01
      %v2583 = vmul.f32 %v1669, 0.01
      %v2584 = vmul.f32 %v1780, 0.01
      %v2585 = vmul.f32 %v1782, 0.01
      %v2586 = vmul.f32 %v1893, 0.01
      %v2587 = vmul.f32 %v1895, 0.01
      %v2588 = vmul.f32 %v2006, 0.01
      %v2589 = vmul.f32 %v2008, 0.01
      %v2590 = vmul.f32 %v2119, 0.01
      %v2591 = vmul.f32 %v2121, 0.01
      %v2592 = vmul.f32 %v2232, 0.01
      %v2593 = vmul.f32 %v2234, 0.01
      %v2594 = vmul.f32 %v1447, 0.01
      %v2595 = vmul.f32 %v1449, 0.01
      %v2596 = vmul.f32 %v1560, 0.01
      %v2597 = vmul.f32 %v1562, 0.01
      %v2598 = vmul.f32 %v1673, 0.01
      %v2599 = vmul.f32 %v1675, 0.01
      %v2600 = vmul.f32 %v1786, 0.01
      %v2601 = vmul.f32 %v1788, 0.01
      %v2602 = vmul.f32 %v1899, 0.01
      %v2603 = vmul.f32 %v1901, 0.01
      %v2604 = vmul.f32 %v2012, 0.01
      %v2605 = vmul.f32 %v2014, 0.01
      %v2606 = vmul.f32 %v2125, 0.01
      %v2607 = vmul.f32 %v2127, 0.01
      %v2608 = vmul.f32 %v2238, 0.01
      %v2609 = vmul.f32 %v2240, 0.01
      %v2610 = vmul.f32 %v1451, 0.01
      %v2611 = vmul.f32 %v1453, 0.01
      %v2612 = vmul.f32 %v1564, 0.01
      %v2613 = vmul.f32 %v1566, 0.01
      %v2614 = vmul.f32 %v1677, 0.01
      %v2615 = vmul.f32 %v1679, 0.01
      %v2616 = vmul.f32 %v1790, 0.01
      %v2617 = vmul.f32 %v1792, 0.01
      %v2618 = vmul.f32 %v1903, 0.01
      %v2619 = vmul.f32 %v1905, 0.01
      %v2620 = vmul.f32 %v2016, 0.01
      %v2621 = vmul.f32 %v2018, 0.01
      %v2622 = vmul.f32 %v2129, 0.01
      %v2623 = vmul.f32 %v2131, 0.01
      %v2624 = vmul.f32 %v2242, 0.01
      %v2625 = vmul.f32 %v2244, 0.01
      %v2626 = vmul.f32 %v1457, 0.01
      %v2627 = vmul.f32 %v1459, 0.01
      %v2628 = vmul.f32 %v1570, 0.01
      %v2629 = vmul.f32 %v1572, 0.01
      %v2630 = vmul.f32 %v1683, 0.01
      %v2631 = vmul.f32 %v1685, 0.01
      %v2632 = vmul.f32 %v1796, 0.01
      %v2633 = vmul.f32 %v1798, 0.01
      %v2634 = vmul.f32 %v1909, 0.01
      %v2635 = vmul.f32 %v1911, 0.01
      %v2636 = vmul.f32 %v2022, 0.01
      %v2637 = vmul.f32 %v2024, 0.01
      %v2638 = vmul.f32 %v2135, 0.01
      %v2639 = vmul.f32 %v2137, 0.01
      %v2640 = vmul.f32 %v2248, 0.01
      %v2641 = vmul.f32 %v2250, 0.01
      %v2642 = vmul.f32 %v1461, 0.01
      %v2643 = vmul.f32 %v1463, 0.01
      %v2644 = vmul.f32 %v1574, 0.01
      %v2645 = vmul.f32 %v1576, 0.01
      %v2646 = vmul.f32 %v1687, 0.01
      %v2647 = vmul.f32 %v1689, 0.01
      %v2648 = vmul.f32 %v1800, 0.01
      %v2649 = vmul.f32 %v1802, 0.01
      %v2650 = vmul.f32 %v1913, 0.01
      %v2651 = vmul.f32 %v1915, 0.01
      %v2652 = vmul.f32 %v2026, 0.01
      %v2653 = vmul.f32 %v2028, 0.01
      %v2654 = vmul.f32 %v2139, 0.01
      %v2655 = vmul.f32 %v2141, 0.01
      %v2656 = vmul.f32 %v2252, 0.01
      %v2657 = vmul.f32 %v2254, 0.01
      %v2658 = vmul.f32 %v1467, 0.01
      %v2659 = vmul.f32 %v1469, 0.01
      %v2660 = vmul.f32 %v1580, 0.01
      %v2661 = vmul.f32 %v1582, 0.01
      %v2662 = vmul.f32 %v1693, 0.01
      %v2663 = vmul.f32 %v1695, 0.01
      %v2664 = vmul.f32 %v1806, 0.01
      %v2665 = vmul.f32 %v1808, 0.01
      %v2666 = vmul.f32 %v1919, 0.01
      %v2667 = vmul.f32 %v1921, 0.01
      %v2668 = vmul.f32 %v2032, 0.01
      %v2669 = vmul.f32 %v2034, 0.01
      %v2670 = vmul.f32 %v2145, 0.01
      %v2671 = vmul.f32 %v2147, 0.01
      %v2672 = vmul.f32 %v2258, 0.01
      %v2673 = vmul.f32 %v2260, 0.01
      %v2674 = vmul.f32 %v1471, 0.01
      %v2675 = vmul.f32 %v1473, 0.01
      %v2676 = vmul.f32 %v1584, 0.01
      %v2677 = vmul.f32 %v1586, 0.01
      %v2678 = vmul.f32 %v1697, 0.01
      %v2679 = vmul.f32 %v1699, 0.01
      %v2680 = vmul.f32 %v1810, 0.01
      %v2681 = vmul.f32 %v1812, 0.01
      %v2682 = vmul.f32 %v1923, 0.01
      %v2683 = vmul.f32 %v1925, 0.01
      %v2684 = vmul.f32 %v2036, 0.01
      %v2685 = vmul.f32 %v2038, 0.01
      %v2686 = vmul.f32 %v2149, 0.01
      %v2687 = vmul.f32 %v2151, 0.01
      %v2688 = vmul.f32 %v2262, 0.01
      %v2689 = vmul.f32 %v2264, 0.01
      %v2690 = vmul.f32 %v1477, 0.01
      %v2691 = vmul.f32 %v1479, 0.01
      %v2692 = vmul.f32 %v1590, 0.01
      %v2693 = vmul.f32 %v1592, 0.01
      %v2694 = vmul.f32 %v1703, 0.01
      %v2695 = vmul.f32 %v1705, 0.01
      %v2696 = vmul.f32 %v1816, 0.01
      %v2697 = vmul.f32 %v1818, 0.01
      %v2698 = vmul.f32 %v1929, 0.01
      %v2699 = vmul.f32 %v1931, 0.01
      %v2700 = vmul.f32 %v2042, 0.01
      %v2701 = vmul.f32 %v2044, 0.01
      %v2702 = vmul.f32 %v2155, 0.01
      %v2703 = vmul.f32 %v2157, 0.01
      %v2704 = vmul.f32 %v2268, 0.01
      %v2705 = vmul.f32 %v2270, 0.01
      %v2706 = vmul.f32 %v1481, 0.01
      %v2707 = vmul.f32 %v1483, 0.01
      %v2708 = vmul.f32 %v1594, 0.01
      %v2709 = vmul.f32 %v1596, 0.01
      %v2710 = vmul.f32 %v1707, 0.01
      %v2711 = vmul.f32 %v1709, 0.01
      %v2712 = vmul.f32 %v1820, 0.01
      %v2713 = vmul.f32 %v1822, 0.01
      %v2714 = vmul.f32 %v1933, 0.01
      %v2715 = vmul.f32 %v1935, 0.01
      %v2716 = vmul.f32 %v2046, 0.01
      %v2717 = vmul.f32 %v2048, 0.01
      %v2718 = vmul.f32 %v2159, 0.01
      %v2719 = vmul.f32 %v2161, 0.01
      %v2720 = vmul.f32 %v2272, 0.01
      %v2721 = vmul.f32 %v2274, 0.01
      %v2722 = vmul.f32 %v1487, 0.01
      %v2723 = vmul.f32 %v1489, 0.01
      %v2724 = vmul.f32 %v1600, 0.01
      %v2725 = vmul.f32 %v1602, 0.01
      %v2726 = vmul.f32 %v1713, 0.01
      %v2727 = vmul.f32 %v1715, 0.01
      %v2728 = vmul.f32 %v1826, 0.01
      %v2729 = vmul.f32 %v1828, 0.01
      %v2730 = vmul.f32 %v1939, 0.01
      %v2731 = vmul.f32 %v1941, 0.01
      %v2732 = vmul.f32 %v2052, 0.01
      %v2733 = vmul.f32 %v2054, 0.01
      %v2734 = vmul.f32 %v2165, 0.01
      %v2735 = vmul.f32 %v2167, 0.01
      %v2736 = vmul.f32 %v2278, 0.01
      %v2737 = vmul.f32 %v2280, 0.01
      %v2738 = vmul.f32 %v1491, 0.01
      %v2739 = vmul.f32 %v1493, 0.01
      %v2740 = vmul.f32 %v1604, 0.01
      %v2741 = vmul.f32 %v1606, 0.01
      %v2742 = vmul.f32 %v1717, 0.01
      %v2743 = vmul.f32 %v1719, 0.01
      %v2744 = vmul.f32 %v1830, 0.01
      %v2745 = vmul.f32 %v1832, 0.01
      %v2746 = vmul.f32 %v1943, 0.01
      %v2747 = vmul.f32 %v1945, 0.01
      %v2748 = vmul.f32 %v2056, 0.01
      %v2749 = vmul.f32 %v2058, 0.01
      %v2750 = vmul.f32 %v2169, 0.01
      %v2751 = vmul.f32 %v2171, 0.01
      %v2752 = vmul.f32 %v2282, 0.01
      %v2753 = vmul.f32 %v2284, 0.01
      %v2754 = vmul.f32 %v1497, 0.01
      %v2755 = vmul.f32 %v1499, 0.01
      %v2756 = vmul.f32 %v1610, 0.01
      %v2757 = vmul.f32 %v1612, 0.01
      %v2758 = vmul.f32 %v1723, 0.01
      %v2759 = vmul.f32 %v1725, 0.01
      %v2760 = vmul.f32 %v1836, 0.01
      %v2761 = vmul.f32 %v1838, 0.01
      %v2762 = vmul.f32 %v1949, 0.01
      %v2763 = vmul.f32 %v1951, 0.01
      %v2764 = vmul.f32 %v2062, 0.01
      %v2765 = vmul.f32 %v2064, 0.01
      %v2766 = vmul.f32 %v2175, 0.01
      %v2767 = vmul.f32 %v2177, 0.01
      %v2768 = vmul.f32 %v2288, 0.01
      %v2769 = vmul.f32 %v2290, 0.01
      %v2770 = vmul.f32 %v1501, 0.01
      %v2771 = vmul.f32 %v1503, 0.01
      %v2772 = vmul.f32 %v1614, 0.01
      %v2773 = vmul.f32 %v1616, 0.01
      %v2774 = vmul.f32 %v1727, 0.01
      %v2775 = vmul.f32 %v1729, 0.01
      %v2776 = vmul.f32 %v1840, 0.01
      %v2777 = vmul.f32 %v1842, 0.01
      %v2778 = vmul.f32 %v1953, 0.01
      %v2779 = vmul.f32 %v1955, 0.01
      %v2780 = vmul.f32 %v2066, 0.01
      %v2781 = vmul.f32 %v2068, 0.01
      %v2782 = vmul.f32 %v2179, 0.01
      %v2783 = vmul.f32 %v2181, 0.01
      %v2784 = vmul.f32 %v2292, 0.01
      %v2785 = vmul.f32 %v2294, 0.01
      %v2786 = vmul.f32 %v1507, 0.01
      %v2787 = vmul.f32 %v1509, 0.01
      %v2788 = vmul.f32 %v1620, 0.01
      %v2789 = vmul.f32 %v1622, 0.01
      %v2790 = vmul.f32 %v1733, 0.01
      %v2791 = vmul.f32 %v1735, 0.01
      %v2792 = vmul.f32 %v1846, 0.01
      %v2793 = vmul.f32 %v1848, 0.01
      %v2794 = vmul.f32 %v1959, 0.01
      %v2795 = vmul.f32 %v1961, 0.01
      %v2796 = vmul.f32 %v2072, 0.01
      %v2797 = vmul.f32 %v2074, 0.01
      %v2798 = vmul.f32 %v2185, 0.01
      %v2799 = vmul.f32 %v2187, 0.01
      %v2800 = vmul.f32 %v2298, 0.01
      %v2801 = vmul.f32 %v2300, 0.01
      %v2802 = vmul.f32 %v1511, 0.01
      %v2803 = vmul.f32 %v1513, 0.01
      %v2804 = vmul.f32 %v1624, 0.01
      %v2805 = vmul.f32 %v1626, 0.01
      %v2806 = vmul.f32 %v1737, 0.01
      %v2807 = vmul.f32 %v1739, 0.01
      %v2808 = vmul.f32 %v1850, 0.01
      %v2809 = vmul.f32 %v1852, 0.01
      %v2810 = vmul.f32 %v1963, 0.01
      %v2811 = vmul.f32 %v1965, 0.01
      %v2812 = vmul.f32 %v2076, 0.01
      %v2813 = vmul.f32 %v2078, 0.01
      %v2814 = vmul.f32 %v2189, 0.01
      %v2815 = vmul.f32 %v2191, 0.01
      %v2816 = vmul.f32 %v2302, 0.01
      %v2817 = vmul.f32 %v2304, 0.01
      %v2818 = vsel %vm2306, %v1437, %v2562
      %v2819 = vsel %vm2307, %v1439, %v2563
      %v2820 = vsel %vm2308, %v1550, %v2564
      %v2821 = vsel %vm2309, %v1552, %v2565
      %v2822 = vsel %vm2310, %v1663, %v2566
      %v2823 = vsel %vm2311, %v1665, %v2567
      %v2824 = vsel %vm2312, %v1776, %v2568
      %v2825 = vsel %vm2313, %v1778, %v2569
      %v2826 = vsel %vm2314, %v1889, %v2570
      %v2827 = vsel %vm2315, %v1891, %v2571
      %v2828 = vsel %vm2316, %v2002, %v2572
      %v2829 = vsel %vm2317, %v2004, %v2573
      %v2830 = vsel %vm2318, %v2115, %v2574
      %v2831 = vsel %vm2319, %v2117, %v2575
      %v2832 = vsel %vm2320, %v2228, %v2576
      %v2833 = vsel %vm2321, %v2230, %v2577
      %v2834 = vsel %vm2322, %v1441, %v2578
      %v2835 = vsel %vm2323, %v1443, %v2579
      %v2836 = vsel %vm2324, %v1554, %v2580
      %v2837 = vsel %vm2325, %v1556, %v2581
      %v2838 = vsel %vm2326, %v1667, %v2582
      %v2839 = vsel %vm2327, %v1669, %v2583
      %v2840 = vsel %vm2328, %v1780, %v2584
      %v2841 = vsel %vm2329, %v1782, %v2585
      %v2842 = vsel %vm2330, %v1893, %v2586
      %v2843 = vsel %vm2331, %v1895, %v2587
      %v2844 = vsel %vm2332, %v2006, %v2588
      %v2845 = vsel %vm2333, %v2008, %v2589
      %v2846 = vsel %vm2334, %v2119, %v2590
      %v2847 = vsel %vm2335, %v2121, %v2591
      %v2848 = vsel %vm2336, %v2232, %v2592
      %v2849 = vsel %vm2337, %v2234, %v2593
      %v2850 = vsel %vm2338, %v1447, %v2594
      %v2851 = vsel %vm2339, %v1449, %v2595
      %v2852 = vsel %vm2340, %v1560, %v2596
      %v2853 = vsel %vm2341, %v1562, %v2597
      %v2854 = vsel %vm2342, %v1673, %v2598
      %v2855 = vsel %vm2343, %v1675, %v2599
      %v2856 = vsel %vm2344, %v1786, %v2600
      %v2857 = vsel %vm2345, %v1788, %v2601
      %v2858 = vsel %vm2346, %v1899, %v2602
      %v2859 = vsel %vm2347, %v1901, %v2603
      %v2860 = vsel %vm2348, %v2012, %v2604
      %v2861 = vsel %vm2349, %v2014, %v2605
      %v2862 = vsel %vm2350, %v2125, %v2606
      %v2863 = vsel %vm2351, %v2127, %v2607
      %v2864 = vsel %vm2352, %v2238, %v2608
      %v2865 = vsel %vm2353, %v2240, %v2609
      %v2866 = vsel %vm2354, %v1451, %v2610
      %v2867 = vsel %vm2355, %v1453, %v2611
      %v2868 = vsel %vm2356, %v1564, %v2612
      %v2869 = vsel %vm2357, %v1566, %v2613
      %v2870 = vsel %vm2358, %v1677, %v2614
      %v2871 = vsel %vm2359, %v1679, %v2615
      %v2872 = vsel %vm2360, %v1790, %v2616
      %v2873 = vsel %vm2361, %v1792, %v2617
      %v2874 = vsel %vm2362, %v1903, %v2618
      %v2875 = vsel %vm2363, %v1905, %v2619
      %v2876 = vsel %vm2364, %v2016, %v2620
      %v2877 = vsel %vm2365, %v2018, %v2621
      %v2878 = vsel %vm2366, %v2129, %v2622
      %v2879 = vsel %vm2367, %v2131, %v2623
      %v2880 = vsel %vm2368, %v2242, %v2624
      %v2881 = vsel %vm2369, %v2244, %v2625
      %v2882 = vsel %vm2370, %v1457, %v2626
      %v2883 = vsel %vm2371, %v1459, %v2627
      %v2884 = vsel %vm2372, %v1570, %v2628
      %v2885 = vsel %vm2373, %v1572, %v2629
      %v2886 = vsel %vm2374, %v1683, %v2630
      %v2887 = vsel %vm2375, %v1685, %v2631
      %v2888 = vsel %vm2376, %v1796, %v2632
      %v2889 = vsel %vm2377, %v1798, %v2633
      %v2890 = vsel %vm2378, %v1909, %v2634
      %v2891 = vsel %vm2379, %v1911, %v2635
      %v2892 = vsel %vm2380, %v2022, %v2636
      %v2893 = vsel %vm2381, %v2024, %v2637
      %v2894 = vsel %vm2382, %v2135, %v2638
      %v2895 = vsel %vm2383, %v2137, %v2639
      %v2896 = vsel %vm2384, %v2248, %v2640
      %v2897 = vsel %vm2385, %v2250, %v2641
      %v2898 = vsel %vm2386, %v1461, %v2642
      %v2899 = vsel %vm2387, %v1463, %v2643
      %v2900 = vsel %vm2388, %v1574, %v2644
      %v2901 = vsel %vm2389, %v1576, %v2645
      %v2902 = vsel %vm2390, %v1687, %v2646
      %v2903 = vsel %vm2391, %v1689, %v2647
      %v2904 = vsel %vm2392, %v1800, %v2648
      %v2905 = vsel %vm2393, %v1802, %v2649
      %v2906 = vsel %vm2394, %v1913, %v2650
      %v2907 = vsel %vm2395, %v1915, %v2651
      %v2908 = vsel %vm2396, %v2026, %v2652
      %v2909 = vsel %vm2397, %v2028, %v2653
      %v2910 = vsel %vm2398, %v2139, %v2654
      %v2911 = vsel %vm2399, %v2141, %v2655
      %v2912 = vsel %vm2400, %v2252, %v2656
      %v2913 = vsel %vm2401, %v2254, %v2657
      %v2914 = vsel %vm2402, %v1467, %v2658
      %v2915 = vsel %vm2403, %v1469, %v2659
      %v2916 = vsel %vm2404, %v1580, %v2660
      %v2917 = vsel %vm2405, %v1582, %v2661
      %v2918 = vsel %vm2406, %v1693, %v2662
      %v2919 = vsel %vm2407, %v1695, %v2663
      %v2920 = vsel %vm2408, %v1806, %v2664
      %v2921 = vsel %vm2409, %v1808, %v2665
      %v2922 = vsel %vm2410, %v1919, %v2666
      %v2923 = vsel %vm2411, %v1921, %v2667
      %v2924 = vsel %vm2412, %v2032, %v2668
      %v2925 = vsel %vm2413, %v2034, %v2669
      %v2926 = vsel %vm2414, %v2145, %v2670
      %v2927 = vsel %vm2415, %v2147, %v2671
      %v2928 = vsel %vm2416, %v2258, %v2672
      %v2929 = vsel %vm2417, %v2260, %v2673
      %v2930 = vsel %vm2418, %v1471, %v2674
      %v2931 = vsel %vm2419, %v1473, %v2675
      %v2932 = vsel %vm2420, %v1584, %v2676
      %v2933 = vsel %vm2421, %v1586, %v2677
      %v2934 = vsel %vm2422, %v1697, %v2678
      %v2935 = vsel %vm2423, %v1699, %v2679
      %v2936 = vsel %vm2424, %v1810, %v2680
      %v2937 = vsel %vm2425, %v1812, %v2681
      %v2938 = vsel %vm2426, %v1923, %v2682
      %v2939 = vsel %vm2427, %v1925, %v2683
      %v2940 = vsel %vm2428, %v2036, %v2684
      %v2941 = vsel %vm2429, %v2038, %v2685
      %v2942 = vsel %vm2430, %v2149, %v2686
      %v2943 = vsel %vm2431, %v2151, %v2687
      %v2944 = vsel %vm2432, %v2262, %v2688
      %v2945 = vsel %vm2433, %v2264, %v2689
      %v2946 = vsel %vm2434, %v1477, %v2690
      %v2947 = vsel %vm2435, %v1479, %v2691
      %v2948 = vsel %vm2436, %v1590, %v2692
      %v2949 = vsel %vm2437, %v1592, %v2693
      %v2950 = vsel %vm2438, %v1703, %v2694
      %v2951 = vsel %vm2439, %v1705, %v2695
      %v2952 = vsel %vm2440, %v1816, %v2696
      %v2953 = vsel %vm2441, %v1818, %v2697
      %v2954 = vsel %vm2442, %v1929, %v2698
      %v2955 = vsel %vm2443, %v1931, %v2699
      %v2956 = vsel %vm2444, %v2042, %v2700
      %v2957 = vsel %vm2445, %v2044, %v2701
      %v2958 = vsel %vm2446, %v2155, %v2702
      %v2959 = vsel %vm2447, %v2157, %v2703
      %v2960 = vsel %vm2448, %v2268, %v2704
      %v2961 = vsel %vm2449, %v2270, %v2705
      %v2962 = vsel %vm2450, %v1481, %v2706
      %v2963 = vsel %vm2451, %v1483, %v2707
      %v2964 = vsel %vm2452, %v1594, %v2708
      %v2965 = vsel %vm2453, %v1596, %v2709
      %v2966 = vsel %vm2454, %v1707, %v2710
      %v2967 = vsel %vm2455, %v1709, %v2711
      %v2968 = vsel %vm2456, %v1820, %v2712
      %v2969 = vsel %vm2457, %v1822, %v2713
      %v2970 = vsel %vm2458, %v1933, %v2714
      %v2971 = vsel %vm2459, %v1935, %v2715
      %v2972 = vsel %vm2460, %v2046, %v2716
      %v2973 = vsel %vm2461, %v2048, %v2717
      %v2974 = vsel %vm2462, %v2159, %v2718
      %v2975 = vsel %vm2463, %v2161, %v2719
      %v2976 = vsel %vm2464, %v2272, %v2720
      %v2977 = vsel %vm2465, %v2274, %v2721
      %v2978 = vsel %vm2466, %v1487, %v2722
      %v2979 = vsel %vm2467, %v1489, %v2723
      %v2980 = vsel %vm2468, %v1600, %v2724
      %v2981 = vsel %vm2469, %v1602, %v2725
      %v2982 = vsel %vm2470, %v1713, %v2726
      %v2983 = vsel %vm2471, %v1715, %v2727
      %v2984 = vsel %vm2472, %v1826, %v2728
      %v2985 = vsel %vm2473, %v1828, %v2729
      %v2986 = vsel %vm2474, %v1939, %v2730
      %v2987 = vsel %vm2475, %v1941, %v2731
      %v2988 = vsel %vm2476, %v2052, %v2732
      %v2989 = vsel %vm2477, %v2054, %v2733
      %v2990 = vsel %vm2478, %v2165, %v2734
      %v2991 = vsel %vm2479, %v2167, %v2735
      %v2992 = vsel %vm2480, %v2278, %v2736
      %v2993 = vsel %vm2481, %v2280, %v2737
      %v2994 = vsel %vm2482, %v1491, %v2738
      %v2995 = vsel %vm2483, %v1493, %v2739
      %v2996 = vsel %vm2484, %v1604, %v2740
      %v2997 = vsel %vm2485, %v1606, %v2741
      %v2998 = vsel %vm2486, %v1717, %v2742
      %v2999 = vsel %vm2487, %v1719, %v2743
      %v3000 = vsel %vm2488, %v1830, %v2744
      %v3001 = vsel %vm2489, %v1832, %v2745
      %v3002 = vsel %vm2490, %v1943, %v2746
      %v3003 = vsel %vm2491, %v1945, %v2747
      %v3004 = vsel %vm2492, %v2056, %v2748
      %v3005 = vsel %vm2493, %v2058, %v2749
      %v3006 = vsel %vm2494, %v2169, %v2750
      %v3007 = vsel %vm2495, %v2171, %v2751
      %v3008 = vsel %vm2496, %v2282, %v2752
      %v3009 = vsel %vm2497, %v2284, %v2753
      %v3010 = vsel %vm2498, %v1497, %v2754
      %v3011 = vsel %vm2499, %v1499, %v2755
      %v3012 = vsel %vm2500, %v1610, %v2756
      %v3013 = vsel %vm2501, %v1612, %v2757
      %v3014 = vsel %vm2502, %v1723, %v2758
      %v3015 = vsel %vm2503, %v1725, %v2759
      %v3016 = vsel %vm2504, %v1836, %v2760
      %v3017 = vsel %vm2505, %v1838, %v2761
      %v3018 = vsel %vm2506, %v1949, %v2762
      %v3019 = vsel %vm2507, %v1951, %v2763
      %v3020 = vsel %vm2508, %v2062, %v2764
      %v3021 = vsel %vm2509, %v2064, %v2765
      %v3022 = vsel %vm2510, %v2175, %v2766
      %v3023 = vsel %vm2511, %v2177, %v2767
      %v3024 = vsel %vm2512, %v2288, %v2768
      %v3025 = vsel %vm2513, %v2290, %v2769
      %v3026 = vsel %vm2514, %v1501, %v2770
      %v3027 = vsel %vm2515, %v1503, %v2771
      %v3028 = vsel %vm2516, %v1614, %v2772
      %v3029 = vsel %vm2517, %v1616, %v2773
      %v3030 = vsel %vm2518, %v1727, %v2774
      %v3031 = vsel %vm2519, %v1729, %v2775
      %v3032 = vsel %vm2520, %v1840, %v2776
      %v3033 = vsel %vm2521, %v1842, %v2777
      %v3034 = vsel %vm2522, %v1953, %v2778
      %v3035 = vsel %vm2523, %v1955, %v2779
      %v3036 = vsel %vm2524, %v2066, %v2780
      %v3037 = vsel %vm2525, %v2068, %v2781
      %v3038 = vsel %vm2526, %v2179, %v2782
      %v3039 = vsel %vm2527, %v2181, %v2783
      %v3040 = vsel %vm2528, %v2292, %v2784
      %v3041 = vsel %vm2529, %v2294, %v2785
      %v3042 = vsel %vm2530, %v1507, %v2786
      %v3043 = vsel %vm2531, %v1509, %v2787
      %v3044 = vsel %vm2532, %v1620, %v2788
      %v3045 = vsel %vm2533, %v1622, %v2789
      %v3046 = vsel %vm2534, %v1733, %v2790
      %v3047 = vsel %vm2535, %v1735, %v2791
      %v3048 = vsel %vm2536, %v1846, %v2792
      %v3049 = vsel %vm2537, %v1848, %v2793
      %v3050 = vsel %vm2538, %v1959, %v2794
      %v3051 = vsel %vm2539, %v1961, %v2795
      %v3052 = vsel %vm2540, %v2072, %v2796
      %v3053 = vsel %vm2541, %v2074, %v2797
      %v3054 = vsel %vm2542, %v2185, %v2798
      %v3055 = vsel %vm2543, %v2187, %v2799
      %v3056 = vsel %vm2544, %v2298, %v2800
      %v3057 = vsel %vm2545, %v2300, %v2801
      %v3058 = vsel %vm2546, %v1511, %v2802
      %v3059 = vsel %vm2547, %v1513, %v2803
      %v3060 = vsel %vm2548, %v1624, %v2804
      %v3061 = vsel %vm2549, %v1626, %v2805
      %v3062 = vsel %vm2550, %v1737, %v2806
      %v3063 = vsel %vm2551, %v1739, %v2807
      %v3064 = vsel %vm2552, %v1850, %v2808
      %v3065 = vsel %vm2553, %v1852, %v2809
      %v3066 = vsel %vm2554, %v1963, %v2810
      %v3067 = vsel %vm2555, %v1965, %v2811
      %v3068 = vsel %vm2556, %v2076, %v2812
      %v3069 = vsel %vm2557, %v2078, %v2813
      %v3070 = vsel %vm2558, %v2189, %v2814
      %v3071 = vsel %vm2559, %v2191, %v2815
      %v3072 = vsel %vm2560, %v2302, %v2816
      %v3073 = vsel %vm2561, %v2304, %v2817
      %v3074 = vpack.c.bf16 %v2834, %v2818
      %v3075 = vpack.c.bf16 %v2835, %v2819
      %v3076 = vpack.c.bf16 %v2836, %v2820
      %v3077 = vpack.c.bf16 %v2837, %v2821
      %v3078 = vpack.c.bf16 %v2838, %v2822
      %v3079 = vpack.c.bf16 %v2839, %v2823
      %v3080 = vpack.c.bf16 %v2840, %v2824
      %v3081 = vpack.c.bf16 %v2841, %v2825
      %v3082 = vpack.c.bf16 %v2842, %v2826
      %v3083 = vpack.c.bf16 %v2843, %v2827
      %v3084 = vpack.c.bf16 %v2844, %v2828
      %v3085 = vpack.c.bf16 %v2845, %v2829
      %v3086 = vpack.c.bf16 %v2846, %v2830
      %v3087 = vpack.c.bf16 %v2847, %v2831
      %v3088 = vpack.c.bf16 %v2848, %v2832
      %v3089 = vpack.c.bf16 %v2849, %v2833
      %v3090 = vpack.c.bf16 %v2866, %v2850
      %v3091 = vpack.c.bf16 %v2867, %v2851
      %v3092 = vpack.c.bf16 %v2868, %v2852
      %v3093 = vpack.c.bf16 %v2869, %v2853
      %v3094 = vpack.c.bf16 %v2870, %v2854
      %v3095 = vpack.c.bf16 %v2871, %v2855
      %v3096 = vpack.c.bf16 %v2872, %v2856
      %v3097 = vpack.c.bf16 %v2873, %v2857
      %v3098 = vpack.c.bf16 %v2874, %v2858
      %v3099 = vpack.c.bf16 %v2875, %v2859
      %v3100 = vpack.c.bf16 %v2876, %v2860
      %v3101 = vpack.c.bf16 %v2877, %v2861
      %v3102 = vpack.c.bf16 %v2878, %v2862
      %v3103 = vpack.c.bf16 %v2879, %v2863
      %v3104 = vpack.c.bf16 %v2880, %v2864
      %v3105 = vpack.c.bf16 %v2881, %v2865
      %v3106 = vpack.c.bf16 %v2898, %v2882
      %v3107 = vpack.c.bf16 %v2899, %v2883
      %v3108 = vpack.c.bf16 %v2900, %v2884
      %v3109 = vpack.c.bf16 %v2901, %v2885
      %v3110 = vpack.c.bf16 %v2902, %v2886
      %v3111 = vpack.c.bf16 %v2903, %v2887
      %v3112 = vpack.c.bf16 %v2904, %v2888
      %v3113 = vpack.c.bf16 %v2905, %v2889
      %v3114 = vpack.c.bf16 %v2906, %v2890
      %v3115 = vpack.c.bf16 %v2907, %v2891
      %v3116 = vpack.c.bf16 %v2908, %v2892
      %v3117 = vpack.c.bf16 %v2909, %v2893
      %v3118 = vpack.c.bf16 %v2910, %v2894
      %v3119 = vpack.c.bf16 %v2911, %v2895
      %v3120 = vpack.c.bf16 %v2912, %v2896
      %v3121 = vpack.c.bf16 %v2913, %v2897
      %v3122 = vpack.c.bf16 %v2930, %v2914
      %v3123 = vpack.c.bf16 %v2931, %v2915
      %v3124 = vpack.c.bf16 %v2932, %v2916
      %v3125 = vpack.c.bf16 %v2933, %v2917
      %v3126 = vpack.c.bf16 %v2934, %v2918
      %v3127 = vpack.c.bf16 %v2935, %v2919
      %v3128 = vpack.c.bf16 %v2936, %v2920
      %v3129 = vpack.c.bf16 %v2937, %v2921
      %v3130 = vpack.c.bf16 %v2938, %v2922
      %v3131 = vpack.c.bf16 %v2939, %v2923
      %v3132 = vpack.c.bf16 %v2940, %v2924
      %v3133 = vpack.c.bf16 %v2941, %v2925
      %v3134 = vpack.c.bf16 %v2942, %v2926
      %v3135 = vpack.c.bf16 %v2943, %v2927
      %v3136 = vpack.c.bf16 %v2944, %v2928
      %v3137 = vpack.c.bf16 %v2945, %v2929
      %v3138 = vpack.c.bf16 %v2962, %v2946
      %v3139 = vpack.c.bf16 %v2963, %v2947
      %v3140 = vpack.c.bf16 %v2964, %v2948
      %v3141 = vpack.c.bf16 %v2965, %v2949
      %v3142 = vpack.c.bf16 %v2966, %v2950
      %v3143 = vpack.c.bf16 %v2967, %v2951
      %v3144 = vpack.c.bf16 %v2968, %v2952
      %v3145 = vpack.c.bf16 %v2969, %v2953
      %v3146 = vpack.c.bf16 %v2970, %v2954
      %v3147 = vpack.c.bf16 %v2971, %v2955
      %v3148 = vpack.c.bf16 %v2972, %v2956
      %v3149 = vpack.c.bf16 %v2973, %v2957
      %v3150 = vpack.c.bf16 %v2974, %v2958
      %v3151 = vpack.c.bf16 %v2975, %v2959
      %v3152 = vpack.c.bf16 %v2976, %v2960
      %v3153 = vpack.c.bf16 %v2977, %v2961
      %v3154 = vpack.c.bf16 %v2994, %v2978
      %v3155 = vpack.c.bf16 %v2995, %v2979
      %v3156 = vpack.c.bf16 %v2996, %v2980
      %v3157 = vpack.c.bf16 %v2997, %v2981
      %v3158 = vpack.c.bf16 %v2998, %v2982
      %v3159 = vpack.c.bf16 %v2999, %v2983
      %v3160 = vpack.c.bf16 %v3000, %v2984
      %v3161 = vpack.c.bf16 %v3001, %v2985
      %v3162 = vpack.c.bf16 %v3002, %v2986
      %v3163 = vpack.c.bf16 %v3003, %v2987
      %v3164 = vpack.c.bf16 %v3004, %v2988
      %v3165 = vpack.c.bf16 %v3005, %v2989
      %v3166 = vpack.c.bf16 %v3006, %v2990
      %v3167 = vpack.c.bf16 %v3007, %v2991
      %v3168 = vpack.c.bf16 %v3008, %v2992
      %v3169 = vpack.c.bf16 %v3009, %v2993
      %v3170 = vpack.c.bf16 %v3026, %v3010
      %v3171 = vpack.c.bf16 %v3027, %v3011
      %v3172 = vpack.c.bf16 %v3028, %v3012
      %v3173 = vpack.c.bf16 %v3029, %v3013
      %v3174 = vpack.c.bf16 %v3030, %v3014
      %v3175 = vpack.c.bf16 %v3031, %v3015
      %v3176 = vpack.c.bf16 %v3032, %v3016
      %v3177 = vpack.c.bf16 %v3033, %v3017
      %v3178 = vpack.c.bf16 %v3034, %v3018
      %v3179 = vpack.c.bf16 %v3035, %v3019
      %v3180 = vpack.c.bf16 %v3036, %v3020
      %v3181 = vpack.c.bf16 %v3037, %v3021
      %v3182 = vpack.c.bf16 %v3038, %v3022
      %v3183 = vpack.c.bf16 %v3039, %v3023
      %v3184 = vpack.c.bf16 %v3040, %v3024
      %v3185 = vpack.c.bf16 %v3041, %v3025
      %v3186 = vpack.c.bf16 %v3058, %v3042
      %v3187 = vpack.c.bf16 %v3059, %v3043
      %v3188 = vpack.c.bf16 %v3060, %v3044
      %v3189 = vpack.c.bf16 %v3061, %v3045
      %v3190 = vpack.c.bf16 %v3062, %v3046
      %v3191 = vpack.c.bf16 %v3063, %v3047
      %v3192 = vpack.c.bf16 %v3064, %v3048
      %v3193 = vpack.c.bf16 %v3065, %v3049
      %v3194 = vpack.c.bf16 %v3066, %v3050
      %v3195 = vpack.c.bf16 %v3067, %v3051
      %v3196 = vpack.c.bf16 %v3068, %v3052
      %v3197 = vpack.c.bf16 %v3069, %v3053
      %v3198 = vpack.c.bf16 %v3070, %v3054
      %v3199 = vpack.c.bf16 %v3071, %v3055
      %v3200 = vpack.c.bf16 %v3072, %v3056
      %v3201 = vpack.c.bf16 %v3073, %v3057
      %v3202 = vld [vmem:[%s3] sm:$0xff]
      %v3203 = vld [vmem:[%s3 + $0x8] sm:$0xff]
      %v3204 = vld [vmem:[%s3 + $0x10] sm:$0xff]
      %v3205 = vld [vmem:[%s3 + $0x18] sm:$0xff]
      %v3206 = vld [vmem:[%s3 + $0x20] sm:$0xff]
      %v3207 = vld [vmem:[%s3 + $0x28] sm:$0xff]
      %v3208 = vld [vmem:[%s3 + $0x30] sm:$0xff]
      %v3209 = vld [vmem:[%s3 + $0x38] sm:$0xff]
      %v3210 = vld [vmem:[%s3 + $0x40] sm:$0xff]
      %v3211 = vld [vmem:[%s3 + $0x48] sm:$0xff]
      %v3212 = vld [vmem:[%s3 + $0x50] sm:$0xff]
      %v3213 = vld [vmem:[%s3 + $0x58] sm:$0xff]
      %v3214 = vld [vmem:[%s3 + $0x60] sm:$0xff]
      %v3215 = vld [vmem:[%s3 + $0x68] sm:$0xff]
      %v3216 = vld [vmem:[%s3 + $0x70] sm:$0xff]
      %v3217 = vld [vmem:[%s3 + $0x78] sm:$0xff]
      %v3218 = vld [vmem:[%s3 + $0x80] sm:$0xff]
      %v3219 = vld [vmem:[%s3 + $0x88] sm:$0xff]
      %v3220 = vld [vmem:[%s3 + $0x90] sm:$0xff]
      %v3221 = vld [vmem:[%s3 + $0x98] sm:$0xff]
      %v3222 = vld [vmem:[%s3 + $0xa0] sm:$0xff]
      %v3223 = vld [vmem:[%s3 + $0xa8] sm:$0xff]
      %v3224 = vld [vmem:[%s3 + $0xb0] sm:$0xff]
      %v3225 = vld [vmem:[%s3 + $0xb8] sm:$0xff]
      %v3226 = vld [vmem:[%s3 + $0xc0] sm:$0xff]
      %v3227 = vld [vmem:[%s3 + $0xc8] sm:$0xff]
      %v3228 = vld [vmem:[%s3 + $0xd0] sm:$0xff]
      %v3229 = vld [vmem:[%s3 + $0xd8] sm:$0xff]
      %v3230 = vld [vmem:[%s3 + $0xe0] sm:$0xff]
      %v3231 = vld [vmem:[%s3 + $0xe8] sm:$0xff]
      %v3232 = vld [vmem:[%s3 + $0xf0] sm:$0xff]
      %v3233 = vld [vmem:[%s3 + $0xf8] sm:$0xff]
      %v3234 = vld [vmem:[%s3 + $0x100] sm:$0xff]
      %v3235 = vld [vmem:[%s3 + $0x108] sm:$0xff]
      %v3236 = vld [vmem:[%s3 + $0x110] sm:$0xff]
      %v3237 = vld [vmem:[%s3 + $0x118] sm:$0xff]
      %v3238 = vld [vmem:[%s3 + $0x120] sm:$0xff]
      %v3239 = vld [vmem:[%s3 + $0x128] sm:$0xff]
      %v3240 = vld [vmem:[%s3 + $0x130] sm:$0xff]
      %v3241 = vld [vmem:[%s3 + $0x138] sm:$0xff]
      %v3242 = vld [vmem:[%s3 + $0x140] sm:$0xff]
      %v3243 = vld [vmem:[%s3 + $0x148] sm:$0xff]
      %v3244 = vld [vmem:[%s3 + $0x150] sm:$0xff]
      %v3245 = vld [vmem:[%s3 + $0x158] sm:$0xff]
      %v3246 = vld [vmem:[%s3 + $0x160] sm:$0xff]
      %v3247 = vld [vmem:[%s3 + $0x168] sm:$0xff]
      %v3248 = vld [vmem:[%s3 + $0x170] sm:$0xff]
      %v3249 = vld [vmem:[%s3 + $0x178] sm:$0xff]
      %v3250 = vld [vmem:[%s3 + $0x180] sm:$0xff]
      %v3251 = vld [vmem:[%s3 + $0x188] sm:$0xff]
      %v3252 = vld [vmem:[%s3 + $0x190] sm:$0xff]
      %v3253 = vld [vmem:[%s3 + $0x198] sm:$0xff]
      %v3254 = vld [vmem:[%s3 + $0x1a0] sm:$0xff]
      %v3255 = vld [vmem:[%s3 + $0x1a8] sm:$0xff]
      %v3256 = vld [vmem:[%s3 + $0x1b0] sm:$0xff]
      %v3257 = vld [vmem:[%s3 + $0x1b8] sm:$0xff]
      %v3258 = vld [vmem:[%s3 + $0x1c0] sm:$0xff]
      %v3259 = vld [vmem:[%s3 + $0x1c8] sm:$0xff]
      %v3260 = vld [vmem:[%s3 + $0x1d0] sm:$0xff]
      %v3261 = vld [vmem:[%s3 + $0x1d8] sm:$0xff]
      %v3262 = vld [vmem:[%s3 + $0x1e0] sm:$0xff]
      %v3263 = vld [vmem:[%s3 + $0x1e8] sm:$0xff]
      %v3264 = vld [vmem:[%s3 + $0x1f0] sm:$0xff]
      %v3265 = vld [vmem:[%s3 + $0x1f8] sm:$0xff]
      %v3266 = vld [vmem:[%s3 + $0x200] sm:$0xff]
      %v3267 = vld [vmem:[%s3 + $0x208] sm:$0xff]
      %v3268 = vld [vmem:[%s3 + $0x210] sm:$0xff]
      %v3269 = vld [vmem:[%s3 + $0x218] sm:$0xff]
      %v3270 = vld [vmem:[%s3 + $0x220] sm:$0xff]
      %v3271 = vld [vmem:[%s3 + $0x228] sm:$0xff]
      %v3272 = vld [vmem:[%s3 + $0x230] sm:$0xff]
      %v3273 = vld [vmem:[%s3 + $0x238] sm:$0xff]
      %v3274 = vld [vmem:[%s3 + $0x240] sm:$0xff]
      %v3275 = vld [vmem:[%s3 + $0x248] sm:$0xff]
      %v3276 = vld [vmem:[%s3 + $0x250] sm:$0xff]
      %v3277 = vld [vmem:[%s3 + $0x258] sm:$0xff]
      %v3278 = vld [vmem:[%s3 + $0x260] sm:$0xff]
      %v3279 = vld [vmem:[%s3 + $0x268] sm:$0xff]
      %v3280 = vld [vmem:[%s3 + $0x270] sm:$0xff]
      %v3281 = vld [vmem:[%s3 + $0x278] sm:$0xff]
      %v3282 = vld [vmem:[%s3 + $0x280] sm:$0xff]
      %v3283 = vld [vmem:[%s3 + $0x288] sm:$0xff]
      %v3284 = vld [vmem:[%s3 + $0x290] sm:$0xff]
      %v3285 = vld [vmem:[%s3 + $0x298] sm:$0xff]
      %v3286 = vld [vmem:[%s3 + $0x2a0] sm:$0xff]
      %v3287 = vld [vmem:[%s3 + $0x2a8] sm:$0xff]
      %v3288 = vld [vmem:[%s3 + $0x2b0] sm:$0xff]
      %v3289 = vld [vmem:[%s3 + $0x2b8] sm:$0xff]
      %v3290 = vld [vmem:[%s3 + $0x2c0] sm:$0xff]
      %v3291 = vld [vmem:[%s3 + $0x2c8] sm:$0xff]
      %v3292 = vld [vmem:[%s3 + $0x2d0] sm:$0xff]
      %v3293 = vld [vmem:[%s3 + $0x2d8] sm:$0xff]
      %v3294 = vld [vmem:[%s3 + $0x2e0] sm:$0xff]
      %v3295 = vld [vmem:[%s3 + $0x2e8] sm:$0xff]
      %v3296 = vld [vmem:[%s3 + $0x2f0] sm:$0xff]
      %v3297 = vld [vmem:[%s3 + $0x2f8] sm:$0xff]
      %v3298 = vld [vmem:[%s3 + $0x300] sm:$0xff]
      %v3299 = vld [vmem:[%s3 + $0x308] sm:$0xff]
      %v3300 = vld [vmem:[%s3 + $0x310] sm:$0xff]
      %v3301 = vld [vmem:[%s3 + $0x318] sm:$0xff]
      %v3302 = vld [vmem:[%s3 + $0x320] sm:$0xff]
      %v3303 = vld [vmem:[%s3 + $0x328] sm:$0xff]
      %v3304 = vld [vmem:[%s3 + $0x330] sm:$0xff]
      %v3305 = vld [vmem:[%s3 + $0x338] sm:$0xff]
      %v3306 = vld [vmem:[%s3 + $0x340] sm:$0xff]
      %v3307 = vld [vmem:[%s3 + $0x348] sm:$0xff]
      %v3308 = vld [vmem:[%s3 + $0x350] sm:$0xff]
      %v3309 = vld [vmem:[%s3 + $0x358] sm:$0xff]
      %v3310 = vld [vmem:[%s3 + $0x360] sm:$0xff]
      %v3311 = vld [vmem:[%s3 + $0x368] sm:$0xff]
      %v3312 = vld [vmem:[%s3 + $0x370] sm:$0xff]
      %v3313 = vld [vmem:[%s3 + $0x378] sm:$0xff]
      %v3314 = vld [vmem:[%s3 + $0x380] sm:$0xff]
      %v3315 = vld [vmem:[%s3 + $0x388] sm:$0xff]
      %v3316 = vld [vmem:[%s3 + $0x390] sm:$0xff]
      %v3317 = vld [vmem:[%s3 + $0x398] sm:$0xff]
      %v3318 = vld [vmem:[%s3 + $0x3a0] sm:$0xff]
      %v3319 = vld [vmem:[%s3 + $0x3a8] sm:$0xff]
      %v3320 = vld [vmem:[%s3 + $0x3b0] sm:$0xff]
      %v3321 = vld [vmem:[%s3 + $0x3b8] sm:$0xff]
      %v3322 = vld [vmem:[%s3 + $0x3c0] sm:$0xff]
      %v3323 = vld [vmem:[%s3 + $0x3c8] sm:$0xff]
      %v3324 = vld [vmem:[%s3 + $0x3d0] sm:$0xff]
      %v3325 = vld [vmem:[%s3 + $0x3d8] sm:$0xff]
      %v3326 = vld [vmem:[%s3 + $0x3e0] sm:$0xff]
      %v3327 = vld [vmem:[%s3 + $0x3e8] sm:$0xff]
      %v3328 = vld [vmem:[%s3 + $0x3f0] sm:$0xff]
      %v3329 = vld [vmem:[%s3 + $0x3f8] sm:$0xff]
      %v3330 = vld [vmem:[%s3 + $0x400] sm:$0xff]
      %v3331 = vld [vmem:[%s3 + $0x408] sm:$0xff]
      %v3332 = vld [vmem:[%s3 + $0x410] sm:$0xff]
      %v3333 = vld [vmem:[%s3 + $0x418] sm:$0xff]
      %v3334 = vld [vmem:[%s3 + $0x420] sm:$0xff]
      %v3335 = vld [vmem:[%s3 + $0x428] sm:$0xff]
      %v3336 = vld [vmem:[%s3 + $0x430] sm:$0xff]
      %v3337 = vld [vmem:[%s3 + $0x438] sm:$0xff]
      %v3338 = vld [vmem:[%s3 + $0x440] sm:$0xff]
      %v3339 = vld [vmem:[%s3 + $0x448] sm:$0xff]
      %v3340 = vld [vmem:[%s3 + $0x450] sm:$0xff]
      %v3341 = vld [vmem:[%s3 + $0x458] sm:$0xff]
      %v3342 = vld [vmem:[%s3 + $0x460] sm:$0xff]
      %v3343 = vld [vmem:[%s3 + $0x468] sm:$0xff]
      %v3344 = vld [vmem:[%s3 + $0x470] sm:$0xff]
      %v3345 = vld [vmem:[%s3 + $0x478] sm:$0xff]
      %v3346 = vld [vmem:[%s3 + $0x480] sm:$0xff]
      %v3347 = vld [vmem:[%s3 + $0x488] sm:$0xff]
      %v3348 = vld [vmem:[%s3 + $0x490] sm:$0xff]
      %v3349 = vld [vmem:[%s3 + $0x498] sm:$0xff]
      %v3350 = vld [vmem:[%s3 + $0x4a0] sm:$0xff]
      %v3351 = vld [vmem:[%s3 + $0x4a8] sm:$0xff]
      %v3352 = vld [vmem:[%s3 + $0x4b0] sm:$0xff]
      %v3353 = vld [vmem:[%s3 + $0x4b8] sm:$0xff]
      %v3354 = vld [vmem:[%s3 + $0x4c0] sm:$0xff]
      %v3355 = vld [vmem:[%s3 + $0x4c8] sm:$0xff]
      %v3356 = vld [vmem:[%s3 + $0x4d0] sm:$0xff]
      %v3357 = vld [vmem:[%s3 + $0x4d8] sm:$0xff]
      %v3358 = vld [vmem:[%s3 + $0x4e0] sm:$0xff]
      %v3359 = vld [vmem:[%s3 + $0x4e8] sm:$0xff]
      %v3360 = vld [vmem:[%s3 + $0x4f0] sm:$0xff]
      %v3361 = vld [vmem:[%s3 + $0x4f8] sm:$0xff]
      %v3362 = vld [vmem:[%s3 + $0x500] sm:$0xff]
      %v3363 = vld [vmem:[%s3 + $0x508] sm:$0xff]
      %v3364 = vld [vmem:[%s3 + $0x510] sm:$0xff]
      %v3365 = vld [vmem:[%s3 + $0x518] sm:$0xff]
      %v3366 = vld [vmem:[%s3 + $0x520] sm:$0xff]
      %v3367 = vld [vmem:[%s3 + $0x528] sm:$0xff]
      %v3368 = vld [vmem:[%s3 + $0x530] sm:$0xff]
      %v3369 = vld [vmem:[%s3 + $0x538] sm:$0xff]
      %v3370 = vld [vmem:[%s3 + $0x540] sm:$0xff]
      %v3371 = vld [vmem:[%s3 + $0x548] sm:$0xff]
      %v3372 = vld [vmem:[%s3 + $0x550] sm:$0xff]
      %v3373 = vld [vmem:[%s3 + $0x558] sm:$0xff]
      %v3374 = vld [vmem:[%s3 + $0x560] sm:$0xff]
      %v3375 = vld [vmem:[%s3 + $0x568] sm:$0xff]
      %v3376 = vld [vmem:[%s3 + $0x570] sm:$0xff]
      %v3377 = vld [vmem:[%s3 + $0x578] sm:$0xff]
      %v3378 = vld [vmem:[%s3 + $0x580] sm:$0xff]
      %v3379 = vld [vmem:[%s3 + $0x588] sm:$0xff]
      %v3380 = vld [vmem:[%s3 + $0x590] sm:$0xff]
      %v3381 = vld [vmem:[%s3 + $0x598] sm:$0xff]
      %v3382 = vld [vmem:[%s3 + $0x5a0] sm:$0xff]
      %v3383 = vld [vmem:[%s3 + $0x5a8] sm:$0xff]
      %v3384 = vld [vmem:[%s3 + $0x5b0] sm:$0xff]
      %v3385 = vld [vmem:[%s3 + $0x5b8] sm:$0xff]
      %v3386 = vld [vmem:[%s3 + $0x5c0] sm:$0xff]
      %v3387 = vld [vmem:[%s3 + $0x5c8] sm:$0xff]
      %v3388 = vld [vmem:[%s3 + $0x5d0] sm:$0xff]
      %v3389 = vld [vmem:[%s3 + $0x5d8] sm:$0xff]
      %v3390 = vld [vmem:[%s3 + $0x5e0] sm:$0xff]
      %v3391 = vld [vmem:[%s3 + $0x5e8] sm:$0xff]
      %v3392 = vld [vmem:[%s3 + $0x5f0] sm:$0xff]
      %v3393 = vld [vmem:[%s3 + $0x5f8] sm:$0xff]
      %v3394 = vld [vmem:[%s3 + $0x600] sm:$0xff]
      %v3395 = vld [vmem:[%s3 + $0x608] sm:$0xff]
      %v3396 = vld [vmem:[%s3 + $0x610] sm:$0xff]
      %v3397 = vld [vmem:[%s3 + $0x618] sm:$0xff]
      %v3398 = vld [vmem:[%s3 + $0x620] sm:$0xff]
      %v3399 = vld [vmem:[%s3 + $0x628] sm:$0xff]
      %v3400 = vld [vmem:[%s3 + $0x630] sm:$0xff]
      %v3401 = vld [vmem:[%s3 + $0x638] sm:$0xff]
      %v3402 = vld [vmem:[%s3 + $0x640] sm:$0xff]
      %v3403 = vld [vmem:[%s3 + $0x648] sm:$0xff]
      %v3404 = vld [vmem:[%s3 + $0x650] sm:$0xff]
      %v3405 = vld [vmem:[%s3 + $0x658] sm:$0xff]
      %v3406 = vld [vmem:[%s3 + $0x660] sm:$0xff]
      %v3407 = vld [vmem:[%s3 + $0x668] sm:$0xff]
      %v3408 = vld [vmem:[%s3 + $0x670] sm:$0xff]
      %v3409 = vld [vmem:[%s3 + $0x678] sm:$0xff]
      %v3410 = vld [vmem:[%s3 + $0x680] sm:$0xff]
      %v3411 = vld [vmem:[%s3 + $0x688] sm:$0xff]
      %v3412 = vld [vmem:[%s3 + $0x690] sm:$0xff]
      %v3413 = vld [vmem:[%s3 + $0x698] sm:$0xff]
      %v3414 = vld [vmem:[%s3 + $0x6a0] sm:$0xff]
      %v3415 = vld [vmem:[%s3 + $0x6a8] sm:$0xff]
      %v3416 = vld [vmem:[%s3 + $0x6b0] sm:$0xff]
      %v3417 = vld [vmem:[%s3 + $0x6b8] sm:$0xff]
      %v3418 = vld [vmem:[%s3 + $0x6c0] sm:$0xff]
      %v3419 = vld [vmem:[%s3 + $0x6c8] sm:$0xff]
      %v3420 = vld [vmem:[%s3 + $0x6d0] sm:$0xff]
      %v3421 = vld [vmem:[%s3 + $0x6d8] sm:$0xff]
      %v3422 = vld [vmem:[%s3 + $0x6e0] sm:$0xff]
      %v3423 = vld [vmem:[%s3 + $0x6e8] sm:$0xff]
      %v3424 = vld [vmem:[%s3 + $0x6f0] sm:$0xff]
      %v3425 = vld [vmem:[%s3 + $0x6f8] sm:$0xff]
      %v3426 = vld [vmem:[%s3 + $0x700] sm:$0xff]
      %v3427 = vld [vmem:[%s3 + $0x708] sm:$0xff]
      %v3428 = vld [vmem:[%s3 + $0x710] sm:$0xff]
      %v3429 = vld [vmem:[%s3 + $0x718] sm:$0xff]
      %v3430 = vld [vmem:[%s3 + $0x720] sm:$0xff]
      %v3431 = vld [vmem:[%s3 + $0x728] sm:$0xff]
      %v3432 = vld [vmem:[%s3 + $0x730] sm:$0xff]
      %v3433 = vld [vmem:[%s3 + $0x738] sm:$0xff]
      %v3434 = vld [vmem:[%s3 + $0x740] sm:$0xff]
      %v3435 = vld [vmem:[%s3 + $0x748] sm:$0xff]
      %v3436 = vld [vmem:[%s3 + $0x750] sm:$0xff]
      %v3437 = vld [vmem:[%s3 + $0x758] sm:$0xff]
      %v3438 = vld [vmem:[%s3 + $0x760] sm:$0xff]
      %v3439 = vld [vmem:[%s3 + $0x768] sm:$0xff]
      %v3440 = vld [vmem:[%s3 + $0x770] sm:$0xff]
      %v3441 = vld [vmem:[%s3 + $0x778] sm:$0xff]
      %v3442 = vld [vmem:[%s3 + $0x780] sm:$0xff]
      %v3443 = vld [vmem:[%s3 + $0x788] sm:$0xff]
      %v3444 = vld [vmem:[%s3 + $0x790] sm:$0xff]
      %v3445 = vld [vmem:[%s3 + $0x798] sm:$0xff]
      %v3446 = vld [vmem:[%s3 + $0x7a0] sm:$0xff]
      %v3447 = vld [vmem:[%s3 + $0x7a8] sm:$0xff]
      %v3448 = vld [vmem:[%s3 + $0x7b0] sm:$0xff]
      %v3449 = vld [vmem:[%s3 + $0x7b8] sm:$0xff]
      %v3450 = vld [vmem:[%s3 + $0x7c0] sm:$0xff]
      %v3451 = vld [vmem:[%s3 + $0x7c8] sm:$0xff]
      %v3452 = vld [vmem:[%s3 + $0x7d0] sm:$0xff]
      %v3453 = vld [vmem:[%s3 + $0x7d8] sm:$0xff]
      %v3454 = vld [vmem:[%s3 + $0x7e0] sm:$0xff]
      %v3455 = vld [vmem:[%s3 + $0x7e8] sm:$0xff]
      %v3456 = vld [vmem:[%s3 + $0x7f0] sm:$0xff]
      %v3457 = vld [vmem:[%s3 + $0x7f8] sm:$0xff]
      %v3458 = vld [vmem:[%s4] sm:$0x3]
      %v3460 = vlaneseq
      %v3461 = vshrl.u32 %v3460, 7
      %v3462 = vsub.s32 0, %v3461
      %v3463 = vrot.slane %v3458, %v3462
      %v3464 = vlaneseq
      %v3465 = vshrl.u32 %v3464, 7
      %v3466 = vsub.s32 1, %v3465
      %v3467 = vrot.slane %v3458, %v3466
      %v3726 = vunpack.c.l.b16 %v3202
      %v3727 = vunpack.c.h.b16 %v3202
      %v3728 = vunpack.c.l.b16 %v3203
      %v3729 = vunpack.c.h.b16 %v3203
      %v3730 = vunpack.c.l.b16 %v3204
      %v3731 = vunpack.c.h.b16 %v3204
      %v3732 = vunpack.c.l.b16 %v3205
      %v3733 = vunpack.c.h.b16 %v3205
      %v3734 = vunpack.c.l.b16 %v3206
      %v3735 = vunpack.c.h.b16 %v3206
      %v3736 = vunpack.c.l.b16 %v3207
      %v3737 = vunpack.c.h.b16 %v3207
      %v3738 = vunpack.c.l.b16 %v3208
      %v3739 = vunpack.c.h.b16 %v3208
      %v3740 = vunpack.c.l.b16 %v3209
      %v3741 = vunpack.c.h.b16 %v3209
      %v3742 = vunpack.c.l.b16 %v3210
      %v3743 = vunpack.c.h.b16 %v3210
      %v3744 = vunpack.c.l.b16 %v3211
      %v3745 = vunpack.c.h.b16 %v3211
      %v3746 = vunpack.c.l.b16 %v3212
      %v3747 = vunpack.c.h.b16 %v3212
      %v3748 = vunpack.c.l.b16 %v3213
      %v3749 = vunpack.c.h.b16 %v3213
      %v3750 = vunpack.c.l.b16 %v3214
      %v3751 = vunpack.c.h.b16 %v3214
      %v3752 = vunpack.c.l.b16 %v3215
      %v3753 = vunpack.c.h.b16 %v3215
      %v3754 = vunpack.c.l.b16 %v3216
      %v3755 = vunpack.c.h.b16 %v3216
      %v3756 = vunpack.c.l.b16 %v3217
      %v3757 = vunpack.c.h.b16 %v3217
      %v3758 = vunpack.c.l.b16 %v3218
      %v3759 = vunpack.c.h.b16 %v3218
      %v3760 = vunpack.c.l.b16 %v3219
      %v3761 = vunpack.c.h.b16 %v3219
      %v3762 = vunpack.c.l.b16 %v3220
      %v3763 = vunpack.c.h.b16 %v3220
      %v3764 = vunpack.c.l.b16 %v3221
      %v3765 = vunpack.c.h.b16 %v3221
      %v3766 = vunpack.c.l.b16 %v3222
      %v3767 = vunpack.c.h.b16 %v3222
      %v3768 = vunpack.c.l.b16 %v3223
      %v3769 = vunpack.c.h.b16 %v3223
      %v3770 = vunpack.c.l.b16 %v3224
      %v3771 = vunpack.c.h.b16 %v3224
      %v3772 = vunpack.c.l.b16 %v3225
      %v3773 = vunpack.c.h.b16 %v3225
      %v3774 = vunpack.c.l.b16 %v3226
      %v3775 = vunpack.c.h.b16 %v3226
      %v3776 = vunpack.c.l.b16 %v3227
      %v3777 = vunpack.c.h.b16 %v3227
      %v3778 = vunpack.c.l.b16 %v3228
      %v3779 = vunpack.c.h.b16 %v3228
      %v3780 = vunpack.c.l.b16 %v3229
      %v3781 = vunpack.c.h.b16 %v3229
      %v3782 = vunpack.c.l.b16 %v3230
      %v3783 = vunpack.c.h.b16 %v3230
      %v3784 = vunpack.c.l.b16 %v3231
      %v3785 = vunpack.c.h.b16 %v3231
      %v3786 = vunpack.c.l.b16 %v3232
      %v3787 = vunpack.c.h.b16 %v3232
      %v3788 = vunpack.c.l.b16 %v3233
      %v3789 = vunpack.c.h.b16 %v3233
      %v3790 = vunpack.c.l.b16 %v3234
      %v3791 = vunpack.c.h.b16 %v3234
      %v3792 = vunpack.c.l.b16 %v3235
      %v3793 = vunpack.c.h.b16 %v3235
      %v3794 = vunpack.c.l.b16 %v3236
      %v3795 = vunpack.c.h.b16 %v3236
      %v3796 = vunpack.c.l.b16 %v3237
      %v3797 = vunpack.c.h.b16 %v3237
      %v3798 = vunpack.c.l.b16 %v3238
      %v3799 = vunpack.c.h.b16 %v3238
      %v3800 = vunpack.c.l.b16 %v3239
      %v3801 = vunpack.c.h.b16 %v3239
      %v3802 = vunpack.c.l.b16 %v3240
      %v3803 = vunpack.c.h.b16 %v3240
      %v3804 = vunpack.c.l.b16 %v3241
      %v3805 = vunpack.c.h.b16 %v3241
      %v3806 = vunpack.c.l.b16 %v3242
      %v3807 = vunpack.c.h.b16 %v3242
      %v3808 = vunpack.c.l.b16 %v3243
      %v3809 = vunpack.c.h.b16 %v3243
      %v3810 = vunpack.c.l.b16 %v3244
      %v3811 = vunpack.c.h.b16 %v3244
      %v3812 = vunpack.c.l.b16 %v3245
      %v3813 = vunpack.c.h.b16 %v3245
      %v3814 = vunpack.c.l.b16 %v3246
      %v3815 = vunpack.c.h.b16 %v3246
      %v3816 = vunpack.c.l.b16 %v3247
      %v3817 = vunpack.c.h.b16 %v3247
      %v3818 = vunpack.c.l.b16 %v3248
      %v3819 = vunpack.c.h.b16 %v3248
      %v3820 = vunpack.c.l.b16 %v3249
      %v3821 = vunpack.c.h.b16 %v3249
      %v3822 = vunpack.c.l.b16 %v3250
      %v3823 = vunpack.c.h.b16 %v3250
      %v3824 = vunpack.c.l.b16 %v3251
      %v3825 = vunpack.c.h.b16 %v3251
      %v3826 = vunpack.c.l.b16 %v3252
      %v3827 = vunpack.c.h.b16 %v3252
      %v3828 = vunpack.c.l.b16 %v3253
      %v3829 = vunpack.c.h.b16 %v3253
      %v3830 = vunpack.c.l.b16 %v3254
      %v3831 = vunpack.c.h.b16 %v3254
      %v3832 = vunpack.c.l.b16 %v3255
      %v3833 = vunpack.c.h.b16 %v3255
      %v3834 = vunpack.c.l.b16 %v3256
      %v3835 = vunpack.c.h.b16 %v3256
      %v3836 = vunpack.c.l.b16 %v3257
      %v3837 = vunpack.c.h.b16 %v3257
      %v3838 = vunpack.c.l.b16 %v3258
      %v3839 = vunpack.c.h.b16 %v3258
      %v3840 = vunpack.c.l.b16 %v3259
      %v3841 = vunpack.c.h.b16 %v3259
      %v3842 = vunpack.c.l.b16 %v3260
      %v3843 = vunpack.c.h.b16 %v3260
      %v3844 = vunpack.c.l.b16 %v3261
      %v3845 = vunpack.c.h.b16 %v3261
      %v3846 = vunpack.c.l.b16 %v3262
      %v3847 = vunpack.c.h.b16 %v3262
      %v3848 = vunpack.c.l.b16 %v3263
      %v3849 = vunpack.c.h.b16 %v3263
      %v3850 = vunpack.c.l.b16 %v3264
      %v3851 = vunpack.c.h.b16 %v3264
      %v3852 = vunpack.c.l.b16 %v3265
      %v3853 = vunpack.c.h.b16 %v3265
      %v3854 = vunpack.c.l.b16 %v3266
      %v3855 = vunpack.c.h.b16 %v3266
      %v3856 = vunpack.c.l.b16 %v3267
      %v3857 = vunpack.c.h.b16 %v3267
      %v3858 = vunpack.c.l.b16 %v3268
      %v3859 = vunpack.c.h.b16 %v3268
      %v3860 = vunpack.c.l.b16 %v3269
      %v3861 = vunpack.c.h.b16 %v3269
      %v3862 = vunpack.c.l.b16 %v3270
      %v3863 = vunpack.c.h.b16 %v3270
      %v3864 = vunpack.c.l.b16 %v3271
      %v3865 = vunpack.c.h.b16 %v3271
      %v3866 = vunpack.c.l.b16 %v3272
      %v3867 = vunpack.c.h.b16 %v3272
      %v3868 = vunpack.c.l.b16 %v3273
      %v3869 = vunpack.c.h.b16 %v3273
      %v3870 = vunpack.c.l.b16 %v3274
      %v3871 = vunpack.c.h.b16 %v3274
      %v3872 = vunpack.c.l.b16 %v3275
      %v3873 = vunpack.c.h.b16 %v3275
      %v3874 = vunpack.c.l.b16 %v3276
      %v3875 = vunpack.c.h.b16 %v3276
      %v3876 = vunpack.c.l.b16 %v3277
      %v3877 = vunpack.c.h.b16 %v3277
      %v3878 = vunpack.c.l.b16 %v3278
      %v3879 = vunpack.c.h.b16 %v3278
      %v3880 = vunpack.c.l.b16 %v3279
      %v3881 = vunpack.c.h.b16 %v3279
      %v3882 = vunpack.c.l.b16 %v3280
      %v3883 = vunpack.c.h.b16 %v3280
      %v3884 = vunpack.c.l.b16 %v3281
      %v3885 = vunpack.c.h.b16 %v3281
      %v3886 = vunpack.c.l.b16 %v3282
      %v3887 = vunpack.c.h.b16 %v3282
      %v3888 = vunpack.c.l.b16 %v3283
      %v3889 = vunpack.c.h.b16 %v3283
      %v3890 = vunpack.c.l.b16 %v3284
      %v3891 = vunpack.c.h.b16 %v3284
      %v3892 = vunpack.c.l.b16 %v3285
      %v3893 = vunpack.c.h.b16 %v3285
      %v3894 = vunpack.c.l.b16 %v3286
      %v3895 = vunpack.c.h.b16 %v3286
      %v3896 = vunpack.c.l.b16 %v3287
      %v3897 = vunpack.c.h.b16 %v3287
      %v3898 = vunpack.c.l.b16 %v3288
      %v3899 = vunpack.c.h.b16 %v3288
      %v3900 = vunpack.c.l.b16 %v3289
      %v3901 = vunpack.c.h.b16 %v3289
      %v3902 = vunpack.c.l.b16 %v3290
      %v3903 = vunpack.c.h.b16 %v3290
      %v3904 = vunpack.c.l.b16 %v3291
      %v3905 = vunpack.c.h.b16 %v3291
      %v3906 = vunpack.c.l.b16 %v3292
      %v3907 = vunpack.c.h.b16 %v3292
      %v3908 = vunpack.c.l.b16 %v3293
      %v3909 = vunpack.c.h.b16 %v3293
      %v3910 = vunpack.c.l.b16 %v3294
      %v3911 = vunpack.c.h.b16 %v3294
      %v3912 = vunpack.c.l.b16 %v3295
      %v3913 = vunpack.c.h.b16 %v3295
      %v3914 = vunpack.c.l.b16 %v3296
      %v3915 = vunpack.c.h.b16 %v3296
      %v3916 = vunpack.c.l.b16 %v3297
      %v3917 = vunpack.c.h.b16 %v3297
      %v3918 = vunpack.c.l.b16 %v3298
      %v3919 = vunpack.c.h.b16 %v3298
      %v3920 = vunpack.c.l.b16 %v3299
      %v3921 = vunpack.c.h.b16 %v3299
      %v3922 = vunpack.c.l.b16 %v3300
      %v3923 = vunpack.c.h.b16 %v3300
      %v3924 = vunpack.c.l.b16 %v3301
      %v3925 = vunpack.c.h.b16 %v3301
      %v3926 = vunpack.c.l.b16 %v3302
      %v3927 = vunpack.c.h.b16 %v3302
      %v3928 = vunpack.c.l.b16 %v3303
      %v3929 = vunpack.c.h.b16 %v3303
      %v3930 = vunpack.c.l.b16 %v3304
      %v3931 = vunpack.c.h.b16 %v3304
      %v3932 = vunpack.c.l.b16 %v3305
      %v3933 = vunpack.c.h.b16 %v3305
      %v3934 = vunpack.c.l.b16 %v3306
      %v3935 = vunpack.c.h.b16 %v3306
      %v3936 = vunpack.c.l.b16 %v3307
      %v3937 = vunpack.c.h.b16 %v3307
      %v3938 = vunpack.c.l.b16 %v3308
      %v3939 = vunpack.c.h.b16 %v3308
      %v3940 = vunpack.c.l.b16 %v3309
      %v3941 = vunpack.c.h.b16 %v3309
      %v3942 = vunpack.c.l.b16 %v3310
      %v3943 = vunpack.c.h.b16 %v3310
      %v3944 = vunpack.c.l.b16 %v3311
      %v3945 = vunpack.c.h.b16 %v3311
      %v3946 = vunpack.c.l.b16 %v3312
      %v3947 = vunpack.c.h.b16 %v3312
      %v3948 = vunpack.c.l.b16 %v3313
      %v3949 = vunpack.c.h.b16 %v3313
      %v3950 = vunpack.c.l.b16 %v3314
      %v3951 = vunpack.c.h.b16 %v3314
      %v3952 = vunpack.c.l.b16 %v3315
      %v3953 = vunpack.c.h.b16 %v3315
      %v3954 = vunpack.c.l.b16 %v3316
      %v3955 = vunpack.c.h.b16 %v3316
      %v3956 = vunpack.c.l.b16 %v3317
      %v3957 = vunpack.c.h.b16 %v3317
      %v3958 = vunpack.c.l.b16 %v3318
      %v3959 = vunpack.c.h.b16 %v3318
      %v3960 = vunpack.c.l.b16 %v3319
      %v3961 = vunpack.c.h.b16 %v3319
      %v3962 = vunpack.c.l.b16 %v3320
      %v3963 = vunpack.c.h.b16 %v3320
      %v3964 = vunpack.c.l.b16 %v3321
      %v3965 = vunpack.c.h.b16 %v3321
      %v3966 = vunpack.c.l.b16 %v3322
      %v3967 = vunpack.c.h.b16 %v3322
      %v3968 = vunpack.c.l.b16 %v3323
      %v3969 = vunpack.c.h.b16 %v3323
      %v3970 = vunpack.c.l.b16 %v3324
      %v3971 = vunpack.c.h.b16 %v3324
      %v3972 = vunpack.c.l.b16 %v3325
      %v3973 = vunpack.c.h.b16 %v3325
      %v3974 = vunpack.c.l.b16 %v3326
      %v3975 = vunpack.c.h.b16 %v3326
      %v3976 = vunpack.c.l.b16 %v3327
      %v3977 = vunpack.c.h.b16 %v3327
      %v3978 = vunpack.c.l.b16 %v3328
      %v3979 = vunpack.c.h.b16 %v3328
      %v3980 = vunpack.c.l.b16 %v3329
      %v3981 = vunpack.c.h.b16 %v3329
      %v3982 = vunpack.c.l.b16 %v3330
      %v3983 = vunpack.c.h.b16 %v3330
      %v3984 = vunpack.c.l.b16 %v3331
      %v3985 = vunpack.c.h.b16 %v3331
      %v3986 = vunpack.c.l.b16 %v3332
      %v3987 = vunpack.c.h.b16 %v3332
      %v3988 = vunpack.c.l.b16 %v3333
      %v3989 = vunpack.c.h.b16 %v3333
      %v3990 = vunpack.c.l.b16 %v3334
      %v3991 = vunpack.c.h.b16 %v3334
      %v3992 = vunpack.c.l.b16 %v3335
      %v3993 = vunpack.c.h.b16 %v3335
      %v3994 = vunpack.c.l.b16 %v3336
      %v3995 = vunpack.c.h.b16 %v3336
      %v3996 = vunpack.c.l.b16 %v3337
      %v3997 = vunpack.c.h.b16 %v3337
      %v3998 = vunpack.c.l.b16 %v3338
      %v3999 = vunpack.c.h.b16 %v3338
      %v4000 = vunpack.c.l.b16 %v3339
      %v4001 = vunpack.c.h.b16 %v3339
      %v4002 = vunpack.c.l.b16 %v3340
      %v4003 = vunpack.c.h.b16 %v3340
      %v4004 = vunpack.c.l.b16 %v3341
      %v4005 = vunpack.c.h.b16 %v3341
      %v4006 = vunpack.c.l.b16 %v3342
      %v4007 = vunpack.c.h.b16 %v3342
      %v4008 = vunpack.c.l.b16 %v3343
      %v4009 = vunpack.c.h.b16 %v3343
      %v4010 = vunpack.c.l.b16 %v3344
      %v4011 = vunpack.c.h.b16 %v3344
      %v4012 = vunpack.c.l.b16 %v3345
      %v4013 = vunpack.c.h.b16 %v3345
      %v4014 = vunpack.c.l.b16 %v3346
      %v4015 = vunpack.c.h.b16 %v3346
      %v4016 = vunpack.c.l.b16 %v3347
      %v4017 = vunpack.c.h.b16 %v3347
      %v4018 = vunpack.c.l.b16 %v3348
      %v4019 = vunpack.c.h.b16 %v3348
      %v4020 = vunpack.c.l.b16 %v3349
      %v4021 = vunpack.c.h.b16 %v3349
      %v4022 = vunpack.c.l.b16 %v3350
      %v4023 = vunpack.c.h.b16 %v3350
      %v4024 = vunpack.c.l.b16 %v3351
      %v4025 = vunpack.c.h.b16 %v3351
      %v4026 = vunpack.c.l.b16 %v3352
      %v4027 = vunpack.c.h.b16 %v3352
      %v4028 = vunpack.c.l.b16 %v3353
      %v4029 = vunpack.c.h.b16 %v3353
      %v4030 = vunpack.c.l.b16 %v3354
      %v4031 = vunpack.c.h.b16 %v3354
      %v4032 = vunpack.c.l.b16 %v3355
      %v4033 = vunpack.c.h.b16 %v3355
      %v4034 = vunpack.c.l.b16 %v3356
      %v4035 = vunpack.c.h.b16 %v3356
      %v4036 = vunpack.c.l.b16 %v3357
      %v4037 = vunpack.c.h.b16 %v3357
      %v4038 = vunpack.c.l.b16 %v3358
      %v4039 = vunpack.c.h.b16 %v3358
      %v4040 = vunpack.c.l.b16 %v3359
      %v4041 = vunpack.c.h.b16 %v3359
      %v4042 = vunpack.c.l.b16 %v3360
      %v4043 = vunpack.c.h.b16 %v3360
      %v4044 = vunpack.c.l.b16 %v3361
      %v4045 = vunpack.c.h.b16 %v3361
      %v4046 = vunpack.c.l.b16 %v3362
      %v4047 = vunpack.c.h.b16 %v3362
      %v4048 = vunpack.c.l.b16 %v3363
      %v4049 = vunpack.c.h.b16 %v3363
      %v4050 = vunpack.c.l.b16 %v3364
      %v4051 = vunpack.c.h.b16 %v3364
      %v4052 = vunpack.c.l.b16 %v3365
      %v4053 = vunpack.c.h.b16 %v3365
      %v4054 = vunpack.c.l.b16 %v3366
      %v4055 = vunpack.c.h.b16 %v3366
      %v4056 = vunpack.c.l.b16 %v3367
      %v4057 = vunpack.c.h.b16 %v3367
      %v4058 = vunpack.c.l.b16 %v3368
      %v4059 = vunpack.c.h.b16 %v3368
      %v4060 = vunpack.c.l.b16 %v3369
      %v4061 = vunpack.c.h.b16 %v3369
      %v4062 = vunpack.c.l.b16 %v3370
      %v4063 = vunpack.c.h.b16 %v3370
      %v4064 = vunpack.c.l.b16 %v3371
      %v4065 = vunpack.c.h.b16 %v3371
      %v4066 = vunpack.c.l.b16 %v3372
      %v4067 = vunpack.c.h.b16 %v3372
      %v4068 = vunpack.c.l.b16 %v3373
      %v4069 = vunpack.c.h.b16 %v3373
      %v4070 = vunpack.c.l.b16 %v3374
      %v4071 = vunpack.c.h.b16 %v3374
      %v4072 = vunpack.c.l.b16 %v3375
      %v4073 = vunpack.c.h.b16 %v3375
      %v4074 = vunpack.c.l.b16 %v3376
      %v4075 = vunpack.c.h.b16 %v3376
      %v4076 = vunpack.c.l.b16 %v3377
      %v4077 = vunpack.c.h.b16 %v3377
      %v4078 = vunpack.c.l.b16 %v3378
      %v4079 = vunpack.c.h.b16 %v3378
      %v4080 = vunpack.c.l.b16 %v3379
      %v4081 = vunpack.c.h.b16 %v3379
      %v4082 = vunpack.c.l.b16 %v3380
      %v4083 = vunpack.c.h.b16 %v3380
      %v4084 = vunpack.c.l.b16 %v3381
      %v4085 = vunpack.c.h.b16 %v3381
      %v4086 = vunpack.c.l.b16 %v3382
      %v4087 = vunpack.c.h.b16 %v3382
      %v4088 = vunpack.c.l.b16 %v3383
      %v4089 = vunpack.c.h.b16 %v3383
      %v4090 = vunpack.c.l.b16 %v3384
      %v4091 = vunpack.c.h.b16 %v3384
      %v4092 = vunpack.c.l.b16 %v3385
      %v4093 = vunpack.c.h.b16 %v3385
      %v4094 = vunpack.c.l.b16 %v3386
      %v4095 = vunpack.c.h.b16 %v3386
      %v4096 = vunpack.c.l.b16 %v3387
      %v4097 = vunpack.c.h.b16 %v3387
      %v4098 = vunpack.c.l.b16 %v3388
      %v4099 = vunpack.c.h.b16 %v3388
      %v4100 = vunpack.c.l.b16 %v3389
      %v4101 = vunpack.c.h.b16 %v3389
      %v4102 = vunpack.c.l.b16 %v3390
      %v4103 = vunpack.c.h.b16 %v3390
      %v4104 = vunpack.c.l.b16 %v3391
      %v4105 = vunpack.c.h.b16 %v3391
      %v4106 = vunpack.c.l.b16 %v3392
      %v4107 = vunpack.c.h.b16 %v3392
      %v4108 = vunpack.c.l.b16 %v3393
      %v4109 = vunpack.c.h.b16 %v3393
      %v4110 = vunpack.c.l.b16 %v3394
      %v4111 = vunpack.c.h.b16 %v3394
      %v4112 = vunpack.c.l.b16 %v3395
      %v4113 = vunpack.c.h.b16 %v3395
      %v4114 = vunpack.c.l.b16 %v3396
      %v4115 = vunpack.c.h.b16 %v3396
      %v4116 = vunpack.c.l.b16 %v3397
      %v4117 = vunpack.c.h.b16 %v3397
      %v4118 = vunpack.c.l.b16 %v3398
      %v4119 = vunpack.c.h.b16 %v3398
      %v4120 = vunpack.c.l.b16 %v3399
      %v4121 = vunpack.c.h.b16 %v3399
      %v4122 = vunpack.c.l.b16 %v3400
      %v4123 = vunpack.c.h.b16 %v3400
      %v4124 = vunpack.c.l.b16 %v3401
      %v4125 = vunpack.c.h.b16 %v3401
      %v4126 = vunpack.c.l.b16 %v3402
      %v4127 = vunpack.c.h.b16 %v3402
      %v4128 = vunpack.c.l.b16 %v3403
      %v4129 = vunpack.c.h.b16 %v3403
      %v4130 = vunpack.c.l.b16 %v3404
      %v4131 = vunpack.c.h.b16 %v3404
      %v4132 = vunpack.c.l.b16 %v3405
      %v4133 = vunpack.c.h.b16 %v3405
      %v4134 = vunpack.c.l.b16 %v3406
      %v4135 = vunpack.c.h.b16 %v3406
      %v4136 = vunpack.c.l.b16 %v3407
      %v4137 = vunpack.c.h.b16 %v3407
      %v4138 = vunpack.c.l.b16 %v3408
      %v4139 = vunpack.c.h.b16 %v3408
      %v4140 = vunpack.c.l.b16 %v3409
      %v4141 = vunpack.c.h.b16 %v3409
      %v4142 = vunpack.c.l.b16 %v3410
      %v4143 = vunpack.c.h.b16 %v3410
      %v4144 = vunpack.c.l.b16 %v3411
      %v4145 = vunpack.c.h.b16 %v3411
      %v4146 = vunpack.c.l.b16 %v3412
      %v4147 = vunpack.c.h.b16 %v3412
      %v4148 = vunpack.c.l.b16 %v3413
      %v4149 = vunpack.c.h.b16 %v3413
      %v4150 = vunpack.c.l.b16 %v3414
      %v4151 = vunpack.c.h.b16 %v3414
      %v4152 = vunpack.c.l.b16 %v3415
      %v4153 = vunpack.c.h.b16 %v3415
      %v4154 = vunpack.c.l.b16 %v3416
      %v4155 = vunpack.c.h.b16 %v3416
      %v4156 = vunpack.c.l.b16 %v3417
      %v4157 = vunpack.c.h.b16 %v3417
      %v4158 = vunpack.c.l.b16 %v3418
      %v4159 = vunpack.c.h.b16 %v3418
      %v4160 = vunpack.c.l.b16 %v3419
      %v4161 = vunpack.c.h.b16 %v3419
      %v4162 = vunpack.c.l.b16 %v3420
      %v4163 = vunpack.c.h.b16 %v3420
      %v4164 = vunpack.c.l.b16 %v3421
      %v4165 = vunpack.c.h.b16 %v3421
      %v4166 = vunpack.c.l.b16 %v3422
      %v4167 = vunpack.c.h.b16 %v3422
      %v4168 = vunpack.c.l.b16 %v3423
      %v4169 = vunpack.c.h.b16 %v3423
      %v4170 = vunpack.c.l.b16 %v3424
      %v4171 = vunpack.c.h.b16 %v3424
      %v4172 = vunpack.c.l.b16 %v3425
      %v4173 = vunpack.c.h.b16 %v3425
      %v4174 = vunpack.c.l.b16 %v3426
      %v4175 = vunpack.c.h.b16 %v3426
      %v4176 = vunpack.c.l.b16 %v3427
      %v4177 = vunpack.c.h.b16 %v3427
      %v4178 = vunpack.c.l.b16 %v3428
      %v4179 = vunpack.c.h.b16 %v3428
      %v4180 = vunpack.c.l.b16 %v3429
      %v4181 = vunpack.c.h.b16 %v3429
      %v4182 = vunpack.c.l.b16 %v3430
      %v4183 = vunpack.c.h.b16 %v3430
      %v4184 = vunpack.c.l.b16 %v3431
      %v4185 = vunpack.c.h.b16 %v3431
      %v4186 = vunpack.c.l.b16 %v3432
      %v4187 = vunpack.c.h.b16 %v3432
      %v4188 = vunpack.c.l.b16 %v3433
      %v4189 = vunpack.c.h.b16 %v3433
      %v4190 = vunpack.c.l.b16 %v3434
      %v4191 = vunpack.c.h.b16 %v3434
      %v4192 = vunpack.c.l.b16 %v3435
      %v4193 = vunpack.c.h.b16 %v3435
      %v4194 = vunpack.c.l.b16 %v3436
      %v4195 = vunpack.c.h.b16 %v3436
      %v4196 = vunpack.c.l.b16 %v3437
      %v4197 = vunpack.c.h.b16 %v3437
      %v4198 = vunpack.c.l.b16 %v3438
      %v4199 = vunpack.c.h.b16 %v3438
      %v4200 = vunpack.c.l.b16 %v3439
      %v4201 = vunpack.c.h.b16 %v3439
      %v4202 = vunpack.c.l.b16 %v3440
      %v4203 = vunpack.c.h.b16 %v3440
      %v4204 = vunpack.c.l.b16 %v3441
      %v4205 = vunpack.c.h.b16 %v3441
      %v4206 = vunpack.c.l.b16 %v3442
      %v4207 = vunpack.c.h.b16 %v3442
      %v4208 = vunpack.c.l.b16 %v3443
      %v4209 = vunpack.c.h.b16 %v3443
      %v4210 = vunpack.c.l.b16 %v3444
      %v4211 = vunpack.c.h.b16 %v3444
      %v4212 = vunpack.c.l.b16 %v3445
      %v4213 = vunpack.c.h.b16 %v3445
      %v4214 = vunpack.c.l.b16 %v3446
      %v4215 = vunpack.c.h.b16 %v3446
      %v4216 = vunpack.c.l.b16 %v3447
      %v4217 = vunpack.c.h.b16 %v3447
      %v4218 = vunpack.c.l.b16 %v3448
      %v4219 = vunpack.c.h.b16 %v3448
      %v4220 = vunpack.c.l.b16 %v3449
      %v4221 = vunpack.c.h.b16 %v3449
      %v4222 = vunpack.c.l.b16 %v3450
      %v4223 = vunpack.c.h.b16 %v3450
      %v4224 = vunpack.c.l.b16 %v3451
      %v4225 = vunpack.c.h.b16 %v3451
      %v4226 = vunpack.c.l.b16 %v3452
      %v4227 = vunpack.c.h.b16 %v3452
      %v4228 = vunpack.c.l.b16 %v3453
      %v4229 = vunpack.c.h.b16 %v3453
      %v4230 = vunpack.c.l.b16 %v3454
      %v4231 = vunpack.c.h.b16 %v3454
      %v4232 = vunpack.c.l.b16 %v3455
      %v4233 = vunpack.c.h.b16 %v3455
      %v4234 = vunpack.c.l.b16 %v3456
      %v4235 = vunpack.c.h.b16 %v3456
      %v4236 = vunpack.c.l.b16 %v3457
      %v4237 = vunpack.c.h.b16 %v3457
      %v4238 = vpack.c.b16 %v3728, %v3726
      %v4239 = vpack.c.b16 %v3729, %v3727
      %v4240 = vpack.c.b16 %v3732, %v3730
      %v4241 = vpack.c.b16 %v3733, %v3731
      %v4242 = vpack.c.b16 %v3736, %v3734
      %v4243 = vpack.c.b16 %v3737, %v3735
      %v4244 = vpack.c.b16 %v3740, %v3738
      %v4245 = vpack.c.b16 %v3741, %v3739
      %v4246 = vpack.c.b16 %v3744, %v3742
      %v4247 = vpack.c.b16 %v3745, %v3743
      %v4248 = vpack.c.b16 %v3748, %v3746
      %v4249 = vpack.c.b16 %v3749, %v3747
      %v4250 = vpack.c.b16 %v3752, %v3750
      %v4251 = vpack.c.b16 %v3753, %v3751
      %v4252 = vpack.c.b16 %v3756, %v3754
      %v4253 = vpack.c.b16 %v3757, %v3755
      %v4254 = vpack.c.b16 %v3760, %v3758
      %v4255 = vpack.c.b16 %v3761, %v3759
      %v4256 = vpack.c.b16 %v3764, %v3762
      %v4257 = vpack.c.b16 %v3765, %v3763
      %v4258 = vpack.c.b16 %v3768, %v3766
      %v4259 = vpack.c.b16 %v3769, %v3767
      %v4260 = vpack.c.b16 %v3772, %v3770
      %v4261 = vpack.c.b16 %v3773, %v3771
      %v4262 = vpack.c.b16 %v3776, %v3774
      %v4263 = vpack.c.b16 %v3777, %v3775
      %v4264 = vpack.c.b16 %v3780, %v3778
      %v4265 = vpack.c.b16 %v3781, %v3779
      %v4266 = vpack.c.b16 %v3784, %v3782
      %v4267 = vpack.c.b16 %v3785, %v3783
      %v4268 = vpack.c.b16 %v3788, %v3786
      %v4269 = vpack.c.b16 %v3789, %v3787
      %v4270 = vpack.c.b16 %v3792, %v3790
      %v4271 = vpack.c.b16 %v3793, %v3791
      %v4272 = vpack.c.b16 %v3796, %v3794
      %v4273 = vpack.c.b16 %v3797, %v3795
      %v4274 = vpack.c.b16 %v3800, %v3798
      %v4275 = vpack.c.b16 %v3801, %v3799
      %v4276 = vpack.c.b16 %v3804, %v3802
      %v4277 = vpack.c.b16 %v3805, %v3803
      %v4278 = vpack.c.b16 %v3808, %v3806
      %v4279 = vpack.c.b16 %v3809, %v3807
      %v4280 = vpack.c.b16 %v3812, %v3810
      %v4281 = vpack.c.b16 %v3813, %v3811
      %v4282 = vpack.c.b16 %v3816, %v3814
      %v4283 = vpack.c.b16 %v3817, %v3815
      %v4284 = vpack.c.b16 %v3820, %v3818
      %v4285 = vpack.c.b16 %v3821, %v3819
      %v4286 = vpack.c.b16 %v3824, %v3822
      %v4287 = vpack.c.b16 %v3825, %v3823
      %v4288 = vpack.c.b16 %v3828, %v3826
      %v4289 = vpack.c.b16 %v3829, %v3827
      %v4290 = vpack.c.b16 %v3832, %v3830
      %v4291 = vpack.c.b16 %v3833, %v3831
      %v4292 = vpack.c.b16 %v3836, %v3834
      %v4293 = vpack.c.b16 %v3837, %v3835
      %v4294 = vpack.c.b16 %v3840, %v3838
      %v4295 = vpack.c.b16 %v3841, %v3839
      %v4296 = vpack.c.b16 %v3844, %v3842
      %v4297 = vpack.c.b16 %v3845, %v3843
      %v4298 = vpack.c.b16 %v3848, %v3846
      %v4299 = vpack.c.b16 %v3849, %v3847
      %v4300 = vpack.c.b16 %v3852, %v3850
      %v4301 = vpack.c.b16 %v3853, %v3851
      %v4302 = vpack.c.b16 %v3856, %v3854
      %v4303 = vpack.c.b16 %v3857, %v3855
      %v4304 = vpack.c.b16 %v3860, %v3858
      %v4305 = vpack.c.b16 %v3861, %v3859
      %v4306 = vpack.c.b16 %v3864, %v3862
      %v4307 = vpack.c.b16 %v3865, %v3863
      %v4308 = vpack.c.b16 %v3868, %v3866
      %v4309 = vpack.c.b16 %v3869, %v3867
      %v4310 = vpack.c.b16 %v3872, %v3870
      %v4311 = vpack.c.b16 %v3873, %v3871
      %v4312 = vpack.c.b16 %v3876, %v3874
      %v4313 = vpack.c.b16 %v3877, %v3875
      %v4314 = vpack.c.b16 %v3880, %v3878
      %v4315 = vpack.c.b16 %v3881, %v3879
      %v4316 = vpack.c.b16 %v3884, %v3882
      %v4317 = vpack.c.b16 %v3885, %v3883
      %v4318 = vpack.c.b16 %v3888, %v3886
      %v4319 = vpack.c.b16 %v3889, %v3887
      %v4320 = vpack.c.b16 %v3892, %v3890
      %v4321 = vpack.c.b16 %v3893, %v3891
      %v4322 = vpack.c.b16 %v3896, %v3894
      %v4323 = vpack.c.b16 %v3897, %v3895
      %v4324 = vpack.c.b16 %v3900, %v3898
      %v4325 = vpack.c.b16 %v3901, %v3899
      %v4326 = vpack.c.b16 %v3904, %v3902
      %v4327 = vpack.c.b16 %v3905, %v3903
      %v4328 = vpack.c.b16 %v3908, %v3906
      %v4329 = vpack.c.b16 %v3909, %v3907
      %v4330 = vpack.c.b16 %v3912, %v3910
      %v4331 = vpack.c.b16 %v3913, %v3911
      %v4332 = vpack.c.b16 %v3916, %v3914
      %v4333 = vpack.c.b16 %v3917, %v3915
      %v4334 = vpack.c.b16 %v3920, %v3918
      %v4335 = vpack.c.b16 %v3921, %v3919
      %v4336 = vpack.c.b16 %v3924, %v3922
      %v4337 = vpack.c.b16 %v3925, %v3923
      %v4338 = vpack.c.b16 %v3928, %v3926
      %v4339 = vpack.c.b16 %v3929, %v3927
      %v4340 = vpack.c.b16 %v3932, %v3930
      %v4341 = vpack.c.b16 %v3933, %v3931
      %v4342 = vpack.c.b16 %v3936, %v3934
      %v4343 = vpack.c.b16 %v3937, %v3935
      %v4344 = vpack.c.b16 %v3940, %v3938
      %v4345 = vpack.c.b16 %v3941, %v3939
      %v4346 = vpack.c.b16 %v3944, %v3942
      %v4347 = vpack.c.b16 %v3945, %v3943
      %v4348 = vpack.c.b16 %v3948, %v3946
      %v4349 = vpack.c.b16 %v3949, %v3947
      %v4350 = vpack.c.b16 %v3952, %v3950
      %v4351 = vpack.c.b16 %v3953, %v3951
      %v4352 = vpack.c.b16 %v3956, %v3954
      %v4353 = vpack.c.b16 %v3957, %v3955
      %v4354 = vpack.c.b16 %v3960, %v3958
      %v4355 = vpack.c.b16 %v3961, %v3959
      %v4356 = vpack.c.b16 %v3964, %v3962
      %v4357 = vpack.c.b16 %v3965, %v3963
      %v4358 = vpack.c.b16 %v3968, %v3966
      %v4359 = vpack.c.b16 %v3969, %v3967
      %v4360 = vpack.c.b16 %v3972, %v3970
      %v4361 = vpack.c.b16 %v3973, %v3971
      %v4362 = vpack.c.b16 %v3976, %v3974
      %v4363 = vpack.c.b16 %v3977, %v3975
      %v4364 = vpack.c.b16 %v3980, %v3978
      %v4365 = vpack.c.b16 %v3981, %v3979
      %v4366 = vpack.c.b16 %v3984, %v3982
      %v4367 = vpack.c.b16 %v3985, %v3983
      %v4368 = vpack.c.b16 %v3988, %v3986
      %v4369 = vpack.c.b16 %v3989, %v3987
      %v4370 = vpack.c.b16 %v3992, %v3990
      %v4371 = vpack.c.b16 %v3993, %v3991
      %v4372 = vpack.c.b16 %v3996, %v3994
      %v4373 = vpack.c.b16 %v3997, %v3995
      %v4374 = vpack.c.b16 %v4000, %v3998
      %v4375 = vpack.c.b16 %v4001, %v3999
      %v4376 = vpack.c.b16 %v4004, %v4002
      %v4377 = vpack.c.b16 %v4005, %v4003
      %v4378 = vpack.c.b16 %v4008, %v4006
      %v4379 = vpack.c.b16 %v4009, %v4007
      %v4380 = vpack.c.b16 %v4012, %v4010
      %v4381 = vpack.c.b16 %v4013, %v4011
      %v4382 = vpack.c.b16 %v4016, %v4014
      %v4383 = vpack.c.b16 %v4017, %v4015
      %v4384 = vpack.c.b16 %v4020, %v4018
      %v4385 = vpack.c.b16 %v4021, %v4019
      %v4386 = vpack.c.b16 %v4024, %v4022
      %v4387 = vpack.c.b16 %v4025, %v4023
      %v4388 = vpack.c.b16 %v4028, %v4026
      %v4389 = vpack.c.b16 %v4029, %v4027
      %v4390 = vpack.c.b16 %v4032, %v4030
      %v4391 = vpack.c.b16 %v4033, %v4031
      %v4392 = vpack.c.b16 %v4036, %v4034
      %v4393 = vpack.c.b16 %v4037, %v4035
      %v4394 = vpack.c.b16 %v4040, %v4038
      %v4395 = vpack.c.b16 %v4041, %v4039
      %v4396 = vpack.c.b16 %v4044, %v4042
      %v4397 = vpack.c.b16 %v4045, %v4043
      %v4398 = vpack.c.b16 %v4048, %v4046
      %v4399 = vpack.c.b16 %v4049, %v4047
      %v4400 = vpack.c.b16 %v4052, %v4050
      %v4401 = vpack.c.b16 %v4053, %v4051
      %v4402 = vpack.c.b16 %v4056, %v4054
      %v4403 = vpack.c.b16 %v4057, %v4055
      %v4404 = vpack.c.b16 %v4060, %v4058
      %v4405 = vpack.c.b16 %v4061, %v4059
      %v4406 = vpack.c.b16 %v4064, %v4062
      %v4407 = vpack.c.b16 %v4065, %v4063
      %v4408 = vpack.c.b16 %v4068, %v4066
      %v4409 = vpack.c.b16 %v4069, %v4067
      %v4410 = vpack.c.b16 %v4072, %v4070
      %v4411 = vpack.c.b16 %v4073, %v4071
      %v4412 = vpack.c.b16 %v4076, %v4074
      %v4413 = vpack.c.b16 %v4077, %v4075
      %v4414 = vpack.c.b16 %v4080, %v4078
      %v4415 = vpack.c.b16 %v4081, %v4079
      %v4416 = vpack.c.b16 %v4084, %v4082
      %v4417 = vpack.c.b16 %v4085, %v4083
      %v4418 = vpack.c.b16 %v4088, %v4086
      %v4419 = vpack.c.b16 %v4089, %v4087
      %v4420 = vpack.c.b16 %v4092, %v4090
      %v4421 = vpack.c.b16 %v4093, %v4091
      %v4422 = vpack.c.b16 %v4096, %v4094
      %v4423 = vpack.c.b16 %v4097, %v4095
      %v4424 = vpack.c.b16 %v4100, %v4098
      %v4425 = vpack.c.b16 %v4101, %v4099
      %v4426 = vpack.c.b16 %v4104, %v4102
      %v4427 = vpack.c.b16 %v4105, %v4103
      %v4428 = vpack.c.b16 %v4108, %v4106
      %v4429 = vpack.c.b16 %v4109, %v4107
      %v4430 = vpack.c.b16 %v4112, %v4110
      %v4431 = vpack.c.b16 %v4113, %v4111
      %v4432 = vpack.c.b16 %v4116, %v4114
      %v4433 = vpack.c.b16 %v4117, %v4115
      %v4434 = vpack.c.b16 %v4120, %v4118
      %v4435 = vpack.c.b16 %v4121, %v4119
      %v4436 = vpack.c.b16 %v4124, %v4122
      %v4437 = vpack.c.b16 %v4125, %v4123
      %v4438 = vpack.c.b16 %v4128, %v4126
      %v4439 = vpack.c.b16 %v4129, %v4127
      %v4440 = vpack.c.b16 %v4132, %v4130
      %v4441 = vpack.c.b16 %v4133, %v4131
      %v4442 = vpack.c.b16 %v4136, %v4134
      %v4443 = vpack.c.b16 %v4137, %v4135
      %v4444 = vpack.c.b16 %v4140, %v4138
      %v4445 = vpack.c.b16 %v4141, %v4139
      %v4446 = vpack.c.b16 %v4144, %v4142
      %v4447 = vpack.c.b16 %v4145, %v4143
      %v4448 = vpack.c.b16 %v4148, %v4146
      %v4449 = vpack.c.b16 %v4149, %v4147
      %v4450 = vpack.c.b16 %v4152, %v4150
      %v4451 = vpack.c.b16 %v4153, %v4151
      %v4452 = vpack.c.b16 %v4156, %v4154
      %v4453 = vpack.c.b16 %v4157, %v4155
      %v4454 = vpack.c.b16 %v4160, %v4158
      %v4455 = vpack.c.b16 %v4161, %v4159
      %v4456 = vpack.c.b16 %v4164, %v4162
      %v4457 = vpack.c.b16 %v4165, %v4163
      %v4458 = vpack.c.b16 %v4168, %v4166
      %v4459 = vpack.c.b16 %v4169, %v4167
      %v4460 = vpack.c.b16 %v4172, %v4170
      %v4461 = vpack.c.b16 %v4173, %v4171
      %v4462 = vpack.c.b16 %v4176, %v4174
      %v4463 = vpack.c.b16 %v4177, %v4175
      %v4464 = vpack.c.b16 %v4180, %v4178
      %v4465 = vpack.c.b16 %v4181, %v4179
      %v4466 = vpack.c.b16 %v4184, %v4182
      %v4467 = vpack.c.b16 %v4185, %v4183
      %v4468 = vpack.c.b16 %v4188, %v4186
      %v4469 = vpack.c.b16 %v4189, %v4187
      %v4470 = vpack.c.b16 %v4192, %v4190
      %v4471 = vpack.c.b16 %v4193, %v4191
      %v4472 = vpack.c.b16 %v4196, %v4194
      %v4473 = vpack.c.b16 %v4197, %v4195
      %v4474 = vpack.c.b16 %v4200, %v4198
      %v4475 = vpack.c.b16 %v4201, %v4199
      %v4476 = vpack.c.b16 %v4204, %v4202
      %v4477 = vpack.c.b16 %v4205, %v4203
      %v4478 = vpack.c.b16 %v4208, %v4206
      %v4479 = vpack.c.b16 %v4209, %v4207
      %v4480 = vpack.c.b16 %v4212, %v4210
      %v4481 = vpack.c.b16 %v4213, %v4211
      %v4482 = vpack.c.b16 %v4216, %v4214
      %v4483 = vpack.c.b16 %v4217, %v4215
      %v4484 = vpack.c.b16 %v4220, %v4218
      %v4485 = vpack.c.b16 %v4221, %v4219
      %v4486 = vpack.c.b16 %v4224, %v4222
      %v4487 = vpack.c.b16 %v4225, %v4223
      %v4488 = vpack.c.b16 %v4228, %v4226
      %v4489 = vpack.c.b16 %v4229, %v4227
      %v4490 = vpack.c.b16 %v4232, %v4230
      %v4491 = vpack.c.b16 %v4233, %v4231
      %v4492 = vpack.c.b16 %v4236, %v4234
      %v4493 = vpack.c.b16 %v4237, %v4235
      %4750 = vmatprep.subr.bf16.mxu0 %v4253
      %4751 = vmatpush1.bf16.msra.mxu0 %v4252
      %4752 = vmatprep.subr.bf16.mxu0 %v4251
      %4753 = vmatpush1.bf16.msra.mxu0 %v4250
      %4754 = vmatprep.subr.bf16.mxu0 %v4249
      %4755 = vmatpush1.bf16.msra.mxu0 %v4248
      %4756 = vmatprep.subr.bf16.mxu0 %v4247
      %4757 = vmatpush1.bf16.msra.mxu0 %v4246
      %4758 = vmatprep.subr.bf16.mxu0 %v4245
      %4759 = vmatpush1.bf16.msra.mxu0 %v4244
      %4760 = vmatprep.subr.bf16.mxu0 %v4243
      %4761 = vmatpush1.bf16.msra.mxu0 %v4242
      %4762 = vmatprep.subr.bf16.mxu0 %v4241
      %4763 = vmatpush1.bf16.msra.mxu0 %v4240
      %4764 = vmatprep.subr.bf16.mxu0 %v4239
      %4765 = vmatpush1.bf16.msra.mxu0 %v4238
      %4766 = vmatprep.subr.bf16.mxu0 %v4269
      %4767 = vmatpush2.bf16.msra.mxu0 %v4268
      %4768 = vmatprep.subr.bf16.mxu0 %v4267
      %4769 = vmatpush2.bf16.msra.mxu0 %v4266
      %4770 = vmatprep.subr.bf16.mxu0 %v4265
      %4771 = vmatpush2.bf16.msra.mxu0 %v4264
      %4772 = vmatprep.subr.bf16.mxu0 %v4263
      %4773 = vmatpush2.bf16.msra.mxu0 %v4262
      %4774 = vmatprep.subr.bf16.mxu0 %v4261
      %4775 = vmatpush2.bf16.msra.mxu0 %v4260
      %4776 = vmatprep.subr.bf16.mxu0 %v4259
      %4777 = vmatpush2.bf16.msra.mxu0 %v4258
      %4778 = vmatprep.subr.bf16.mxu0 %v4257
      %4779 = vmatpush2.bf16.msra.mxu0 %v4256
      %4780 = vmatprep.subr.bf16.mxu0 %v4255
      %4781 = vmatpush2.bf16.msra.mxu0 %v4254
      %4782 = vmatprep.mubr.bf16.mxu0 %v3075
      %4783 = vmatmul.mubr.bf16.gmra.mxu0 %v3074
      %v4784 = vpop.f32.mrf.mxu0
      %v4785 = vadd.f32 %v3463, %v4784
      %v4786 = vpop.f32.mrf.mxu0
      %v4787 = vadd.f32 %v3467, %v4786
      %v4788 = vpop.f32.mrf.mxu0
      %v4789 = vadd.f32 %v3463, %v4788
      %v4790 = vpop.f32.mrf.mxu0
      %v4791 = vadd.f32 %v3467, %v4790
      %4792 = vmatprep.mubr.bf16.mxu0 %v3091
      %4793 = vmatmul.mubr.bf16.gmra.mxu0 %v3090
      %v4794 = vpop.f32.mrf.mxu0
      %v4795 = vadd.f32 %v3463, %v4794
      %v4796 = vpop.f32.mrf.mxu0
      %v4797 = vadd.f32 %v3467, %v4796
      %v4798 = vpop.f32.mrf.mxu0
      %v4799 = vadd.f32 %v3463, %v4798
      %v4800 = vpop.f32.mrf.mxu0
      %v4801 = vadd.f32 %v3467, %v4800
      %4802 = vmatprep.mubr.bf16.mxu0 %v3107
      %4803 = vmatmul.mubr.bf16.gmra.mxu0 %v3106
      %v4804 = vpop.f32.mrf.mxu0
      %v4805 = vadd.f32 %v3463, %v4804
      %v4806 = vpop.f32.mrf.mxu0
      %v4807 = vadd.f32 %v3467, %v4806
      %v4808 = vpop.f32.mrf.mxu0
      %v4809 = vadd.f32 %v3463, %v4808
      %v4810 = vpop.f32.mrf.mxu0
      %v4811 = vadd.f32 %v3467, %v4810
      %4812 = vmatprep.mubr.bf16.mxu0 %v3123
      %4813 = vmatmul.mubr.bf16.gmra.mxu0 %v3122
      %v4814 = vpop.f32.mrf.mxu0
      %v4815 = vadd.f32 %v3463, %v4814
      %v4816 = vpop.f32.mrf.mxu0
      %v4817 = vadd.f32 %v3467, %v4816
      %v4818 = vpop.f32.mrf.mxu0
      %v4819 = vadd.f32 %v3463, %v4818
      %v4820 = vpop.f32.mrf.mxu0
      %v4821 = vadd.f32 %v3467, %v4820
      %4822 = vmatprep.mubr.bf16.mxu0 %v3139
      %4823 = vmatmul.mubr.bf16.gmra.mxu0 %v3138
      %v4824 = vpop.f32.mrf.mxu0
      %v4825 = vadd.f32 %v3463, %v4824
      %v4826 = vpop.f32.mrf.mxu0
      %v4827 = vadd.f32 %v3467, %v4826
      %v4828 = vpop.f32.mrf.mxu0
      %v4829 = vadd.f32 %v3463, %v4828
      %v4830 = vpop.f32.mrf.mxu0
      %v4831 = vadd.f32 %v3467, %v4830
      %4832 = vmatprep.mubr.bf16.mxu0 %v3155
      %4833 = vmatmul.mubr.bf16.gmra.mxu0 %v3154
      %v4834 = vpop.f32.mrf.mxu0
      %v4835 = vadd.f32 %v3463, %v4834
      %v4836 = vpop.f32.mrf.mxu0
      %v4837 = vadd.f32 %v3467, %v4836
      %v4838 = vpop.f32.mrf.mxu0
      %v4839 = vadd.f32 %v3463, %v4838
      %v4840 = vpop.f32.mrf.mxu0
      %v4841 = vadd.f32 %v3467, %v4840
      %4842 = vmatprep.mubr.bf16.mxu0 %v3171
      %4843 = vmatmul.mubr.bf16.gmra.mxu0 %v3170
      %v4844 = vpop.f32.mrf.mxu0
      %v4845 = vadd.f32 %v3463, %v4844
      %v4846 = vpop.f32.mrf.mxu0
      %v4847 = vadd.f32 %v3467, %v4846
      %v4848 = vpop.f32.mrf.mxu0
      %v4849 = vadd.f32 %v3463, %v4848
      %v4850 = vpop.f32.mrf.mxu0
      %v4851 = vadd.f32 %v3467, %v4850
      %4852 = vmatprep.mubr.bf16.mxu0 %v3187
      %4853 = vmatmul.mubr.bf16.gmra.mxu0 %v3186
      %v4854 = vpop.f32.mrf.mxu0
      %v4855 = vadd.f32 %v3463, %v4854
      %v4856 = vpop.f32.mrf.mxu0
      %v4857 = vadd.f32 %v3467, %v4856
      %v4858 = vpop.f32.mrf.mxu0
      %v4859 = vadd.f32 %v3463, %v4858
      %v4860 = vpop.f32.mrf.mxu0
      %v4861 = vadd.f32 %v3467, %v4860
      %4862 = vdwg.mxu0
      %4863 = vmatprep.subr.bf16.mxu0 %v4285
      %4864 = vmatpush1.bf16.msra.mxu0 %v4284
      %4865 = vmatprep.subr.bf16.mxu0 %v4283
      %4866 = vmatpush1.bf16.msra.mxu0 %v4282
      %4867 = vmatprep.subr.bf16.mxu0 %v4281
      %4868 = vmatpush1.bf16.msra.mxu0 %v4280
      %4869 = vmatprep.subr.bf16.mxu0 %v4279
      %4870 = vmatpush1.bf16.msra.mxu0 %v4278
      %4871 = vmatprep.subr.bf16.mxu0 %v4277
      %4872 = vmatpush1.bf16.msra.mxu0 %v4276
      %4873 = vmatprep.subr.bf16.mxu0 %v4275
      %4874 = vmatpush1.bf16.msra.mxu0 %v4274
      %4875 = vmatprep.subr.bf16.mxu0 %v4273
      %4876 = vmatpush1.bf16.msra.mxu0 %v4272
      %4877 = vmatprep.subr.bf16.mxu0 %v4271
      %4878 = vmatpush1.bf16.msra.mxu0 %v4270
      %4879 = vmatprep.subr.bf16.mxu0 %v4301
      %4880 = vmatpush2.bf16.msra.mxu0 %v4300
      %4881 = vmatprep.subr.bf16.mxu0 %v4299
      %4882 = vmatpush2.bf16.msra.mxu0 %v4298
      %4883 = vmatprep.subr.bf16.mxu0 %v4297
      %4884 = vmatpush2.bf16.msra.mxu0 %v4296
      %4885 = vmatprep.subr.bf16.mxu0 %v4295
      %4886 = vmatpush2.bf16.msra.mxu0 %v4294
      %4887 = vmatprep.subr.bf16.mxu0 %v4293
      %4888 = vmatpush2.bf16.msra.mxu0 %v4292
      %4889 = vmatprep.subr.bf16.mxu0 %v4291
      %4890 = vmatpush2.bf16.msra.mxu0 %v4290
      %4891 = vmatprep.subr.bf16.mxu0 %v4289
      %4892 = vmatpush2.bf16.msra.mxu0 %v4288
      %4893 = vmatprep.subr.bf16.mxu0 %v4287
      %4894 = vmatpush2.bf16.msra.mxu0 %v4286
      %4895 = vmatprep.mubr.bf16.mxu0 %v3077
      %4896 = vmatmul.mubr.bf16.gmra.mxu0 %v3076
      %v4897 = vpop.f32.mrf.mxu0
      %v4898 = vadd.f32 %v4785, %v4897
      %v4899 = vpop.f32.mrf.mxu0
      %v4900 = vadd.f32 %v4787, %v4899
      %v4901 = vpop.f32.mrf.mxu0
      %v4902 = vadd.f32 %v4789, %v4901
      %v4903 = vpop.f32.mrf.mxu0
      %v4904 = vadd.f32 %v4791, %v4903
      %4905 = vmatprep.mubr.bf16.mxu0 %v3093
      %4906 = vmatmul.mubr.bf16.gmra.mxu0 %v3092
      %v4907 = vpop.f32.mrf.mxu0
      %v4908 = vadd.f32 %v4795, %v4907
      %v4909 = vpop.f32.mrf.mxu0
      %v4910 = vadd.f32 %v4797, %v4909
      %v4911 = vpop.f32.mrf.mxu0
      %v4912 = vadd.f32 %v4799, %v4911
      %v4913 = vpop.f32.mrf.mxu0
      %v4914 = vadd.f32 %v4801, %v4913
      %4915 = vmatprep.mubr.bf16.mxu0 %v3109
      %4916 = vmatmul.mubr.bf16.gmra.mxu0 %v3108
      %v4917 = vpop.f32.mrf.mxu0
      %v4918 = vadd.f32 %v4805, %v4917
      %v4919 = vpop.f32.mrf.mxu0
      %v4920 = vadd.f32 %v4807, %v4919
      %v4921 = vpop.f32.mrf.mxu0
      %v4922 = vadd.f32 %v4809, %v4921
      %v4923 = vpop.f32.mrf.mxu0
      %v4924 = vadd.f32 %v4811, %v4923
      %4925 = vmatprep.mubr.bf16.mxu0 %v3125
      %4926 = vmatmul.mubr.bf16.gmra.mxu0 %v3124
      %v4927 = vpop.f32.mrf.mxu0
      %v4928 = vadd.f32 %v4815, %v4927
      %v4929 = vpop.f32.mrf.mxu0
      %v4930 = vadd.f32 %v4817, %v4929
      %v4931 = vpop.f32.mrf.mxu0
      %v4932 = vadd.f32 %v4819, %v4931
      %v4933 = vpop.f32.mrf.mxu0
      %v4934 = vadd.f32 %v4821, %v4933
      %4935 = vmatprep.mubr.bf16.mxu0 %v3141
      %4936 = vmatmul.mubr.bf16.gmra.mxu0 %v3140
      %v4937 = vpop.f32.mrf.mxu0
      %v4938 = vadd.f32 %v4825, %v4937
      %v4939 = vpop.f32.mrf.mxu0
      %v4940 = vadd.f32 %v4827, %v4939
      %v4941 = vpop.f32.mrf.mxu0
      %v4942 = vadd.f32 %v4829, %v4941
      %v4943 = vpop.f32.mrf.mxu0
      %v4944 = vadd.f32 %v4831, %v4943
      %4945 = vmatprep.mubr.bf16.mxu0 %v3157
      %4946 = vmatmul.mubr.bf16.gmra.mxu0 %v3156
      %v4947 = vpop.f32.mrf.mxu0
      %v4948 = vadd.f32 %v4835, %v4947
      %v4949 = vpop.f32.mrf.mxu0
      %v4950 = vadd.f32 %v4837, %v4949
      %v4951 = vpop.f32.mrf.mxu0
      %v4952 = vadd.f32 %v4839, %v4951
      %v4953 = vpop.f32.mrf.mxu0
      %v4954 = vadd.f32 %v4841, %v4953
      %4955 = vmatprep.mubr.bf16.mxu0 %v3173
      %4956 = vmatmul.mubr.bf16.gmra.mxu0 %v3172
      %v4957 = vpop.f32.mrf.mxu0
      %v4958 = vadd.f32 %v4845, %v4957
      %v4959 = vpop.f32.mrf.mxu0
      %v4960 = vadd.f32 %v4847, %v4959
      %v4961 = vpop.f32.mrf.mxu0
      %v4962 = vadd.f32 %v4849, %v4961
      %v4963 = vpop.f32.mrf.mxu0
      %v4964 = vadd.f32 %v4851, %v4963
      %4965 = vmatprep.mubr.bf16.mxu0 %v3189
      %4966 = vmatmul.mubr.bf16.gmra.mxu0 %v3188
      %v4967 = vpop.f32.mrf.mxu0
      %v4968 = vadd.f32 %v4855, %v4967
      %v4969 = vpop.f32.mrf.mxu0
      %v4970 = vadd.f32 %v4857, %v4969
      %v4971 = vpop.f32.mrf.mxu0
      %v4972 = vadd.f32 %v4859, %v4971
      %v4973 = vpop.f32.mrf.mxu0
      %v4974 = vadd.f32 %v4861, %v4973
      %4975 = vdwg.mxu0
      %4976 = vmatprep.subr.bf16.mxu0 %v4317
      %4977 = vmatpush1.bf16.msra.mxu0 %v4316
      %4978 = vmatprep.subr.bf16.mxu0 %v4315
      %4979 = vmatpush1.bf16.msra.mxu0 %v4314
      %4980 = vmatprep.subr.bf16.mxu0 %v4313
      %4981 = vmatpush1.bf16.msra.mxu0 %v4312
      %4982 = vmatprep.subr.bf16.mxu0 %v4311
      %4983 = vmatpush1.bf16.msra.mxu0 %v4310
      %4984 = vmatprep.subr.bf16.mxu0 %v4309
      %4985 = vmatpush1.bf16.msra.mxu0 %v4308
      %4986 = vmatprep.subr.bf16.mxu0 %v4307
      %4987 = vmatpush1.bf16.msra.mxu0 %v4306
      %4988 = vmatprep.subr.bf16.mxu0 %v4305
      %4989 = vmatpush1.bf16.msra.mxu0 %v4304
      %4990 = vmatprep.subr.bf16.mxu0 %v4303
      %4991 = vmatpush1.bf16.msra.mxu0 %v4302
      %4992 = vmatprep.subr.bf16.mxu0 %v4333
      %4993 = vmatpush2.bf16.msra.mxu0 %v4332
      %4994 = vmatprep.subr.bf16.mxu0 %v4331
      %4995 = vmatpush2.bf16.msra.mxu0 %v4330
      %4996 = vmatprep.subr.bf16.mxu0 %v4329
      %4997 = vmatpush2.bf16.msra.mxu0 %v4328
      %4998 = vmatprep.subr.bf16.mxu0 %v4327
      %4999 = vmatpush2.bf16.msra.mxu0 %v4326
      %5000 = vmatprep.subr.bf16.mxu0 %v4325
      %5001 = vmatpush2.bf16.msra.mxu0 %v4324
      %5002 = vmatprep.subr.bf16.mxu0 %v4323
      %5003 = vmatpush2.bf16.msra.mxu0 %v4322
      %5004 = vmatprep.subr.bf16.mxu0 %v4321
      %5005 = vmatpush2.bf16.msra.mxu0 %v4320
      %5006 = vmatprep.subr.bf16.mxu0 %v4319
      %5007 = vmatpush2.bf16.msra.mxu0 %v4318
      %5008 = vmatprep.mubr.bf16.mxu0 %v3079
      %5009 = vmatmul.mubr.bf16.gmra.mxu0 %v3078
      %v5010 = vpop.f32.mrf.mxu0
      %v5011 = vadd.f32 %v4898, %v5010
      %v5012 = vpop.f32.mrf.mxu0
      %v5013 = vadd.f32 %v4900, %v5012
      %v5014 = vpop.f32.mrf.mxu0
      %v5015 = vadd.f32 %v4902, %v5014
      %v5016 = vpop.f32.mrf.mxu0
      %v5017 = vadd.f32 %v4904, %v5016
      %5018 = vmatprep.mubr.bf16.mxu0 %v3095
      %5019 = vmatmul.mubr.bf16.gmra.mxu0 %v3094
      %v5020 = vpop.f32.mrf.mxu0
      %v5021 = vadd.f32 %v4908, %v5020
      %v5022 = vpop.f32.mrf.mxu0
      %v5023 = vadd.f32 %v4910, %v5022
      %v5024 = vpop.f32.mrf.mxu0
      %v5025 = vadd.f32 %v4912, %v5024
      %v5026 = vpop.f32.mrf.mxu0
      %v5027 = vadd.f32 %v4914, %v5026
      %5028 = vmatprep.mubr.bf16.mxu0 %v3111
      %5029 = vmatmul.mubr.bf16.gmra.mxu0 %v3110
      %v5030 = vpop.f32.mrf.mxu0
      %v5031 = vadd.f32 %v4918, %v5030
      %v5032 = vpop.f32.mrf.mxu0
      %v5033 = vadd.f32 %v4920, %v5032
      %v5034 = vpop.f32.mrf.mxu0
      %v5035 = vadd.f32 %v4922, %v5034
      %v5036 = vpop.f32.mrf.mxu0
      %v5037 = vadd.f32 %v4924, %v5036
      %5038 = vmatprep.mubr.bf16.mxu0 %v3127
      %5039 = vmatmul.mubr.bf16.gmra.mxu0 %v3126
      %v5040 = vpop.f32.mrf.mxu0
      %v5041 = vadd.f32 %v4928, %v5040
      %v5042 = vpop.f32.mrf.mxu0
      %v5043 = vadd.f32 %v4930, %v5042
      %v5044 = vpop.f32.mrf.mxu0
      %v5045 = vadd.f32 %v4932, %v5044
      %v5046 = vpop.f32.mrf.mxu0
      %v5047 = vadd.f32 %v4934, %v5046
      %5048 = vmatprep.mubr.bf16.mxu0 %v3143
      %5049 = vmatmul.mubr.bf16.gmra.mxu0 %v3142
      %v5050 = vpop.f32.mrf.mxu0
      %v5051 = vadd.f32 %v4938, %v5050
      %v5052 = vpop.f32.mrf.mxu0
      %v5053 = vadd.f32 %v4940, %v5052
      %v5054 = vpop.f32.mrf.mxu0
      %v5055 = vadd.f32 %v4942, %v5054
      %v5056 = vpop.f32.mrf.mxu0
      %v5057 = vadd.f32 %v4944, %v5056
      %5058 = vmatprep.mubr.bf16.mxu0 %v3159
      %5059 = vmatmul.mubr.bf16.gmra.mxu0 %v3158
      %v5060 = vpop.f32.mrf.mxu0
      %v5061 = vadd.f32 %v4948, %v5060
      %v5062 = vpop.f32.mrf.mxu0
      %v5063 = vadd.f32 %v4950, %v5062
      %v5064 = vpop.f32.mrf.mxu0
      %v5065 = vadd.f32 %v4952, %v5064
      %v5066 = vpop.f32.mrf.mxu0
      %v5067 = vadd.f32 %v4954, %v5066
      %5068 = vmatprep.mubr.bf16.mxu0 %v3175
      %5069 = vmatmul.mubr.bf16.gmra.mxu0 %v3174
      %v5070 = vpop.f32.mrf.mxu0
      %v5071 = vadd.f32 %v4958, %v5070
      %v5072 = vpop.f32.mrf.mxu0
      %v5073 = vadd.f32 %v4960, %v5072
      %v5074 = vpop.f32.mrf.mxu0
      %v5075 = vadd.f32 %v4962, %v5074
      %v5076 = vpop.f32.mrf.mxu0
      %v5077 = vadd.f32 %v4964, %v5076
      %5078 = vmatprep.mubr.bf16.mxu0 %v3191
      %5079 = vmatmul.mubr.bf16.gmra.mxu0 %v3190
      %v5080 = vpop.f32.mrf.mxu0
      %v5081 = vadd.f32 %v4968, %v5080
      %v5082 = vpop.f32.mrf.mxu0
      %v5083 = vadd.f32 %v4970, %v5082
      %v5084 = vpop.f32.mrf.mxu0
      %v5085 = vadd.f32 %v4972, %v5084
      %v5086 = vpop.f32.mrf.mxu0
      %v5087 = vadd.f32 %v4974, %v5086
      %5088 = vdwg.mxu0
      %5089 = vmatprep.subr.bf16.mxu0 %v4349
      %5090 = vmatpush1.bf16.msra.mxu0 %v4348
      %5091 = vmatprep.subr.bf16.mxu0 %v4347
      %5092 = vmatpush1.bf16.msra.mxu0 %v4346
      %5093 = vmatprep.subr.bf16.mxu0 %v4345
      %5094 = vmatpush1.bf16.msra.mxu0 %v4344
      %5095 = vmatprep.subr.bf16.mxu0 %v4343
      %5096 = vmatpush1.bf16.msra.mxu0 %v4342
      %5097 = vmatprep.subr.bf16.mxu0 %v4341
      %5098 = vmatpush1.bf16.msra.mxu0 %v4340
      %5099 = vmatprep.subr.bf16.mxu0 %v4339
      %5100 = vmatpush1.bf16.msra.mxu0 %v4338
      %5101 = vmatprep.subr.bf16.mxu0 %v4337
      %5102 = vmatpush1.bf16.msra.mxu0 %v4336
      %5103 = vmatprep.subr.bf16.mxu0 %v4335
      %5104 = vmatpush1.bf16.msra.mxu0 %v4334
      %5105 = vmatprep.subr.bf16.mxu0 %v4365
      %5106 = vmatpush2.bf16.msra.mxu0 %v4364
      %5107 = vmatprep.subr.bf16.mxu0 %v4363
      %5108 = vmatpush2.bf16.msra.mxu0 %v4362
      %5109 = vmatprep.subr.bf16.mxu0 %v4361
      %5110 = vmatpush2.bf16.msra.mxu0 %v4360
      %5111 = vmatprep.subr.bf16.mxu0 %v4359
      %5112 = vmatpush2.bf16.msra.mxu0 %v4358
      %5113 = vmatprep.subr.bf16.mxu0 %v4357
      %5114 = vmatpush2.bf16.msra.mxu0 %v4356
      %5115 = vmatprep.subr.bf16.mxu0 %v4355
      %5116 = vmatpush2.bf16.msra.mxu0 %v4354
      %5117 = vmatprep.subr.bf16.mxu0 %v4353
      %5118 = vmatpush2.bf16.msra.mxu0 %v4352
      %5119 = vmatprep.subr.bf16.mxu0 %v4351
      %5120 = vmatpush2.bf16.msra.mxu0 %v4350
      %5121 = vmatprep.mubr.bf16.mxu0 %v3081
      %5122 = vmatmul.mubr.bf16.gmra.mxu0 %v3080
      %v5123 = vpop.f32.mrf.mxu0
      %v5124 = vadd.f32 %v5011, %v5123
      %v5125 = vpop.f32.mrf.mxu0
      %v5126 = vadd.f32 %v5013, %v5125
      %v5127 = vpop.f32.mrf.mxu0
      %v5128 = vadd.f32 %v5015, %v5127
      %v5129 = vpop.f32.mrf.mxu0
      %v5130 = vadd.f32 %v5017, %v5129
      %5131 = vmatprep.mubr.bf16.mxu0 %v3097
      %5132 = vmatmul.mubr.bf16.gmra.mxu0 %v3096
      %v5133 = vpop.f32.mrf.mxu0
      %v5134 = vadd.f32 %v5021, %v5133
      %v5135 = vpop.f32.mrf.mxu0
      %v5136 = vadd.f32 %v5023, %v5135
      %v5137 = vpop.f32.mrf.mxu0
      %v5138 = vadd.f32 %v5025, %v5137
      %v5139 = vpop.f32.mrf.mxu0
      %v5140 = vadd.f32 %v5027, %v5139
      %5141 = vmatprep.mubr.bf16.mxu0 %v3113
      %5142 = vmatmul.mubr.bf16.gmra.mxu0 %v3112
      %v5143 = vpop.f32.mrf.mxu0
      %v5144 = vadd.f32 %v5031, %v5143
      %v5145 = vpop.f32.mrf.mxu0
      %v5146 = vadd.f32 %v5033, %v5145
      %v5147 = vpop.f32.mrf.mxu0
      %v5148 = vadd.f32 %v5035, %v5147
      %v5149 = vpop.f32.mrf.mxu0
      %v5150 = vadd.f32 %v5037, %v5149
      %5151 = vmatprep.mubr.bf16.mxu0 %v3129
      %5152 = vmatmul.mubr.bf16.gmra.mxu0 %v3128
      %v5153 = vpop.f32.mrf.mxu0
      %v5154 = vadd.f32 %v5041, %v5153
      %v5155 = vpop.f32.mrf.mxu0
      %v5156 = vadd.f32 %v5043, %v5155
      %v5157 = vpop.f32.mrf.mxu0
      %v5158 = vadd.f32 %v5045, %v5157
      %v5159 = vpop.f32.mrf.mxu0
      %v5160 = vadd.f32 %v5047, %v5159
      %5161 = vmatprep.mubr.bf16.mxu0 %v3145
      %5162 = vmatmul.mubr.bf16.gmra.mxu0 %v3144
      %v5163 = vpop.f32.mrf.mxu0
      %v5164 = vadd.f32 %v5051, %v5163
      %v5165 = vpop.f32.mrf.mxu0
      %v5166 = vadd.f32 %v5053, %v5165
      %v5167 = vpop.f32.mrf.mxu0
      %v5168 = vadd.f32 %v5055, %v5167
      %v5169 = vpop.f32.mrf.mxu0
      %v5170 = vadd.f32 %v5057, %v5169
      %5171 = vmatprep.mubr.bf16.mxu0 %v3161
      %5172 = vmatmul.mubr.bf16.gmra.mxu0 %v3160
      %v5173 = vpop.f32.mrf.mxu0
      %v5174 = vadd.f32 %v5061, %v5173
      %v5175 = vpop.f32.mrf.mxu0
      %v5176 = vadd.f32 %v5063, %v5175
      %v5177 = vpop.f32.mrf.mxu0
      %v5178 = vadd.f32 %v5065, %v5177
      %v5179 = vpop.f32.mrf.mxu0
      %v5180 = vadd.f32 %v5067, %v5179
      %5181 = vmatprep.mubr.bf16.mxu0 %v3177
      %5182 = vmatmul.mubr.bf16.gmra.mxu0 %v3176
      %v5183 = vpop.f32.mrf.mxu0
      %v5184 = vadd.f32 %v5071, %v5183
      %v5185 = vpop.f32.mrf.mxu0
      %v5186 = vadd.f32 %v5073, %v5185
      %v5187 = vpop.f32.mrf.mxu0
      %v5188 = vadd.f32 %v5075, %v5187
      %v5189 = vpop.f32.mrf.mxu0
      %v5190 = vadd.f32 %v5077, %v5189
      %5191 = vmatprep.mubr.bf16.mxu0 %v3193
      %5192 = vmatmul.mubr.bf16.gmra.mxu0 %v3192
      %v5193 = vpop.f32.mrf.mxu0
      %v5194 = vadd.f32 %v5081, %v5193
      %v5195 = vpop.f32.mrf.mxu0
      %v5196 = vadd.f32 %v5083, %v5195
      %v5197 = vpop.f32.mrf.mxu0
      %v5198 = vadd.f32 %v5085, %v5197
      %v5199 = vpop.f32.mrf.mxu0
      %v5200 = vadd.f32 %v5087, %v5199
      %5201 = vdwg.mxu0
      %5202 = vmatprep.subr.bf16.mxu0 %v4381
      %5203 = vmatpush1.bf16.msra.mxu0 %v4380
      %5204 = vmatprep.subr.bf16.mxu0 %v4379
      %5205 = vmatpush1.bf16.msra.mxu0 %v4378
      %5206 = vmatprep.subr.bf16.mxu0 %v4377
      %5207 = vmatpush1.bf16.msra.mxu0 %v4376
      %5208 = vmatprep.subr.bf16.mxu0 %v4375
      %5209 = vmatpush1.bf16.msra.mxu0 %v4374
      %5210 = vmatprep.subr.bf16.mxu0 %v4373
      %5211 = vmatpush1.bf16.msra.mxu0 %v4372
      %5212 = vmatprep.subr.bf16.mxu0 %v4371
      %5213 = vmatpush1.bf16.msra.mxu0 %v4370
      %5214 = vmatprep.subr.bf16.mxu0 %v4369
      %5215 = vmatpush1.bf16.msra.mxu0 %v4368
      %5216 = vmatprep.subr.bf16.mxu0 %v4367
      %5217 = vmatpush1.bf16.msra.mxu0 %v4366
      %5218 = vmatprep.subr.bf16.mxu0 %v4397
      %5219 = vmatpush2.bf16.msra.mxu0 %v4396
      %5220 = vmatprep.subr.bf16.mxu0 %v4395
      %5221 = vmatpush2.bf16.msra.mxu0 %v4394
      %5222 = vmatprep.subr.bf16.mxu0 %v4393
      %5223 = vmatpush2.bf16.msra.mxu0 %v4392
      %5224 = vmatprep.subr.bf16.mxu0 %v4391
      %5225 = vmatpush2.bf16.msra.mxu0 %v4390
      %5226 = vmatprep.subr.bf16.mxu0 %v4389
      %5227 = vmatpush2.bf16.msra.mxu0 %v4388
      %5228 = vmatprep.subr.bf16.mxu0 %v4387
      %5229 = vmatpush2.bf16.msra.mxu0 %v4386
      %5230 = vmatprep.subr.bf16.mxu0 %v4385
      %5231 = vmatpush2.bf16.msra.mxu0 %v4384
      %5232 = vmatprep.subr.bf16.mxu0 %v4383
      %5233 = vmatpush2.bf16.msra.mxu0 %v4382
      %5234 = vmatprep.mubr.bf16.mxu0 %v3083
      %5235 = vmatmul.mubr.bf16.gmra.mxu0 %v3082
      %v5236 = vpop.f32.mrf.mxu0
      %v5237 = vadd.f32 %v5124, %v5236
      %v5238 = vpop.f32.mrf.mxu0
      %v5239 = vadd.f32 %v5126, %v5238
      %v5240 = vpop.f32.mrf.mxu0
      %v5241 = vadd.f32 %v5128, %v5240
      %v5242 = vpop.f32.mrf.mxu0
      %v5243 = vadd.f32 %v5130, %v5242
      %5244 = vmatprep.mubr.bf16.mxu0 %v3099
      %5245 = vmatmul.mubr.bf16.gmra.mxu0 %v3098
      %v5246 = vpop.f32.mrf.mxu0
      %v5247 = vadd.f32 %v5134, %v5246
      %v5248 = vpop.f32.mrf.mxu0
      %v5249 = vadd.f32 %v5136, %v5248
      %v5250 = vpop.f32.mrf.mxu0
      %v5251 = vadd.f32 %v5138, %v5250
      %v5252 = vpop.f32.mrf.mxu0
      %v5253 = vadd.f32 %v5140, %v5252
      %5254 = vmatprep.mubr.bf16.mxu0 %v3115
      %5255 = vmatmul.mubr.bf16.gmra.mxu0 %v3114
      %v5256 = vpop.f32.mrf.mxu0
      %v5257 = vadd.f32 %v5144, %v5256
      %v5258 = vpop.f32.mrf.mxu0
      %v5259 = vadd.f32 %v5146, %v5258
      %v5260 = vpop.f32.mrf.mxu0
      %v5261 = vadd.f32 %v5148, %v5260
      %v5262 = vpop.f32.mrf.mxu0
      %v5263 = vadd.f32 %v5150, %v5262
      %5264 = vmatprep.mubr.bf16.mxu0 %v3131
      %5265 = vmatmul.mubr.bf16.gmra.mxu0 %v3130
      %v5266 = vpop.f32.mrf.mxu0
      %v5267 = vadd.f32 %v5154, %v5266
      %v5268 = vpop.f32.mrf.mxu0
      %v5269 = vadd.f32 %v5156, %v5268
      %v5270 = vpop.f32.mrf.mxu0
      %v5271 = vadd.f32 %v5158, %v5270
      %v5272 = vpop.f32.mrf.mxu0
      %v5273 = vadd.f32 %v5160, %v5272
      %5274 = vmatprep.mubr.bf16.mxu0 %v3147
      %5275 = vmatmul.mubr.bf16.gmra.mxu0 %v3146
      %v5276 = vpop.f32.mrf.mxu0
      %v5277 = vadd.f32 %v5164, %v5276
      %v5278 = vpop.f32.mrf.mxu0
      %v5279 = vadd.f32 %v5166, %v5278
      %v5280 = vpop.f32.mrf.mxu0
      %v5281 = vadd.f32 %v5168, %v5280
      %v5282 = vpop.f32.mrf.mxu0
      %v5283 = vadd.f32 %v5170, %v5282
      %5284 = vmatprep.mubr.bf16.mxu0 %v3163
      %5285 = vmatmul.mubr.bf16.gmra.mxu0 %v3162
      %v5286 = vpop.f32.mrf.mxu0
      %v5287 = vadd.f32 %v5174, %v5286
      %v5288 = vpop.f32.mrf.mxu0
      %v5289 = vadd.f32 %v5176, %v5288
      %v5290 = vpop.f32.mrf.mxu0
      %v5291 = vadd.f32 %v5178, %v5290
      %v5292 = vpop.f32.mrf.mxu0
      %v5293 = vadd.f32 %v5180, %v5292
      %5294 = vmatprep.mubr.bf16.mxu0 %v3179
      %5295 = vmatmul.mubr.bf16.gmra.mxu0 %v3178
      %v5296 = vpop.f32.mrf.mxu0
      %v5297 = vadd.f32 %v5184, %v5296
      %v5298 = vpop.f32.mrf.mxu0
      %v5299 = vadd.f32 %v5186, %v5298
      %v5300 = vpop.f32.mrf.mxu0
      %v5301 = vadd.f32 %v5188, %v5300
      %v5302 = vpop.f32.mrf.mxu0
      %v5303 = vadd.f32 %v5190, %v5302
      %5304 = vmatprep.mubr.bf16.mxu0 %v3195
      %5305 = vmatmul.mubr.bf16.gmra.mxu0 %v3194
      %v5306 = vpop.f32.mrf.mxu0
      %v5307 = vadd.f32 %v5194, %v5306
      %v5308 = vpop.f32.mrf.mxu0
      %v5309 = vadd.f32 %v5196, %v5308
      %v5310 = vpop.f32.mrf.mxu0
      %v5311 = vadd.f32 %v5198, %v5310
      %v5312 = vpop.f32.mrf.mxu0
      %v5313 = vadd.f32 %v5200, %v5312
      %5314 = vdwg.mxu0
      %5315 = vmatprep.subr.bf16.mxu0 %v4413
      %5316 = vmatpush1.bf16.msra.mxu0 %v4412
      %5317 = vmatprep.subr.bf16.mxu0 %v4411
      %5318 = vmatpush1.bf16.msra.mxu0 %v4410
      %5319 = vmatprep.subr.bf16.mxu0 %v4409
      %5320 = vmatpush1.bf16.msra.mxu0 %v4408
      %5321 = vmatprep.subr.bf16.mxu0 %v4407
      %5322 = vmatpush1.bf16.msra.mxu0 %v4406
      %5323 = vmatprep.subr.bf16.mxu0 %v4405
      %5324 = vmatpush1.bf16.msra.mxu0 %v4404
      %5325 = vmatprep.subr.bf16.mxu0 %v4403
      %5326 = vmatpush1.bf16.msra.mxu0 %v4402
      %5327 = vmatprep.subr.bf16.mxu0 %v4401
      %5328 = vmatpush1.bf16.msra.mxu0 %v4400
      %5329 = vmatprep.subr.bf16.mxu0 %v4399
      %5330 = vmatpush1.bf16.msra.mxu0 %v4398
      %5331 = vmatprep.subr.bf16.mxu0 %v4429
      %5332 = vmatpush2.bf16.msra.mxu0 %v4428
      %5333 = vmatprep.subr.bf16.mxu0 %v4427
      %5334 = vmatpush2.bf16.msra.mxu0 %v4426
      %5335 = vmatprep.subr.bf16.mxu0 %v4425
      %5336 = vmatpush2.bf16.msra.mxu0 %v4424
      %5337 = vmatprep.subr.bf16.mxu0 %v4423
      %5338 = vmatpush2.bf16.msra.mxu0 %v4422
      %5339 = vmatprep.subr.bf16.mxu0 %v4421
      %5340 = vmatpush2.bf16.msra.mxu0 %v4420
      %5341 = vmatprep.subr.bf16.mxu0 %v4419
      %5342 = vmatpush2.bf16.msra.mxu0 %v4418
      %5343 = vmatprep.subr.bf16.mxu0 %v4417
      %5344 = vmatpush2.bf16.msra.mxu0 %v4416
      %5345 = vmatprep.subr.bf16.mxu0 %v4415
      %5346 = vmatpush2.bf16.msra.mxu0 %v4414
      %5347 = vmatprep.mubr.bf16.mxu0 %v3085
      %5348 = vmatmul.mubr.bf16.gmra.mxu0 %v3084
      %v5349 = vpop.f32.mrf.mxu0
      %v5350 = vadd.f32 %v5237, %v5349
      %v5351 = vpop.f32.mrf.mxu0
      %v5352 = vadd.f32 %v5239, %v5351
      %v5353 = vpop.f32.mrf.mxu0
      %v5354 = vadd.f32 %v5241, %v5353
      %v5355 = vpop.f32.mrf.mxu0
      %v5356 = vadd.f32 %v5243, %v5355
      %5357 = vmatprep.mubr.bf16.mxu0 %v3101
      %5358 = vmatmul.mubr.bf16.gmra.mxu0 %v3100
      %v5359 = vpop.f32.mrf.mxu0
      %v5360 = vadd.f32 %v5247, %v5359
      %v5361 = vpop.f32.mrf.mxu0
      %v5362 = vadd.f32 %v5249, %v5361
      %v5363 = vpop.f32.mrf.mxu0
      %v5364 = vadd.f32 %v5251, %v5363
      %v5365 = vpop.f32.mrf.mxu0
      %v5366 = vadd.f32 %v5253, %v5365
      %5367 = vmatprep.mubr.bf16.mxu0 %v3117
      %5368 = vmatmul.mubr.bf16.gmra.mxu0 %v3116
      %v5369 = vpop.f32.mrf.mxu0
      %v5370 = vadd.f32 %v5257, %v5369
      %v5371 = vpop.f32.mrf.mxu0
      %v5372 = vadd.f32 %v5259, %v5371
      %v5373 = vpop.f32.mrf.mxu0
      %v5374 = vadd.f32 %v5261, %v5373
      %v5375 = vpop.f32.mrf.mxu0
      %v5376 = vadd.f32 %v5263, %v5375
      %5377 = vmatprep.mubr.bf16.mxu0 %v3133
      %5378 = vmatmul.mubr.bf16.gmra.mxu0 %v3132
      %v5379 = vpop.f32.mrf.mxu0
      %v5380 = vadd.f32 %v5267, %v5379
      %v5381 = vpop.f32.mrf.mxu0
      %v5382 = vadd.f32 %v5269, %v5381
      %v5383 = vpop.f32.mrf.mxu0
      %v5384 = vadd.f32 %v5271, %v5383
      %v5385 = vpop.f32.mrf.mxu0
      %v5386 = vadd.f32 %v5273, %v5385
      %5387 = vmatprep.mubr.bf16.mxu0 %v3149
      %5388 = vmatmul.mubr.bf16.gmra.mxu0 %v3148
      %v5389 = vpop.f32.mrf.mxu0
      %v5390 = vadd.f32 %v5277, %v5389
      %v5391 = vpop.f32.mrf.mxu0
      %v5392 = vadd.f32 %v5279, %v5391
      %v5393 = vpop.f32.mrf.mxu0
      %v5394 = vadd.f32 %v5281, %v5393
      %v5395 = vpop.f32.mrf.mxu0
      %v5396 = vadd.f32 %v5283, %v5395
      %5397 = vmatprep.mubr.bf16.mxu0 %v3165
      %5398 = vmatmul.mubr.bf16.gmra.mxu0 %v3164
      %v5399 = vpop.f32.mrf.mxu0
      %v5400 = vadd.f32 %v5287, %v5399
      %v5401 = vpop.f32.mrf.mxu0
      %v5402 = vadd.f32 %v5289, %v5401
      %v5403 = vpop.f32.mrf.mxu0
      %v5404 = vadd.f32 %v5291, %v5403
      %v5405 = vpop.f32.mrf.mxu0
      %v5406 = vadd.f32 %v5293, %v5405
      %5407 = vmatprep.mubr.bf16.mxu0 %v3181
      %5408 = vmatmul.mubr.bf16.gmra.mxu0 %v3180
      %v5409 = vpop.f32.mrf.mxu0
      %v5410 = vadd.f32 %v5297, %v5409
      %v5411 = vpop.f32.mrf.mxu0
      %v5412 = vadd.f32 %v5299, %v5411
      %v5413 = vpop.f32.mrf.mxu0
      %v5414 = vadd.f32 %v5301, %v5413
      %v5415 = vpop.f32.mrf.mxu0
      %v5416 = vadd.f32 %v5303, %v5415
      %5417 = vmatprep.mubr.bf16.mxu0 %v3197
      %5418 = vmatmul.mubr.bf16.gmra.mxu0 %v3196
      %v5419 = vpop.f32.mrf.mxu0
      %v5420 = vadd.f32 %v5307, %v5419
      %v5421 = vpop.f32.mrf.mxu0
      %v5422 = vadd.f32 %v5309, %v5421
      %v5423 = vpop.f32.mrf.mxu0
      %v5424 = vadd.f32 %v5311, %v5423
      %v5425 = vpop.f32.mrf.mxu0
      %v5426 = vadd.f32 %v5313, %v5425
      %5427 = vdwg.mxu0
      %5428 = vmatprep.subr.bf16.mxu0 %v4445
      %5429 = vmatpush1.bf16.msra.mxu0 %v4444
      %5430 = vmatprep.subr.bf16.mxu0 %v4443
      %5431 = vmatpush1.bf16.msra.mxu0 %v4442
      %5432 = vmatprep.subr.bf16.mxu0 %v4441
      %5433 = vmatpush1.bf16.msra.mxu0 %v4440
      %5434 = vmatprep.subr.bf16.mxu0 %v4439
      %5435 = vmatpush1.bf16.msra.mxu0 %v4438
      %5436 = vmatprep.subr.bf16.mxu0 %v4437
      %5437 = vmatpush1.bf16.msra.mxu0 %v4436
      %5438 = vmatprep.subr.bf16.mxu0 %v4435
      %5439 = vmatpush1.bf16.msra.mxu0 %v4434
      %5440 = vmatprep.subr.bf16.mxu0 %v4433
      %5441 = vmatpush1.bf16.msra.mxu0 %v4432
      %5442 = vmatprep.subr.bf16.mxu0 %v4431
      %5443 = vmatpush1.bf16.msra.mxu0 %v4430
      %5444 = vmatprep.subr.bf16.mxu0 %v4461
      %5445 = vmatpush2.bf16.msra.mxu0 %v4460
      %5446 = vmatprep.subr.bf16.mxu0 %v4459
      %5447 = vmatpush2.bf16.msra.mxu0 %v4458
      %5448 = vmatprep.subr.bf16.mxu0 %v4457
      %5449 = vmatpush2.bf16.msra.mxu0 %v4456
      %5450 = vmatprep.subr.bf16.mxu0 %v4455
      %5451 = vmatpush2.bf16.msra.mxu0 %v4454
      %5452 = vmatprep.subr.bf16.mxu0 %v4453
      %5453 = vmatpush2.bf16.msra.mxu0 %v4452
      %5454 = vmatprep.subr.bf16.mxu0 %v4451
      %5455 = vmatpush2.bf16.msra.mxu0 %v4450
      %5456 = vmatprep.subr.bf16.mxu0 %v4449
      %5457 = vmatpush2.bf16.msra.mxu0 %v4448
      %5458 = vmatprep.subr.bf16.mxu0 %v4447
      %5459 = vmatpush2.bf16.msra.mxu0 %v4446
      %5460 = vmatprep.mubr.bf16.mxu0 %v3087
      %5461 = vmatmul.mubr.bf16.gmra.mxu0 %v3086
      %v5462 = vpop.f32.mrf.mxu0
      %v5463 = vadd.f32 %v5350, %v5462
      %v5464 = vpop.f32.mrf.mxu0
      %v5465 = vadd.f32 %v5352, %v5464
      %v5466 = vpop.f32.mrf.mxu0
      %v5467 = vadd.f32 %v5354, %v5466
      %v5468 = vpop.f32.mrf.mxu0
      %v5469 = vadd.f32 %v5356, %v5468
      %5470 = vmatprep.mubr.bf16.mxu0 %v3103
      %5471 = vmatmul.mubr.bf16.gmra.mxu0 %v3102
      %v5472 = vpop.f32.mrf.mxu0
      %v5473 = vadd.f32 %v5360, %v5472
      %v5474 = vpop.f32.mrf.mxu0
      %v5475 = vadd.f32 %v5362, %v5474
      %v5476 = vpop.f32.mrf.mxu0
      %v5477 = vadd.f32 %v5364, %v5476
      %v5478 = vpop.f32.mrf.mxu0
      %v5479 = vadd.f32 %v5366, %v5478
      %5480 = vmatprep.mubr.bf16.mxu0 %v3119
      %5481 = vmatmul.mubr.bf16.gmra.mxu0 %v3118
      %v5482 = vpop.f32.mrf.mxu0
      %v5483 = vadd.f32 %v5370, %v5482
      %v5484 = vpop.f32.mrf.mxu0
      %v5485 = vadd.f32 %v5372, %v5484
      %v5486 = vpop.f32.mrf.mxu0
      %v5487 = vadd.f32 %v5374, %v5486
      %v5488 = vpop.f32.mrf.mxu0
      %v5489 = vadd.f32 %v5376, %v5488
      %5490 = vmatprep.mubr.bf16.mxu0 %v3135
      %5491 = vmatmul.mubr.bf16.gmra.mxu0 %v3134
      %v5492 = vpop.f32.mrf.mxu0
      %v5493 = vadd.f32 %v5380, %v5492
      %v5494 = vpop.f32.mrf.mxu0
      %v5495 = vadd.f32 %v5382, %v5494
      %v5496 = vpop.f32.mrf.mxu0
      %v5497 = vadd.f32 %v5384, %v5496
      %v5498 = vpop.f32.mrf.mxu0
      %v5499 = vadd.f32 %v5386, %v5498
      %5500 = vmatprep.mubr.bf16.mxu0 %v3151
      %5501 = vmatmul.mubr.bf16.gmra.mxu0 %v3150
      %v5502 = vpop.f32.mrf.mxu0
      %v5503 = vadd.f32 %v5390, %v5502
      %v5504 = vpop.f32.mrf.mxu0
      %v5505 = vadd.f32 %v5392, %v5504
      %v5506 = vpop.f32.mrf.mxu0
      %v5507 = vadd.f32 %v5394, %v5506
      %v5508 = vpop.f32.mrf.mxu0
      %v5509 = vadd.f32 %v5396, %v5508
      %5510 = vmatprep.mubr.bf16.mxu0 %v3167
      %5511 = vmatmul.mubr.bf16.gmra.mxu0 %v3166
      %v5512 = vpop.f32.mrf.mxu0
      %v5513 = vadd.f32 %v5400, %v5512
      %v5514 = vpop.f32.mrf.mxu0
      %v5515 = vadd.f32 %v5402, %v5514
      %v5516 = vpop.f32.mrf.mxu0
      %v5517 = vadd.f32 %v5404, %v5516
      %v5518 = vpop.f32.mrf.mxu0
      %v5519 = vadd.f32 %v5406, %v5518
      %5520 = vmatprep.mubr.bf16.mxu0 %v3183
      %5521 = vmatmul.mubr.bf16.gmra.mxu0 %v3182
      %v5522 = vpop.f32.mrf.mxu0
      %v5523 = vadd.f32 %v5410, %v5522
      %v5524 = vpop.f32.mrf.mxu0
      %v5525 = vadd.f32 %v5412, %v5524
      %v5526 = vpop.f32.mrf.mxu0
      %v5527 = vadd.f32 %v5414, %v5526
      %v5528 = vpop.f32.mrf.mxu0
      %v5529 = vadd.f32 %v5416, %v5528
      %5530 = vmatprep.mubr.bf16.mxu0 %v3199
      %5531 = vmatmul.mubr.bf16.gmra.mxu0 %v3198
      %v5532 = vpop.f32.mrf.mxu0
      %v5533 = vadd.f32 %v5420, %v5532
      %v5534 = vpop.f32.mrf.mxu0
      %v5535 = vadd.f32 %v5422, %v5534
      %v5536 = vpop.f32.mrf.mxu0
      %v5537 = vadd.f32 %v5424, %v5536
      %v5538 = vpop.f32.mrf.mxu0
      %v5539 = vadd.f32 %v5426, %v5538
      %5540 = vdwg.mxu0
      %5541 = vmatprep.subr.bf16.mxu0 %v4477
      %5542 = vmatpush1.bf16.msra.mxu0 %v4476
      %5543 = vmatprep.subr.bf16.mxu0 %v4475
      %5544 = vmatpush1.bf16.msra.mxu0 %v4474
      %5545 = vmatprep.subr.bf16.mxu0 %v4473
      %5546 = vmatpush1.bf16.msra.mxu0 %v4472
      %5547 = vmatprep.subr.bf16.mxu0 %v4471
      %5548 = vmatpush1.bf16.msra.mxu0 %v4470
      %5549 = vmatprep.subr.bf16.mxu0 %v4469
      %5550 = vmatpush1.bf16.msra.mxu0 %v4468
      %5551 = vmatprep.subr.bf16.mxu0 %v4467
      %5552 = vmatpush1.bf16.msra.mxu0 %v4466
      %5553 = vmatprep.subr.bf16.mxu0 %v4465
      %5554 = vmatpush1.bf16.msra.mxu0 %v4464
      %5555 = vmatprep.subr.bf16.mxu0 %v4463
      %5556 = vmatpush1.bf16.msra.mxu0 %v4462
      %5557 = vmatprep.subr.bf16.mxu0 %v4493
      %5558 = vmatpush2.bf16.msra.mxu0 %v4492
      %5559 = vmatprep.subr.bf16.mxu0 %v4491
      %5560 = vmatpush2.bf16.msra.mxu0 %v4490
      %5561 = vmatprep.subr.bf16.mxu0 %v4489
      %5562 = vmatpush2.bf16.msra.mxu0 %v4488
      %5563 = vmatprep.subr.bf16.mxu0 %v4487
      %5564 = vmatpush2.bf16.msra.mxu0 %v4486
      %5565 = vmatprep.subr.bf16.mxu0 %v4485
      %5566 = vmatpush2.bf16.msra.mxu0 %v4484
      %5567 = vmatprep.subr.bf16.mxu0 %v4483
      %5568 = vmatpush2.bf16.msra.mxu0 %v4482
      %5569 = vmatprep.subr.bf16.mxu0 %v4481
      %5570 = vmatpush2.bf16.msra.mxu0 %v4480
      %5571 = vmatprep.subr.bf16.mxu0 %v4479
      %5572 = vmatpush2.bf16.msra.mxu0 %v4478
      %5573 = vmatprep.mubr.bf16.mxu0 %v3089
      %5574 = vmatmul.mubr.bf16.gmra.mxu0 %v3088
      %v5575 = vpop.f32.mrf.mxu0
      %v5576 = vadd.f32 %v5463, %v5575
      %v5577 = vpop.f32.mrf.mxu0
      %v5578 = vadd.f32 %v5465, %v5577
      %v5579 = vpop.f32.mrf.mxu0
      %v5580 = vadd.f32 %v5467, %v5579
      %v5581 = vpop.f32.mrf.mxu0
      %v5582 = vadd.f32 %v5469, %v5581
      %5583 = vmatprep.mubr.bf16.mxu0 %v3105
      %5584 = vmatmul.mubr.bf16.gmra.mxu0 %v3104
      %v5585 = vpop.f32.mrf.mxu0
      %v5586 = vadd.f32 %v5473, %v5585
      %v5587 = vpop.f32.mrf.mxu0
      %v5588 = vadd.f32 %v5475, %v5587
      %v5589 = vpop.f32.mrf.mxu0
      %v5590 = vadd.f32 %v5477, %v5589
      %v5591 = vpop.f32.mrf.mxu0
      %v5592 = vadd.f32 %v5479, %v5591
      %5593 = vmatprep.mubr.bf16.mxu0 %v3121
      %5594 = vmatmul.mubr.bf16.gmra.mxu0 %v3120
      %v5595 = vpop.f32.mrf.mxu0
      %v5596 = vadd.f32 %v5483, %v5595
      %v5597 = vpop.f32.mrf.mxu0
      %v5598 = vadd.f32 %v5485, %v5597
      %v5599 = vpop.f32.mrf.mxu0
      %v5600 = vadd.f32 %v5487, %v5599
      %v5601 = vpop.f32.mrf.mxu0
      %v5602 = vadd.f32 %v5489, %v5601
      %5603 = vmatprep.mubr.bf16.mxu0 %v3137
      %5604 = vmatmul.mubr.bf16.gmra.mxu0 %v3136
      %v5605 = vpop.f32.mrf.mxu0
      %v5606 = vadd.f32 %v5493, %v5605
      %v5607 = vpop.f32.mrf.mxu0
      %v5608 = vadd.f32 %v5495, %v5607
      %v5609 = vpop.f32.mrf.mxu0
      %v5610 = vadd.f32 %v5497, %v5609
      %v5611 = vpop.f32.mrf.mxu0
      %v5612 = vadd.f32 %v5499, %v5611
      %5613 = vmatprep.mubr.bf16.mxu0 %v3153
      %5614 = vmatmul.mubr.bf16.gmra.mxu0 %v3152
      %v5615 = vpop.f32.mrf.mxu0
      %v5616 = vadd.f32 %v5503, %v5615
      %v5617 = vpop.f32.mrf.mxu0
      %v5618 = vadd.f32 %v5505, %v5617
      %v5619 = vpop.f32.mrf.mxu0
      %v5620 = vadd.f32 %v5507, %v5619
      %v5621 = vpop.f32.mrf.mxu0
      %v5622 = vadd.f32 %v5509, %v5621
      %5623 = vmatprep.mubr.bf16.mxu0 %v3169
      %5624 = vmatmul.mubr.bf16.gmra.mxu0 %v3168
      %v5625 = vpop.f32.mrf.mxu0
      %v5626 = vadd.f32 %v5513, %v5625
      %v5627 = vpop.f32.mrf.mxu0
      %v5628 = vadd.f32 %v5515, %v5627
      %v5629 = vpop.f32.mrf.mxu0
      %v5630 = vadd.f32 %v5517, %v5629
      %v5631 = vpop.f32.mrf.mxu0
      %v5632 = vadd.f32 %v5519, %v5631
      %5633 = vmatprep.mubr.bf16.mxu0 %v3185
      %5634 = vmatmul.mubr.bf16.gmra.mxu0 %v3184
      %v5635 = vpop.f32.mrf.mxu0
      %v5636 = vadd.f32 %v5523, %v5635
      %v5637 = vpop.f32.mrf.mxu0
      %v5638 = vadd.f32 %v5525, %v5637
      %v5639 = vpop.f32.mrf.mxu0
      %v5640 = vadd.f32 %v5527, %v5639
      %v5641 = vpop.f32.mrf.mxu0
      %v5642 = vadd.f32 %v5529, %v5641
      %5643 = vmatprep.mubr.bf16.mxu0 %v3201
      %5644 = vmatmul.mubr.bf16.gmra.mxu0 %v3200
      %v5645 = vpop.f32.mrf.mxu0
      %v5646 = vadd.f32 %v5533, %v5645
      %v5647 = vpop.f32.mrf.mxu0
      %v5648 = vadd.f32 %v5535, %v5647
      %v5649 = vpop.f32.mrf.mxu0
      %v5650 = vadd.f32 %v5537, %v5649
      %v5651 = vpop.f32.mrf.mxu0
      %v5652 = vadd.f32 %v5539, %v5651
      %5653 = vdwg.mxu0
      %vm5654 = vcmp.gt.f32.partialorder %v5576, 0.0
      %vm5655 = vcmp.gt.f32.partialorder %v5578, 0.0
      %vm5656 = vcmp.gt.f32.partialorder %v5580, 0.0
      %vm5657 = vcmp.gt.f32.partialorder %v5582, 0.0
      %vm5658 = vcmp.gt.f32.partialorder %v5586, 0.0
      %vm5659 = vcmp.gt.f32.partialorder %v5588, 0.0
      %vm5660 = vcmp.gt.f32.partialorder %v5590, 0.0
      %vm5661 = vcmp.gt.f32.partialorder %v5592, 0.0
      %vm5662 = vcmp.gt.f32.partialorder %v5596, 0.0
      %vm5663 = vcmp.gt.f32.partialorder %v5598, 0.0
      %vm5664 = vcmp.gt.f32.partialorder %v5600, 0.0
      %vm5665 = vcmp.gt.f32.partialorder %v5602, 0.0
      %vm5666 = vcmp.gt.f32.partialorder %v5606, 0.0
      %vm5667 = vcmp.gt.f32.partialorder %v5608, 0.0
      %vm5668 = vcmp.gt.f32.partialorder %v5610, 0.0
      %vm5669 = vcmp.gt.f32.partialorder %v5612, 0.0
      %vm5670 = vcmp.gt.f32.partialorder %v5616, 0.0
      %vm5671 = vcmp.gt.f32.partialorder %v5618, 0.0
      %vm5672 = vcmp.gt.f32.partialorder %v5620, 0.0
      %vm5673 = vcmp.gt.f32.partialorder %v5622, 0.0
      %vm5674 = vcmp.gt.f32.partialorder %v5626, 0.0
      %vm5675 = vcmp.gt.f32.partialorder %v5628, 0.0
      %vm5676 = vcmp.gt.f32.partialorder %v5630, 0.0
      %vm5677 = vcmp.gt.f32.partialorder %v5632, 0.0
      %vm5678 = vcmp.gt.f32.partialorder %v5636, 0.0
      %vm5679 = vcmp.gt.f32.partialorder %v5638, 0.0
      %vm5680 = vcmp.gt.f32.partialorder %v5640, 0.0
      %vm5681 = vcmp.gt.f32.partialorder %v5642, 0.0
      %vm5682 = vcmp.gt.f32.partialorder %v5646, 0.0
      %vm5683 = vcmp.gt.f32.partialorder %v5648, 0.0
      %vm5684 = vcmp.gt.f32.partialorder %v5650, 0.0
      %vm5685 = vcmp.gt.f32.partialorder %v5652, 0.0
      %v5686 = vmul.f32 %v5576, 0.01
      %v5687 = vmul.f32 %v5578, 0.01
      %v5688 = vmul.f32 %v5580, 0.01
      %v5689 = vmul.f32 %v5582, 0.01
      %v5690 = vmul.f32 %v5586, 0.01
      %v5691 = vmul.f32 %v5588, 0.01
      %v5692 = vmul.f32 %v5590, 0.01
      %v5693 = vmul.f32 %v5592, 0.01
      %v5694 = vmul.f32 %v5596, 0.01
      %v5695 = vmul.f32 %v5598, 0.01
      %v5696 = vmul.f32 %v5600, 0.01
      %v5697 = vmul.f32 %v5602, 0.01
      %v5698 = vmul.f32 %v5606, 0.01
      %v5699 = vmul.f32 %v5608, 0.01
      %v5700 = vmul.f32 %v5610, 0.01
      %v5701 = vmul.f32 %v5612, 0.01
      %v5702 = vmul.f32 %v5616, 0.01
      %v5703 = vmul.f32 %v5618, 0.01
      %v5704 = vmul.f32 %v5620, 0.01
      %v5705 = vmul.f32 %v5622, 0.01
      %v5706 = vmul.f32 %v5626, 0.01
      %v5707 = vmul.f32 %v5628, 0.01
      %v5708 = vmul.f32 %v5630, 0.01
      %v5709 = vmul.f32 %v5632, 0.01
      %v5710 = vmul.f32 %v5636, 0.01
      %v5711 = vmul.f32 %v5638, 0.01
      %v5712 = vmul.f32 %v5640, 0.01
      %v5713 = vmul.f32 %v5642, 0.01
      %v5714 = vmul.f32 %v5646, 0.01
      %v5715 = vmul.f32 %v5648, 0.01
      %v5716 = vmul.f32 %v5650, 0.01
      %v5717 = vmul.f32 %v5652, 0.01
      %v5718 = vsel %vm5654, %v5576, %v5686
      %v5719 = vsel %vm5655, %v5578, %v5687
      %v5720 = vsel %vm5656, %v5580, %v5688
      %v5721 = vsel %vm5657, %v5582, %v5689
      %v5722 = vsel %vm5658, %v5586, %v5690
      %v5723 = vsel %vm5659, %v5588, %v5691
      %v5724 = vsel %vm5660, %v5590, %v5692
      %v5725 = vsel %vm5661, %v5592, %v5693
      %v5726 = vsel %vm5662, %v5596, %v5694
      %v5727 = vsel %vm5663, %v5598, %v5695
      %v5728 = vsel %vm5664, %v5600, %v5696
      %v5729 = vsel %vm5665, %v5602, %v5697
      %v5730 = vsel %vm5666, %v5606, %v5698
      %v5731 = vsel %vm5667, %v5608, %v5699
      %v5732 = vsel %vm5668, %v5610, %v5700
      %v5733 = vsel %vm5669, %v5612, %v5701
      %v5734 = vsel %vm5670, %v5616, %v5702
      %v5735 = vsel %vm5671, %v5618, %v5703
      %v5736 = vsel %vm5672, %v5620, %v5704
      %v5737 = vsel %vm5673, %v5622, %v5705
      %v5738 = vsel %vm5674, %v5626, %v5706
      %v5739 = vsel %vm5675, %v5628, %v5707
      %v5740 = vsel %vm5676, %v5630, %v5708
      %v5741 = vsel %vm5677, %v5632, %v5709
      %v5742 = vsel %vm5678, %v5636, %v5710
      %v5743 = vsel %vm5679, %v5638, %v5711
      %v5744 = vsel %vm5680, %v5640, %v5712
      %v5745 = vsel %vm5681, %v5642, %v5713
      %v5746 = vsel %vm5682, %v5646, %v5714
      %v5747 = vsel %vm5683, %v5648, %v5715
      %v5748 = vsel %vm5684, %v5650, %v5716
      %v5749 = vsel %vm5685, %v5652, %v5717
      %v5750 = vpack.c.bf16 %v5720, %v5718
      %v5751 = vpack.c.bf16 %v5721, %v5719
      %v5752 = vpack.c.bf16 %v5724, %v5722
      %v5753 = vpack.c.bf16 %v5725, %v5723
      %v5754 = vpack.c.bf16 %v5728, %v5726
      %v5755 = vpack.c.bf16 %v5729, %v5727
      %v5756 = vpack.c.bf16 %v5732, %v5730
      %v5757 = vpack.c.bf16 %v5733, %v5731
      %v5758 = vpack.c.bf16 %v5736, %v5734
      %v5759 = vpack.c.bf16 %v5737, %v5735
      %v5760 = vpack.c.bf16 %v5740, %v5738
      %v5761 = vpack.c.bf16 %v5741, %v5739
      %v5762 = vpack.c.bf16 %v5744, %v5742
      %v5763 = vpack.c.bf16 %v5745, %v5743
      %v5764 = vpack.c.bf16 %v5748, %v5746
      %v5765 = vpack.c.bf16 %v5749, %v5747
      %v5766 = vld [vmem:[%s5] sm:$0xf]
      %v5767 = vld [vmem:[%s5 + $0x4] sm:$0xf]
      %v5768 = vld [vmem:[%s5 + $0x8] sm:$0xf]
      %v5769 = vld [vmem:[%s5 + $0xc] sm:$0xf]
      %v5770 = vld [vmem:[%s5 + $0x10] sm:$0xf]
      %v5771 = vld [vmem:[%s5 + $0x14] sm:$0xf]
      %v5772 = vld [vmem:[%s5 + $0x18] sm:$0xf]
      %v5773 = vld [vmem:[%s5 + $0x1c] sm:$0xf]
      %v5774 = vld [vmem:[%s5 + $0x20] sm:$0xf]
      %v5775 = vld [vmem:[%s5 + $0x24] sm:$0xf]
      %v5776 = vld [vmem:[%s5 + $0x28] sm:$0xf]
      %v5777 = vld [vmem:[%s5 + $0x2c] sm:$0xf]
      %v5778 = vld [vmem:[%s5 + $0x30] sm:$0xf]
      %v5779 = vld [vmem:[%s5 + $0x34] sm:$0xf]
      %v5780 = vld [vmem:[%s5 + $0x38] sm:$0xf]
      %v5781 = vld [vmem:[%s5 + $0x3c] sm:$0xf]
      %v5782 = vld [vmem:[%s5 + $0x40] sm:$0xf]
      %v5783 = vld [vmem:[%s5 + $0x44] sm:$0xf]
      %v5784 = vld [vmem:[%s5 + $0x48] sm:$0xf]
      %v5785 = vld [vmem:[%s5 + $0x4c] sm:$0xf]
      %v5786 = vld [vmem:[%s5 + $0x50] sm:$0xf]
      %v5787 = vld [vmem:[%s5 + $0x54] sm:$0xf]
      %v5788 = vld [vmem:[%s5 + $0x58] sm:$0xf]
      %v5789 = vld [vmem:[%s5 + $0x5c] sm:$0xf]
      %v5790 = vld [vmem:[%s5 + $0x60] sm:$0xf]
      %v5791 = vld [vmem:[%s5 + $0x64] sm:$0xf]
      %v5792 = vld [vmem:[%s5 + $0x68] sm:$0xf]
      %v5793 = vld [vmem:[%s5 + $0x6c] sm:$0xf]
      %v5794 = vld [vmem:[%s5 + $0x70] sm:$0xf]
      %v5795 = vld [vmem:[%s5 + $0x74] sm:$0xf]
      %v5796 = vld [vmem:[%s5 + $0x78] sm:$0xf]
      %v5797 = vld [vmem:[%s5 + $0x7c] sm:$0xf]
      %v5798 = vld [vmem:[%s6] sm:$0x1]
      %v5800 = vlaneseq
      %v5801 = vshrl.u32 %v5800, 7
      %v5802 = vsub.s32 0, %v5801
      %v5803 = vrot.slane %v5798, %v5802
      %v5837 = vunpack.c.l.b16 %v5766
      %v5838 = vunpack.c.l.b16 %v5767
      %v5839 = vunpack.c.l.b16 %v5768
      %v5840 = vunpack.c.l.b16 %v5769
      %v5841 = vunpack.c.l.b16 %v5770
      %v5842 = vunpack.c.l.b16 %v5771
      %v5843 = vunpack.c.l.b16 %v5772
      %v5844 = vunpack.c.l.b16 %v5773
      %v5845 = vunpack.c.l.b16 %v5774
      %v5846 = vunpack.c.l.b16 %v5775
      %v5847 = vunpack.c.l.b16 %v5776
      %v5848 = vunpack.c.l.b16 %v5777
      %v5849 = vunpack.c.l.b16 %v5778
      %v5850 = vunpack.c.l.b16 %v5779
      %v5851 = vunpack.c.l.b16 %v5780
      %v5852 = vunpack.c.l.b16 %v5781
      %v5853 = vunpack.c.l.b16 %v5782
      %v5854 = vunpack.c.l.b16 %v5783
      %v5855 = vunpack.c.l.b16 %v5784
      %v5856 = vunpack.c.l.b16 %v5785
      %v5857 = vunpack.c.l.b16 %v5786
      %v5858 = vunpack.c.l.b16 %v5787
      %v5859 = vunpack.c.l.b16 %v5788
      %v5860 = vunpack.c.l.b16 %v5789
      %v5861 = vunpack.c.l.b16 %v5790
      %v5862 = vunpack.c.l.b16 %v5791
      %v5863 = vunpack.c.l.b16 %v5792
      %v5864 = vunpack.c.l.b16 %v5793
      %v5865 = vunpack.c.l.b16 %v5794
      %v5866 = vunpack.c.l.b16 %v5795
      %v5867 = vunpack.c.l.b16 %v5796
      %v5868 = vunpack.c.l.b16 %v5797
      %v5869 = vpack.c.b16 %v5838, %v5837
      %v5870 = vpack.c.b16 %v5840, %v5839
      %v5871 = vpack.c.b16 %v5842, %v5841
      %v5872 = vpack.c.b16 %v5844, %v5843
      %v5873 = vpack.c.b16 %v5846, %v5845
      %v5874 = vpack.c.b16 %v5848, %v5847
      %v5875 = vpack.c.b16 %v5850, %v5849
      %v5876 = vpack.c.b16 %v5852, %v5851
      %v5877 = vpack.c.b16 %v5854, %v5853
      %v5878 = vpack.c.b16 %v5856, %v5855
      %v5879 = vpack.c.b16 %v5858, %v5857
      %v5880 = vpack.c.b16 %v5860, %v5859
      %v5881 = vpack.c.b16 %v5862, %v5861
      %v5882 = vpack.c.b16 %v5864, %v5863
      %v5883 = vpack.c.b16 %v5866, %v5865
      %v5884 = vpack.c.b16 %v5868, %v5867
      %5901 = vmatprep.subr.bf16.mxu0 0
      %5902 = vmatpush1.bf16.msra.mxu0 %v5876
      %5903 = vmatprep.subr.bf16.mxu0 0
      %5904 = vmatpush1.bf16.msra.mxu0 %v5875
      %5905 = vmatprep.subr.bf16.mxu0 0
      %5906 = vmatpush1.bf16.msra.mxu0 %v5874
      %5907 = vmatprep.subr.bf16.mxu0 0
      %5908 = vmatpush1.bf16.msra.mxu0 %v5873
      %5909 = vmatprep.subr.bf16.mxu0 0
      %5910 = vmatpush1.bf16.msra.mxu0 %v5872
      %5911 = vmatprep.subr.bf16.mxu0 0
      %5912 = vmatpush1.bf16.msra.mxu0 %v5871
      %5913 = vmatprep.subr.bf16.mxu0 0
      %5914 = vmatpush1.bf16.msra.mxu0 %v5870
      %5915 = vmatprep.subr.bf16.mxu0 0
      %5916 = vmatpush1.bf16.msra.mxu0 %v5869
      %5917 = vmatprep.subr.bf16.mxu0 0
      %5918 = vmatpush2.bf16.msra.mxu0 %v5884
      %5919 = vmatprep.subr.bf16.mxu0 0
      %5920 = vmatpush2.bf16.msra.mxu0 %v5883
      %5921 = vmatprep.subr.bf16.mxu0 0
      %5922 = vmatpush2.bf16.msra.mxu0 %v5882
      %5923 = vmatprep.subr.bf16.mxu0 0
      %5924 = vmatpush2.bf16.msra.mxu0 %v5881
      %5925 = vmatprep.subr.bf16.mxu0 0
      %5926 = vmatpush2.bf16.msra.mxu0 %v5880
      %5927 = vmatprep.subr.bf16.mxu0 0
      %5928 = vmatpush2.bf16.msra.mxu0 %v5879
      %5929 = vmatprep.subr.bf16.mxu0 0
      %5930 = vmatpush2.bf16.msra.mxu0 %v5878
      %5931 = vmatprep.subr.bf16.mxu0 0
      %5932 = vmatpush2.bf16.msra.mxu0 %v5877
      %5933 = vmatprep.mubr.bf16.mxu0 %v5751
      %5934 = vmatmul.mubr.bf16.gmra.mxu0 %v5750
      %v5935 = vpop.f32.mrf.mxu0
      %v5936 = vadd.f32 %v5803, %v5935
      %v5937 = vpop.f32.mrf.mxu0
      %v5938 = vpop.f32.mrf.mxu0
      %v5939 = vadd.f32 %v5803, %v5938
      %v5940 = vpop.f32.mrf.mxu0
      %5941 = vmatprep.mubr.bf16.mxu0 %v5753
      %5942 = vmatmul.mubr.bf16.gmra.mxu0 %v5752
      %v5943 = vpop.f32.mrf.mxu0
      %v5944 = vadd.f32 %v5803, %v5943
      %v5945 = vpop.f32.mrf.mxu0
      %v5946 = vpop.f32.mrf.mxu0
      %v5947 = vadd.f32 %v5803, %v5946
      %v5948 = vpop.f32.mrf.mxu0
      %5949 = vmatprep.mubr.bf16.mxu0 %v5755
      %5950 = vmatmul.mubr.bf16.gmra.mxu0 %v5754
      %v5951 = vpop.f32.mrf.mxu0
      %v5952 = vadd.f32 %v5803, %v5951
      %v5953 = vpop.f32.mrf.mxu0
      %v5954 = vpop.f32.mrf.mxu0
      %v5955 = vadd.f32 %v5803, %v5954
      %v5956 = vpop.f32.mrf.mxu0
      %5957 = vmatprep.mubr.bf16.mxu0 %v5757
      %5958 = vmatmul.mubr.bf16.gmra.mxu0 %v5756
      %v5959 = vpop.f32.mrf.mxu0
      %v5960 = vadd.f32 %v5803, %v5959
      %v5961 = vpop.f32.mrf.mxu0
      %v5962 = vpop.f32.mrf.mxu0
      %v5963 = vadd.f32 %v5803, %v5962
      %v5964 = vpop.f32.mrf.mxu0
      %5965 = vmatprep.mubr.bf16.mxu0 %v5759
      %5966 = vmatmul.mubr.bf16.gmra.mxu0 %v5758
      %v5967 = vpop.f32.mrf.mxu0
      %v5968 = vadd.f32 %v5803, %v5967
      %v5969 = vpop.f32.mrf.mxu0
      %v5970 = vpop.f32.mrf.mxu0
      %v5971 = vadd.f32 %v5803, %v5970
      %v5972 = vpop.f32.mrf.mxu0
      %5973 = vmatprep.mubr.bf16.mxu0 %v5761
      %5974 = vmatmul.mubr.bf16.gmra.mxu0 %v5760
      %v5975 = vpop.f32.mrf.mxu0
      %v5976 = vadd.f32 %v5803, %v5975
      %v5977 = vpop.f32.mrf.mxu0
      %v5978 = vpop.f32.mrf.mxu0
      %v5979 = vadd.f32 %v5803, %v5978
      %v5980 = vpop.f32.mrf.mxu0
      %5981 = vmatprep.mubr.bf16.mxu0 %v5763
      %5982 = vmatmul.mubr.bf16.gmra.mxu0 %v5762
      %v5983 = vpop.f32.mrf.mxu0
      %v5984 = vadd.f32 %v5803, %v5983
      %v5985 = vpop.f32.mrf.mxu0
      %v5986 = vpop.f32.mrf.mxu0
      %v5987 = vadd.f32 %v5803, %v5986
      %v5988 = vpop.f32.mrf.mxu0
      %5989 = vmatprep.mubr.bf16.mxu0 %v5765
      %5990 = vmatmul.mubr.bf16.gmra.mxu0 %v5764
      %v5991 = vpop.f32.mrf.mxu0
      %v5992 = vadd.f32 %v5803, %v5991
      %v5993 = vpop.f32.mrf.mxu0
      %v5994 = vpop.f32.mrf.mxu0
      %v5995 = vadd.f32 %v5803, %v5994
      %v5996 = vpop.f32.mrf.mxu0
      %5997 = vdwg.mxu0
      %5998 = vst [vmem:[%s477] sm:$0xff] %v5936
      %5999 = vst [vmem:[%s477 + $0x8] sm:$0xff] %v5939
      %6000 = vst [vmem:[%s477 + $0x10] sm:$0xff] %v5944
      %6001 = vst [vmem:[%s477 + $0x18] sm:$0xff] %v5947
      %6002 = vst [vmem:[%s477 + $0x20] sm:$0xff] %v5952
      %6003 = vst [vmem:[%s477 + $0x28] sm:$0xff] %v5955
      %6004 = vst [vmem:[%s477 + $0x30] sm:$0xff] %v5960
      %6005 = vst [vmem:[%s477 + $0x38] sm:$0xff] %v5963
      %6006 = vst [vmem:[%s477 + $0x40] sm:$0xff] %v5968
      %6007 = vst [vmem:[%s477 + $0x48] sm:$0xff] %v5971
      %6008 = vst [vmem:[%s477 + $0x50] sm:$0xff] %v5976
      %6009 = vst [vmem:[%s477 + $0x58] sm:$0xff] %v5979
      %6010 = vst [vmem:[%s477 + $0x60] sm:$0xff] %v5984
      %6011 = vst [vmem:[%s477 + $0x68] sm:$0xff] %v5987
      %6012 = vst [vmem:[%s477 + $0x70] sm:$0xff] %v5992
      %6013 = vst [vmem:[%s477 + $0x78] sm:$0xff] %v5995
      %v6014 = vpack.c.bf16 %v5939, %v5936
      %v6015 = vpack.c.bf16 %v5947, %v5944
      %v6016 = vpack.c.bf16 %v5955, %v5952
      %v6017 = vpack.c.bf16 %v5963, %v5960
      %v6018 = vpack.c.bf16 %v5971, %v5968
      %v6019 = vpack.c.bf16 %v5979, %v5976
      %v6020 = vpack.c.bf16 %v5987, %v5984
      %v6021 = vpack.c.bf16 %v5995, %v5992
      %v6022 = vld [vmem:[%s7] sm:$0xff]
      %v6023 = vld [vmem:[%s7 + $0x8] sm:$0xff]
      %v6024 = vld [vmem:[%s7 + $0x10] sm:$0xff]
      %v6025 = vld [vmem:[%s7 + $0x18] sm:$0xff]
      %v6026 = vld [vmem:[%s7 + $0x20] sm:$0xff]
      %v6027 = vld [vmem:[%s7 + $0x28] sm:$0xff]
      %v6028 = vld [vmem:[%s7 + $0x30] sm:$0xff]
      %v6029 = vld [vmem:[%s7 + $0x38] sm:$0xff]
      %v6030 = vld [vmem:[%s7 + $0x40] sm:$0xff]
      %v6031 = vld [vmem:[%s7 + $0x48] sm:$0xff]
      %v6032 = vld [vmem:[%s7 + $0x50] sm:$0xff]
      %v6033 = vld [vmem:[%s7 + $0x58] sm:$0xff]
      %v6034 = vld [vmem:[%s7 + $0x60] sm:$0xff]
      %v6035 = vld [vmem:[%s7 + $0x68] sm:$0xff]
      %v6036 = vld [vmem:[%s7 + $0x70] sm:$0xff]
      %v6037 = vld [vmem:[%s7 + $0x78] sm:$0xff]
      %v6038 = vld [vmem:[%s8] sm:$0x3]
      %v6040 = vlaneseq
      %v6041 = vshrl.u32 %v6040, 7
      %v6042 = vsub.s32 0, %v6041
      %v6043 = vrot.slane %v6038, %v6042
      %v6044 = vlaneseq
      %v6045 = vshrl.u32 %v6044, 7
      %v6046 = vsub.s32 1, %v6045
      %v6047 = vrot.slane %v6038, %v6046
      %v6066 = vunpack.c.l.b16 %v6022
      %v6067 = vunpack.c.h.b16 %v6022
      %v6068 = vunpack.c.l.b16 %v6023
      %v6069 = vunpack.c.h.b16 %v6023
      %v6070 = vunpack.c.l.b16 %v6024
      %v6071 = vunpack.c.h.b16 %v6024
      %v6072 = vunpack.c.l.b16 %v6025
      %v6073 = vunpack.c.h.b16 %v6025
      %v6074 = vunpack.c.l.b16 %v6026
      %v6075 = vunpack.c.h.b16 %v6026
      %v6076 = vunpack.c.l.b16 %v6027
      %v6077 = vunpack.c.h.b16 %v6027
      %v6078 = vunpack.c.l.b16 %v6028
      %v6079 = vunpack.c.h.b16 %v6028
      %v6080 = vunpack.c.l.b16 %v6029
      %v6081 = vunpack.c.h.b16 %v6029
      %v6082 = vunpack.c.l.b16 %v6030
      %v6083 = vunpack.c.h.b16 %v6030
      %v6084 = vunpack.c.l.b16 %v6031
      %v6085 = vunpack.c.h.b16 %v6031
      %v6086 = vunpack.c.l.b16 %v6032
      %v6087 = vunpack.c.h.b16 %v6032
      %v6088 = vunpack.c.l.b16 %v6033
      %v6089 = vunpack.c.h.b16 %v6033
      %v6090 = vunpack.c.l.b16 %v6034
      %v6091 = vunpack.c.h.b16 %v6034
      %v6092 = vunpack.c.l.b16 %v6035
      %v6093 = vunpack.c.h.b16 %v6035
      %v6094 = vunpack.c.l.b16 %v6036
      %v6095 = vunpack.c.h.b16 %v6036
      %v6096 = vunpack.c.l.b16 %v6037
      %v6097 = vunpack.c.h.b16 %v6037
      %v6098 = vpack.c.b16 %v6068, %v6066
      %v6099 = vpack.c.b16 %v6069, %v6067
      %v6100 = vpack.c.b16 %v6072, %v6070
      %v6101 = vpack.c.b16 %v6073, %v6071
      %v6102 = vpack.c.b16 %v6076, %v6074
      %v6103 = vpack.c.b16 %v6077, %v6075
      %v6104 = vpack.c.b16 %v6080, %v6078
      %v6105 = vpack.c.b16 %v6081, %v6079
      %v6106 = vpack.c.b16 %v6084, %v6082
      %v6107 = vpack.c.b16 %v6085, %v6083
      %v6108 = vpack.c.b16 %v6088, %v6086
      %v6109 = vpack.c.b16 %v6089, %v6087
      %v6110 = vpack.c.b16 %v6092, %v6090
      %v6111 = vpack.c.b16 %v6093, %v6091
      %v6112 = vpack.c.b16 %v6096, %v6094
      %v6113 = vpack.c.b16 %v6097, %v6095
      %6130 = vmatprep.subr.bf16.mxu0 %v6113
      %6131 = vmatpush1.bf16.msra.mxu0 %v6112
      %6132 = vmatprep.subr.bf16.mxu0 %v6111
      %6133 = vmatpush1.bf16.msra.mxu0 %v6110
      %6134 = vmatprep.subr.bf16.mxu0 %v6109
      %6135 = vmatpush1.bf16.msra.mxu0 %v6108
      %6136 = vmatprep.subr.bf16.mxu0 %v6107
      %6137 = vmatpush1.bf16.msra.mxu0 %v6106
      %6138 = vmatprep.subr.bf16.mxu0 %v6105
      %6139 = vmatpush1.bf16.msra.mxu0 %v6104
      %6140 = vmatprep.subr.bf16.mxu0 %v6103
      %6141 = vmatpush1.bf16.msra.mxu0 %v6102
      %6142 = vmatprep.subr.bf16.mxu0 %v6101
      %6143 = vmatpush1.bf16.msra.mxu0 %v6100
      %6144 = vmatprep.subr.bf16.mxu0 %v6099
      %6145 = vmatpush1.bf16.msra.mxu0 %v6098
      %6146 = vmatprep.subr.bf16.mxu0 0
      %6147 = vmatpush2.bf16.msra.mxu0 0
      %6148 = vmatprep.subr.bf16.mxu0 0
      %6149 = vmatpush2.bf16.msra.mxu0 0
      %6150 = vmatprep.subr.bf16.mxu0 0
      %6151 = vmatpush2.bf16.msra.mxu0 0
      %6152 = vmatprep.subr.bf16.mxu0 0
      %6153 = vmatpush2.bf16.msra.mxu0 0
      %6154 = vmatprep.subr.bf16.mxu0 0
      %6155 = vmatpush2.bf16.msra.mxu0 0
      %6156 = vmatprep.subr.bf16.mxu0 0
      %6157 = vmatpush2.bf16.msra.mxu0 0
      %6158 = vmatprep.subr.bf16.mxu0 0
      %6159 = vmatpush2.bf16.msra.mxu0 0
      %6160 = vmatprep.subr.bf16.mxu0 0
      %6161 = vmatpush2.bf16.msra.mxu0 0
      %6162 = vmatprep.mubr.bf16.mxu0 0
      %6163 = vmatmul.mubr.bf16.gmra.mxu0 %v6014
      %v6164 = vpop.f32.mrf.mxu0
      %v6165 = vadd.f32 %v6043, %v6164
      %v6166 = vpop.f32.mrf.mxu0
      %v6167 = vadd.f32 %v6047, %v6166
      %v6168 = vpop.f32.mrf.mxu0
      %v6169 = vadd.f32 %v6043, %v6168
      %v6170 = vpop.f32.mrf.mxu0
      %v6171 = vadd.f32 %v6047, %v6170
      %6172 = vmatprep.mubr.bf16.mxu0 0
      %6173 = vmatmul.mubr.bf16.gmra.mxu0 %v6015
      %v6174 = vpop.f32.mrf.mxu0
      %v6175 = vadd.f32 %v6043, %v6174
      %v6176 = vpop.f32.mrf.mxu0
      %v6177 = vadd.f32 %v6047, %v6176
      %v6178 = vpop.f32.mrf.mxu0
      %v6179 = vadd.f32 %v6043, %v6178
      %v6180 = vpop.f32.mrf.mxu0
      %v6181 = vadd.f32 %v6047, %v6180
      %6182 = vmatprep.mubr.bf16.mxu0 0
      %6183 = vmatmul.mubr.bf16.gmra.mxu0 %v6016
      %v6184 = vpop.f32.mrf.mxu0
      %v6185 = vadd.f32 %v6043, %v6184
      %v6186 = vpop.f32.mrf.mxu0
      %v6187 = vadd.f32 %v6047, %v6186
      %v6188 = vpop.f32.mrf.mxu0
      %v6189 = vadd.f32 %v6043, %v6188
      %v6190 = vpop.f32.mrf.mxu0
      %v6191 = vadd.f32 %v6047, %v6190
      %6192 = vmatprep.mubr.bf16.mxu0 0
      %6193 = vmatmul.mubr.bf16.gmra.mxu0 %v6017
      %v6194 = vpop.f32.mrf.mxu0
      %v6195 = vadd.f32 %v6043, %v6194
      %v6196 = vpop.f32.mrf.mxu0
      %v6197 = vadd.f32 %v6047, %v6196
      %v6198 = vpop.f32.mrf.mxu0
      %v6199 = vadd.f32 %v6043, %v6198
      %v6200 = vpop.f32.mrf.mxu0
      %v6201 = vadd.f32 %v6047, %v6200
      %6202 = vmatprep.mubr.bf16.mxu0 0
      %6203 = vmatmul.mubr.bf16.gmra.mxu0 %v6018
      %v6204 = vpop.f32.mrf.mxu0
      %v6205 = vadd.f32 %v6043, %v6204
      %v6206 = vpop.f32.mrf.mxu0
      %v6207 = vadd.f32 %v6047, %v6206
      %v6208 = vpop.f32.mrf.mxu0
      %v6209 = vadd.f32 %v6043, %v6208
      %v6210 = vpop.f32.mrf.mxu0
      %v6211 = vadd.f32 %v6047, %v6210
      %6212 = vmatprep.mubr.bf16.mxu0 0
      %6213 = vmatmul.mubr.bf16.gmra.mxu0 %v6019
      %v6214 = vpop.f32.mrf.mxu0
      %v6215 = vadd.f32 %v6043, %v6214
      %v6216 = vpop.f32.mrf.mxu0
      %v6217 = vadd.f32 %v6047, %v6216
      %v6218 = vpop.f32.mrf.mxu0
      %v6219 = vadd.f32 %v6043, %v6218
      %v6220 = vpop.f32.mrf.mxu0
      %v6221 = vadd.f32 %v6047, %v6220
      %6222 = vmatprep.mubr.bf16.mxu0 0
      %6223 = vmatmul.mubr.bf16.gmra.mxu0 %v6020
      %v6224 = vpop.f32.mrf.mxu0
      %v6225 = vadd.f32 %v6043, %v6224
      %v6226 = vpop.f32.mrf.mxu0
      %v6227 = vadd.f32 %v6047, %v6226
      %v6228 = vpop.f32.mrf.mxu0
      %v6229 = vadd.f32 %v6043, %v6228
      %v6230 = vpop.f32.mrf.mxu0
      %v6231 = vadd.f32 %v6047, %v6230
      %6232 = vmatprep.mubr.bf16.mxu0 0
      %6233 = vmatmul.mubr.bf16.gmra.mxu0 %v6021
      %v6234 = vpop.f32.mrf.mxu0
      %v6235 = vadd.f32 %v6043, %v6234
      %v6236 = vpop.f32.mrf.mxu0
      %v6237 = vadd.f32 %v6047, %v6236
      %v6238 = vpop.f32.mrf.mxu0
      %v6239 = vadd.f32 %v6043, %v6238
      %v6240 = vpop.f32.mrf.mxu0
      %v6241 = vadd.f32 %v6047, %v6240
      %6242 = vdwg.mxu0
      %v6243 = vmax.f32 %v6165, 0.0
      %v6244 = vmax.f32 %v6167, 0.0
      %v6245 = vmax.f32 %v6169, 0.0
      %v6246 = vmax.f32 %v6171, 0.0
      %v6247 = vmax.f32 %v6175, 0.0
      %v6248 = vmax.f32 %v6177, 0.0
      %v6249 = vmax.f32 %v6179, 0.0
      %v6250 = vmax.f32 %v6181, 0.0
      %v6251 = vmax.f32 %v6185, 0.0
      %v6252 = vmax.f32 %v6187, 0.0
      %v6253 = vmax.f32 %v6189, 0.0
      %v6254 = vmax.f32 %v6191, 0.0
      %v6255 = vmax.f32 %v6195, 0.0
      %v6256 = vmax.f32 %v6197, 0.0
      %v6257 = vmax.f32 %v6199, 0.0
      %v6258 = vmax.f32 %v6201, 0.0
      %v6259 = vmax.f32 %v6205, 0.0
      %v6260 = vmax.f32 %v6207, 0.0
      %v6261 = vmax.f32 %v6209, 0.0
      %v6262 = vmax.f32 %v6211, 0.0
      %v6263 = vmax.f32 %v6215, 0.0
      %v6264 = vmax.f32 %v6217, 0.0
      %v6265 = vmax.f32 %v6219, 0.0
      %v6266 = vmax.f32 %v6221, 0.0
      %v6267 = vmax.f32 %v6225, 0.0
      %v6268 = vmax.f32 %v6227, 0.0
      %v6269 = vmax.f32 %v6229, 0.0
      %v6270 = vmax.f32 %v6231, 0.0
      %v6271 = vmax.f32 %v6235, 0.0
      %v6272 = vmax.f32 %v6237, 0.0
      %v6273 = vmax.f32 %v6239, 0.0
      %v6274 = vmax.f32 %v6241, 0.0
      %v6275 = vpack.c.bf16 %v6245, %v6243
      %v6276 = vpack.c.bf16 %v6246, %v6244
      %v6277 = vpack.c.bf16 %v6249, %v6247
      %v6278 = vpack.c.bf16 %v6250, %v6248
      %v6279 = vpack.c.bf16 %v6253, %v6251
      %v6280 = vpack.c.bf16 %v6254, %v6252
      %v6281 = vpack.c.bf16 %v6257, %v6255
      %v6282 = vpack.c.bf16 %v6258, %v6256
      %v6283 = vpack.c.bf16 %v6261, %v6259
      %v6284 = vpack.c.bf16 %v6262, %v6260
      %v6285 = vpack.c.bf16 %v6265, %v6263
      %v6286 = vpack.c.bf16 %v6266, %v6264
      %v6287 = vpack.c.bf16 %v6269, %v6267
      %v6288 = vpack.c.bf16 %v6270, %v6268
      %v6289 = vpack.c.bf16 %v6273, %v6271
      %v6290 = vpack.c.bf16 %v6274, %v6272
      %v6291 = vld [vmem:[%s9] sm:$0xff]
      %v6292 = vld [vmem:[%s9 + $0x8] sm:$0xff]
      %v6293 = vld [vmem:[%s9 + $0x10] sm:$0xff]
      %v6294 = vld [vmem:[%s9 + $0x18] sm:$0xff]
      %v6295 = vld [vmem:[%s9 + $0x20] sm:$0xff]
      %v6296 = vld [vmem:[%s9 + $0x28] sm:$0xff]
      %v6297 = vld [vmem:[%s9 + $0x30] sm:$0xff]
      %v6298 = vld [vmem:[%s9 + $0x38] sm:$0xff]
      %v6299 = vld [vmem:[%s9 + $0x40] sm:$0xff]
      %v6300 = vld [vmem:[%s9 + $0x48] sm:$0xff]
      %v6301 = vld [vmem:[%s9 + $0x50] sm:$0xff]
      %v6302 = vld [vmem:[%s9 + $0x58] sm:$0xff]
      %v6303 = vld [vmem:[%s9 + $0x60] sm:$0xff]
      %v6304 = vld [vmem:[%s9 + $0x68] sm:$0xff]
      %v6305 = vld [vmem:[%s9 + $0x70] sm:$0xff]
      %v6306 = vld [vmem:[%s9 + $0x78] sm:$0xff]
      %v6307 = vld [vmem:[%s9 + $0x80] sm:$0xff]
      %v6308 = vld [vmem:[%s9 + $0x88] sm:$0xff]
      %v6309 = vld [vmem:[%s9 + $0x90] sm:$0xff]
      %v6310 = vld [vmem:[%s9 + $0x98] sm:$0xff]
      %v6311 = vld [vmem:[%s9 + $0xa0] sm:$0xff]
      %v6312 = vld [vmem:[%s9 + $0xa8] sm:$0xff]
      %v6313 = vld [vmem:[%s9 + $0xb0] sm:$0xff]
      %v6314 = vld [vmem:[%s9 + $0xb8] sm:$0xff]
      %v6315 = vld [vmem:[%s9 + $0xc0] sm:$0xff]
      %v6316 = vld [vmem:[%s9 + $0xc8] sm:$0xff]
      %v6317 = vld [vmem:[%s9 + $0xd0] sm:$0xff]
      %v6318 = vld [vmem:[%s9 + $0xd8] sm:$0xff]
      %v6319 = vld [vmem:[%s9 + $0xe0] sm:$0xff]
      %v6320 = vld [vmem:[%s9 + $0xe8] sm:$0xff]
      %v6321 = vld [vmem:[%s9 + $0xf0] sm:$0xff]
      %v6322 = vld [vmem:[%s9 + $0xf8] sm:$0xff]
      %v6323 = vld [vmem:[%s9 + $0x100] sm:$0xff]
      %v6324 = vld [vmem:[%s9 + $0x108] sm:$0xff]
      %v6325 = vld [vmem:[%s9 + $0x110] sm:$0xff]
      %v6326 = vld [vmem:[%s9 + $0x118] sm:$0xff]
      %v6327 = vld [vmem:[%s9 + $0x120] sm:$0xff]
      %v6328 = vld [vmem:[%s9 + $0x128] sm:$0xff]
      %v6329 = vld [vmem:[%s9 + $0x130] sm:$0xff]
      %v6330 = vld [vmem:[%s9 + $0x138] sm:$0xff]
      %v6331 = vld [vmem:[%s9 + $0x140] sm:$0xff]
      %v6332 = vld [vmem:[%s9 + $0x148] sm:$0xff]
      %v6333 = vld [vmem:[%s9 + $0x150] sm:$0xff]
      %v6334 = vld [vmem:[%s9 + $0x158] sm:$0xff]
      %v6335 = vld [vmem:[%s9 + $0x160] sm:$0xff]
      %v6336 = vld [vmem:[%s9 + $0x168] sm:$0xff]
      %v6337 = vld [vmem:[%s9 + $0x170] sm:$0xff]
      %v6338 = vld [vmem:[%s9 + $0x178] sm:$0xff]
      %v6339 = vld [vmem:[%s9 + $0x180] sm:$0xff]
      %v6340 = vld [vmem:[%s9 + $0x188] sm:$0xff]
      %v6341 = vld [vmem:[%s9 + $0x190] sm:$0xff]
      %v6342 = vld [vmem:[%s9 + $0x198] sm:$0xff]
      %v6343 = vld [vmem:[%s9 + $0x1a0] sm:$0xff]
      %v6344 = vld [vmem:[%s9 + $0x1a8] sm:$0xff]
      %v6345 = vld [vmem:[%s9 + $0x1b0] sm:$0xff]
      %v6346 = vld [vmem:[%s9 + $0x1b8] sm:$0xff]
      %v6347 = vld [vmem:[%s9 + $0x1c0] sm:$0xff]
      %v6348 = vld [vmem:[%s9 + $0x1c8] sm:$0xff]
      %v6349 = vld [vmem:[%s9 + $0x1d0] sm:$0xff]
      %v6350 = vld [vmem:[%s9 + $0x1d8] sm:$0xff]
      %v6351 = vld [vmem:[%s9 + $0x1e0] sm:$0xff]
      %v6352 = vld [vmem:[%s9 + $0x1e8] sm:$0xff]
      %v6353 = vld [vmem:[%s9 + $0x1f0] sm:$0xff]
      %v6354 = vld [vmem:[%s9 + $0x1f8] sm:$0xff]
      %v6355 = vld [vmem:[%s9 + $0x200] sm:$0xff]
      %v6356 = vld [vmem:[%s9 + $0x208] sm:$0xff]
      %v6357 = vld [vmem:[%s9 + $0x210] sm:$0xff]
      %v6358 = vld [vmem:[%s9 + $0x218] sm:$0xff]
      %v6359 = vld [vmem:[%s9 + $0x220] sm:$0xff]
      %v6360 = vld [vmem:[%s9 + $0x228] sm:$0xff]
      %v6361 = vld [vmem:[%s9 + $0x230] sm:$0xff]
      %v6362 = vld [vmem:[%s9 + $0x238] sm:$0xff]
      %v6363 = vld [vmem:[%s9 + $0x240] sm:$0xff]
      %v6364 = vld [vmem:[%s9 + $0x248] sm:$0xff]
      %v6365 = vld [vmem:[%s9 + $0x250] sm:$0xff]
      %v6366 = vld [vmem:[%s9 + $0x258] sm:$0xff]
      %v6367 = vld [vmem:[%s9 + $0x260] sm:$0xff]
      %v6368 = vld [vmem:[%s9 + $0x268] sm:$0xff]
      %v6369 = vld [vmem:[%s9 + $0x270] sm:$0xff]
      %v6370 = vld [vmem:[%s9 + $0x278] sm:$0xff]
      %v6371 = vld [vmem:[%s9 + $0x280] sm:$0xff]
      %v6372 = vld [vmem:[%s9 + $0x288] sm:$0xff]
      %v6373 = vld [vmem:[%s9 + $0x290] sm:$0xff]
      %v6374 = vld [vmem:[%s9 + $0x298] sm:$0xff]
      %v6375 = vld [vmem:[%s9 + $0x2a0] sm:$0xff]
      %v6376 = vld [vmem:[%s9 + $0x2a8] sm:$0xff]
      %v6377 = vld [vmem:[%s9 + $0x2b0] sm:$0xff]
      %v6378 = vld [vmem:[%s9 + $0x2b8] sm:$0xff]
      %v6379 = vld [vmem:[%s9 + $0x2c0] sm:$0xff]
      %v6380 = vld [vmem:[%s9 + $0x2c8] sm:$0xff]
      %v6381 = vld [vmem:[%s9 + $0x2d0] sm:$0xff]
      %v6382 = vld [vmem:[%s9 + $0x2d8] sm:$0xff]
      %v6383 = vld [vmem:[%s9 + $0x2e0] sm:$0xff]
      %v6384 = vld [vmem:[%s9 + $0x2e8] sm:$0xff]
      %v6385 = vld [vmem:[%s9 + $0x2f0] sm:$0xff]
      %v6386 = vld [vmem:[%s9 + $0x2f8] sm:$0xff]
      %v6387 = vld [vmem:[%s9 + $0x300] sm:$0xff]
      %v6388 = vld [vmem:[%s9 + $0x308] sm:$0xff]
      %v6389 = vld [vmem:[%s9 + $0x310] sm:$0xff]
      %v6390 = vld [vmem:[%s9 + $0x318] sm:$0xff]
      %v6391 = vld [vmem:[%s9 + $0x320] sm:$0xff]
      %v6392 = vld [vmem:[%s9 + $0x328] sm:$0xff]
      %v6393 = vld [vmem:[%s9 + $0x330] sm:$0xff]
      %v6394 = vld [vmem:[%s9 + $0x338] sm:$0xff]
      %v6395 = vld [vmem:[%s9 + $0x340] sm:$0xff]
      %v6396 = vld [vmem:[%s9 + $0x348] sm:$0xff]
      %v6397 = vld [vmem:[%s9 + $0x350] sm:$0xff]
      %v6398 = vld [vmem:[%s9 + $0x358] sm:$0xff]
      %v6399 = vld [vmem:[%s9 + $0x360] sm:$0xff]
      %v6400 = vld [vmem:[%s9 + $0x368] sm:$0xff]
      %v6401 = vld [vmem:[%s9 + $0x370] sm:$0xff]
      %v6402 = vld [vmem:[%s9 + $0x378] sm:$0xff]
      %v6403 = vld [vmem:[%s9 + $0x380] sm:$0xff]
      %v6404 = vld [vmem:[%s9 + $0x388] sm:$0xff]
      %v6405 = vld [vmem:[%s9 + $0x390] sm:$0xff]
      %v6406 = vld [vmem:[%s9 + $0x398] sm:$0xff]
      %v6407 = vld [vmem:[%s9 + $0x3a0] sm:$0xff]
      %v6408 = vld [vmem:[%s9 + $0x3a8] sm:$0xff]
      %v6409 = vld [vmem:[%s9 + $0x3b0] sm:$0xff]
      %v6410 = vld [vmem:[%s9 + $0x3b8] sm:$0xff]
      %v6411 = vld [vmem:[%s9 + $0x3c0] sm:$0xff]
      %v6412 = vld [vmem:[%s9 + $0x3c8] sm:$0xff]
      %v6413 = vld [vmem:[%s9 + $0x3d0] sm:$0xff]
      %v6414 = vld [vmem:[%s9 + $0x3d8] sm:$0xff]
      %v6415 = vld [vmem:[%s9 + $0x3e0] sm:$0xff]
      %v6416 = vld [vmem:[%s9 + $0x3e8] sm:$0xff]
      %v6417 = vld [vmem:[%s9 + $0x3f0] sm:$0xff]
      %v6418 = vld [vmem:[%s9 + $0x3f8] sm:$0xff]
      %v6419 = vld [vmem:[%s9 + $0x400] sm:$0xff]
      %v6420 = vld [vmem:[%s9 + $0x408] sm:$0xff]
      %v6421 = vld [vmem:[%s9 + $0x410] sm:$0xff]
      %v6422 = vld [vmem:[%s9 + $0x418] sm:$0xff]
      %v6423 = vld [vmem:[%s9 + $0x420] sm:$0xff]
      %v6424 = vld [vmem:[%s9 + $0x428] sm:$0xff]
      %v6425 = vld [vmem:[%s9 + $0x430] sm:$0xff]
      %v6426 = vld [vmem:[%s9 + $0x438] sm:$0xff]
      %v6427 = vld [vmem:[%s9 + $0x440] sm:$0xff]
      %v6428 = vld [vmem:[%s9 + $0x448] sm:$0xff]
      %v6429 = vld [vmem:[%s9 + $0x450] sm:$0xff]
      %v6430 = vld [vmem:[%s9 + $0x458] sm:$0xff]
      %v6431 = vld [vmem:[%s9 + $0x460] sm:$0xff]
      %v6432 = vld [vmem:[%s9 + $0x468] sm:$0xff]
      %v6433 = vld [vmem:[%s9 + $0x470] sm:$0xff]
      %v6434 = vld [vmem:[%s9 + $0x478] sm:$0xff]
      %v6435 = vld [vmem:[%s9 + $0x480] sm:$0xff]
      %v6436 = vld [vmem:[%s9 + $0x488] sm:$0xff]
      %v6437 = vld [vmem:[%s9 + $0x490] sm:$0xff]
      %v6438 = vld [vmem:[%s9 + $0x498] sm:$0xff]
      %v6439 = vld [vmem:[%s9 + $0x4a0] sm:$0xff]
      %v6440 = vld [vmem:[%s9 + $0x4a8] sm:$0xff]
      %v6441 = vld [vmem:[%s9 + $0x4b0] sm:$0xff]
      %v6442 = vld [vmem:[%s9 + $0x4b8] sm:$0xff]
      %v6443 = vld [vmem:[%s9 + $0x4c0] sm:$0xff]
      %v6444 = vld [vmem:[%s9 + $0x4c8] sm:$0xff]
      %v6445 = vld [vmem:[%s9 + $0x4d0] sm:$0xff]
      %v6446 = vld [vmem:[%s9 + $0x4d8] sm:$0xff]
      %v6447 = vld [vmem:[%s9 + $0x4e0] sm:$0xff]
      %v6448 = vld [vmem:[%s9 + $0x4e8] sm:$0xff]
      %v6449 = vld [vmem:[%s9 + $0x4f0] sm:$0xff]
      %v6450 = vld [vmem:[%s9 + $0x4f8] sm:$0xff]
      %v6451 = vld [vmem:[%s9 + $0x500] sm:$0xff]
      %v6452 = vld [vmem:[%s9 + $0x508] sm:$0xff]
      %v6453 = vld [vmem:[%s9 + $0x510] sm:$0xff]
      %v6454 = vld [vmem:[%s9 + $0x518] sm:$0xff]
      %v6455 = vld [vmem:[%s9 + $0x520] sm:$0xff]
      %v6456 = vld [vmem:[%s9 + $0x528] sm:$0xff]
      %v6457 = vld [vmem:[%s9 + $0x530] sm:$0xff]
      %v6458 = vld [vmem:[%s9 + $0x538] sm:$0xff]
      %v6459 = vld [vmem:[%s9 + $0x540] sm:$0xff]
      %v6460 = vld [vmem:[%s9 + $0x548] sm:$0xff]
      %v6461 = vld [vmem:[%s9 + $0x550] sm:$0xff]
      %v6462 = vld [vmem:[%s9 + $0x558] sm:$0xff]
      %v6463 = vld [vmem:[%s9 + $0x560] sm:$0xff]
      %v6464 = vld [vmem:[%s9 + $0x568] sm:$0xff]
      %v6465 = vld [vmem:[%s9 + $0x570] sm:$0xff]
      %v6466 = vld [vmem:[%s9 + $0x578] sm:$0xff]
      %v6467 = vld [vmem:[%s9 + $0x580] sm:$0xff]
      %v6468 = vld [vmem:[%s9 + $0x588] sm:$0xff]
      %v6469 = vld [vmem:[%s9 + $0x590] sm:$0xff]
      %v6470 = vld [vmem:[%s9 + $0x598] sm:$0xff]
      %v6471 = vld [vmem:[%s9 + $0x5a0] sm:$0xff]
      %v6472 = vld [vmem:[%s9 + $0x5a8] sm:$0xff]
      %v6473 = vld [vmem:[%s9 + $0x5b0] sm:$0xff]
      %v6474 = vld [vmem:[%s9 + $0x5b8] sm:$0xff]
      %v6475 = vld [vmem:[%s9 + $0x5c0] sm:$0xff]
      %v6476 = vld [vmem:[%s9 + $0x5c8] sm:$0xff]
      %v6477 = vld [vmem:[%s9 + $0x5d0] sm:$0xff]
      %v6478 = vld [vmem:[%s9 + $0x5d8] sm:$0xff]
      %v6479 = vld [vmem:[%s9 + $0x5e0] sm:$0xff]
      %v6480 = vld [vmem:[%s9 + $0x5e8] sm:$0xff]
      %v6481 = vld [vmem:[%s9 + $0x5f0] sm:$0xff]
      %v6482 = vld [vmem:[%s9 + $0x5f8] sm:$0xff]
      %v6483 = vld [vmem:[%s9 + $0x600] sm:$0xff]
      %v6484 = vld [vmem:[%s9 + $0x608] sm:$0xff]
      %v6485 = vld [vmem:[%s9 + $0x610] sm:$0xff]
      %v6486 = vld [vmem:[%s9 + $0x618] sm:$0xff]
      %v6487 = vld [vmem:[%s9 + $0x620] sm:$0xff]
      %v6488 = vld [vmem:[%s9 + $0x628] sm:$0xff]
      %v6489 = vld [vmem:[%s9 + $0x630] sm:$0xff]
      %v6490 = vld [vmem:[%s9 + $0x638] sm:$0xff]
      %v6491 = vld [vmem:[%s9 + $0x640] sm:$0xff]
      %v6492 = vld [vmem:[%s9 + $0x648] sm:$0xff]
      %v6493 = vld [vmem:[%s9 + $0x650] sm:$0xff]
      %v6494 = vld [vmem:[%s9 + $0x658] sm:$0xff]
      %v6495 = vld [vmem:[%s9 + $0x660] sm:$0xff]
      %v6496 = vld [vmem:[%s9 + $0x668] sm:$0xff]
      %v6497 = vld [vmem:[%s9 + $0x670] sm:$0xff]
      %v6498 = vld [vmem:[%s9 + $0x678] sm:$0xff]
      %v6499 = vld [vmem:[%s9 + $0x680] sm:$0xff]
      %v6500 = vld [vmem:[%s9 + $0x688] sm:$0xff]
      %v6501 = vld [vmem:[%s9 + $0x690] sm:$0xff]
      %v6502 = vld [vmem:[%s9 + $0x698] sm:$0xff]
      %v6503 = vld [vmem:[%s9 + $0x6a0] sm:$0xff]
      %v6504 = vld [vmem:[%s9 + $0x6a8] sm:$0xff]
      %v6505 = vld [vmem:[%s9 + $0x6b0] sm:$0xff]
      %v6506 = vld [vmem:[%s9 + $0x6b8] sm:$0xff]
      %v6507 = vld [vmem:[%s9 + $0x6c0] sm:$0xff]
      %v6508 = vld [vmem:[%s9 + $0x6c8] sm:$0xff]
      %v6509 = vld [vmem:[%s9 + $0x6d0] sm:$0xff]
      %v6510 = vld [vmem:[%s9 + $0x6d8] sm:$0xff]
      %v6511 = vld [vmem:[%s9 + $0x6e0] sm:$0xff]
      %v6512 = vld [vmem:[%s9 + $0x6e8] sm:$0xff]
      %v6513 = vld [vmem:[%s9 + $0x6f0] sm:$0xff]
      %v6514 = vld [vmem:[%s9 + $0x6f8] sm:$0xff]
      %v6515 = vld [vmem:[%s9 + $0x700] sm:$0xff]
      %v6516 = vld [vmem:[%s9 + $0x708] sm:$0xff]
      %v6517 = vld [vmem:[%s9 + $0x710] sm:$0xff]
      %v6518 = vld [vmem:[%s9 + $0x718] sm:$0xff]
      %v6519 = vld [vmem:[%s9 + $0x720] sm:$0xff]
      %v6520 = vld [vmem:[%s9 + $0x728] sm:$0xff]
      %v6521 = vld [vmem:[%s9 + $0x730] sm:$0xff]
      %v6522 = vld [vmem:[%s9 + $0x738] sm:$0xff]
      %v6523 = vld [vmem:[%s9 + $0x740] sm:$0xff]
      %v6524 = vld [vmem:[%s9 + $0x748] sm:$0xff]
      %v6525 = vld [vmem:[%s9 + $0x750] sm:$0xff]
      %v6526 = vld [vmem:[%s9 + $0x758] sm:$0xff]
      %v6527 = vld [vmem:[%s9 + $0x760] sm:$0xff]
      %v6528 = vld [vmem:[%s9 + $0x768] sm:$0xff]
      %v6529 = vld [vmem:[%s9 + $0x770] sm:$0xff]
      %v6530 = vld [vmem:[%s9 + $0x778] sm:$0xff]
      %v6531 = vld [vmem:[%s9 + $0x780] sm:$0xff]
      %v6532 = vld [vmem:[%s9 + $0x788] sm:$0xff]
      %v6533 = vld [vmem:[%s9 + $0x790] sm:$0xff]
      %v6534 = vld [vmem:[%s9 + $0x798] sm:$0xff]
      %v6535 = vld [vmem:[%s9 + $0x7a0] sm:$0xff]
      %v6536 = vld [vmem:[%s9 + $0x7a8] sm:$0xff]
      %v6537 = vld [vmem:[%s9 + $0x7b0] sm:$0xff]
      %v6538 = vld [vmem:[%s9 + $0x7b8] sm:$0xff]
      %v6539 = vld [vmem:[%s9 + $0x7c0] sm:$0xff]
      %v6540 = vld [vmem:[%s9 + $0x7c8] sm:$0xff]
      %v6541 = vld [vmem:[%s9 + $0x7d0] sm:$0xff]
      %v6542 = vld [vmem:[%s9 + $0x7d8] sm:$0xff]
      %v6543 = vld [vmem:[%s9 + $0x7e0] sm:$0xff]
      %v6544 = vld [vmem:[%s9 + $0x7e8] sm:$0xff]
      %v6545 = vld [vmem:[%s9 + $0x7f0] sm:$0xff]
      %v6546 = vld [vmem:[%s9 + $0x7f8] sm:$0xff]
      %v6547 = vld [vmem:[%s10] sm:$0xff]
      %v6548 = vld [vmem:[%s10 + $0x8] sm:$0xff]
      %v6551 = vlaneseq
      %v6552 = vshrl.u32 %v6551, 7
      %v6553 = vsub.s32 0, %v6552
      %v6554 = vrot.slane %v6547, %v6553
      %v6555 = vlaneseq
      %v6556 = vshrl.u32 %v6555, 7
      %v6557 = vsub.s32 1, %v6556
      %v6558 = vrot.slane %v6547, %v6557
      %v6559 = vlaneseq
      %v6560 = vshrl.u32 %v6559, 7
      %v6561 = vsub.s32 2, %v6560
      %v6562 = vrot.slane %v6547, %v6561
      %v6563 = vlaneseq
      %v6564 = vshrl.u32 %v6563, 7
      %v6565 = vsub.s32 3, %v6564
      %v6566 = vrot.slane %v6547, %v6565
      %v6567 = vlaneseq
      %v6568 = vshrl.u32 %v6567, 7
      %v6569 = vsub.s32 4, %v6568
      %v6570 = vrot.slane %v6547, %v6569
      %v6571 = vlaneseq
      %v6572 = vshrl.u32 %v6571, 7
      %v6573 = vsub.s32 5, %v6572
      %v6574 = vrot.slane %v6547, %v6573
      %v6575 = vlaneseq
      %v6576 = vshrl.u32 %v6575, 7
      %v6577 = vsub.s32 6, %v6576
      %v6578 = vrot.slane %v6547, %v6577
      %v6579 = vlaneseq
      %v6580 = vshrl.u32 %v6579, 7
      %v6581 = vsub.s32 7, %v6580
      %v6582 = vrot.slane %v6547, %v6581
      %v6583 = vlaneseq
      %v6584 = vshrl.u32 %v6583, 7
      %v6585 = vsub.s32 0, %v6584
      %v6586 = vrot.slane %v6548, %v6585
      %v6587 = vlaneseq
      %v6588 = vshrl.u32 %v6587, 7
      %v6589 = vsub.s32 1, %v6588
      %v6590 = vrot.slane %v6548, %v6589
      %v6591 = vlaneseq
      %v6592 = vshrl.u32 %v6591, 7
      %v6593 = vsub.s32 2, %v6592
      %v6594 = vrot.slane %v6548, %v6593
      %v6595 = vlaneseq
      %v6596 = vshrl.u32 %v6595, 7
      %v6597 = vsub.s32 3, %v6596
      %v6598 = vrot.slane %v6548, %v6597
      %v6599 = vlaneseq
      %v6600 = vshrl.u32 %v6599, 7
      %v6601 = vsub.s32 4, %v6600
      %v6602 = vrot.slane %v6548, %v6601
      %v6603 = vlaneseq
      %v6604 = vshrl.u32 %v6603, 7
      %v6605 = vsub.s32 5, %v6604
      %v6606 = vrot.slane %v6548, %v6605
      %v6607 = vlaneseq
      %v6608 = vshrl.u32 %v6607, 7
      %v6609 = vsub.s32 6, %v6608
      %v6610 = vrot.slane %v6548, %v6609
      %v6611 = vlaneseq
      %v6612 = vshrl.u32 %v6611, 7
      %v6613 = vsub.s32 7, %v6612
      %v6614 = vrot.slane %v6548, %v6613
      %v6887 = vunpack.c.l.b16 %v6291
      %v6888 = vunpack.c.h.b16 %v6291
      %v6889 = vunpack.c.l.b16 %v6292
      %v6890 = vunpack.c.h.b16 %v6292
      %v6891 = vunpack.c.l.b16 %v6293
      %v6892 = vunpack.c.h.b16 %v6293
      %v6893 = vunpack.c.l.b16 %v6294
      %v6894 = vunpack.c.h.b16 %v6294
      %v6895 = vunpack.c.l.b16 %v6295
      %v6896 = vunpack.c.h.b16 %v6295
      %v6897 = vunpack.c.l.b16 %v6296
      %v6898 = vunpack.c.h.b16 %v6296
      %v6899 = vunpack.c.l.b16 %v6297
      %v6900 = vunpack.c.h.b16 %v6297
      %v6901 = vunpack.c.l.b16 %v6298
      %v6902 = vunpack.c.h.b16 %v6298
      %v6903 = vunpack.c.l.b16 %v6299
      %v6904 = vunpack.c.h.b16 %v6299
      %v6905 = vunpack.c.l.b16 %v6300
      %v6906 = vunpack.c.h.b16 %v6300
      %v6907 = vunpack.c.l.b16 %v6301
      %v6908 = vunpack.c.h.b16 %v6301
      %v6909 = vunpack.c.l.b16 %v6302
      %v6910 = vunpack.c.h.b16 %v6302
      %v6911 = vunpack.c.l.b16 %v6303
      %v6912 = vunpack.c.h.b16 %v6303
      %v6913 = vunpack.c.l.b16 %v6304
      %v6914 = vunpack.c.h.b16 %v6304
      %v6915 = vunpack.c.l.b16 %v6305
      %v6916 = vunpack.c.h.b16 %v6305
      %v6917 = vunpack.c.l.b16 %v6306
      %v6918 = vunpack.c.h.b16 %v6306
      %v6919 = vunpack.c.l.b16 %v6307
      %v6920 = vunpack.c.h.b16 %v6307
      %v6921 = vunpack.c.l.b16 %v6308
      %v6922 = vunpack.c.h.b16 %v6308
      %v6923 = vunpack.c.l.b16 %v6309
      %v6924 = vunpack.c.h.b16 %v6309
      %v6925 = vunpack.c.l.b16 %v6310
      %v6926 = vunpack.c.h.b16 %v6310
      %v6927 = vunpack.c.l.b16 %v6311
      %v6928 = vunpack.c.h.b16 %v6311
      %v6929 = vunpack.c.l.b16 %v6312
      %v6930 = vunpack.c.h.b16 %v6312
      %v6931 = vunpack.c.l.b16 %v6313
      %v6932 = vunpack.c.h.b16 %v6313
      %v6933 = vunpack.c.l.b16 %v6314
      %v6934 = vunpack.c.h.b16 %v6314
      %v6935 = vunpack.c.l.b16 %v6315
      %v6936 = vunpack.c.h.b16 %v6315
      %v6937 = vunpack.c.l.b16 %v6316
      %v6938 = vunpack.c.h.b16 %v6316
      %v6939 = vunpack.c.l.b16 %v6317
      %v6940 = vunpack.c.h.b16 %v6317
      %v6941 = vunpack.c.l.b16 %v6318
      %v6942 = vunpack.c.h.b16 %v6318
      %v6943 = vunpack.c.l.b16 %v6319
      %v6944 = vunpack.c.h.b16 %v6319
      %v6945 = vunpack.c.l.b16 %v6320
      %v6946 = vunpack.c.h.b16 %v6320
      %v6947 = vunpack.c.l.b16 %v6321
      %v6948 = vunpack.c.h.b16 %v6321
      %v6949 = vunpack.c.l.b16 %v6322
      %v6950 = vunpack.c.h.b16 %v6322
      %v6951 = vunpack.c.l.b16 %v6323
      %v6952 = vunpack.c.h.b16 %v6323
      %v6953 = vunpack.c.l.b16 %v6324
      %v6954 = vunpack.c.h.b16 %v6324
      %v6955 = vunpack.c.l.b16 %v6325
      %v6956 = vunpack.c.h.b16 %v6325
      %v6957 = vunpack.c.l.b16 %v6326
      %v6958 = vunpack.c.h.b16 %v6326
      %v6959 = vunpack.c.l.b16 %v6327
      %v6960 = vunpack.c.h.b16 %v6327
      %v6961 = vunpack.c.l.b16 %v6328
      %v6962 = vunpack.c.h.b16 %v6328
      %v6963 = vunpack.c.l.b16 %v6329
      %v6964 = vunpack.c.h.b16 %v6329
      %v6965 = vunpack.c.l.b16 %v6330
      %v6966 = vunpack.c.h.b16 %v6330
      %v6967 = vunpack.c.l.b16 %v6331
      %v6968 = vunpack.c.h.b16 %v6331
      %v6969 = vunpack.c.l.b16 %v6332
      %v6970 = vunpack.c.h.b16 %v6332
      %v6971 = vunpack.c.l.b16 %v6333
      %v6972 = vunpack.c.h.b16 %v6333
      %v6973 = vunpack.c.l.b16 %v6334
      %v6974 = vunpack.c.h.b16 %v6334
      %v6975 = vunpack.c.l.b16 %v6335
      %v6976 = vunpack.c.h.b16 %v6335
      %v6977 = vunpack.c.l.b16 %v6336
      %v6978 = vunpack.c.h.b16 %v6336
      %v6979 = vunpack.c.l.b16 %v6337
      %v6980 = vunpack.c.h.b16 %v6337
      %v6981 = vunpack.c.l.b16 %v6338
      %v6982 = vunpack.c.h.b16 %v6338
      %v6983 = vunpack.c.l.b16 %v6339
      %v6984 = vunpack.c.h.b16 %v6339
      %v6985 = vunpack.c.l.b16 %v6340
      %v6986 = vunpack.c.h.b16 %v6340
      %v6987 = vunpack.c.l.b16 %v6341
      %v6988 = vunpack.c.h.b16 %v6341
      %v6989 = vunpack.c.l.b16 %v6342
      %v6990 = vunpack.c.h.b16 %v6342
      %v6991 = vunpack.c.l.b16 %v6343
      %v6992 = vunpack.c.h.b16 %v6343
      %v6993 = vunpack.c.l.b16 %v6344
      %v6994 = vunpack.c.h.b16 %v6344
      %v6995 = vunpack.c.l.b16 %v6345
      %v6996 = vunpack.c.h.b16 %v6345
      %v6997 = vunpack.c.l.b16 %v6346
      %v6998 = vunpack.c.h.b16 %v6346
      %v6999 = vunpack.c.l.b16 %v6347
      %v7000 = vunpack.c.h.b16 %v6347
      %v7001 = vunpack.c.l.b16 %v6348
      %v7002 = vunpack.c.h.b16 %v6348
      %v7003 = vunpack.c.l.b16 %v6349
      %v7004 = vunpack.c.h.b16 %v6349
      %v7005 = vunpack.c.l.b16 %v6350
      %v7006 = vunpack.c.h.b16 %v6350
      %v7007 = vunpack.c.l.b16 %v6351
      %v7008 = vunpack.c.h.b16 %v6351
      %v7009 = vunpack.c.l.b16 %v6352
      %v7010 = vunpack.c.h.b16 %v6352
      %v7011 = vunpack.c.l.b16 %v6353
      %v7012 = vunpack.c.h.b16 %v6353
      %v7013 = vunpack.c.l.b16 %v6354
      %v7014 = vunpack.c.h.b16 %v6354
      %v7015 = vunpack.c.l.b16 %v6355
      %v7016 = vunpack.c.h.b16 %v6355
      %v7017 = vunpack.c.l.b16 %v6356
      %v7018 = vunpack.c.h.b16 %v6356
      %v7019 = vunpack.c.l.b16 %v6357
      %v7020 = vunpack.c.h.b16 %v6357
      %v7021 = vunpack.c.l.b16 %v6358
      %v7022 = vunpack.c.h.b16 %v6358
      %v7023 = vunpack.c.l.b16 %v6359
      %v7024 = vunpack.c.h.b16 %v6359
      %v7025 = vunpack.c.l.b16 %v6360
      %v7026 = vunpack.c.h.b16 %v6360
      %v7027 = vunpack.c.l.b16 %v6361
      %v7028 = vunpack.c.h.b16 %v6361
      %v7029 = vunpack.c.l.b16 %v6362
      %v7030 = vunpack.c.h.b16 %v6362
      %v7031 = vunpack.c.l.b16 %v6363
      %v7032 = vunpack.c.h.b16 %v6363
      %v7033 = vunpack.c.l.b16 %v6364
      %v7034 = vunpack.c.h.b16 %v6364
      %v7035 = vunpack.c.l.b16 %v6365
      %v7036 = vunpack.c.h.b16 %v6365
      %v7037 = vunpack.c.l.b16 %v6366
      %v7038 = vunpack.c.h.b16 %v6366
      %v7039 = vunpack.c.l.b16 %v6367
      %v7040 = vunpack.c.h.b16 %v6367
      %v7041 = vunpack.c.l.b16 %v6368
      %v7042 = vunpack.c.h.b16 %v6368
      %v7043 = vunpack.c.l.b16 %v6369
      %v7044 = vunpack.c.h.b16 %v6369
      %v7045 = vunpack.c.l.b16 %v6370
      %v7046 = vunpack.c.h.b16 %v6370
      %v7047 = vunpack.c.l.b16 %v6371
      %v7048 = vunpack.c.h.b16 %v6371
      %v7049 = vunpack.c.l.b16 %v6372
      %v7050 = vunpack.c.h.b16 %v6372
      %v7051 = vunpack.c.l.b16 %v6373
      %v7052 = vunpack.c.h.b16 %v6373
      %v7053 = vunpack.c.l.b16 %v6374
      %v7054 = vunpack.c.h.b16 %v6374
      %v7055 = vunpack.c.l.b16 %v6375
      %v7056 = vunpack.c.h.b16 %v6375
      %v7057 = vunpack.c.l.b16 %v6376
      %v7058 = vunpack.c.h.b16 %v6376
      %v7059 = vunpack.c.l.b16 %v6377
      %v7060 = vunpack.c.h.b16 %v6377
      %v7061 = vunpack.c.l.b16 %v6378
      %v7062 = vunpack.c.h.b16 %v6378
      %v7063 = vunpack.c.l.b16 %v6379
      %v7064 = vunpack.c.h.b16 %v6379
      %v7065 = vunpack.c.l.b16 %v6380
      %v7066 = vunpack.c.h.b16 %v6380
      %v7067 = vunpack.c.l.b16 %v6381
      %v7068 = vunpack.c.h.b16 %v6381
      %v7069 = vunpack.c.l.b16 %v6382
      %v7070 = vunpack.c.h.b16 %v6382
      %v7071 = vunpack.c.l.b16 %v6383
      %v7072 = vunpack.c.h.b16 %v6383
      %v7073 = vunpack.c.l.b16 %v6384
      %v7074 = vunpack.c.h.b16 %v6384
      %v7075 = vunpack.c.l.b16 %v6385
      %v7076 = vunpack.c.h.b16 %v6385
      %v7077 = vunpack.c.l.b16 %v6386
      %v7078 = vunpack.c.h.b16 %v6386
      %v7079 = vunpack.c.l.b16 %v6387
      %v7080 = vunpack.c.h.b16 %v6387
      %v7081 = vunpack.c.l.b16 %v6388
      %v7082 = vunpack.c.h.b16 %v6388
      %v7083 = vunpack.c.l.b16 %v6389
      %v7084 = vunpack.c.h.b16 %v6389
      %v7085 = vunpack.c.l.b16 %v6390
      %v7086 = vunpack.c.h.b16 %v6390
      %v7087 = vunpack.c.l.b16 %v6391
      %v7088 = vunpack.c.h.b16 %v6391
      %v7089 = vunpack.c.l.b16 %v6392
      %v7090 = vunpack.c.h.b16 %v6392
      %v7091 = vunpack.c.l.b16 %v6393
      %v7092 = vunpack.c.h.b16 %v6393
      %v7093 = vunpack.c.l.b16 %v6394
      %v7094 = vunpack.c.h.b16 %v6394
      %v7095 = vunpack.c.l.b16 %v6395
      %v7096 = vunpack.c.h.b16 %v6395
      %v7097 = vunpack.c.l.b16 %v6396
      %v7098 = vunpack.c.h.b16 %v6396
      %v7099 = vunpack.c.l.b16 %v6397
      %v7100 = vunpack.c.h.b16 %v6397
      %v7101 = vunpack.c.l.b16 %v6398
      %v7102 = vunpack.c.h.b16 %v6398
      %v7103 = vunpack.c.l.b16 %v6399
      %v7104 = vunpack.c.h.b16 %v6399
      %v7105 = vunpack.c.l.b16 %v6400
      %v7106 = vunpack.c.h.b16 %v6400
      %v7107 = vunpack.c.l.b16 %v6401
      %v7108 = vunpack.c.h.b16 %v6401
      %v7109 = vunpack.c.l.b16 %v6402
      %v7110 = vunpack.c.h.b16 %v6402
      %v7111 = vunpack.c.l.b16 %v6403
      %v7112 = vunpack.c.h.b16 %v6403
      %v7113 = vunpack.c.l.b16 %v6404
      %v7114 = vunpack.c.h.b16 %v6404
      %v7115 = vunpack.c.l.b16 %v6405
      %v7116 = vunpack.c.h.b16 %v6405
      %v7117 = vunpack.c.l.b16 %v6406
      %v7118 = vunpack.c.h.b16 %v6406
      %v7119 = vunpack.c.l.b16 %v6407
      %v7120 = vunpack.c.h.b16 %v6407
      %v7121 = vunpack.c.l.b16 %v6408
      %v7122 = vunpack.c.h.b16 %v6408
      %v7123 = vunpack.c.l.b16 %v6409
      %v7124 = vunpack.c.h.b16 %v6409
      %v7125 = vunpack.c.l.b16 %v6410
      %v7126 = vunpack.c.h.b16 %v6410
      %v7127 = vunpack.c.l.b16 %v6411
      %v7128 = vunpack.c.h.b16 %v6411
      %v7129 = vunpack.c.l.b16 %v6412
      %v7130 = vunpack.c.h.b16 %v6412
      %v7131 = vunpack.c.l.b16 %v6413
      %v7132 = vunpack.c.h.b16 %v6413
      %v7133 = vunpack.c.l.b16 %v6414
      %v7134 = vunpack.c.h.b16 %v6414
      %v7135 = vunpack.c.l.b16 %v6415
      %v7136 = vunpack.c.h.b16 %v6415
      %v7137 = vunpack.c.l.b16 %v6416
      %v7138 = vunpack.c.h.b16 %v6416
      %v7139 = vunpack.c.l.b16 %v6417
      %v7140 = vunpack.c.h.b16 %v6417
      %v7141 = vunpack.c.l.b16 %v6418
      %v7142 = vunpack.c.h.b16 %v6418
      %v7143 = vunpack.c.l.b16 %v6419
      %v7144 = vunpack.c.h.b16 %v6419
      %v7145 = vunpack.c.l.b16 %v6420
      %v7146 = vunpack.c.h.b16 %v6420
      %v7147 = vunpack.c.l.b16 %v6421
      %v7148 = vunpack.c.h.b16 %v6421
      %v7149 = vunpack.c.l.b16 %v6422
      %v7150 = vunpack.c.h.b16 %v6422
      %v7151 = vunpack.c.l.b16 %v6423
      %v7152 = vunpack.c.h.b16 %v6423
      %v7153 = vunpack.c.l.b16 %v6424
      %v7154 = vunpack.c.h.b16 %v6424
      %v7155 = vunpack.c.l.b16 %v6425
      %v7156 = vunpack.c.h.b16 %v6425
      %v7157 = vunpack.c.l.b16 %v6426
      %v7158 = vunpack.c.h.b16 %v6426
      %v7159 = vunpack.c.l.b16 %v6427
      %v7160 = vunpack.c.h.b16 %v6427
      %v7161 = vunpack.c.l.b16 %v6428
      %v7162 = vunpack.c.h.b16 %v6428
      %v7163 = vunpack.c.l.b16 %v6429
      %v7164 = vunpack.c.h.b16 %v6429
      %v7165 = vunpack.c.l.b16 %v6430
      %v7166 = vunpack.c.h.b16 %v6430
      %v7167 = vunpack.c.l.b16 %v6431
      %v7168 = vunpack.c.h.b16 %v6431
      %v7169 = vunpack.c.l.b16 %v6432
      %v7170 = vunpack.c.h.b16 %v6432
      %v7171 = vunpack.c.l.b16 %v6433
      %v7172 = vunpack.c.h.b16 %v6433
      %v7173 = vunpack.c.l.b16 %v6434
      %v7174 = vunpack.c.h.b16 %v6434
      %v7175 = vunpack.c.l.b16 %v6435
      %v7176 = vunpack.c.h.b16 %v6435
      %v7177 = vunpack.c.l.b16 %v6436
      %v7178 = vunpack.c.h.b16 %v6436
      %v7179 = vunpack.c.l.b16 %v6437
      %v7180 = vunpack.c.h.b16 %v6437
      %v7181 = vunpack.c.l.b16 %v6438
      %v7182 = vunpack.c.h.b16 %v6438
      %v7183 = vunpack.c.l.b16 %v6439
      %v7184 = vunpack.c.h.b16 %v6439
      %v7185 = vunpack.c.l.b16 %v6440
      %v7186 = vunpack.c.h.b16 %v6440
      %v7187 = vunpack.c.l.b16 %v6441
      %v7188 = vunpack.c.h.b16 %v6441
      %v7189 = vunpack.c.l.b16 %v6442
      %v7190 = vunpack.c.h.b16 %v6442
      %v7191 = vunpack.c.l.b16 %v6443
      %v7192 = vunpack.c.h.b16 %v6443
      %v7193 = vunpack.c.l.b16 %v6444
      %v7194 = vunpack.c.h.b16 %v6444
      %v7195 = vunpack.c.l.b16 %v6445
      %v7196 = vunpack.c.h.b16 %v6445
      %v7197 = vunpack.c.l.b16 %v6446
      %v7198 = vunpack.c.h.b16 %v6446
      %v7199 = vunpack.c.l.b16 %v6447
      %v7200 = vunpack.c.h.b16 %v6447
      %v7201 = vunpack.c.l.b16 %v6448
      %v7202 = vunpack.c.h.b16 %v6448
      %v7203 = vunpack.c.l.b16 %v6449
      %v7204 = vunpack.c.h.b16 %v6449
      %v7205 = vunpack.c.l.b16 %v6450
      %v7206 = vunpack.c.h.b16 %v6450
      %v7207 = vunpack.c.l.b16 %v6451
      %v7208 = vunpack.c.h.b16 %v6451
      %v7209 = vunpack.c.l.b16 %v6452
      %v7210 = vunpack.c.h.b16 %v6452
      %v7211 = vunpack.c.l.b16 %v6453
      %v7212 = vunpack.c.h.b16 %v6453
      %v7213 = vunpack.c.l.b16 %v6454
      %v7214 = vunpack.c.h.b16 %v6454
      %v7215 = vunpack.c.l.b16 %v6455
      %v7216 = vunpack.c.h.b16 %v6455
      %v7217 = vunpack.c.l.b16 %v6456
      %v7218 = vunpack.c.h.b16 %v6456
      %v7219 = vunpack.c.l.b16 %v6457
      %v7220 = vunpack.c.h.b16 %v6457
      %v7221 = vunpack.c.l.b16 %v6458
      %v7222 = vunpack.c.h.b16 %v6458
      %v7223 = vunpack.c.l.b16 %v6459
      %v7224 = vunpack.c.h.b16 %v6459
      %v7225 = vunpack.c.l.b16 %v6460
      %v7226 = vunpack.c.h.b16 %v6460
      %v7227 = vunpack.c.l.b16 %v6461
      %v7228 = vunpack.c.h.b16 %v6461
      %v7229 = vunpack.c.l.b16 %v6462
      %v7230 = vunpack.c.h.b16 %v6462
      %v7231 = vunpack.c.l.b16 %v6463
      %v7232 = vunpack.c.h.b16 %v6463
      %v7233 = vunpack.c.l.b16 %v6464
      %v7234 = vunpack.c.h.b16 %v6464
      %v7235 = vunpack.c.l.b16 %v6465
      %v7236 = vunpack.c.h.b16 %v6465
      %v7237 = vunpack.c.l.b16 %v6466
      %v7238 = vunpack.c.h.b16 %v6466
      %v7239 = vunpack.c.l.b16 %v6467
      %v7240 = vunpack.c.h.b16 %v6467
      %v7241 = vunpack.c.l.b16 %v6468
      %v7242 = vunpack.c.h.b16 %v6468
      %v7243 = vunpack.c.l.b16 %v6469
      %v7244 = vunpack.c.h.b16 %v6469
      %v7245 = vunpack.c.l.b16 %v6470
      %v7246 = vunpack.c.h.b16 %v6470
      %v7247 = vunpack.c.l.b16 %v6471
      %v7248 = vunpack.c.h.b16 %v6471
      %v7249 = vunpack.c.l.b16 %v6472
      %v7250 = vunpack.c.h.b16 %v6472
      %v7251 = vunpack.c.l.b16 %v6473
      %v7252 = vunpack.c.h.b16 %v6473
      %v7253 = vunpack.c.l.b16 %v6474
      %v7254 = vunpack.c.h.b16 %v6474
      %v7255 = vunpack.c.l.b16 %v6475
      %v7256 = vunpack.c.h.b16 %v6475
      %v7257 = vunpack.c.l.b16 %v6476
      %v7258 = vunpack.c.h.b16 %v6476
      %v7259 = vunpack.c.l.b16 %v6477
      %v7260 = vunpack.c.h.b16 %v6477
      %v7261 = vunpack.c.l.b16 %v6478
      %v7262 = vunpack.c.h.b16 %v6478
      %v7263 = vunpack.c.l.b16 %v6479
      %v7264 = vunpack.c.h.b16 %v6479
      %v7265 = vunpack.c.l.b16 %v6480
      %v7266 = vunpack.c.h.b16 %v6480
      %v7267 = vunpack.c.l.b16 %v6481
      %v7268 = vunpack.c.h.b16 %v6481
      %v7269 = vunpack.c.l.b16 %v6482
      %v7270 = vunpack.c.h.b16 %v6482
      %v7271 = vunpack.c.l.b16 %v6483
      %v7272 = vunpack.c.h.b16 %v6483
      %v7273 = vunpack.c.l.b16 %v6484
      %v7274 = vunpack.c.h.b16 %v6484
      %v7275 = vunpack.c.l.b16 %v6485
      %v7276 = vunpack.c.h.b16 %v6485
      %v7277 = vunpack.c.l.b16 %v6486
      %v7278 = vunpack.c.h.b16 %v6486
      %v7279 = vunpack.c.l.b16 %v6487
      %v7280 = vunpack.c.h.b16 %v6487
      %v7281 = vunpack.c.l.b16 %v6488
      %v7282 = vunpack.c.h.b16 %v6488
      %v7283 = vunpack.c.l.b16 %v6489
      %v7284 = vunpack.c.h.b16 %v6489
      %v7285 = vunpack.c.l.b16 %v6490
      %v7286 = vunpack.c.h.b16 %v6490
      %v7287 = vunpack.c.l.b16 %v6491
      %v7288 = vunpack.c.h.b16 %v6491
      %v7289 = vunpack.c.l.b16 %v6492
      %v7290 = vunpack.c.h.b16 %v6492
      %v7291 = vunpack.c.l.b16 %v6493
      %v7292 = vunpack.c.h.b16 %v6493
      %v7293 = vunpack.c.l.b16 %v6494
      %v7294 = vunpack.c.h.b16 %v6494
      %v7295 = vunpack.c.l.b16 %v6495
      %v7296 = vunpack.c.h.b16 %v6495
      %v7297 = vunpack.c.l.b16 %v6496
      %v7298 = vunpack.c.h.b16 %v6496
      %v7299 = vunpack.c.l.b16 %v6497
      %v7300 = vunpack.c.h.b16 %v6497
      %v7301 = vunpack.c.l.b16 %v6498
      %v7302 = vunpack.c.h.b16 %v6498
      %v7303 = vunpack.c.l.b16 %v6499
      %v7304 = vunpack.c.h.b16 %v6499
      %v7305 = vunpack.c.l.b16 %v6500
      %v7306 = vunpack.c.h.b16 %v6500
      %v7307 = vunpack.c.l.b16 %v6501
      %v7308 = vunpack.c.h.b16 %v6501
      %v7309 = vunpack.c.l.b16 %v6502
      %v7310 = vunpack.c.h.b16 %v6502
      %v7311 = vunpack.c.l.b16 %v6503
      %v7312 = vunpack.c.h.b16 %v6503
      %v7313 = vunpack.c.l.b16 %v6504
      %v7314 = vunpack.c.h.b16 %v6504
      %v7315 = vunpack.c.l.b16 %v6505
      %v7316 = vunpack.c.h.b16 %v6505
      %v7317 = vunpack.c.l.b16 %v6506
      %v7318 = vunpack.c.h.b16 %v6506
      %v7319 = vunpack.c.l.b16 %v6507
      %v7320 = vunpack.c.h.b16 %v6507
      %v7321 = vunpack.c.l.b16 %v6508
      %v7322 = vunpack.c.h.b16 %v6508
      %v7323 = vunpack.c.l.b16 %v6509
      %v7324 = vunpack.c.h.b16 %v6509
      %v7325 = vunpack.c.l.b16 %v6510
      %v7326 = vunpack.c.h.b16 %v6510
      %v7327 = vunpack.c.l.b16 %v6511
      %v7328 = vunpack.c.h.b16 %v6511
      %v7329 = vunpack.c.l.b16 %v6512
      %v7330 = vunpack.c.h.b16 %v6512
      %v7331 = vunpack.c.l.b16 %v6513
      %v7332 = vunpack.c.h.b16 %v6513
      %v7333 = vunpack.c.l.b16 %v6514
      %v7334 = vunpack.c.h.b16 %v6514
      %v7335 = vunpack.c.l.b16 %v6515
      %v7336 = vunpack.c.h.b16 %v6515
      %v7337 = vunpack.c.l.b16 %v6516
      %v7338 = vunpack.c.h.b16 %v6516
      %v7339 = vunpack.c.l.b16 %v6517
      %v7340 = vunpack.c.h.b16 %v6517
      %v7341 = vunpack.c.l.b16 %v6518
      %v7342 = vunpack.c.h.b16 %v6518
      %v7343 = vunpack.c.l.b16 %v6519
      %v7344 = vunpack.c.h.b16 %v6519
      %v7345 = vunpack.c.l.b16 %v6520
      %v7346 = vunpack.c.h.b16 %v6520
      %v7347 = vunpack.c.l.b16 %v6521
      %v7348 = vunpack.c.h.b16 %v6521
      %v7349 = vunpack.c.l.b16 %v6522
      %v7350 = vunpack.c.h.b16 %v6522
      %v7351 = vunpack.c.l.b16 %v6523
      %v7352 = vunpack.c.h.b16 %v6523
      %v7353 = vunpack.c.l.b16 %v6524
      %v7354 = vunpack.c.h.b16 %v6524
      %v7355 = vunpack.c.l.b16 %v6525
      %v7356 = vunpack.c.h.b16 %v6525
      %v7357 = vunpack.c.l.b16 %v6526
      %v7358 = vunpack.c.h.b16 %v6526
      %v7359 = vunpack.c.l.b16 %v6527
      %v7360 = vunpack.c.h.b16 %v6527
      %v7361 = vunpack.c.l.b16 %v6528
      %v7362 = vunpack.c.h.b16 %v6528
      %v7363 = vunpack.c.l.b16 %v6529
      %v7364 = vunpack.c.h.b16 %v6529
      %v7365 = vunpack.c.l.b16 %v6530
      %v7366 = vunpack.c.h.b16 %v6530
      %v7367 = vunpack.c.l.b16 %v6531
      %v7368 = vunpack.c.h.b16 %v6531
      %v7369 = vunpack.c.l.b16 %v6532
      %v7370 = vunpack.c.h.b16 %v6532
      %v7371 = vunpack.c.l.b16 %v6533
      %v7372 = vunpack.c.h.b16 %v6533
      %v7373 = vunpack.c.l.b16 %v6534
      %v7374 = vunpack.c.h.b16 %v6534
      %v7375 = vunpack.c.l.b16 %v6535
      %v7376 = vunpack.c.h.b16 %v6535
      %v7377 = vunpack.c.l.b16 %v6536
      %v7378 = vunpack.c.h.b16 %v6536
      %v7379 = vunpack.c.l.b16 %v6537
      %v7380 = vunpack.c.h.b16 %v6537
      %v7381 = vunpack.c.l.b16 %v6538
      %v7382 = vunpack.c.h.b16 %v6538
      %v7383 = vunpack.c.l.b16 %v6539
      %v7384 = vunpack.c.h.b16 %v6539
      %v7385 = vunpack.c.l.b16 %v6540
      %v7386 = vunpack.c.h.b16 %v6540
      %v7387 = vunpack.c.l.b16 %v6541
      %v7388 = vunpack.c.h.b16 %v6541
      %v7389 = vunpack.c.l.b16 %v6542
      %v7390 = vunpack.c.h.b16 %v6542
      %v7391 = vunpack.c.l.b16 %v6543
      %v7392 = vunpack.c.h.b16 %v6543
      %v7393 = vunpack.c.l.b16 %v6544
      %v7394 = vunpack.c.h.b16 %v6544
      %v7395 = vunpack.c.l.b16 %v6545
      %v7396 = vunpack.c.h.b16 %v6545
      %v7397 = vunpack.c.l.b16 %v6546
      %v7398 = vunpack.c.h.b16 %v6546
      %v7399 = vpack.c.b16 %v6903, %v6887
      %v7400 = vpack.c.b16 %v6904, %v6888
      %v7401 = vpack.c.b16 %v6905, %v6889
      %v7402 = vpack.c.b16 %v6906, %v6890
      %v7403 = vpack.c.b16 %v6907, %v6891
      %v7404 = vpack.c.b16 %v6908, %v6892
      %v7405 = vpack.c.b16 %v6909, %v6893
      %v7406 = vpack.c.b16 %v6910, %v6894
      %v7407 = vpack.c.b16 %v6911, %v6895
      %v7408 = vpack.c.b16 %v6912, %v6896
      %v7409 = vpack.c.b16 %v6913, %v6897
      %v7410 = vpack.c.b16 %v6914, %v6898
      %v7411 = vpack.c.b16 %v6915, %v6899
      %v7412 = vpack.c.b16 %v6916, %v6900
      %v7413 = vpack.c.b16 %v6917, %v6901
      %v7414 = vpack.c.b16 %v6918, %v6902
      %v7415 = vpack.c.b16 %v6935, %v6919
      %v7416 = vpack.c.b16 %v6936, %v6920
      %v7417 = vpack.c.b16 %v6937, %v6921
      %v7418 = vpack.c.b16 %v6938, %v6922
      %v7419 = vpack.c.b16 %v6939, %v6923
      %v7420 = vpack.c.b16 %v6940, %v6924
      %v7421 = vpack.c.b16 %v6941, %v6925
      %v7422 = vpack.c.b16 %v6942, %v6926
      %v7423 = vpack.c.b16 %v6943, %v6927
      %v7424 = vpack.c.b16 %v6944, %v6928
      %v7425 = vpack.c.b16 %v6945, %v6929
      %v7426 = vpack.c.b16 %v6946, %v6930
      %v7427 = vpack.c.b16 %v6947, %v6931
      %v7428 = vpack.c.b16 %v6948, %v6932
      %v7429 = vpack.c.b16 %v6949, %v6933
      %v7430 = vpack.c.b16 %v6950, %v6934
      %v7431 = vpack.c.b16 %v6967, %v6951
      %v7432 = vpack.c.b16 %v6968, %v6952
      %v7433 = vpack.c.b16 %v6969, %v6953
      %v7434 = vpack.c.b16 %v6970, %v6954
      %v7435 = vpack.c.b16 %v6971, %v6955
      %v7436 = vpack.c.b16 %v6972, %v6956
      %v7437 = vpack.c.b16 %v6973, %v6957
      %v7438 = vpack.c.b16 %v6974, %v6958
      %v7439 = vpack.c.b16 %v6975, %v6959
      %v7440 = vpack.c.b16 %v6976, %v6960
      %v7441 = vpack.c.b16 %v6977, %v6961
      %v7442 = vpack.c.b16 %v6978, %v6962
      %v7443 = vpack.c.b16 %v6979, %v6963
      %v7444 = vpack.c.b16 %v6980, %v6964
      %v7445 = vpack.c.b16 %v6981, %v6965
      %v7446 = vpack.c.b16 %v6982, %v6966
      %v7447 = vpack.c.b16 %v6999, %v6983
      %v7448 = vpack.c.b16 %v7000, %v6984
      %v7449 = vpack.c.b16 %v7001, %v6985
      %v7450 = vpack.c.b16 %v7002, %v6986
      %v7451 = vpack.c.b16 %v7003, %v6987
      %v7452 = vpack.c.b16 %v7004, %v6988
      %v7453 = vpack.c.b16 %v7005, %v6989
      %v7454 = vpack.c.b16 %v7006, %v6990
      %v7455 = vpack.c.b16 %v7007, %v6991
      %v7456 = vpack.c.b16 %v7008, %v6992
      %v7457 = vpack.c.b16 %v7009, %v6993
      %v7458 = vpack.c.b16 %v7010, %v6994
      %v7459 = vpack.c.b16 %v7011, %v6995
      %v7460 = vpack.c.b16 %v7012, %v6996
      %v7461 = vpack.c.b16 %v7013, %v6997
      %v7462 = vpack.c.b16 %v7014, %v6998
      %v7463 = vpack.c.b16 %v7031, %v7015
      %v7464 = vpack.c.b16 %v7032, %v7016
      %v7465 = vpack.c.b16 %v7033, %v7017
      %v7466 = vpack.c.b16 %v7034, %v7018
      %v7467 = vpack.c.b16 %v7035, %v7019
      %v7468 = vpack.c.b16 %v7036, %v7020
      %v7469 = vpack.c.b16 %v7037, %v7021
      %v7470 = vpack.c.b16 %v7038, %v7022
      %v7471 = vpack.c.b16 %v7039, %v7023
      %v7472 = vpack.c.b16 %v7040, %v7024
      %v7473 = vpack.c.b16 %v7041, %v7025
      %v7474 = vpack.c.b16 %v7042, %v7026
      %v7475 = vpack.c.b16 %v7043, %v7027
      %v7476 = vpack.c.b16 %v7044, %v7028
      %v7477 = vpack.c.b16 %v7045, %v7029
      %v7478 = vpack.c.b16 %v7046, %v7030
      %v7479 = vpack.c.b16 %v7063, %v7047
      %v7480 = vpack.c.b16 %v7064, %v7048
      %v7481 = vpack.c.b16 %v7065, %v7049
      %v7482 = vpack.c.b16 %v7066, %v7050
      %v7483 = vpack.c.b16 %v7067, %v7051
      %v7484 = vpack.c.b16 %v7068, %v7052
      %v7485 = vpack.c.b16 %v7069, %v7053
      %v7486 = vpack.c.b16 %v7070, %v7054
      %v7487 = vpack.c.b16 %v7071, %v7055
      %v7488 = vpack.c.b16 %v7072, %v7056
      %v7489 = vpack.c.b16 %v7073, %v7057
      %v7490 = vpack.c.b16 %v7074, %v7058
      %v7491 = vpack.c.b16 %v7075, %v7059
      %v7492 = vpack.c.b16 %v7076, %v7060
      %v7493 = vpack.c.b16 %v7077, %v7061
      %v7494 = vpack.c.b16 %v7078, %v7062
      %v7495 = vpack.c.b16 %v7095, %v7079
      %v7496 = vpack.c.b16 %v7096, %v7080
      %v7497 = vpack.c.b16 %v7097, %v7081
      %v7498 = vpack.c.b16 %v7098, %v7082
      %v7499 = vpack.c.b16 %v7099, %v7083
      %v7500 = vpack.c.b16 %v7100, %v7084
      %v7501 = vpack.c.b16 %v7101, %v7085
      %v7502 = vpack.c.b16 %v7102, %v7086
      %v7503 = vpack.c.b16 %v7103, %v7087
      %v7504 = vpack.c.b16 %v7104, %v7088
      %v7505 = vpack.c.b16 %v7105, %v7089
      %v7506 = vpack.c.b16 %v7106, %v7090
      %v7507 = vpack.c.b16 %v7107, %v7091
      %v7508 = vpack.c.b16 %v7108, %v7092
      %v7509 = vpack.c.b16 %v7109, %v7093
      %v7510 = vpack.c.b16 %v7110, %v7094
      %v7511 = vpack.c.b16 %v7127, %v7111
      %v7512 = vpack.c.b16 %v7128, %v7112
      %v7513 = vpack.c.b16 %v7129, %v7113
      %v7514 = vpack.c.b16 %v7130, %v7114
      %v7515 = vpack.c.b16 %v7131, %v7115
      %v7516 = vpack.c.b16 %v7132, %v7116
      %v7517 = vpack.c.b16 %v7133, %v7117
      %v7518 = vpack.c.b16 %v7134, %v7118
      %v7519 = vpack.c.b16 %v7135, %v7119
      %v7520 = vpack.c.b16 %v7136, %v7120
      %v7521 = vpack.c.b16 %v7137, %v7121
      %v7522 = vpack.c.b16 %v7138, %v7122
      %v7523 = vpack.c.b16 %v7139, %v7123
      %v7524 = vpack.c.b16 %v7140, %v7124
      %v7525 = vpack.c.b16 %v7141, %v7125
      %v7526 = vpack.c.b16 %v7142, %v7126
      %v7527 = vpack.c.b16 %v7159, %v7143
      %v7528 = vpack.c.b16 %v7160, %v7144
      %v7529 = vpack.c.b16 %v7161, %v7145
      %v7530 = vpack.c.b16 %v7162, %v7146
      %v7531 = vpack.c.b16 %v7163, %v7147
      %v7532 = vpack.c.b16 %v7164, %v7148
      %v7533 = vpack.c.b16 %v7165, %v7149
      %v7534 = vpack.c.b16 %v7166, %v7150
      %v7535 = vpack.c.b16 %v7167, %v7151
      %v7536 = vpack.c.b16 %v7168, %v7152
      %v7537 = vpack.c.b16 %v7169, %v7153
      %v7538 = vpack.c.b16 %v7170, %v7154
      %v7539 = vpack.c.b16 %v7171, %v7155
      %v7540 = vpack.c.b16 %v7172, %v7156
      %v7541 = vpack.c.b16 %v7173, %v7157
      %v7542 = vpack.c.b16 %v7174, %v7158
      %v7543 = vpack.c.b16 %v7191, %v7175
      %v7544 = vpack.c.b16 %v7192, %v7176
      %v7545 = vpack.c.b16 %v7193, %v7177
      %v7546 = vpack.c.b16 %v7194, %v7178
      %v7547 = vpack.c.b16 %v7195, %v7179
      %v7548 = vpack.c.b16 %v7196, %v7180
      %v7549 = vpack.c.b16 %v7197, %v7181
      %v7550 = vpack.c.b16 %v7198, %v7182
      %v7551 = vpack.c.b16 %v7199, %v7183
      %v7552 = vpack.c.b16 %v7200, %v7184
      %v7553 = vpack.c.b16 %v7201, %v7185
      %v7554 = vpack.c.b16 %v7202, %v7186
      %v7555 = vpack.c.b16 %v7203, %v7187
      %v7556 = vpack.c.b16 %v7204, %v7188
      %v7557 = vpack.c.b16 %v7205, %v7189
      %v7558 = vpack.c.b16 %v7206, %v7190
      %v7559 = vpack.c.b16 %v7223, %v7207
      %v7560 = vpack.c.b16 %v7224, %v7208
      %v7561 = vpack.c.b16 %v7225, %v7209
      %v7562 = vpack.c.b16 %v7226, %v7210
      %v7563 = vpack.c.b16 %v7227, %v7211
      %v7564 = vpack.c.b16 %v7228, %v7212
      %v7565 = vpack.c.b16 %v7229, %v7213
      %v7566 = vpack.c.b16 %v7230, %v7214
      %v7567 = vpack.c.b16 %v7231, %v7215
      %v7568 = vpack.c.b16 %v7232, %v7216
      %v7569 = vpack.c.b16 %v7233, %v7217
      %v7570 = vpack.c.b16 %v7234, %v7218
      %v7571 = vpack.c.b16 %v7235, %v7219
      %v7572 = vpack.c.b16 %v7236, %v7220
      %v7573 = vpack.c.b16 %v7237, %v7221
      %v7574 = vpack.c.b16 %v7238, %v7222
      %v7575 = vpack.c.b16 %v7255, %v7239
      %v7576 = vpack.c.b16 %v7256, %v7240
      %v7577 = vpack.c.b16 %v7257, %v7241
      %v7578 = vpack.c.b16 %v7258, %v7242
      %v7579 = vpack.c.b16 %v7259, %v7243
      %v7580 = vpack.c.b16 %v7260, %v7244
      %v7581 = vpack.c.b16 %v7261, %v7245
      %v7582 = vpack.c.b16 %v7262, %v7246
      %v7583 = vpack.c.b16 %v7263, %v7247
      %v7584 = vpack.c.b16 %v7264, %v7248
      %v7585 = vpack.c.b16 %v7265, %v7249
      %v7586 = vpack.c.b16 %v7266, %v7250
      %v7587 = vpack.c.b16 %v7267, %v7251
      %v7588 = vpack.c.b16 %v7268, %v7252
      %v7589 = vpack.c.b16 %v7269, %v7253
      %v7590 = vpack.c.b16 %v7270, %v7254
      %v7591 = vpack.c.b16 %v7287, %v7271
      %v7592 = vpack.c.b16 %v7288, %v7272
      %v7593 = vpack.c.b16 %v7289, %v7273
      %v7594 = vpack.c.b16 %v7290, %v7274
      %v7595 = vpack.c.b16 %v7291, %v7275
      %v7596 = vpack.c.b16 %v7292, %v7276
      %v7597 = vpack.c.b16 %v7293, %v7277
      %v7598 = vpack.c.b16 %v7294, %v7278
      %v7599 = vpack.c.b16 %v7295, %v7279
      %v7600 = vpack.c.b16 %v7296, %v7280
      %v7601 = vpack.c.b16 %v7297, %v7281
      %v7602 = vpack.c.b16 %v7298, %v7282
      %v7603 = vpack.c.b16 %v7299, %v7283
      %v7604 = vpack.c.b16 %v7300, %v7284
      %v7605 = vpack.c.b16 %v7301, %v7285
      %v7606 = vpack.c.b16 %v7302, %v7286
      %v7607 = vpack.c.b16 %v7319, %v7303
      %v7608 = vpack.c.b16 %v7320, %v7304
      %v7609 = vpack.c.b16 %v7321, %v7305
      %v7610 = vpack.c.b16 %v7322, %v7306
      %v7611 = vpack.c.b16 %v7323, %v7307
      %v7612 = vpack.c.b16 %v7324, %v7308
      %v7613 = vpack.c.b16 %v7325, %v7309
      %v7614 = vpack.c.b16 %v7326, %v7310
      %v7615 = vpack.c.b16 %v7327, %v7311
      %v7616 = vpack.c.b16 %v7328, %v7312
      %v7617 = vpack.c.b16 %v7329, %v7313
      %v7618 = vpack.c.b16 %v7330, %v7314
      %v7619 = vpack.c.b16 %v7331, %v7315
      %v7620 = vpack.c.b16 %v7332, %v7316
      %v7621 = vpack.c.b16 %v7333, %v7317
      %v7622 = vpack.c.b16 %v7334, %v7318
      %v7623 = vpack.c.b16 %v7351, %v7335
      %v7624 = vpack.c.b16 %v7352, %v7336
      %v7625 = vpack.c.b16 %v7353, %v7337
      %v7626 = vpack.c.b16 %v7354, %v7338
      %v7627 = vpack.c.b16 %v7355, %v7339
      %v7628 = vpack.c.b16 %v7356, %v7340
      %v7629 = vpack.c.b16 %v7357, %v7341
      %v7630 = vpack.c.b16 %v7358, %v7342
      %v7631 = vpack.c.b16 %v7359, %v7343
      %v7632 = vpack.c.b16 %v7360, %v7344
      %v7633 = vpack.c.b16 %v7361, %v7345
      %v7634 = vpack.c.b16 %v7362, %v7346
      %v7635 = vpack.c.b16 %v7363, %v7347
      %v7636 = vpack.c.b16 %v7364, %v7348
      %v7637 = vpack.c.b16 %v7365, %v7349
      %v7638 = vpack.c.b16 %v7366, %v7350
      %v7639 = vpack.c.b16 %v7383, %v7367
      %v7640 = vpack.c.b16 %v7384, %v7368
      %v7641 = vpack.c.b16 %v7385, %v7369
      %v7642 = vpack.c.b16 %v7386, %v7370
      %v7643 = vpack.c.b16 %v7387, %v7371
      %v7644 = vpack.c.b16 %v7388, %v7372
      %v7645 = vpack.c.b16 %v7389, %v7373
      %v7646 = vpack.c.b16 %v7390, %v7374
      %v7647 = vpack.c.b16 %v7391, %v7375
      %v7648 = vpack.c.b16 %v7392, %v7376
      %v7649 = vpack.c.b16 %v7393, %v7377
      %v7650 = vpack.c.b16 %v7394, %v7378
      %v7651 = vpack.c.b16 %v7395, %v7379
      %v7652 = vpack.c.b16 %v7396, %v7380
      %v7653 = vpack.c.b16 %v7397, %v7381
      %v7654 = vpack.c.b16 %v7398, %v7382
      %7911 = vmatprep.subr.bf16.mxu0 %v7512
      %7912 = vmatpush1.bf16.msra.mxu0 %v7511
      %7913 = vmatprep.subr.bf16.mxu0 %v7496
      %7914 = vmatpush1.bf16.msra.mxu0 %v7495
      %7915 = vmatprep.subr.bf16.mxu0 %v7480
      %7916 = vmatpush1.bf16.msra.mxu0 %v7479
      %7917 = vmatprep.subr.bf16.mxu0 %v7464
      %7918 = vmatpush1.bf16.msra.mxu0 %v7463
      %7919 = vmatprep.subr.bf16.mxu0 %v7448
      %7920 = vmatpush1.bf16.msra.mxu0 %v7447
      %7921 = vmatprep.subr.bf16.mxu0 %v7432
      %7922 = vmatpush1.bf16.msra.mxu0 %v7431
      %7923 = vmatprep.subr.bf16.mxu0 %v7416
      %7924 = vmatpush1.bf16.msra.mxu0 %v7415
      %7925 = vmatprep.subr.bf16.mxu0 %v7400
      %7926 = vmatpush1.bf16.msra.mxu0 %v7399
      %7927 = vmatprep.subr.bf16.mxu0 %v7640
      %7928 = vmatpush2.bf16.msra.mxu0 %v7639
      %7929 = vmatprep.subr.bf16.mxu0 %v7624
      %7930 = vmatpush2.bf16.msra.mxu0 %v7623
      %7931 = vmatprep.subr.bf16.mxu0 %v7608
      %7932 = vmatpush2.bf16.msra.mxu0 %v7607
      %7933 = vmatprep.subr.bf16.mxu0 %v7592
      %7934 = vmatpush2.bf16.msra.mxu0 %v7591
      %7935 = vmatprep.subr.bf16.mxu0 %v7576
      %7936 = vmatpush2.bf16.msra.mxu0 %v7575
      %7937 = vmatprep.subr.bf16.mxu0 %v7560
      %7938 = vmatpush2.bf16.msra.mxu0 %v7559
      %7939 = vmatprep.subr.bf16.mxu0 %v7544
      %7940 = vmatpush2.bf16.msra.mxu0 %v7543
      %7941 = vmatprep.subr.bf16.mxu0 %v7528
      %7942 = vmatpush2.bf16.msra.mxu0 %v7527
      %7943 = vmatprep.mubr.bf16.mxu0 %v6276
      %7944 = vmatmul.mubr.bf16.gmra.mxu0 %v6275
      %v7945 = vpop.f32.mrf.mxu0
      %v7946 = vadd.f32 %v6554, %v7945
      %v7947 = vpop.f32.mrf.mxu0
      %v7948 = vadd.f32 %v6558, %v7947
      %v7949 = vpop.f32.mrf.mxu0
      %v7950 = vadd.f32 %v6554, %v7949
      %v7951 = vpop.f32.mrf.mxu0
      %v7952 = vadd.f32 %v6558, %v7951
      %7953 = vmatprep.mubr.bf16.mxu0 %v6278
      %7954 = vmatmul.mubr.bf16.gmra.mxu0 %v6277
      %v7955 = vpop.f32.mrf.mxu0
      %v7956 = vadd.f32 %v6554, %v7955
      %v7957 = vpop.f32.mrf.mxu0
      %v7958 = vadd.f32 %v6558, %v7957
      %v7959 = vpop.f32.mrf.mxu0
      %v7960 = vadd.f32 %v6554, %v7959
      %v7961 = vpop.f32.mrf.mxu0
      %v7962 = vadd.f32 %v6558, %v7961
      %7963 = vmatprep.mubr.bf16.mxu0 %v6280
      %7964 = vmatmul.mubr.bf16.gmra.mxu0 %v6279
      %v7965 = vpop.f32.mrf.mxu0
      %v7966 = vadd.f32 %v6554, %v7965
      %v7967 = vpop.f32.mrf.mxu0
      %v7968 = vadd.f32 %v6558, %v7967
      %v7969 = vpop.f32.mrf.mxu0
      %v7970 = vadd.f32 %v6554, %v7969
      %v7971 = vpop.f32.mrf.mxu0
      %v7972 = vadd.f32 %v6558, %v7971
      %7973 = vmatprep.mubr.bf16.mxu0 %v6282
      %7974 = vmatmul.mubr.bf16.gmra.mxu0 %v6281
      %v7975 = vpop.f32.mrf.mxu0
      %v7976 = vadd.f32 %v6554, %v7975
      %v7977 = vpop.f32.mrf.mxu0
      %v7978 = vadd.f32 %v6558, %v7977
      %v7979 = vpop.f32.mrf.mxu0
      %v7980 = vadd.f32 %v6554, %v7979
      %v7981 = vpop.f32.mrf.mxu0
      %v7982 = vadd.f32 %v6558, %v7981
      %7983 = vmatprep.mubr.bf16.mxu0 %v6284
      %7984 = vmatmul.mubr.bf16.gmra.mxu0 %v6283
      %v7985 = vpop.f32.mrf.mxu0
      %v7986 = vadd.f32 %v6554, %v7985
      %v7987 = vpop.f32.mrf.mxu0
      %v7988 = vadd.f32 %v6558, %v7987
      %v7989 = vpop.f32.mrf.mxu0
      %v7990 = vadd.f32 %v6554, %v7989
      %v7991 = vpop.f32.mrf.mxu0
      %v7992 = vadd.f32 %v6558, %v7991
      %7993 = vmatprep.mubr.bf16.mxu0 %v6286
      %7994 = vmatmul.mubr.bf16.gmra.mxu0 %v6285
      %v7995 = vpop.f32.mrf.mxu0
      %v7996 = vadd.f32 %v6554, %v7995
      %v7997 = vpop.f32.mrf.mxu0
      %v7998 = vadd.f32 %v6558, %v7997
      %v7999 = vpop.f32.mrf.mxu0
      %v8000 = vadd.f32 %v6554, %v7999
      %v8001 = vpop.f32.mrf.mxu0
      %v8002 = vadd.f32 %v6558, %v8001
      %8003 = vmatprep.mubr.bf16.mxu0 %v6288
      %8004 = vmatmul.mubr.bf16.gmra.mxu0 %v6287
      %v8005 = vpop.f32.mrf.mxu0
      %v8006 = vadd.f32 %v6554, %v8005
      %v8007 = vpop.f32.mrf.mxu0
      %v8008 = vadd.f32 %v6558, %v8007
      %v8009 = vpop.f32.mrf.mxu0
      %v8010 = vadd.f32 %v6554, %v8009
      %v8011 = vpop.f32.mrf.mxu0
      %v8012 = vadd.f32 %v6558, %v8011
      %8013 = vmatprep.mubr.bf16.mxu0 %v6290
      %8014 = vmatmul.mubr.bf16.gmra.mxu0 %v6289
      %v8015 = vpop.f32.mrf.mxu0
      %v8016 = vadd.f32 %v6554, %v8015
      %v8017 = vpop.f32.mrf.mxu0
      %v8018 = vadd.f32 %v6558, %v8017
      %v8019 = vpop.f32.mrf.mxu0
      %v8020 = vadd.f32 %v6554, %v8019
      %v8021 = vpop.f32.mrf.mxu0
      %v8022 = vadd.f32 %v6558, %v8021
      %8023 = vdwg.mxu0
      %8024 = vmatprep.subr.bf16.mxu0 %v7514
      %8025 = vmatpush1.bf16.msra.mxu0 %v7513
      %8026 = vmatprep.subr.bf16.mxu0 %v7498
      %8027 = vmatpush1.bf16.msra.mxu0 %v7497
      %8028 = vmatprep.subr.bf16.mxu0 %v7482
      %8029 = vmatpush1.bf16.msra.mxu0 %v7481
      %8030 = vmatprep.subr.bf16.mxu0 %v7466
      %8031 = vmatpush1.bf16.msra.mxu0 %v7465
      %8032 = vmatprep.subr.bf16.mxu0 %v7450
      %8033 = vmatpush1.bf16.msra.mxu0 %v7449
      %8034 = vmatprep.subr.bf16.mxu0 %v7434
      %8035 = vmatpush1.bf16.msra.mxu0 %v7433
      %8036 = vmatprep.subr.bf16.mxu0 %v7418
      %8037 = vmatpush1.bf16.msra.mxu0 %v7417
      %8038 = vmatprep.subr.bf16.mxu0 %v7402
      %8039 = vmatpush1.bf16.msra.mxu0 %v7401
      %8040 = vmatprep.subr.bf16.mxu0 %v7642
      %8041 = vmatpush2.bf16.msra.mxu0 %v7641
      %8042 = vmatprep.subr.bf16.mxu0 %v7626
      %8043 = vmatpush2.bf16.msra.mxu0 %v7625
      %8044 = vmatprep.subr.bf16.mxu0 %v7610
      %8045 = vmatpush2.bf16.msra.mxu0 %v7609
      %8046 = vmatprep.subr.bf16.mxu0 %v7594
      %8047 = vmatpush2.bf16.msra.mxu0 %v7593
      %8048 = vmatprep.subr.bf16.mxu0 %v7578
      %8049 = vmatpush2.bf16.msra.mxu0 %v7577
      %8050 = vmatprep.subr.bf16.mxu0 %v7562
      %8051 = vmatpush2.bf16.msra.mxu0 %v7561
      %8052 = vmatprep.subr.bf16.mxu0 %v7546
      %8053 = vmatpush2.bf16.msra.mxu0 %v7545
      %8054 = vmatprep.subr.bf16.mxu0 %v7530
      %8055 = vmatpush2.bf16.msra.mxu0 %v7529
      %8056 = vmatprep.mubr.bf16.mxu0 %v6276
      %8057 = vmatmul.mubr.bf16.gmra.mxu0 %v6275
      %v8058 = vpop.f32.mrf.mxu0
      %v8059 = vadd.f32 %v6562, %v8058
      %v8060 = vpop.f32.mrf.mxu0
      %v8061 = vadd.f32 %v6566, %v8060
      %v8062 = vpop.f32.mrf.mxu0
      %v8063 = vadd.f32 %v6562, %v8062
      %v8064 = vpop.f32.mrf.mxu0
      %v8065 = vadd.f32 %v6566, %v8064
      %8066 = vmatprep.mubr.bf16.mxu0 %v6278
      %8067 = vmatmul.mubr.bf16.gmra.mxu0 %v6277
      %v8068 = vpop.f32.mrf.mxu0
      %v8069 = vadd.f32 %v6562, %v8068
      %v8070 = vpop.f32.mrf.mxu0
      %v8071 = vadd.f32 %v6566, %v8070
      %v8072 = vpop.f32.mrf.mxu0
      %v8073 = vadd.f32 %v6562, %v8072
      %v8074 = vpop.f32.mrf.mxu0
      %v8075 = vadd.f32 %v6566, %v8074
      %8076 = vmatprep.mubr.bf16.mxu0 %v6280
      %8077 = vmatmul.mubr.bf16.gmra.mxu0 %v6279
      %v8078 = vpop.f32.mrf.mxu0
      %v8079 = vadd.f32 %v6562, %v8078
      %v8080 = vpop.f32.mrf.mxu0
      %v8081 = vadd.f32 %v6566, %v8080
      %v8082 = vpop.f32.mrf.mxu0
      %v8083 = vadd.f32 %v6562, %v8082
      %v8084 = vpop.f32.mrf.mxu0
      %v8085 = vadd.f32 %v6566, %v8084
      %8086 = vmatprep.mubr.bf16.mxu0 %v6282
      %8087 = vmatmul.mubr.bf16.gmra.mxu0 %v6281
      %v8088 = vpop.f32.mrf.mxu0
      %v8089 = vadd.f32 %v6562, %v8088
      %v8090 = vpop.f32.mrf.mxu0
      %v8091 = vadd.f32 %v6566, %v8090
      %v8092 = vpop.f32.mrf.mxu0
      %v8093 = vadd.f32 %v6562, %v8092
      %v8094 = vpop.f32.mrf.mxu0
      %v8095 = vadd.f32 %v6566, %v8094
      %8096 = vmatprep.mubr.bf16.mxu0 %v6284
      %8097 = vmatmul.mubr.bf16.gmra.mxu0 %v6283
      %v8098 = vpop.f32.mrf.mxu0
      %v8099 = vadd.f32 %v6562, %v8098
      %v8100 = vpop.f32.mrf.mxu0
      %v8101 = vadd.f32 %v6566, %v8100
      %v8102 = vpop.f32.mrf.mxu0
      %v8103 = vadd.f32 %v6562, %v8102
      %v8104 = vpop.f32.mrf.mxu0
      %v8105 = vadd.f32 %v6566, %v8104
      %8106 = vmatprep.mubr.bf16.mxu0 %v6286
      %8107 = vmatmul.mubr.bf16.gmra.mxu0 %v6285
      %v8108 = vpop.f32.mrf.mxu0
      %v8109 = vadd.f32 %v6562, %v8108
      %v8110 = vpop.f32.mrf.mxu0
      %v8111 = vadd.f32 %v6566, %v8110
      %v8112 = vpop.f32.mrf.mxu0
      %v8113 = vadd.f32 %v6562, %v8112
      %v8114 = vpop.f32.mrf.mxu0
      %v8115 = vadd.f32 %v6566, %v8114
      %8116 = vmatprep.mubr.bf16.mxu0 %v6288
      %8117 = vmatmul.mubr.bf16.gmra.mxu0 %v6287
      %v8118 = vpop.f32.mrf.mxu0
      %v8119 = vadd.f32 %v6562, %v8118
      %v8120 = vpop.f32.mrf.mxu0
      %v8121 = vadd.f32 %v6566, %v8120
      %v8122 = vpop.f32.mrf.mxu0
      %v8123 = vadd.f32 %v6562, %v8122
      %v8124 = vpop.f32.mrf.mxu0
      %v8125 = vadd.f32 %v6566, %v8124
      %8126 = vmatprep.mubr.bf16.mxu0 %v6290
      %8127 = vmatmul.mubr.bf16.gmra.mxu0 %v6289
      %v8128 = vpop.f32.mrf.mxu0
      %v8129 = vadd.f32 %v6562, %v8128
      %v8130 = vpop.f32.mrf.mxu0
      %v8131 = vadd.f32 %v6566, %v8130
      %v8132 = vpop.f32.mrf.mxu0
      %v8133 = vadd.f32 %v6562, %v8132
      %v8134 = vpop.f32.mrf.mxu0
      %v8135 = vadd.f32 %v6566, %v8134
      %8136 = vdwg.mxu0
      %8137 = vmatprep.subr.bf16.mxu0 %v7516
      %8138 = vmatpush1.bf16.msra.mxu0 %v7515
      %8139 = vmatprep.subr.bf16.mxu0 %v7500
      %8140 = vmatpush1.bf16.msra.mxu0 %v7499
      %8141 = vmatprep.subr.bf16.mxu0 %v7484
      %8142 = vmatpush1.bf16.msra.mxu0 %v7483
      %8143 = vmatprep.subr.bf16.mxu0 %v7468
      %8144 = vmatpush1.bf16.msra.mxu0 %v7467
      %8145 = vmatprep.subr.bf16.mxu0 %v7452
      %8146 = vmatpush1.bf16.msra.mxu0 %v7451
      %8147 = vmatprep.subr.bf16.mxu0 %v7436
      %8148 = vmatpush1.bf16.msra.mxu0 %v7435
      %8149 = vmatprep.subr.bf16.mxu0 %v7420
      %8150 = vmatpush1.bf16.msra.mxu0 %v7419
      %8151 = vmatprep.subr.bf16.mxu0 %v7404
      %8152 = vmatpush1.bf16.msra.mxu0 %v7403
      %8153 = vmatprep.subr.bf16.mxu0 %v7644
      %8154 = vmatpush2.bf16.msra.mxu0 %v7643
      %8155 = vmatprep.subr.bf16.mxu0 %v7628
      %8156 = vmatpush2.bf16.msra.mxu0 %v7627
      %8157 = vmatprep.subr.bf16.mxu0 %v7612
      %8158 = vmatpush2.bf16.msra.mxu0 %v7611
      %8159 = vmatprep.subr.bf16.mxu0 %v7596
      %8160 = vmatpush2.bf16.msra.mxu0 %v7595
      %8161 = vmatprep.subr.bf16.mxu0 %v7580
      %8162 = vmatpush2.bf16.msra.mxu0 %v7579
      %8163 = vmatprep.subr.bf16.mxu0 %v7564
      %8164 = vmatpush2.bf16.msra.mxu0 %v7563
      %8165 = vmatprep.subr.bf16.mxu0 %v7548
      %8166 = vmatpush2.bf16.msra.mxu0 %v7547
      %8167 = vmatprep.subr.bf16.mxu0 %v7532
      %8168 = vmatpush2.bf16.msra.mxu0 %v7531
      %8169 = vmatprep.mubr.bf16.mxu0 %v6276
      %8170 = vmatmul.mubr.bf16.gmra.mxu0 %v6275
      %v8171 = vpop.f32.mrf.mxu0
      %v8172 = vadd.f32 %v6570, %v8171
      %v8173 = vpop.f32.mrf.mxu0
      %v8174 = vadd.f32 %v6574, %v8173
      %v8175 = vpop.f32.mrf.mxu0
      %v8176 = vadd.f32 %v6570, %v8175
      %v8177 = vpop.f32.mrf.mxu0
      %v8178 = vadd.f32 %v6574, %v8177
      %8179 = vmatprep.mubr.bf16.mxu0 %v6278
      %8180 = vmatmul.mubr.bf16.gmra.mxu0 %v6277
      %v8181 = vpop.f32.mrf.mxu0
      %v8182 = vadd.f32 %v6570, %v8181
      %v8183 = vpop.f32.mrf.mxu0
      %v8184 = vadd.f32 %v6574, %v8183
      %v8185 = vpop.f32.mrf.mxu0
      %v8186 = vadd.f32 %v6570, %v8185
      %v8187 = vpop.f32.mrf.mxu0
      %v8188 = vadd.f32 %v6574, %v8187
      %8189 = vmatprep.mubr.bf16.mxu0 %v6280
      %8190 = vmatmul.mubr.bf16.gmra.mxu0 %v6279
      %v8191 = vpop.f32.mrf.mxu0
      %v8192 = vadd.f32 %v6570, %v8191
      %v8193 = vpop.f32.mrf.mxu0
      %v8194 = vadd.f32 %v6574, %v8193
      %v8195 = vpop.f32.mrf.mxu0
      %v8196 = vadd.f32 %v6570, %v8195
      %v8197 = vpop.f32.mrf.mxu0
      %v8198 = vadd.f32 %v6574, %v8197
      %8199 = vmatprep.mubr.bf16.mxu0 %v6282
      %8200 = vmatmul.mubr.bf16.gmra.mxu0 %v6281
      %v8201 = vpop.f32.mrf.mxu0
      %v8202 = vadd.f32 %v6570, %v8201
      %v8203 = vpop.f32.mrf.mxu0
      %v8204 = vadd.f32 %v6574, %v8203
      %v8205 = vpop.f32.mrf.mxu0
      %v8206 = vadd.f32 %v6570, %v8205
      %v8207 = vpop.f32.mrf.mxu0
      %v8208 = vadd.f32 %v6574, %v8207
      %8209 = vmatprep.mubr.bf16.mxu0 %v6284
      %8210 = vmatmul.mubr.bf16.gmra.mxu0 %v6283
      %v8211 = vpop.f32.mrf.mxu0
      %v8212 = vadd.f32 %v6570, %v8211
      %v8213 = vpop.f32.mrf.mxu0
      %v8214 = vadd.f32 %v6574, %v8213
      %v8215 = vpop.f32.mrf.mxu0
      %v8216 = vadd.f32 %v6570, %v8215
      %v8217 = vpop.f32.mrf.mxu0
      %v8218 = vadd.f32 %v6574, %v8217
      %8219 = vmatprep.mubr.bf16.mxu0 %v6286
      %8220 = vmatmul.mubr.bf16.gmra.mxu0 %v6285
      %v8221 = vpop.f32.mrf.mxu0
      %v8222 = vadd.f32 %v6570, %v8221
      %v8223 = vpop.f32.mrf.mxu0
      %v8224 = vadd.f32 %v6574, %v8223
      %v8225 = vpop.f32.mrf.mxu0
      %v8226 = vadd.f32 %v6570, %v8225
      %v8227 = vpop.f32.mrf.mxu0
      %v8228 = vadd.f32 %v6574, %v8227
      %8229 = vmatprep.mubr.bf16.mxu0 %v6288
      %8230 = vmatmul.mubr.bf16.gmra.mxu0 %v6287
      %v8231 = vpop.f32.mrf.mxu0
      %v8232 = vadd.f32 %v6570, %v8231
      %v8233 = vpop.f32.mrf.mxu0
      %v8234 = vadd.f32 %v6574, %v8233
      %v8235 = vpop.f32.mrf.mxu0
      %v8236 = vadd.f32 %v6570, %v8235
      %v8237 = vpop.f32.mrf.mxu0
      %v8238 = vadd.f32 %v6574, %v8237
      %8239 = vmatprep.mubr.bf16.mxu0 %v6290
      %8240 = vmatmul.mubr.bf16.gmra.mxu0 %v6289
      %v8241 = vpop.f32.mrf.mxu0
      %v8242 = vadd.f32 %v6570, %v8241
      %v8243 = vpop.f32.mrf.mxu0
      %v8244 = vadd.f32 %v6574, %v8243
      %v8245 = vpop.f32.mrf.mxu0
      %v8246 = vadd.f32 %v6570, %v8245
      %v8247 = vpop.f32.mrf.mxu0
      %v8248 = vadd.f32 %v6574, %v8247
      %8249 = vdwg.mxu0
      %8250 = vmatprep.subr.bf16.mxu0 %v7518
      %8251 = vmatpush1.bf16.msra.mxu0 %v7517
      %8252 = vmatprep.subr.bf16.mxu0 %v7502
      %8253 = vmatpush1.bf16.msra.mxu0 %v7501
      %8254 = vmatprep.subr.bf16.mxu0 %v7486
      %8255 = vmatpush1.bf16.msra.mxu0 %v7485
      %8256 = vmatprep.subr.bf16.mxu0 %v7470
      %8257 = vmatpush1.bf16.msra.mxu0 %v7469
      %8258 = vmatprep.subr.bf16.mxu0 %v7454
      %8259 = vmatpush1.bf16.msra.mxu0 %v7453
      %8260 = vmatprep.subr.bf16.mxu0 %v7438
      %8261 = vmatpush1.bf16.msra.mxu0 %v7437
      %8262 = vmatprep.subr.bf16.mxu0 %v7422
      %8263 = vmatpush1.bf16.msra.mxu0 %v7421
      %8264 = vmatprep.subr.bf16.mxu0 %v7406
      %8265 = vmatpush1.bf16.msra.mxu0 %v7405
      %8266 = vmatprep.subr.bf16.mxu0 %v7646
      %8267 = vmatpush2.bf16.msra.mxu0 %v7645
      %8268 = vmatprep.subr.bf16.mxu0 %v7630
      %8269 = vmatpush2.bf16.msra.mxu0 %v7629
      %8270 = vmatprep.subr.bf16.mxu0 %v7614
      %8271 = vmatpush2.bf16.msra.mxu0 %v7613
      %8272 = vmatprep.subr.bf16.mxu0 %v7598
      %8273 = vmatpush2.bf16.msra.mxu0 %v7597
      %8274 = vmatprep.subr.bf16.mxu0 %v7582
      %8275 = vmatpush2.bf16.msra.mxu0 %v7581
      %8276 = vmatprep.subr.bf16.mxu0 %v7566
      %8277 = vmatpush2.bf16.msra.mxu0 %v7565
      %8278 = vmatprep.subr.bf16.mxu0 %v7550
      %8279 = vmatpush2.bf16.msra.mxu0 %v7549
      %8280 = vmatprep.subr.bf16.mxu0 %v7534
      %8281 = vmatpush2.bf16.msra.mxu0 %v7533
      %8282 = vmatprep.mubr.bf16.mxu0 %v6276
      %8283 = vmatmul.mubr.bf16.gmra.mxu0 %v6275
      %v8284 = vpop.f32.mrf.mxu0
      %v8285 = vadd.f32 %v6578, %v8284
      %v8286 = vpop.f32.mrf.mxu0
      %v8287 = vadd.f32 %v6582, %v8286
      %v8288 = vpop.f32.mrf.mxu0
      %v8289 = vadd.f32 %v6578, %v8288
      %v8290 = vpop.f32.mrf.mxu0
      %v8291 = vadd.f32 %v6582, %v8290
      %8292 = vmatprep.mubr.bf16.mxu0 %v6278
      %8293 = vmatmul.mubr.bf16.gmra.mxu0 %v6277
      %v8294 = vpop.f32.mrf.mxu0
      %v8295 = vadd.f32 %v6578, %v8294
      %v8296 = vpop.f32.mrf.mxu0
      %v8297 = vadd.f32 %v6582, %v8296
      %v8298 = vpop.f32.mrf.mxu0
      %v8299 = vadd.f32 %v6578, %v8298
      %v8300 = vpop.f32.mrf.mxu0
      %v8301 = vadd.f32 %v6582, %v8300
      %8302 = vmatprep.mubr.bf16.mxu0 %v6280
      %8303 = vmatmul.mubr.bf16.gmra.mxu0 %v6279
      %v8304 = vpop.f32.mrf.mxu0
      %v8305 = vadd.f32 %v6578, %v8304
      %v8306 = vpop.f32.mrf.mxu0
      %v8307 = vadd.f32 %v6582, %v8306
      %v8308 = vpop.f32.mrf.mxu0
      %v8309 = vadd.f32 %v6578, %v8308
      %v8310 = vpop.f32.mrf.mxu0
      %v8311 = vadd.f32 %v6582, %v8310
      %8312 = vmatprep.mubr.bf16.mxu0 %v6282
      %8313 = vmatmul.mubr.bf16.gmra.mxu0 %v6281
      %v8314 = vpop.f32.mrf.mxu0
      %v8315 = vadd.f32 %v6578, %v8314
      %v8316 = vpop.f32.mrf.mxu0
      %v8317 = vadd.f32 %v6582, %v8316
      %v8318 = vpop.f32.mrf.mxu0
      %v8319 = vadd.f32 %v6578, %v8318
      %v8320 = vpop.f32.mrf.mxu0
      %v8321 = vadd.f32 %v6582, %v8320
      %8322 = vmatprep.mubr.bf16.mxu0 %v6284
      %8323 = vmatmul.mubr.bf16.gmra.mxu0 %v6283
      %v8324 = vpop.f32.mrf.mxu0
      %v8325 = vadd.f32 %v6578, %v8324
      %v8326 = vpop.f32.mrf.mxu0
      %v8327 = vadd.f32 %v6582, %v8326
      %v8328 = vpop.f32.mrf.mxu0
      %v8329 = vadd.f32 %v6578, %v8328
      %v8330 = vpop.f32.mrf.mxu0
      %v8331 = vadd.f32 %v6582, %v8330
      %8332 = vmatprep.mubr.bf16.mxu0 %v6286
      %8333 = vmatmul.mubr.bf16.gmra.mxu0 %v6285
      %v8334 = vpop.f32.mrf.mxu0
      %v8335 = vadd.f32 %v6578, %v8334
      %v8336 = vpop.f32.mrf.mxu0
      %v8337 = vadd.f32 %v6582, %v8336
      %v8338 = vpop.f32.mrf.mxu0
      %v8339 = vadd.f32 %v6578, %v8338
      %v8340 = vpop.f32.mrf.mxu0
      %v8341 = vadd.f32 %v6582, %v8340
      %8342 = vmatprep.mubr.bf16.mxu0 %v6288
      %8343 = vmatmul.mubr.bf16.gmra.mxu0 %v6287
      %v8344 = vpop.f32.mrf.mxu0
      %v8345 = vadd.f32 %v6578, %v8344
      %v8346 = vpop.f32.mrf.mxu0
      %v8347 = vadd.f32 %v6582, %v8346
      %v8348 = vpop.f32.mrf.mxu0
      %v8349 = vadd.f32 %v6578, %v8348
      %v8350 = vpop.f32.mrf.mxu0
      %v8351 = vadd.f32 %v6582, %v8350
      %8352 = vmatprep.mubr.bf16.mxu0 %v6290
      %8353 = vmatmul.mubr.bf16.gmra.mxu0 %v6289
      %v8354 = vpop.f32.mrf.mxu0
      %v8355 = vadd.f32 %v6578, %v8354
      %v8356 = vpop.f32.mrf.mxu0
      %v8357 = vadd.f32 %v6582, %v8356
      %v8358 = vpop.f32.mrf.mxu0
      %v8359 = vadd.f32 %v6578, %v8358
      %v8360 = vpop.f32.mrf.mxu0
      %v8361 = vadd.f32 %v6582, %v8360
      %8362 = vdwg.mxu0
      %8363 = vmatprep.subr.bf16.mxu0 %v7520
      %8364 = vmatpush1.bf16.msra.mxu0 %v7519
      %8365 = vmatprep.subr.bf16.mxu0 %v7504
      %8366 = vmatpush1.bf16.msra.mxu0 %v7503
      %8367 = vmatprep.subr.bf16.mxu0 %v7488
      %8368 = vmatpush1.bf16.msra.mxu0 %v7487
      %8369 = vmatprep.subr.bf16.mxu0 %v7472
      %8370 = vmatpush1.bf16.msra.mxu0 %v7471
      %8371 = vmatprep.subr.bf16.mxu0 %v7456
      %8372 = vmatpush1.bf16.msra.mxu0 %v7455
      %8373 = vmatprep.subr.bf16.mxu0 %v7440
      %8374 = vmatpush1.bf16.msra.mxu0 %v7439
      %8375 = vmatprep.subr.bf16.mxu0 %v7424
      %8376 = vmatpush1.bf16.msra.mxu0 %v7423
      %8377 = vmatprep.subr.bf16.mxu0 %v7408
      %8378 = vmatpush1.bf16.msra.mxu0 %v7407
      %8379 = vmatprep.subr.bf16.mxu0 %v7648
      %8380 = vmatpush2.bf16.msra.mxu0 %v7647
      %8381 = vmatprep.subr.bf16.mxu0 %v7632
      %8382 = vmatpush2.bf16.msra.mxu0 %v7631
      %8383 = vmatprep.subr.bf16.mxu0 %v7616
      %8384 = vmatpush2.bf16.msra.mxu0 %v7615
      %8385 = vmatprep.subr.bf16.mxu0 %v7600
      %8386 = vmatpush2.bf16.msra.mxu0 %v7599
      %8387 = vmatprep.subr.bf16.mxu0 %v7584
      %8388 = vmatpush2.bf16.msra.mxu0 %v7583
      %8389 = vmatprep.subr.bf16.mxu0 %v7568
      %8390 = vmatpush2.bf16.msra.mxu0 %v7567
      %8391 = vmatprep.subr.bf16.mxu0 %v7552
      %8392 = vmatpush2.bf16.msra.mxu0 %v7551
      %8393 = vmatprep.subr.bf16.mxu0 %v7536
      %8394 = vmatpush2.bf16.msra.mxu0 %v7535
      %8395 = vmatprep.mubr.bf16.mxu0 %v6276
      %8396 = vmatmul.mubr.bf16.gmra.mxu0 %v6275
      %v8397 = vpop.f32.mrf.mxu0
      %v8398 = vadd.f32 %v6586, %v8397
      %v8399 = vpop.f32.mrf.mxu0
      %v8400 = vadd.f32 %v6590, %v8399
      %v8401 = vpop.f32.mrf.mxu0
      %v8402 = vadd.f32 %v6586, %v8401
      %v8403 = vpop.f32.mrf.mxu0
      %v8404 = vadd.f32 %v6590, %v8403
      %8405 = vmatprep.mubr.bf16.mxu0 %v6278
      %8406 = vmatmul.mubr.bf16.gmra.mxu0 %v6277
      %v8407 = vpop.f32.mrf.mxu0
      %v8408 = vadd.f32 %v6586, %v8407
      %v8409 = vpop.f32.mrf.mxu0
      %v8410 = vadd.f32 %v6590, %v8409
      %v8411 = vpop.f32.mrf.mxu0
      %v8412 = vadd.f32 %v6586, %v8411
      %v8413 = vpop.f32.mrf.mxu0
      %v8414 = vadd.f32 %v6590, %v8413
      %8415 = vmatprep.mubr.bf16.mxu0 %v6280
      %8416 = vmatmul.mubr.bf16.gmra.mxu0 %v6279
      %v8417 = vpop.f32.mrf.mxu0
      %v8418 = vadd.f32 %v6586, %v8417
      %v8419 = vpop.f32.mrf.mxu0
      %v8420 = vadd.f32 %v6590, %v8419
      %v8421 = vpop.f32.mrf.mxu0
      %v8422 = vadd.f32 %v6586, %v8421
      %v8423 = vpop.f32.mrf.mxu0
      %v8424 = vadd.f32 %v6590, %v8423
      %8425 = vmatprep.mubr.bf16.mxu0 %v6282
      %8426 = vmatmul.mubr.bf16.gmra.mxu0 %v6281
      %v8427 = vpop.f32.mrf.mxu0
      %v8428 = vadd.f32 %v6586, %v8427
      %v8429 = vpop.f32.mrf.mxu0
      %v8430 = vadd.f32 %v6590, %v8429
      %v8431 = vpop.f32.mrf.mxu0
      %v8432 = vadd.f32 %v6586, %v8431
      %v8433 = vpop.f32.mrf.mxu0
      %v8434 = vadd.f32 %v6590, %v8433
      %8435 = vmatprep.mubr.bf16.mxu0 %v6284
      %8436 = vmatmul.mubr.bf16.gmra.mxu0 %v6283
      %v8437 = vpop.f32.mrf.mxu0
      %v8438 = vadd.f32 %v6586, %v8437
      %v8439 = vpop.f32.mrf.mxu0
      %v8440 = vadd.f32 %v6590, %v8439
      %v8441 = vpop.f32.mrf.mxu0
      %v8442 = vadd.f32 %v6586, %v8441
      %v8443 = vpop.f32.mrf.mxu0
      %v8444 = vadd.f32 %v6590, %v8443
      %8445 = vmatprep.mubr.bf16.mxu0 %v6286
      %8446 = vmatmul.mubr.bf16.gmra.mxu0 %v6285
      %v8447 = vpop.f32.mrf.mxu0
      %v8448 = vadd.f32 %v6586, %v8447
      %v8449 = vpop.f32.mrf.mxu0
      %v8450 = vadd.f32 %v6590, %v8449
      %v8451 = vpop.f32.mrf.mxu0
      %v8452 = vadd.f32 %v6586, %v8451
      %v8453 = vpop.f32.mrf.mxu0
      %v8454 = vadd.f32 %v6590, %v8453
      %8455 = vmatprep.mubr.bf16.mxu0 %v6288
      %8456 = vmatmul.mubr.bf16.gmra.mxu0 %v6287
      %v8457 = vpop.f32.mrf.mxu0
      %v8458 = vadd.f32 %v6586, %v8457
      %v8459 = vpop.f32.mrf.mxu0
      %v8460 = vadd.f32 %v6590, %v8459
      %v8461 = vpop.f32.mrf.mxu0
      %v8462 = vadd.f32 %v6586, %v8461
      %v8463 = vpop.f32.mrf.mxu0
      %v8464 = vadd.f32 %v6590, %v8463
      %8465 = vmatprep.mubr.bf16.mxu0 %v6290
      %8466 = vmatmul.mubr.bf16.gmra.mxu0 %v6289
      %v8467 = vpop.f32.mrf.mxu0
      %v8468 = vadd.f32 %v6586, %v8467
      %v8469 = vpop.f32.mrf.mxu0
      %v8470 = vadd.f32 %v6590, %v8469
      %v8471 = vpop.f32.mrf.mxu0
      %v8472 = vadd.f32 %v6586, %v8471
      %v8473 = vpop.f32.mrf.mxu0
      %v8474 = vadd.f32 %v6590, %v8473
      %8475 = vdwg.mxu0
      %8476 = vmatprep.subr.bf16.mxu0 %v7522
      %8477 = vmatpush1.bf16.msra.mxu0 %v7521
      %8478 = vmatprep.subr.bf16.mxu0 %v7506
      %8479 = vmatpush1.bf16.msra.mxu0 %v7505
      %8480 = vmatprep.subr.bf16.mxu0 %v7490
      %8481 = vmatpush1.bf16.msra.mxu0 %v7489
      %8482 = vmatprep.subr.bf16.mxu0 %v7474
      %8483 = vmatpush1.bf16.msra.mxu0 %v7473
      %8484 = vmatprep.subr.bf16.mxu0 %v7458
      %8485 = vmatpush1.bf16.msra.mxu0 %v7457
      %8486 = vmatprep.subr.bf16.mxu0 %v7442
      %8487 = vmatpush1.bf16.msra.mxu0 %v7441
      %8488 = vmatprep.subr.bf16.mxu0 %v7426
      %8489 = vmatpush1.bf16.msra.mxu0 %v7425
      %8490 = vmatprep.subr.bf16.mxu0 %v7410
      %8491 = vmatpush1.bf16.msra.mxu0 %v7409
      %8492 = vmatprep.subr.bf16.mxu0 %v7650
      %8493 = vmatpush2.bf16.msra.mxu0 %v7649
      %8494 = vmatprep.subr.bf16.mxu0 %v7634
      %8495 = vmatpush2.bf16.msra.mxu0 %v7633
      %8496 = vmatprep.subr.bf16.mxu0 %v7618
      %8497 = vmatpush2.bf16.msra.mxu0 %v7617
      %8498 = vmatprep.subr.bf16.mxu0 %v7602
      %8499 = vmatpush2.bf16.msra.mxu0 %v7601
      %8500 = vmatprep.subr.bf16.mxu0 %v7586
      %8501 = vmatpush2.bf16.msra.mxu0 %v7585
      %8502 = vmatprep.subr.bf16.mxu0 %v7570
      %8503 = vmatpush2.bf16.msra.mxu0 %v7569
      %8504 = vmatprep.subr.bf16.mxu0 %v7554
      %8505 = vmatpush2.bf16.msra.mxu0 %v7553
      %8506 = vmatprep.subr.bf16.mxu0 %v7538
      %8507 = vmatpush2.bf16.msra.mxu0 %v7537
      %8508 = vmatprep.mubr.bf16.mxu0 %v6276
      %8509 = vmatmul.mubr.bf16.gmra.mxu0 %v6275
      %v8510 = vpop.f32.mrf.mxu0
      %v8511 = vadd.f32 %v6594, %v8510
      %v8512 = vpop.f32.mrf.mxu0
      %v8513 = vadd.f32 %v6598, %v8512
      %v8514 = vpop.f32.mrf.mxu0
      %v8515 = vadd.f32 %v6594, %v8514
      %v8516 = vpop.f32.mrf.mxu0
      %v8517 = vadd.f32 %v6598, %v8516
      %8518 = vmatprep.mubr.bf16.mxu0 %v6278
      %8519 = vmatmul.mubr.bf16.gmra.mxu0 %v6277
      %v8520 = vpop.f32.mrf.mxu0
      %v8521 = vadd.f32 %v6594, %v8520
      %v8522 = vpop.f32.mrf.mxu0
      %v8523 = vadd.f32 %v6598, %v8522
      %v8524 = vpop.f32.mrf.mxu0
      %v8525 = vadd.f32 %v6594, %v8524
      %v8526 = vpop.f32.mrf.mxu0
      %v8527 = vadd.f32 %v6598, %v8526
      %8528 = vmatprep.mubr.bf16.mxu0 %v6280
      %8529 = vmatmul.mubr.bf16.gmra.mxu0 %v6279
      %v8530 = vpop.f32.mrf.mxu0
      %v8531 = vadd.f32 %v6594, %v8530
      %v8532 = vpop.f32.mrf.mxu0
      %v8533 = vadd.f32 %v6598, %v8532
      %v8534 = vpop.f32.mrf.mxu0
      %v8535 = vadd.f32 %v6594, %v8534
      %v8536 = vpop.f32.mrf.mxu0
      %v8537 = vadd.f32 %v6598, %v8536
      %8538 = vmatprep.mubr.bf16.mxu0 %v6282
      %8539 = vmatmul.mubr.bf16.gmra.mxu0 %v6281
      %v8540 = vpop.f32.mrf.mxu0
      %v8541 = vadd.f32 %v6594, %v8540
      %v8542 = vpop.f32.mrf.mxu0
      %v8543 = vadd.f32 %v6598, %v8542
      %v8544 = vpop.f32.mrf.mxu0
      %v8545 = vadd.f32 %v6594, %v8544
      %v8546 = vpop.f32.mrf.mxu0
      %v8547 = vadd.f32 %v6598, %v8546
      %8548 = vmatprep.mubr.bf16.mxu0 %v6284
      %8549 = vmatmul.mubr.bf16.gmra.mxu0 %v6283
      %v8550 = vpop.f32.mrf.mxu0
      %v8551 = vadd.f32 %v6594, %v8550
      %v8552 = vpop.f32.mrf.mxu0
      %v8553 = vadd.f32 %v6598, %v8552
      %v8554 = vpop.f32.mrf.mxu0
      %v8555 = vadd.f32 %v6594, %v8554
      %v8556 = vpop.f32.mrf.mxu0
      %v8557 = vadd.f32 %v6598, %v8556
      %8558 = vmatprep.mubr.bf16.mxu0 %v6286
      %8559 = vmatmul.mubr.bf16.gmra.mxu0 %v6285
      %v8560 = vpop.f32.mrf.mxu0
      %v8561 = vadd.f32 %v6594, %v8560
      %v8562 = vpop.f32.mrf.mxu0
      %v8563 = vadd.f32 %v6598, %v8562
      %v8564 = vpop.f32.mrf.mxu0
      %v8565 = vadd.f32 %v6594, %v8564
      %v8566 = vpop.f32.mrf.mxu0
      %v8567 = vadd.f32 %v6598, %v8566
      %8568 = vmatprep.mubr.bf16.mxu0 %v6288
      %8569 = vmatmul.mubr.bf16.gmra.mxu0 %v6287
      %v8570 = vpop.f32.mrf.mxu0
      %v8571 = vadd.f32 %v6594, %v8570
      %v8572 = vpop.f32.mrf.mxu0
      %v8573 = vadd.f32 %v6598, %v8572
      %v8574 = vpop.f32.mrf.mxu0
      %v8575 = vadd.f32 %v6594, %v8574
      %v8576 = vpop.f32.mrf.mxu0
      %v8577 = vadd.f32 %v6598, %v8576
      %8578 = vmatprep.mubr.bf16.mxu0 %v6290
      %8579 = vmatmul.mubr.bf16.gmra.mxu0 %v6289
      %v8580 = vpop.f32.mrf.mxu0
      %v8581 = vadd.f32 %v6594, %v8580
      %v8582 = vpop.f32.mrf.mxu0
      %v8583 = vadd.f32 %v6598, %v8582
      %v8584 = vpop.f32.mrf.mxu0
      %v8585 = vadd.f32 %v6594, %v8584
      %v8586 = vpop.f32.mrf.mxu0
      %v8587 = vadd.f32 %v6598, %v8586
      %8588 = vdwg.mxu0
      %8589 = vmatprep.subr.bf16.mxu0 %v7524
      %8590 = vmatpush1.bf16.msra.mxu0 %v7523
      %8591 = vmatprep.subr.bf16.mxu0 %v7508
      %8592 = vmatpush1.bf16.msra.mxu0 %v7507
      %8593 = vmatprep.subr.bf16.mxu0 %v7492
      %8594 = vmatpush1.bf16.msra.mxu0 %v7491
      %8595 = vmatprep.subr.bf16.mxu0 %v7476
      %8596 = vmatpush1.bf16.msra.mxu0 %v7475
      %8597 = vmatprep.subr.bf16.mxu0 %v7460
      %8598 = vmatpush1.bf16.msra.mxu0 %v7459
      %8599 = vmatprep.subr.bf16.mxu0 %v7444
      %8600 = vmatpush1.bf16.msra.mxu0 %v7443
      %8601 = vmatprep.subr.bf16.mxu0 %v7428
      %8602 = vmatpush1.bf16.msra.mxu0 %v7427
      %8603 = vmatprep.subr.bf16.mxu0 %v7412
      %8604 = vmatpush1.bf16.msra.mxu0 %v7411
      %8605 = vmatprep.subr.bf16.mxu0 %v7652
      %8606 = vmatpush2.bf16.msra.mxu0 %v7651
      %8607 = vmatprep.subr.bf16.mxu0 %v7636
      %8608 = vmatpush2.bf16.msra.mxu0 %v7635
      %8609 = vmatprep.subr.bf16.mxu0 %v7620
      %8610 = vmatpush2.bf16.msra.mxu0 %v7619
      %8611 = vmatprep.subr.bf16.mxu0 %v7604
      %8612 = vmatpush2.bf16.msra.mxu0 %v7603
      %8613 = vmatprep.subr.bf16.mxu0 %v7588
      %8614 = vmatpush2.bf16.msra.mxu0 %v7587
      %8615 = vmatprep.subr.bf16.mxu0 %v7572
      %8616 = vmatpush2.bf16.msra.mxu0 %v7571
      %8617 = vmatprep.subr.bf16.mxu0 %v7556
      %8618 = vmatpush2.bf16.msra.mxu0 %v7555
      %8619 = vmatprep.subr.bf16.mxu0 %v7540
      %8620 = vmatpush2.bf16.msra.mxu0 %v7539
      %8621 = vmatprep.mubr.bf16.mxu0 %v6276
      %8622 = vmatmul.mubr.bf16.gmra.mxu0 %v6275
      %v8623 = vpop.f32.mrf.mxu0
      %v8624 = vadd.f32 %v6602, %v8623
      %v8625 = vpop.f32.mrf.mxu0
      %v8626 = vadd.f32 %v6606, %v8625
      %v8627 = vpop.f32.mrf.mxu0
      %v8628 = vadd.f32 %v6602, %v8627
      %v8629 = vpop.f32.mrf.mxu0
      %v8630 = vadd.f32 %v6606, %v8629
      %8631 = vmatprep.mubr.bf16.mxu0 %v6278
      %8632 = vmatmul.mubr.bf16.gmra.mxu0 %v6277
      %v8633 = vpop.f32.mrf.mxu0
      %v8634 = vadd.f32 %v6602, %v8633
      %v8635 = vpop.f32.mrf.mxu0
      %v8636 = vadd.f32 %v6606, %v8635
      %v8637 = vpop.f32.mrf.mxu0
      %v8638 = vadd.f32 %v6602, %v8637
      %v8639 = vpop.f32.mrf.mxu0
      %v8640 = vadd.f32 %v6606, %v8639
      %8641 = vmatprep.mubr.bf16.mxu0 %v6280
      %8642 = vmatmul.mubr.bf16.gmra.mxu0 %v6279
      %v8643 = vpop.f32.mrf.mxu0
      %v8644 = vadd.f32 %v6602, %v8643
      %v8645 = vpop.f32.mrf.mxu0
      %v8646 = vadd.f32 %v6606, %v8645
      %v8647 = vpop.f32.mrf.mxu0
      %v8648 = vadd.f32 %v6602, %v8647
      %v8649 = vpop.f32.mrf.mxu0
      %v8650 = vadd.f32 %v6606, %v8649
      %8651 = vmatprep.mubr.bf16.mxu0 %v6282
      %8652 = vmatmul.mubr.bf16.gmra.mxu0 %v6281
      %v8653 = vpop.f32.mrf.mxu0
      %v8654 = vadd.f32 %v6602, %v8653
      %v8655 = vpop.f32.mrf.mxu0
      %v8656 = vadd.f32 %v6606, %v8655
      %v8657 = vpop.f32.mrf.mxu0
      %v8658 = vadd.f32 %v6602, %v8657
      %v8659 = vpop.f32.mrf.mxu0
      %v8660 = vadd.f32 %v6606, %v8659
      %8661 = vmatprep.mubr.bf16.mxu0 %v6284
      %8662 = vmatmul.mubr.bf16.gmra.mxu0 %v6283
      %v8663 = vpop.f32.mrf.mxu0
      %v8664 = vadd.f32 %v6602, %v8663
      %v8665 = vpop.f32.mrf.mxu0
      %v8666 = vadd.f32 %v6606, %v8665
      %v8667 = vpop.f32.mrf.mxu0
      %v8668 = vadd.f32 %v6602, %v8667
      %v8669 = vpop.f32.mrf.mxu0
      %v8670 = vadd.f32 %v6606, %v8669
      %8671 = vmatprep.mubr.bf16.mxu0 %v6286
      %8672 = vmatmul.mubr.bf16.gmra.mxu0 %v6285
      %v8673 = vpop.f32.mrf.mxu0
      %v8674 = vadd.f32 %v6602, %v8673
      %v8675 = vpop.f32.mrf.mxu0
      %v8676 = vadd.f32 %v6606, %v8675
      %v8677 = vpop.f32.mrf.mxu0
      %v8678 = vadd.f32 %v6602, %v8677
      %v8679 = vpop.f32.mrf.mxu0
      %v8680 = vadd.f32 %v6606, %v8679
      %8681 = vmatprep.mubr.bf16.mxu0 %v6288
      %8682 = vmatmul.mubr.bf16.gmra.mxu0 %v6287
      %v8683 = vpop.f32.mrf.mxu0
      %v8684 = vadd.f32 %v6602, %v8683
      %v8685 = vpop.f32.mrf.mxu0
      %v8686 = vadd.f32 %v6606, %v8685
      %v8687 = vpop.f32.mrf.mxu0
      %v8688 = vadd.f32 %v6602, %v8687
      %v8689 = vpop.f32.mrf.mxu0
      %v8690 = vadd.f32 %v6606, %v8689
      %8691 = vmatprep.mubr.bf16.mxu0 %v6290
      %8692 = vmatmul.mubr.bf16.gmra.mxu0 %v6289
      %v8693 = vpop.f32.mrf.mxu0
      %v8694 = vadd.f32 %v6602, %v8693
      %v8695 = vpop.f32.mrf.mxu0
      %v8696 = vadd.f32 %v6606, %v8695
      %v8697 = vpop.f32.mrf.mxu0
      %v8698 = vadd.f32 %v6602, %v8697
      %v8699 = vpop.f32.mrf.mxu0
      %v8700 = vadd.f32 %v6606, %v8699
      %8701 = vdwg.mxu0
      %8702 = vmatprep.subr.bf16.mxu0 %v7526
      %8703 = vmatpush1.bf16.msra.mxu0 %v7525
      %8704 = vmatprep.subr.bf16.mxu0 %v7510
      %8705 = vmatpush1.bf16.msra.mxu0 %v7509
      %8706 = vmatprep.subr.bf16.mxu0 %v7494
      %8707 = vmatpush1.bf16.msra.mxu0 %v7493
      %8708 = vmatprep.subr.bf16.mxu0 %v7478
      %8709 = vmatpush1.bf16.msra.mxu0 %v7477
      %8710 = vmatprep.subr.bf16.mxu0 %v7462
      %8711 = vmatpush1.bf16.msra.mxu0 %v7461
      %8712 = vmatprep.subr.bf16.mxu0 %v7446
      %8713 = vmatpush1.bf16.msra.mxu0 %v7445
      %8714 = vmatprep.subr.bf16.mxu0 %v7430
      %8715 = vmatpush1.bf16.msra.mxu0 %v7429
      %8716 = vmatprep.subr.bf16.mxu0 %v7414
      %8717 = vmatpush1.bf16.msra.mxu0 %v7413
      %8718 = vmatprep.subr.bf16.mxu0 %v7654
      %8719 = vmatpush2.bf16.msra.mxu0 %v7653
      %8720 = vmatprep.subr.bf16.mxu0 %v7638
      %8721 = vmatpush2.bf16.msra.mxu0 %v7637
      %8722 = vmatprep.subr.bf16.mxu0 %v7622
      %8723 = vmatpush2.bf16.msra.mxu0 %v7621
      %8724 = vmatprep.subr.bf16.mxu0 %v7606
      %8725 = vmatpush2.bf16.msra.mxu0 %v7605
      %8726 = vmatprep.subr.bf16.mxu0 %v7590
      %8727 = vmatpush2.bf16.msra.mxu0 %v7589
      %8728 = vmatprep.subr.bf16.mxu0 %v7574
      %8729 = vmatpush2.bf16.msra.mxu0 %v7573
      %8730 = vmatprep.subr.bf16.mxu0 %v7558
      %8731 = vmatpush2.bf16.msra.mxu0 %v7557
      %8732 = vmatprep.subr.bf16.mxu0 %v7542
      %8733 = vmatpush2.bf16.msra.mxu0 %v7541
      %8734 = vmatprep.mubr.bf16.mxu0 %v6276
      %8735 = vmatmul.mubr.bf16.gmra.mxu0 %v6275
      %v8736 = vpop.f32.mrf.mxu0
      %v8737 = vadd.f32 %v6610, %v8736
      %v8738 = vpop.f32.mrf.mxu0
      %v8739 = vadd.f32 %v6614, %v8738
      %v8740 = vpop.f32.mrf.mxu0
      %v8741 = vadd.f32 %v6610, %v8740
      %v8742 = vpop.f32.mrf.mxu0
      %v8743 = vadd.f32 %v6614, %v8742
      %8744 = vmatprep.mubr.bf16.mxu0 %v6278
      %8745 = vmatmul.mubr.bf16.gmra.mxu0 %v6277
      %v8746 = vpop.f32.mrf.mxu0
      %v8747 = vadd.f32 %v6610, %v8746
      %v8748 = vpop.f32.mrf.mxu0
      %v8749 = vadd.f32 %v6614, %v8748
      %v8750 = vpop.f32.mrf.mxu0
      %v8751 = vadd.f32 %v6610, %v8750
      %v8752 = vpop.f32.mrf.mxu0
      %v8753 = vadd.f32 %v6614, %v8752
      %8754 = vmatprep.mubr.bf16.mxu0 %v6280
      %8755 = vmatmul.mubr.bf16.gmra.mxu0 %v6279
      %v8756 = vpop.f32.mrf.mxu0
      %v8757 = vadd.f32 %v6610, %v8756
      %v8758 = vpop.f32.mrf.mxu0
      %v8759 = vadd.f32 %v6614, %v8758
      %v8760 = vpop.f32.mrf.mxu0
      %v8761 = vadd.f32 %v6610, %v8760
      %v8762 = vpop.f32.mrf.mxu0
      %v8763 = vadd.f32 %v6614, %v8762
      %8764 = vmatprep.mubr.bf16.mxu0 %v6282
      %8765 = vmatmul.mubr.bf16.gmra.mxu0 %v6281
      %v8766 = vpop.f32.mrf.mxu0
      %v8767 = vadd.f32 %v6610, %v8766
      %v8768 = vpop.f32.mrf.mxu0
      %v8769 = vadd.f32 %v6614, %v8768
      %v8770 = vpop.f32.mrf.mxu0
      %v8771 = vadd.f32 %v6610, %v8770
      %v8772 = vpop.f32.mrf.mxu0
      %v8773 = vadd.f32 %v6614, %v8772
      %8774 = vmatprep.mubr.bf16.mxu0 %v6284
      %8775 = vmatmul.mubr.bf16.gmra.mxu0 %v6283
      %v8776 = vpop.f32.mrf.mxu0
      %v8777 = vadd.f32 %v6610, %v8776
      %v8778 = vpop.f32.mrf.mxu0
      %v8779 = vadd.f32 %v6614, %v8778
      %v8780 = vpop.f32.mrf.mxu0
      %v8781 = vadd.f32 %v6610, %v8780
      %v8782 = vpop.f32.mrf.mxu0
      %v8783 = vadd.f32 %v6614, %v8782
      %8784 = vmatprep.mubr.bf16.mxu0 %v6286
      %8785 = vmatmul.mubr.bf16.gmra.mxu0 %v6285
      %v8786 = vpop.f32.mrf.mxu0
      %v8787 = vadd.f32 %v6610, %v8786
      %v8788 = vpop.f32.mrf.mxu0
      %v8789 = vadd.f32 %v6614, %v8788
      %v8790 = vpop.f32.mrf.mxu0
      %v8791 = vadd.f32 %v6610, %v8790
      %v8792 = vpop.f32.mrf.mxu0
      %v8793 = vadd.f32 %v6614, %v8792
      %8794 = vmatprep.mubr.bf16.mxu0 %v6288
      %8795 = vmatmul.mubr.bf16.gmra.mxu0 %v6287
      %v8796 = vpop.f32.mrf.mxu0
      %v8797 = vadd.f32 %v6610, %v8796
      %v8798 = vpop.f32.mrf.mxu0
      %v8799 = vadd.f32 %v6614, %v8798
      %v8800 = vpop.f32.mrf.mxu0
      %v8801 = vadd.f32 %v6610, %v8800
      %v8802 = vpop.f32.mrf.mxu0
      %v8803 = vadd.f32 %v6614, %v8802
      %8804 = vmatprep.mubr.bf16.mxu0 %v6290
      %8805 = vmatmul.mubr.bf16.gmra.mxu0 %v6289
      %v8806 = vpop.f32.mrf.mxu0
      %v8807 = vadd.f32 %v6610, %v8806
      %v8808 = vpop.f32.mrf.mxu0
      %v8809 = vadd.f32 %v6614, %v8808
      %v8810 = vpop.f32.mrf.mxu0
      %v8811 = vadd.f32 %v6610, %v8810
      %v8812 = vpop.f32.mrf.mxu0
      %v8813 = vadd.f32 %v6614, %v8812
      %8814 = vdwg.mxu0
      %v8815 = vmax.f32 %v7946, 0.0
      %v8816 = vmax.f32 %v7948, 0.0
      %v8817 = vmax.f32 %v8059, 0.0
      %v8818 = vmax.f32 %v8061, 0.0
      %v8819 = vmax.f32 %v8172, 0.0
      %v8820 = vmax.f32 %v8174, 0.0
      %v8821 = vmax.f32 %v8285, 0.0
      %v8822 = vmax.f32 %v8287, 0.0
      %v8823 = vmax.f32 %v8398, 0.0
      %v8824 = vmax.f32 %v8400, 0.0
      %v8825 = vmax.f32 %v8511, 0.0
      %v8826 = vmax.f32 %v8513, 0.0
      %v8827 = vmax.f32 %v8624, 0.0
      %v8828 = vmax.f32 %v8626, 0.0
      %v8829 = vmax.f32 %v8737, 0.0
      %v8830 = vmax.f32 %v8739, 0.0
      %v8831 = vmax.f32 %v7950, 0.0
      %v8832 = vmax.f32 %v7952, 0.0
      %v8833 = vmax.f32 %v8063, 0.0
      %v8834 = vmax.f32 %v8065, 0.0
      %v8835 = vmax.f32 %v8176, 0.0
      %v8836 = vmax.f32 %v8178, 0.0
      %v8837 = vmax.f32 %v8289, 0.0
      %v8838 = vmax.f32 %v8291, 0.0
      %v8839 = vmax.f32 %v8402, 0.0
      %v8840 = vmax.f32 %v8404, 0.0
      %v8841 = vmax.f32 %v8515, 0.0
      %v8842 = vmax.f32 %v8517, 0.0
      %v8843 = vmax.f32 %v8628, 0.0
      %v8844 = vmax.f32 %v8630, 0.0
      %v8845 = vmax.f32 %v8741, 0.0
      %v8846 = vmax.f32 %v8743, 0.0
      %v8847 = vmax.f32 %v7956, 0.0
      %v8848 = vmax.f32 %v7958, 0.0
      %v8849 = vmax.f32 %v8069, 0.0
      %v8850 = vmax.f32 %v8071, 0.0
      %v8851 = vmax.f32 %v8182, 0.0
      %v8852 = vmax.f32 %v8184, 0.0
      %v8853 = vmax.f32 %v8295, 0.0
      %v8854 = vmax.f32 %v8297, 0.0
      %v8855 = vmax.f32 %v8408, 0.0
      %v8856 = vmax.f32 %v8410, 0.0
      %v8857 = vmax.f32 %v8521, 0.0
      %v8858 = vmax.f32 %v8523, 0.0
      %v8859 = vmax.f32 %v8634, 0.0
      %v8860 = vmax.f32 %v8636, 0.0
      %v8861 = vmax.f32 %v8747, 0.0
      %v8862 = vmax.f32 %v8749, 0.0
      %v8863 = vmax.f32 %v7960, 0.0
      %v8864 = vmax.f32 %v7962, 0.0
      %v8865 = vmax.f32 %v8073, 0.0
      %v8866 = vmax.f32 %v8075, 0.0
      %v8867 = vmax.f32 %v8186, 0.0
      %v8868 = vmax.f32 %v8188, 0.0
      %v8869 = vmax.f32 %v8299, 0.0
      %v8870 = vmax.f32 %v8301, 0.0
      %v8871 = vmax.f32 %v8412, 0.0
      %v8872 = vmax.f32 %v8414, 0.0
      %v8873 = vmax.f32 %v8525, 0.0
      %v8874 = vmax.f32 %v8527, 0.0
      %v8875 = vmax.f32 %v8638, 0.0
      %v8876 = vmax.f32 %v8640, 0.0
      %v8877 = vmax.f32 %v8751, 0.0
      %v8878 = vmax.f32 %v8753, 0.0
      %v8879 = vmax.f32 %v7966, 0.0
      %v8880 = vmax.f32 %v7968, 0.0
      %v8881 = vmax.f32 %v8079, 0.0
      %v8882 = vmax.f32 %v8081, 0.0
      %v8883 = vmax.f32 %v8192, 0.0
      %v8884 = vmax.f32 %v8194, 0.0
      %v8885 = vmax.f32 %v8305, 0.0
      %v8886 = vmax.f32 %v8307, 0.0
      %v8887 = vmax.f32 %v8418, 0.0
      %v8888 = vmax.f32 %v8420, 0.0
      %v8889 = vmax.f32 %v8531, 0.0
      %v8890 = vmax.f32 %v8533, 0.0
      %v8891 = vmax.f32 %v8644, 0.0
      %v8892 = vmax.f32 %v8646, 0.0
      %v8893 = vmax.f32 %v8757, 0.0
      %v8894 = vmax.f32 %v8759, 0.0
      %v8895 = vmax.f32 %v7970, 0.0
      %v8896 = vmax.f32 %v7972, 0.0
      %v8897 = vmax.f32 %v8083, 0.0
      %v8898 = vmax.f32 %v8085, 0.0
      %v8899 = vmax.f32 %v8196, 0.0
      %v8900 = vmax.f32 %v8198, 0.0
      %v8901 = vmax.f32 %v8309, 0.0
      %v8902 = vmax.f32 %v8311, 0.0
      %v8903 = vmax.f32 %v8422, 0.0
      %v8904 = vmax.f32 %v8424, 0.0
      %v8905 = vmax.f32 %v8535, 0.0
      %v8906 = vmax.f32 %v8537, 0.0
      %v8907 = vmax.f32 %v8648, 0.0
      %v8908 = vmax.f32 %v8650, 0.0
      %v8909 = vmax.f32 %v8761, 0.0
      %v8910 = vmax.f32 %v8763, 0.0
      %v8911 = vmax.f32 %v7976, 0.0
      %v8912 = vmax.f32 %v7978, 0.0
      %v8913 = vmax.f32 %v8089, 0.0
      %v8914 = vmax.f32 %v8091, 0.0
      %v8915 = vmax.f32 %v8202, 0.0
      %v8916 = vmax.f32 %v8204, 0.0
      %v8917 = vmax.f32 %v8315, 0.0
      %v8918 = vmax.f32 %v8317, 0.0
      %v8919 = vmax.f32 %v8428, 0.0
      %v8920 = vmax.f32 %v8430, 0.0
      %v8921 = vmax.f32 %v8541, 0.0
      %v8922 = vmax.f32 %v8543, 0.0
      %v8923 = vmax.f32 %v8654, 0.0
      %v8924 = vmax.f32 %v8656, 0.0
      %v8925 = vmax.f32 %v8767, 0.0
      %v8926 = vmax.f32 %v8769, 0.0
      %v8927 = vmax.f32 %v7980, 0.0
      %v8928 = vmax.f32 %v7982, 0.0
      %v8929 = vmax.f32 %v8093, 0.0
      %v8930 = vmax.f32 %v8095, 0.0
      %v8931 = vmax.f32 %v8206, 0.0
      %v8932 = vmax.f32 %v8208, 0.0
      %v8933 = vmax.f32 %v8319, 0.0
      %v8934 = vmax.f32 %v8321, 0.0
      %v8935 = vmax.f32 %v8432, 0.0
      %v8936 = vmax.f32 %v8434, 0.0
      %v8937 = vmax.f32 %v8545, 0.0
      %v8938 = vmax.f32 %v8547, 0.0
      %v8939 = vmax.f32 %v8658, 0.0
      %v8940 = vmax.f32 %v8660, 0.0
      %v8941 = vmax.f32 %v8771, 0.0
      %v8942 = vmax.f32 %v8773, 0.0
      %v8943 = vmax.f32 %v7986, 0.0
      %v8944 = vmax.f32 %v7988, 0.0
      %v8945 = vmax.f32 %v8099, 0.0
      %v8946 = vmax.f32 %v8101, 0.0
      %v8947 = vmax.f32 %v8212, 0.0
      %v8948 = vmax.f32 %v8214, 0.0
      %v8949 = vmax.f32 %v8325, 0.0
      %v8950 = vmax.f32 %v8327, 0.0
      %v8951 = vmax.f32 %v8438, 0.0
      %v8952 = vmax.f32 %v8440, 0.0
      %v8953 = vmax.f32 %v8551, 0.0
      %v8954 = vmax.f32 %v8553, 0.0
      %v8955 = vmax.f32 %v8664, 0.0
      %v8956 = vmax.f32 %v8666, 0.0
      %v8957 = vmax.f32 %v8777, 0.0
      %v8958 = vmax.f32 %v8779, 0.0
      %v8959 = vmax.f32 %v7990, 0.0
      %v8960 = vmax.f32 %v7992, 0.0
      %v8961 = vmax.f32 %v8103, 0.0
      %v8962 = vmax.f32 %v8105, 0.0
      %v8963 = vmax.f32 %v8216, 0.0
      %v8964 = vmax.f32 %v8218, 0.0
      %v8965 = vmax.f32 %v8329, 0.0
      %v8966 = vmax.f32 %v8331, 0.0
      %v8967 = vmax.f32 %v8442, 0.0
      %v8968 = vmax.f32 %v8444, 0.0
      %v8969 = vmax.f32 %v8555, 0.0
      %v8970 = vmax.f32 %v8557, 0.0
      %v8971 = vmax.f32 %v8668, 0.0
      %v8972 = vmax.f32 %v8670, 0.0
      %v8973 = vmax.f32 %v8781, 0.0
      %v8974 = vmax.f32 %v8783, 0.0
      %v8975 = vmax.f32 %v7996, 0.0
      %v8976 = vmax.f32 %v7998, 0.0
      %v8977 = vmax.f32 %v8109, 0.0
      %v8978 = vmax.f32 %v8111, 0.0
      %v8979 = vmax.f32 %v8222, 0.0
      %v8980 = vmax.f32 %v8224, 0.0
      %v8981 = vmax.f32 %v8335, 0.0
      %v8982 = vmax.f32 %v8337, 0.0
      %v8983 = vmax.f32 %v8448, 0.0
      %v8984 = vmax.f32 %v8450, 0.0
      %v8985 = vmax.f32 %v8561, 0.0
      %v8986 = vmax.f32 %v8563, 0.0
      %v8987 = vmax.f32 %v8674, 0.0
      %v8988 = vmax.f32 %v8676, 0.0
      %v8989 = vmax.f32 %v8787, 0.0
      %v8990 = vmax.f32 %v8789, 0.0
      %v8991 = vmax.f32 %v8000, 0.0
      %v8992 = vmax.f32 %v8002, 0.0
      %v8993 = vmax.f32 %v8113, 0.0
      %v8994 = vmax.f32 %v8115, 0.0
      %v8995 = vmax.f32 %v8226, 0.0
      %v8996 = vmax.f32 %v8228, 0.0
      %v8997 = vmax.f32 %v8339, 0.0
      %v8998 = vmax.f32 %v8341, 0.0
      %v8999 = vmax.f32 %v8452, 0.0
      %v9000 = vmax.f32 %v8454, 0.0
      %v9001 = vmax.f32 %v8565, 0.0
      %v9002 = vmax.f32 %v8567, 0.0
      %v9003 = vmax.f32 %v8678, 0.0
      %v9004 = vmax.f32 %v8680, 0.0
      %v9005 = vmax.f32 %v8791, 0.0
      %v9006 = vmax.f32 %v8793, 0.0
      %v9007 = vmax.f32 %v8006, 0.0
      %v9008 = vmax.f32 %v8008, 0.0
      %v9009 = vmax.f32 %v8119, 0.0
      %v9010 = vmax.f32 %v8121, 0.0
      %v9011 = vmax.f32 %v8232, 0.0
      %v9012 = vmax.f32 %v8234, 0.0
      %v9013 = vmax.f32 %v8345, 0.0
      %v9014 = vmax.f32 %v8347, 0.0
      %v9015 = vmax.f32 %v8458, 0.0
      %v9016 = vmax.f32 %v8460, 0.0
      %v9017 = vmax.f32 %v8571, 0.0
      %v9018 = vmax.f32 %v8573, 0.0
      %v9019 = vmax.f32 %v8684, 0.0
      %v9020 = vmax.f32 %v8686, 0.0
      %v9021 = vmax.f32 %v8797, 0.0
      %v9022 = vmax.f32 %v8799, 0.0
      %v9023 = vmax.f32 %v8010, 0.0
      %v9024 = vmax.f32 %v8012, 0.0
      %v9025 = vmax.f32 %v8123, 0.0
      %v9026 = vmax.f32 %v8125, 0.0
      %v9027 = vmax.f32 %v8236, 0.0
      %v9028 = vmax.f32 %v8238, 0.0
      %v9029 = vmax.f32 %v8349, 0.0
      %v9030 = vmax.f32 %v8351, 0.0
      %v9031 = vmax.f32 %v8462, 0.0
      %v9032 = vmax.f32 %v8464, 0.0
      %v9033 = vmax.f32 %v8575, 0.0
      %v9034 = vmax.f32 %v8577, 0.0
      %v9035 = vmax.f32 %v8688, 0.0
      %v9036 = vmax.f32 %v8690, 0.0
      %v9037 = vmax.f32 %v8801, 0.0
      %v9038 = vmax.f32 %v8803, 0.0
      %v9039 = vmax.f32 %v8016, 0.0
      %v9040 = vmax.f32 %v8018, 0.0
      %v9041 = vmax.f32 %v8129, 0.0
      %v9042 = vmax.f32 %v8131, 0.0
      %v9043 = vmax.f32 %v8242, 0.0
      %v9044 = vmax.f32 %v8244, 0.0
      %v9045 = vmax.f32 %v8355, 0.0
      %v9046 = vmax.f32 %v8357, 0.0
      %v9047 = vmax.f32 %v8468, 0.0
      %v9048 = vmax.f32 %v8470, 0.0
      %v9049 = vmax.f32 %v8581, 0.0
      %v9050 = vmax.f32 %v8583, 0.0
      %v9051 = vmax.f32 %v8694, 0.0
      %v9052 = vmax.f32 %v8696, 0.0
      %v9053 = vmax.f32 %v8807, 0.0
      %v9054 = vmax.f32 %v8809, 0.0
      %v9055 = vmax.f32 %v8020, 0.0
      %v9056 = vmax.f32 %v8022, 0.0
      %v9057 = vmax.f32 %v8133, 0.0
      %v9058 = vmax.f32 %v8135, 0.0
      %v9059 = vmax.f32 %v8246, 0.0
      %v9060 = vmax.f32 %v8248, 0.0
      %v9061 = vmax.f32 %v8359, 0.0
      %v9062 = vmax.f32 %v8361, 0.0
      %v9063 = vmax.f32 %v8472, 0.0
      %v9064 = vmax.f32 %v8474, 0.0
      %v9065 = vmax.f32 %v8585, 0.0
      %v9066 = vmax.f32 %v8587, 0.0
      %v9067 = vmax.f32 %v8698, 0.0
      %v9068 = vmax.f32 %v8700, 0.0
      %v9069 = vmax.f32 %v8811, 0.0
      %v9070 = vmax.f32 %v8813, 0.0
      %v9071 = vpack.c.bf16 %v8831, %v8815
      %v9072 = vpack.c.bf16 %v8832, %v8816
      %v9073 = vpack.c.bf16 %v8833, %v8817
      %v9074 = vpack.c.bf16 %v8834, %v8818
      %v9075 = vpack.c.bf16 %v8835, %v8819
      %v9076 = vpack.c.bf16 %v8836, %v8820
      %v9077 = vpack.c.bf16 %v8837, %v8821
      %v9078 = vpack.c.bf16 %v8838, %v8822
      %v9079 = vpack.c.bf16 %v8839, %v8823
      %v9080 = vpack.c.bf16 %v8840, %v8824
      %v9081 = vpack.c.bf16 %v8841, %v8825
      %v9082 = vpack.c.bf16 %v8842, %v8826
      %v9083 = vpack.c.bf16 %v8843, %v8827
      %v9084 = vpack.c.bf16 %v8844, %v8828
      %v9085 = vpack.c.bf16 %v8845, %v8829
      %v9086 = vpack.c.bf16 %v8846, %v8830
      %v9087 = vpack.c.bf16 %v8863, %v8847
      %v9088 = vpack.c.bf16 %v8864, %v8848
      %v9089 = vpack.c.bf16 %v8865, %v8849
      %v9090 = vpack.c.bf16 %v8866, %v8850
      %v9091 = vpack.c.bf16 %v8867, %v8851
      %v9092 = vpack.c.bf16 %v8868, %v8852
      %v9093 = vpack.c.bf16 %v8869, %v8853
      %v9094 = vpack.c.bf16 %v8870, %v8854
      %v9095 = vpack.c.bf16 %v8871, %v8855
      %v9096 = vpack.c.bf16 %v8872, %v8856
      %v9097 = vpack.c.bf16 %v8873, %v8857
      %v9098 = vpack.c.bf16 %v8874, %v8858
      %v9099 = vpack.c.bf16 %v8875, %v8859
      %v9100 = vpack.c.bf16 %v8876, %v8860
      %v9101 = vpack.c.bf16 %v8877, %v8861
      %v9102 = vpack.c.bf16 %v8878, %v8862
      %v9103 = vpack.c.bf16 %v8895, %v8879
      %v9104 = vpack.c.bf16 %v8896, %v8880
      %v9105 = vpack.c.bf16 %v8897, %v8881
      %v9106 = vpack.c.bf16 %v8898, %v8882
      %v9107 = vpack.c.bf16 %v8899, %v8883
      %v9108 = vpack.c.bf16 %v8900, %v8884
      %v9109 = vpack.c.bf16 %v8901, %v8885
      %v9110 = vpack.c.bf16 %v8902, %v8886
      %v9111 = vpack.c.bf16 %v8903, %v8887
      %v9112 = vpack.c.bf16 %v8904, %v8888
      %v9113 = vpack.c.bf16 %v8905, %v8889
      %v9114 = vpack.c.bf16 %v8906, %v8890
      %v9115 = vpack.c.bf16 %v8907, %v8891
      %v9116 = vpack.c.bf16 %v8908, %v8892
      %v9117 = vpack.c.bf16 %v8909, %v8893
      %v9118 = vpack.c.bf16 %v8910, %v8894
      %v9119 = vpack.c.bf16 %v8927, %v8911
      %v9120 = vpack.c.bf16 %v8928, %v8912
      %v9121 = vpack.c.bf16 %v8929, %v8913
      %v9122 = vpack.c.bf16 %v8930, %v8914
      %v9123 = vpack.c.bf16 %v8931, %v8915
      %v9124 = vpack.c.bf16 %v8932, %v8916
      %v9125 = vpack.c.bf16 %v8933, %v8917
      %v9126 = vpack.c.bf16 %v8934, %v8918
      %v9127 = vpack.c.bf16 %v8935, %v8919
      %v9128 = vpack.c.bf16 %v8936, %v8920
      %v9129 = vpack.c.bf16 %v8937, %v8921
      %v9130 = vpack.c.bf16 %v8938, %v8922
      %v9131 = vpack.c.bf16 %v8939, %v8923
      %v9132 = vpack.c.bf16 %v8940, %v8924
      %v9133 = vpack.c.bf16 %v8941, %v8925
      %v9134 = vpack.c.bf16 %v8942, %v8926
      %v9135 = vpack.c.bf16 %v8959, %v8943
      %v9136 = vpack.c.bf16 %v8960, %v8944
      %v9137 = vpack.c.bf16 %v8961, %v8945
      %v9138 = vpack.c.bf16 %v8962, %v8946
      %v9139 = vpack.c.bf16 %v8963, %v8947
      %v9140 = vpack.c.bf16 %v8964, %v8948
      %v9141 = vpack.c.bf16 %v8965, %v8949
      %v9142 = vpack.c.bf16 %v8966, %v8950
      %v9143 = vpack.c.bf16 %v8967, %v8951
      %v9144 = vpack.c.bf16 %v8968, %v8952
      %v9145 = vpack.c.bf16 %v8969, %v8953
      %v9146 = vpack.c.bf16 %v8970, %v8954
      %v9147 = vpack.c.bf16 %v8971, %v8955
      %v9148 = vpack.c.bf16 %v8972, %v8956
      %v9149 = vpack.c.bf16 %v8973, %v8957
      %v9150 = vpack.c.bf16 %v8974, %v8958
      %v9151 = vpack.c.bf16 %v8991, %v8975
      %v9152 = vpack.c.bf16 %v8992, %v8976
      %v9153 = vpack.c.bf16 %v8993, %v8977
      %v9154 = vpack.c.bf16 %v8994, %v8978
      %v9155 = vpack.c.bf16 %v8995, %v8979
      %v9156 = vpack.c.bf16 %v8996, %v8980
      %v9157 = vpack.c.bf16 %v8997, %v8981
      %v9158 = vpack.c.bf16 %v8998, %v8982
      %v9159 = vpack.c.bf16 %v8999, %v8983
      %v9160 = vpack.c.bf16 %v9000, %v8984
      %v9161 = vpack.c.bf16 %v9001, %v8985
      %v9162 = vpack.c.bf16 %v9002, %v8986
      %v9163 = vpack.c.bf16 %v9003, %v8987
      %v9164 = vpack.c.bf16 %v9004, %v8988
      %v9165 = vpack.c.bf16 %v9005, %v8989
      %v9166 = vpack.c.bf16 %v9006, %v8990
      %v9167 = vpack.c.bf16 %v9023, %v9007
      %v9168 = vpack.c.bf16 %v9024, %v9008
      %v9169 = vpack.c.bf16 %v9025, %v9009
      %v9170 = vpack.c.bf16 %v9026, %v9010
      %v9171 = vpack.c.bf16 %v9027, %v9011
      %v9172 = vpack.c.bf16 %v9028, %v9012
      %v9173 = vpack.c.bf16 %v9029, %v9013
      %v9174 = vpack.c.bf16 %v9030, %v9014
      %v9175 = vpack.c.bf16 %v9031, %v9015
      %v9176 = vpack.c.bf16 %v9032, %v9016
      %v9177 = vpack.c.bf16 %v9033, %v9017
      %v9178 = vpack.c.bf16 %v9034, %v9018
      %v9179 = vpack.c.bf16 %v9035, %v9019
      %v9180 = vpack.c.bf16 %v9036, %v9020
      %v9181 = vpack.c.bf16 %v9037, %v9021
      %v9182 = vpack.c.bf16 %v9038, %v9022
      %v9183 = vpack.c.bf16 %v9055, %v9039
      %v9184 = vpack.c.bf16 %v9056, %v9040
      %v9185 = vpack.c.bf16 %v9057, %v9041
      %v9186 = vpack.c.bf16 %v9058, %v9042
      %v9187 = vpack.c.bf16 %v9059, %v9043
      %v9188 = vpack.c.bf16 %v9060, %v9044
      %v9189 = vpack.c.bf16 %v9061, %v9045
      %v9190 = vpack.c.bf16 %v9062, %v9046
      %v9191 = vpack.c.bf16 %v9063, %v9047
      %v9192 = vpack.c.bf16 %v9064, %v9048
      %v9193 = vpack.c.bf16 %v9065, %v9049
      %v9194 = vpack.c.bf16 %v9066, %v9050
      %v9195 = vpack.c.bf16 %v9067, %v9051
      %v9196 = vpack.c.bf16 %v9068, %v9052
      %v9197 = vpack.c.bf16 %v9069, %v9053
      %v9198 = vpack.c.bf16 %v9070, %v9054
      %v9199 = vld [vmem:[%s11] sm:$0xf]
      %v9200 = vld [vmem:[%s11 + $0x4] sm:$0xf]
      %v9201 = vld [vmem:[%s11 + $0x8] sm:$0xf]
      %v9202 = vld [vmem:[%s11 + $0xc] sm:$0xf]
      %v9203 = vld [vmem:[%s11 + $0x10] sm:$0xf]
      %v9204 = vld [vmem:[%s11 + $0x14] sm:$0xf]
      %v9205 = vld [vmem:[%s11 + $0x18] sm:$0xf]
      %v9206 = vld [vmem:[%s11 + $0x1c] sm:$0xf]
      %v9207 = vld [vmem:[%s11 + $0x20] sm:$0xf]
      %v9208 = vld [vmem:[%s11 + $0x24] sm:$0xf]
      %v9209 = vld [vmem:[%s11 + $0x28] sm:$0xf]
      %v9210 = vld [vmem:[%s11 + $0x2c] sm:$0xf]
      %v9211 = vld [vmem:[%s11 + $0x30] sm:$0xf]
      %v9212 = vld [vmem:[%s11 + $0x34] sm:$0xf]
      %v9213 = vld [vmem:[%s11 + $0x38] sm:$0xf]
      %v9214 = vld [vmem:[%s11 + $0x3c] sm:$0xf]
      %v9215 = vld [vmem:[%s11 + $0x40] sm:$0xf]
      %v9216 = vld [vmem:[%s11 + $0x44] sm:$0xf]
      %v9217 = vld [vmem:[%s11 + $0x48] sm:$0xf]
      %v9218 = vld [vmem:[%s11 + $0x4c] sm:$0xf]
      %v9219 = vld [vmem:[%s11 + $0x50] sm:$0xf]
      %v9220 = vld [vmem:[%s11 + $0x54] sm:$0xf]
      %v9221 = vld [vmem:[%s11 + $0x58] sm:$0xf]
      %v9222 = vld [vmem:[%s11 + $0x5c] sm:$0xf]
      %v9223 = vld [vmem:[%s11 + $0x60] sm:$0xf]
      %v9224 = vld [vmem:[%s11 + $0x64] sm:$0xf]
      %v9225 = vld [vmem:[%s11 + $0x68] sm:$0xf]
      %v9226 = vld [vmem:[%s11 + $0x6c] sm:$0xf]
      %v9227 = vld [vmem:[%s11 + $0x70] sm:$0xf]
      %v9228 = vld [vmem:[%s11 + $0x74] sm:$0xf]
      %v9229 = vld [vmem:[%s11 + $0x78] sm:$0xf]
      %v9230 = vld [vmem:[%s11 + $0x7c] sm:$0xf]
      %v9231 = vld [vmem:[%s11 + $0x80] sm:$0xf]
      %v9232 = vld [vmem:[%s11 + $0x84] sm:$0xf]
      %v9233 = vld [vmem:[%s11 + $0x88] sm:$0xf]
      %v9234 = vld [vmem:[%s11 + $0x8c] sm:$0xf]
      %v9235 = vld [vmem:[%s11 + $0x90] sm:$0xf]
      %v9236 = vld [vmem:[%s11 + $0x94] sm:$0xf]
      %v9237 = vld [vmem:[%s11 + $0x98] sm:$0xf]
      %v9238 = vld [vmem:[%s11 + $0x9c] sm:$0xf]
      %v9239 = vld [vmem:[%s11 + $0xa0] sm:$0xf]
      %v9240 = vld [vmem:[%s11 + $0xa4] sm:$0xf]
      %v9241 = vld [vmem:[%s11 + $0xa8] sm:$0xf]
      %v9242 = vld [vmem:[%s11 + $0xac] sm:$0xf]
      %v9243 = vld [vmem:[%s11 + $0xb0] sm:$0xf]
      %v9244 = vld [vmem:[%s11 + $0xb4] sm:$0xf]
      %v9245 = vld [vmem:[%s11 + $0xb8] sm:$0xf]
      %v9246 = vld [vmem:[%s11 + $0xbc] sm:$0xf]
      %v9247 = vld [vmem:[%s11 + $0xc0] sm:$0xf]
      %v9248 = vld [vmem:[%s11 + $0xc4] sm:$0xf]
      %v9249 = vld [vmem:[%s11 + $0xc8] sm:$0xf]
      %v9250 = vld [vmem:[%s11 + $0xcc] sm:$0xf]
      %v9251 = vld [vmem:[%s11 + $0xd0] sm:$0xf]
      %v9252 = vld [vmem:[%s11 + $0xd4] sm:$0xf]
      %v9253 = vld [vmem:[%s11 + $0xd8] sm:$0xf]
      %v9254 = vld [vmem:[%s11 + $0xdc] sm:$0xf]
      %v9255 = vld [vmem:[%s11 + $0xe0] sm:$0xf]
      %v9256 = vld [vmem:[%s11 + $0xe4] sm:$0xf]
      %v9257 = vld [vmem:[%s11 + $0xe8] sm:$0xf]
      %v9258 = vld [vmem:[%s11 + $0xec] sm:$0xf]
      %v9259 = vld [vmem:[%s11 + $0xf0] sm:$0xf]
      %v9260 = vld [vmem:[%s11 + $0xf4] sm:$0xf]
      %v9261 = vld [vmem:[%s11 + $0xf8] sm:$0xf]
      %v9262 = vld [vmem:[%s11 + $0xfc] sm:$0xf]
      %v9263 = vld [vmem:[%s11 + $0x100] sm:$0xf]
      %v9264 = vld [vmem:[%s11 + $0x104] sm:$0xf]
      %v9265 = vld [vmem:[%s11 + $0x108] sm:$0xf]
      %v9266 = vld [vmem:[%s11 + $0x10c] sm:$0xf]
      %v9267 = vld [vmem:[%s11 + $0x110] sm:$0xf]
      %v9268 = vld [vmem:[%s11 + $0x114] sm:$0xf]
      %v9269 = vld [vmem:[%s11 + $0x118] sm:$0xf]
      %v9270 = vld [vmem:[%s11 + $0x11c] sm:$0xf]
      %v9271 = vld [vmem:[%s11 + $0x120] sm:$0xf]
      %v9272 = vld [vmem:[%s11 + $0x124] sm:$0xf]
      %v9273 = vld [vmem:[%s11 + $0x128] sm:$0xf]
      %v9274 = vld [vmem:[%s11 + $0x12c] sm:$0xf]
      %v9275 = vld [vmem:[%s11 + $0x130] sm:$0xf]
      %v9276 = vld [vmem:[%s11 + $0x134] sm:$0xf]
      %v9277 = vld [vmem:[%s11 + $0x138] sm:$0xf]
      %v9278 = vld [vmem:[%s11 + $0x13c] sm:$0xf]
      %v9279 = vld [vmem:[%s11 + $0x140] sm:$0xf]
      %v9280 = vld [vmem:[%s11 + $0x144] sm:$0xf]
      %v9281 = vld [vmem:[%s11 + $0x148] sm:$0xf]
      %v9282 = vld [vmem:[%s11 + $0x14c] sm:$0xf]
      %v9283 = vld [vmem:[%s11 + $0x150] sm:$0xf]
      %v9284 = vld [vmem:[%s11 + $0x154] sm:$0xf]
      %v9285 = vld [vmem:[%s11 + $0x158] sm:$0xf]
      %v9286 = vld [vmem:[%s11 + $0x15c] sm:$0xf]
      %v9287 = vld [vmem:[%s11 + $0x160] sm:$0xf]
      %v9288 = vld [vmem:[%s11 + $0x164] sm:$0xf]
      %v9289 = vld [vmem:[%s11 + $0x168] sm:$0xf]
      %v9290 = vld [vmem:[%s11 + $0x16c] sm:$0xf]
      %v9291 = vld [vmem:[%s11 + $0x170] sm:$0xf]
      %v9292 = vld [vmem:[%s11 + $0x174] sm:$0xf]
      %v9293 = vld [vmem:[%s11 + $0x178] sm:$0xf]
      %v9294 = vld [vmem:[%s11 + $0x17c] sm:$0xf]
      %v9295 = vld [vmem:[%s11 + $0x180] sm:$0xf]
      %v9296 = vld [vmem:[%s11 + $0x184] sm:$0xf]
      %v9297 = vld [vmem:[%s11 + $0x188] sm:$0xf]
      %v9298 = vld [vmem:[%s11 + $0x18c] sm:$0xf]
      %v9299 = vld [vmem:[%s11 + $0x190] sm:$0xf]
      %v9300 = vld [vmem:[%s11 + $0x194] sm:$0xf]
      %v9301 = vld [vmem:[%s11 + $0x198] sm:$0xf]
      %v9302 = vld [vmem:[%s11 + $0x19c] sm:$0xf]
      %v9303 = vld [vmem:[%s11 + $0x1a0] sm:$0xf]
      %v9304 = vld [vmem:[%s11 + $0x1a4] sm:$0xf]
      %v9305 = vld [vmem:[%s11 + $0x1a8] sm:$0xf]
      %v9306 = vld [vmem:[%s11 + $0x1ac] sm:$0xf]
      %v9307 = vld [vmem:[%s11 + $0x1b0] sm:$0xf]
      %v9308 = vld [vmem:[%s11 + $0x1b4] sm:$0xf]
      %v9309 = vld [vmem:[%s11 + $0x1b8] sm:$0xf]
      %v9310 = vld [vmem:[%s11 + $0x1bc] sm:$0xf]
      %v9311 = vld [vmem:[%s11 + $0x1c0] sm:$0xf]
      %v9312 = vld [vmem:[%s11 + $0x1c4] sm:$0xf]
      %v9313 = vld [vmem:[%s11 + $0x1c8] sm:$0xf]
      %v9314 = vld [vmem:[%s11 + $0x1cc] sm:$0xf]
      %v9315 = vld [vmem:[%s11 + $0x1d0] sm:$0xf]
      %v9316 = vld [vmem:[%s11 + $0x1d4] sm:$0xf]
      %v9317 = vld [vmem:[%s11 + $0x1d8] sm:$0xf]
      %v9318 = vld [vmem:[%s11 + $0x1dc] sm:$0xf]
      %v9319 = vld [vmem:[%s11 + $0x1e0] sm:$0xf]
      %v9320 = vld [vmem:[%s11 + $0x1e4] sm:$0xf]
      %v9321 = vld [vmem:[%s11 + $0x1e8] sm:$0xf]
      %v9322 = vld [vmem:[%s11 + $0x1ec] sm:$0xf]
      %v9323 = vld [vmem:[%s11 + $0x1f0] sm:$0xf]
      %v9324 = vld [vmem:[%s11 + $0x1f4] sm:$0xf]
      %v9325 = vld [vmem:[%s11 + $0x1f8] sm:$0xf]
      %v9326 = vld [vmem:[%s11 + $0x1fc] sm:$0xf]
      %v9327 = vld [vmem:[%s11 + $0x200] sm:$0xf]
      %v9328 = vld [vmem:[%s11 + $0x204] sm:$0xf]
      %v9329 = vld [vmem:[%s11 + $0x208] sm:$0xf]
      %v9330 = vld [vmem:[%s11 + $0x20c] sm:$0xf]
      %v9331 = vld [vmem:[%s11 + $0x210] sm:$0xf]
      %v9332 = vld [vmem:[%s11 + $0x214] sm:$0xf]
      %v9333 = vld [vmem:[%s11 + $0x218] sm:$0xf]
      %v9334 = vld [vmem:[%s11 + $0x21c] sm:$0xf]
      %v9335 = vld [vmem:[%s11 + $0x220] sm:$0xf]
      %v9336 = vld [vmem:[%s11 + $0x224] sm:$0xf]
      %v9337 = vld [vmem:[%s11 + $0x228] sm:$0xf]
      %v9338 = vld [vmem:[%s11 + $0x22c] sm:$0xf]
      %v9339 = vld [vmem:[%s11 + $0x230] sm:$0xf]
      %v9340 = vld [vmem:[%s11 + $0x234] sm:$0xf]
      %v9341 = vld [vmem:[%s11 + $0x238] sm:$0xf]
      %v9342 = vld [vmem:[%s11 + $0x23c] sm:$0xf]
      %v9343 = vld [vmem:[%s11 + $0x240] sm:$0xf]
      %v9344 = vld [vmem:[%s11 + $0x244] sm:$0xf]
      %v9345 = vld [vmem:[%s11 + $0x248] sm:$0xf]
      %v9346 = vld [vmem:[%s11 + $0x24c] sm:$0xf]
      %v9347 = vld [vmem:[%s11 + $0x250] sm:$0xf]
      %v9348 = vld [vmem:[%s11 + $0x254] sm:$0xf]
      %v9349 = vld [vmem:[%s11 + $0x258] sm:$0xf]
      %v9350 = vld [vmem:[%s11 + $0x25c] sm:$0xf]
      %v9351 = vld [vmem:[%s11 + $0x260] sm:$0xf]
      %v9352 = vld [vmem:[%s11 + $0x264] sm:$0xf]
      %v9353 = vld [vmem:[%s11 + $0x268] sm:$0xf]
      %v9354 = vld [vmem:[%s11 + $0x26c] sm:$0xf]
      %v9355 = vld [vmem:[%s11 + $0x270] sm:$0xf]
      %v9356 = vld [vmem:[%s11 + $0x274] sm:$0xf]
      %v9357 = vld [vmem:[%s11 + $0x278] sm:$0xf]
      %v9358 = vld [vmem:[%s11 + $0x27c] sm:$0xf]
      %v9359 = vld [vmem:[%s11 + $0x280] sm:$0xf]
      %v9360 = vld [vmem:[%s11 + $0x284] sm:$0xf]
      %v9361 = vld [vmem:[%s11 + $0x288] sm:$0xf]
      %v9362 = vld [vmem:[%s11 + $0x28c] sm:$0xf]
      %v9363 = vld [vmem:[%s11 + $0x290] sm:$0xf]
      %v9364 = vld [vmem:[%s11 + $0x294] sm:$0xf]
      %v9365 = vld [vmem:[%s11 + $0x298] sm:$0xf]
      %v9366 = vld [vmem:[%s11 + $0x29c] sm:$0xf]
      %v9367 = vld [vmem:[%s11 + $0x2a0] sm:$0xf]
      %v9368 = vld [vmem:[%s11 + $0x2a4] sm:$0xf]
      %v9369 = vld [vmem:[%s11 + $0x2a8] sm:$0xf]
      %v9370 = vld [vmem:[%s11 + $0x2ac] sm:$0xf]
      %v9371 = vld [vmem:[%s11 + $0x2b0] sm:$0xf]
      %v9372 = vld [vmem:[%s11 + $0x2b4] sm:$0xf]
      %v9373 = vld [vmem:[%s11 + $0x2b8] sm:$0xf]
      %v9374 = vld [vmem:[%s11 + $0x2bc] sm:$0xf]
      %v9375 = vld [vmem:[%s11 + $0x2c0] sm:$0xf]
      %v9376 = vld [vmem:[%s11 + $0x2c4] sm:$0xf]
      %v9377 = vld [vmem:[%s11 + $0x2c8] sm:$0xf]
      %v9378 = vld [vmem:[%s11 + $0x2cc] sm:$0xf]
      %v9379 = vld [vmem:[%s11 + $0x2d0] sm:$0xf]
      %v9380 = vld [vmem:[%s11 + $0x2d4] sm:$0xf]
      %v9381 = vld [vmem:[%s11 + $0x2d8] sm:$0xf]
      %v9382 = vld [vmem:[%s11 + $0x2dc] sm:$0xf]
      %v9383 = vld [vmem:[%s11 + $0x2e0] sm:$0xf]
      %v9384 = vld [vmem:[%s11 + $0x2e4] sm:$0xf]
      %v9385 = vld [vmem:[%s11 + $0x2e8] sm:$0xf]
      %v9386 = vld [vmem:[%s11 + $0x2ec] sm:$0xf]
      %v9387 = vld [vmem:[%s11 + $0x2f0] sm:$0xf]
      %v9388 = vld [vmem:[%s11 + $0x2f4] sm:$0xf]
      %v9389 = vld [vmem:[%s11 + $0x2f8] sm:$0xf]
      %v9390 = vld [vmem:[%s11 + $0x2fc] sm:$0xf]
      %v9391 = vld [vmem:[%s11 + $0x300] sm:$0xf]
      %v9392 = vld [vmem:[%s11 + $0x304] sm:$0xf]
      %v9393 = vld [vmem:[%s11 + $0x308] sm:$0xf]
      %v9394 = vld [vmem:[%s11 + $0x30c] sm:$0xf]
      %v9395 = vld [vmem:[%s11 + $0x310] sm:$0xf]
      %v9396 = vld [vmem:[%s11 + $0x314] sm:$0xf]
      %v9397 = vld [vmem:[%s11 + $0x318] sm:$0xf]
      %v9398 = vld [vmem:[%s11 + $0x31c] sm:$0xf]
      %v9399 = vld [vmem:[%s11 + $0x320] sm:$0xf]
      %v9400 = vld [vmem:[%s11 + $0x324] sm:$0xf]
      %v9401 = vld [vmem:[%s11 + $0x328] sm:$0xf]
      %v9402 = vld [vmem:[%s11 + $0x32c] sm:$0xf]
      %v9403 = vld [vmem:[%s11 + $0x330] sm:$0xf]
      %v9404 = vld [vmem:[%s11 + $0x334] sm:$0xf]
      %v9405 = vld [vmem:[%s11 + $0x338] sm:$0xf]
      %v9406 = vld [vmem:[%s11 + $0x33c] sm:$0xf]
      %v9407 = vld [vmem:[%s11 + $0x340] sm:$0xf]
      %v9408 = vld [vmem:[%s11 + $0x344] sm:$0xf]
      %v9409 = vld [vmem:[%s11 + $0x348] sm:$0xf]
      %v9410 = vld [vmem:[%s11 + $0x34c] sm:$0xf]
      %v9411 = vld [vmem:[%s11 + $0x350] sm:$0xf]
      %v9412 = vld [vmem:[%s11 + $0x354] sm:$0xf]
      %v9413 = vld [vmem:[%s11 + $0x358] sm:$0xf]
      %v9414 = vld [vmem:[%s11 + $0x35c] sm:$0xf]
      %v9415 = vld [vmem:[%s11 + $0x360] sm:$0xf]
      %v9416 = vld [vmem:[%s11 + $0x364] sm:$0xf]
      %v9417 = vld [vmem:[%s11 + $0x368] sm:$0xf]
      %v9418 = vld [vmem:[%s11 + $0x36c] sm:$0xf]
      %v9419 = vld [vmem:[%s11 + $0x370] sm:$0xf]
      %v9420 = vld [vmem:[%s11 + $0x374] sm:$0xf]
      %v9421 = vld [vmem:[%s11 + $0x378] sm:$0xf]
      %v9422 = vld [vmem:[%s11 + $0x37c] sm:$0xf]
      %v9423 = vld [vmem:[%s11 + $0x380] sm:$0xf]
      %v9424 = vld [vmem:[%s11 + $0x384] sm:$0xf]
      %v9425 = vld [vmem:[%s11 + $0x388] sm:$0xf]
      %v9426 = vld [vmem:[%s11 + $0x38c] sm:$0xf]
      %v9427 = vld [vmem:[%s11 + $0x390] sm:$0xf]
      %v9428 = vld [vmem:[%s11 + $0x394] sm:$0xf]
      %v9429 = vld [vmem:[%s11 + $0x398] sm:$0xf]
      %v9430 = vld [vmem:[%s11 + $0x39c] sm:$0xf]
      %v9431 = vld [vmem:[%s11 + $0x3a0] sm:$0xf]
      %v9432 = vld [vmem:[%s11 + $0x3a4] sm:$0xf]
      %v9433 = vld [vmem:[%s11 + $0x3a8] sm:$0xf]
      %v9434 = vld [vmem:[%s11 + $0x3ac] sm:$0xf]
      %v9435 = vld [vmem:[%s11 + $0x3b0] sm:$0xf]
      %v9436 = vld [vmem:[%s11 + $0x3b4] sm:$0xf]
      %v9437 = vld [vmem:[%s11 + $0x3b8] sm:$0xf]
      %v9438 = vld [vmem:[%s11 + $0x3bc] sm:$0xf]
      %v9439 = vld [vmem:[%s11 + $0x3c0] sm:$0xf]
      %v9440 = vld [vmem:[%s11 + $0x3c4] sm:$0xf]
      %v9441 = vld [vmem:[%s11 + $0x3c8] sm:$0xf]
      %v9442 = vld [vmem:[%s11 + $0x3cc] sm:$0xf]
      %v9443 = vld [vmem:[%s11 + $0x3d0] sm:$0xf]
      %v9444 = vld [vmem:[%s11 + $0x3d4] sm:$0xf]
      %v9445 = vld [vmem:[%s11 + $0x3d8] sm:$0xf]
      %v9446 = vld [vmem:[%s11 + $0x3dc] sm:$0xf]
      %v9447 = vld [vmem:[%s11 + $0x3e0] sm:$0xf]
      %v9448 = vld [vmem:[%s11 + $0x3e4] sm:$0xf]
      %v9449 = vld [vmem:[%s11 + $0x3e8] sm:$0xf]
      %v9450 = vld [vmem:[%s11 + $0x3ec] sm:$0xf]
      %v9451 = vld [vmem:[%s11 + $0x3f0] sm:$0xf]
      %v9452 = vld [vmem:[%s11 + $0x3f4] sm:$0xf]
      %v9453 = vld [vmem:[%s11 + $0x3f8] sm:$0xf]
      %v9454 = vld [vmem:[%s11 + $0x3fc] sm:$0xf]
      %v9455 = vld [vmem:[%s12] sm:$0x1]
      %v9457 = vlaneseq
      %v9458 = vshrl.u32 %v9457, 7
      %v9459 = vsub.s32 0, %v9458
      %v9460 = vrot.slane %v9455, %v9459
      %v9718 = vunpack.c.l.b16 %v9199
      %v9719 = vunpack.c.l.b16 %v9200
      %v9720 = vunpack.c.l.b16 %v9201
      %v9721 = vunpack.c.l.b16 %v9202
      %v9722 = vunpack.c.l.b16 %v9203
      %v9723 = vunpack.c.l.b16 %v9204
      %v9724 = vunpack.c.l.b16 %v9205
      %v9725 = vunpack.c.l.b16 %v9206
      %v9726 = vunpack.c.l.b16 %v9207
      %v9727 = vunpack.c.l.b16 %v9208
      %v9728 = vunpack.c.l.b16 %v9209
      %v9729 = vunpack.c.l.b16 %v9210
      %v9730 = vunpack.c.l.b16 %v9211
      %v9731 = vunpack.c.l.b16 %v9212
      %v9732 = vunpack.c.l.b16 %v9213
      %v9733 = vunpack.c.l.b16 %v9214
      %v9734 = vunpack.c.l.b16 %v9215
      %v9735 = vunpack.c.l.b16 %v9216
      %v9736 = vunpack.c.l.b16 %v9217
      %v9737 = vunpack.c.l.b16 %v9218
      %v9738 = vunpack.c.l.b16 %v9219
      %v9739 = vunpack.c.l.b16 %v9220
      %v9740 = vunpack.c.l.b16 %v9221
      %v9741 = vunpack.c.l.b16 %v9222
      %v9742 = vunpack.c.l.b16 %v9223
      %v9743 = vunpack.c.l.b16 %v9224
      %v9744 = vunpack.c.l.b16 %v9225
      %v9745 = vunpack.c.l.b16 %v9226
      %v9746 = vunpack.c.l.b16 %v9227
      %v9747 = vunpack.c.l.b16 %v9228
      %v9748 = vunpack.c.l.b16 %v9229
      %v9749 = vunpack.c.l.b16 %v9230
      %v9750 = vunpack.c.l.b16 %v9231
      %v9751 = vunpack.c.l.b16 %v9232
      %v9752 = vunpack.c.l.b16 %v9233
      %v9753 = vunpack.c.l.b16 %v9234
      %v9754 = vunpack.c.l.b16 %v9235
      %v9755 = vunpack.c.l.b16 %v9236
      %v9756 = vunpack.c.l.b16 %v9237
      %v9757 = vunpack.c.l.b16 %v9238
      %v9758 = vunpack.c.l.b16 %v9239
      %v9759 = vunpack.c.l.b16 %v9240
      %v9760 = vunpack.c.l.b16 %v9241
      %v9761 = vunpack.c.l.b16 %v9242
      %v9762 = vunpack.c.l.b16 %v9243
      %v9763 = vunpack.c.l.b16 %v9244
      %v9764 = vunpack.c.l.b16 %v9245
      %v9765 = vunpack.c.l.b16 %v9246
      %v9766 = vunpack.c.l.b16 %v9247
      %v9767 = vunpack.c.l.b16 %v9248
      %v9768 = vunpack.c.l.b16 %v9249
      %v9769 = vunpack.c.l.b16 %v9250
      %v9770 = vunpack.c.l.b16 %v9251
      %v9771 = vunpack.c.l.b16 %v9252
      %v9772 = vunpack.c.l.b16 %v9253
      %v9773 = vunpack.c.l.b16 %v9254
      %v9774 = vunpack.c.l.b16 %v9255
      %v9775 = vunpack.c.l.b16 %v9256
      %v9776 = vunpack.c.l.b16 %v9257
      %v9777 = vunpack.c.l.b16 %v9258
      %v9778 = vunpack.c.l.b16 %v9259
      %v9779 = vunpack.c.l.b16 %v9260
      %v9780 = vunpack.c.l.b16 %v9261
      %v9781 = vunpack.c.l.b16 %v9262
      %v9782 = vunpack.c.l.b16 %v9263
      %v9783 = vunpack.c.l.b16 %v9264
      %v9784 = vunpack.c.l.b16 %v9265
      %v9785 = vunpack.c.l.b16 %v9266
      %v9786 = vunpack.c.l.b16 %v9267
      %v9787 = vunpack.c.l.b16 %v9268
      %v9788 = vunpack.c.l.b16 %v9269
      %v9789 = vunpack.c.l.b16 %v9270
      %v9790 = vunpack.c.l.b16 %v9271
      %v9791 = vunpack.c.l.b16 %v9272
      %v9792 = vunpack.c.l.b16 %v9273
      %v9793 = vunpack.c.l.b16 %v9274
      %v9794 = vunpack.c.l.b16 %v9275
      %v9795 = vunpack.c.l.b16 %v9276
      %v9796 = vunpack.c.l.b16 %v9277
      %v9797 = vunpack.c.l.b16 %v9278
      %v9798 = vunpack.c.l.b16 %v9279
      %v9799 = vunpack.c.l.b16 %v9280
      %v9800 = vunpack.c.l.b16 %v9281
      %v9801 = vunpack.c.l.b16 %v9282
      %v9802 = vunpack.c.l.b16 %v9283
      %v9803 = vunpack.c.l.b16 %v9284
      %v9804 = vunpack.c.l.b16 %v9285
      %v9805 = vunpack.c.l.b16 %v9286
      %v9806 = vunpack.c.l.b16 %v9287
      %v9807 = vunpack.c.l.b16 %v9288
      %v9808 = vunpack.c.l.b16 %v9289
      %v9809 = vunpack.c.l.b16 %v9290
      %v9810 = vunpack.c.l.b16 %v9291
      %v9811 = vunpack.c.l.b16 %v9292
      %v9812 = vunpack.c.l.b16 %v9293
      %v9813 = vunpack.c.l.b16 %v9294
      %v9814 = vunpack.c.l.b16 %v9295
      %v9815 = vunpack.c.l.b16 %v9296
      %v9816 = vunpack.c.l.b16 %v9297
      %v9817 = vunpack.c.l.b16 %v9298
      %v9818 = vunpack.c.l.b16 %v9299
      %v9819 = vunpack.c.l.b16 %v9300
      %v9820 = vunpack.c.l.b16 %v9301
      %v9821 = vunpack.c.l.b16 %v9302
      %v9822 = vunpack.c.l.b16 %v9303
      %v9823 = vunpack.c.l.b16 %v9304
      %v9824 = vunpack.c.l.b16 %v9305
      %v9825 = vunpack.c.l.b16 %v9306
      %v9826 = vunpack.c.l.b16 %v9307
      %v9827 = vunpack.c.l.b16 %v9308
      %v9828 = vunpack.c.l.b16 %v9309
      %v9829 = vunpack.c.l.b16 %v9310
      %v9830 = vunpack.c.l.b16 %v9311
      %v9831 = vunpack.c.l.b16 %v9312
      %v9832 = vunpack.c.l.b16 %v9313
      %v9833 = vunpack.c.l.b16 %v9314
      %v9834 = vunpack.c.l.b16 %v9315
      %v9835 = vunpack.c.l.b16 %v9316
      %v9836 = vunpack.c.l.b16 %v9317
      %v9837 = vunpack.c.l.b16 %v9318
      %v9838 = vunpack.c.l.b16 %v9319
      %v9839 = vunpack.c.l.b16 %v9320
      %v9840 = vunpack.c.l.b16 %v9321
      %v9841 = vunpack.c.l.b16 %v9322
      %v9842 = vunpack.c.l.b16 %v9323
      %v9843 = vunpack.c.l.b16 %v9324
      %v9844 = vunpack.c.l.b16 %v9325
      %v9845 = vunpack.c.l.b16 %v9326
      %v9846 = vunpack.c.l.b16 %v9327
      %v9847 = vunpack.c.l.b16 %v9328
      %v9848 = vunpack.c.l.b16 %v9329
      %v9849 = vunpack.c.l.b16 %v9330
      %v9850 = vunpack.c.l.b16 %v9331
      %v9851 = vunpack.c.l.b16 %v9332
      %v9852 = vunpack.c.l.b16 %v9333
      %v9853 = vunpack.c.l.b16 %v9334
      %v9854 = vunpack.c.l.b16 %v9335
      %v9855 = vunpack.c.l.b16 %v9336
      %v9856 = vunpack.c.l.b16 %v9337
      %v9857 = vunpack.c.l.b16 %v9338
      %v9858 = vunpack.c.l.b16 %v9339
      %v9859 = vunpack.c.l.b16 %v9340
      %v9860 = vunpack.c.l.b16 %v9341
      %v9861 = vunpack.c.l.b16 %v9342
      %v9862 = vunpack.c.l.b16 %v9343
      %v9863 = vunpack.c.l.b16 %v9344
      %v9864 = vunpack.c.l.b16 %v9345
      %v9865 = vunpack.c.l.b16 %v9346
      %v9866 = vunpack.c.l.b16 %v9347
      %v9867 = vunpack.c.l.b16 %v9348
      %v9868 = vunpack.c.l.b16 %v9349
      %v9869 = vunpack.c.l.b16 %v9350
      %v9870 = vunpack.c.l.b16 %v9351
      %v9871 = vunpack.c.l.b16 %v9352
      %v9872 = vunpack.c.l.b16 %v9353
      %v9873 = vunpack.c.l.b16 %v9354
      %v9874 = vunpack.c.l.b16 %v9355
      %v9875 = vunpack.c.l.b16 %v9356
      %v9876 = vunpack.c.l.b16 %v9357
      %v9877 = vunpack.c.l.b16 %v9358
      %v9878 = vunpack.c.l.b16 %v9359
      %v9879 = vunpack.c.l.b16 %v9360
      %v9880 = vunpack.c.l.b16 %v9361
      %v9881 = vunpack.c.l.b16 %v9362
      %v9882 = vunpack.c.l.b16 %v9363
      %v9883 = vunpack.c.l.b16 %v9364
      %v9884 = vunpack.c.l.b16 %v9365
      %v9885 = vunpack.c.l.b16 %v9366
      %v9886 = vunpack.c.l.b16 %v9367
      %v9887 = vunpack.c.l.b16 %v9368
      %v9888 = vunpack.c.l.b16 %v9369
      %v9889 = vunpack.c.l.b16 %v9370
      %v9890 = vunpack.c.l.b16 %v9371
      %v9891 = vunpack.c.l.b16 %v9372
      %v9892 = vunpack.c.l.b16 %v9373
      %v9893 = vunpack.c.l.b16 %v9374
      %v9894 = vunpack.c.l.b16 %v9375
      %v9895 = vunpack.c.l.b16 %v9376
      %v9896 = vunpack.c.l.b16 %v9377
      %v9897 = vunpack.c.l.b16 %v9378
      %v9898 = vunpack.c.l.b16 %v9379
      %v9899 = vunpack.c.l.b16 %v9380
      %v9900 = vunpack.c.l.b16 %v9381
      %v9901 = vunpack.c.l.b16 %v9382
      %v9902 = vunpack.c.l.b16 %v9383
      %v9903 = vunpack.c.l.b16 %v9384
      %v9904 = vunpack.c.l.b16 %v9385
      %v9905 = vunpack.c.l.b16 %v9386
      %v9906 = vunpack.c.l.b16 %v9387
      %v9907 = vunpack.c.l.b16 %v9388
      %v9908 = vunpack.c.l.b16 %v9389
      %v9909 = vunpack.c.l.b16 %v9390
      %v9910 = vunpack.c.l.b16 %v9391
      %v9911 = vunpack.c.l.b16 %v9392
      %v9912 = vunpack.c.l.b16 %v9393
      %v9913 = vunpack.c.l.b16 %v9394
      %v9914 = vunpack.c.l.b16 %v9395
      %v9915 = vunpack.c.l.b16 %v9396
      %v9916 = vunpack.c.l.b16 %v9397
      %v9917 = vunpack.c.l.b16 %v9398
      %v9918 = vunpack.c.l.b16 %v9399
      %v9919 = vunpack.c.l.b16 %v9400
      %v9920 = vunpack.c.l.b16 %v9401
      %v9921 = vunpack.c.l.b16 %v9402
      %v9922 = vunpack.c.l.b16 %v9403
      %v9923 = vunpack.c.l.b16 %v9404
      %v9924 = vunpack.c.l.b16 %v9405
      %v9925 = vunpack.c.l.b16 %v9406
      %v9926 = vunpack.c.l.b16 %v9407
      %v9927 = vunpack.c.l.b16 %v9408
      %v9928 = vunpack.c.l.b16 %v9409
      %v9929 = vunpack.c.l.b16 %v9410
      %v9930 = vunpack.c.l.b16 %v9411
      %v9931 = vunpack.c.l.b16 %v9412
      %v9932 = vunpack.c.l.b16 %v9413
      %v9933 = vunpack.c.l.b16 %v9414
      %v9934 = vunpack.c.l.b16 %v9415
      %v9935 = vunpack.c.l.b16 %v9416
      %v9936 = vunpack.c.l.b16 %v9417
      %v9937 = vunpack.c.l.b16 %v9418
      %v9938 = vunpack.c.l.b16 %v9419
      %v9939 = vunpack.c.l.b16 %v9420
      %v9940 = vunpack.c.l.b16 %v9421
      %v9941 = vunpack.c.l.b16 %v9422
      %v9942 = vunpack.c.l.b16 %v9423
      %v9943 = vunpack.c.l.b16 %v9424
      %v9944 = vunpack.c.l.b16 %v9425
      %v9945 = vunpack.c.l.b16 %v9426
      %v9946 = vunpack.c.l.b16 %v9427
      %v9947 = vunpack.c.l.b16 %v9428
      %v9948 = vunpack.c.l.b16 %v9429
      %v9949 = vunpack.c.l.b16 %v9430
      %v9950 = vunpack.c.l.b16 %v9431
      %v9951 = vunpack.c.l.b16 %v9432
      %v9952 = vunpack.c.l.b16 %v9433
      %v9953 = vunpack.c.l.b16 %v9434
      %v9954 = vunpack.c.l.b16 %v9435
      %v9955 = vunpack.c.l.b16 %v9436
      %v9956 = vunpack.c.l.b16 %v9437
      %v9957 = vunpack.c.l.b16 %v9438
      %v9958 = vunpack.c.l.b16 %v9439
      %v9959 = vunpack.c.l.b16 %v9440
      %v9960 = vunpack.c.l.b16 %v9441
      %v9961 = vunpack.c.l.b16 %v9442
      %v9962 = vunpack.c.l.b16 %v9443
      %v9963 = vunpack.c.l.b16 %v9444
      %v9964 = vunpack.c.l.b16 %v9445
      %v9965 = vunpack.c.l.b16 %v9446
      %v9966 = vunpack.c.l.b16 %v9447
      %v9967 = vunpack.c.l.b16 %v9448
      %v9968 = vunpack.c.l.b16 %v9449
      %v9969 = vunpack.c.l.b16 %v9450
      %v9970 = vunpack.c.l.b16 %v9451
      %v9971 = vunpack.c.l.b16 %v9452
      %v9972 = vunpack.c.l.b16 %v9453
      %v9973 = vunpack.c.l.b16 %v9454
      %v9974 = vpack.c.b16 %v9719, %v9718
      %v9975 = vpack.c.b16 %v9721, %v9720
      %v9976 = vpack.c.b16 %v9723, %v9722
      %v9977 = vpack.c.b16 %v9725, %v9724
      %v9978 = vpack.c.b16 %v9727, %v9726
      %v9979 = vpack.c.b16 %v9729, %v9728
      %v9980 = vpack.c.b16 %v9731, %v9730
      %v9981 = vpack.c.b16 %v9733, %v9732
      %v9982 = vpack.c.b16 %v9735, %v9734
      %v9983 = vpack.c.b16 %v9737, %v9736
      %v9984 = vpack.c.b16 %v9739, %v9738
      %v9985 = vpack.c.b16 %v9741, %v9740
      %v9986 = vpack.c.b16 %v9743, %v9742
      %v9987 = vpack.c.b16 %v9745, %v9744
      %v9988 = vpack.c.b16 %v9747, %v9746
      %v9989 = vpack.c.b16 %v9749, %v9748
      %v9990 = vpack.c.b16 %v9751, %v9750
      %v9991 = vpack.c.b16 %v9753, %v9752
      %v9992 = vpack.c.b16 %v9755, %v9754
      %v9993 = vpack.c.b16 %v9757, %v9756
      %v9994 = vpack.c.b16 %v9759, %v9758
      %v9995 = vpack.c.b16 %v9761, %v9760
      %v9996 = vpack.c.b16 %v9763, %v9762
      %v9997 = vpack.c.b16 %v9765, %v9764
      %v9998 = vpack.c.b16 %v9767, %v9766
      %v9999 = vpack.c.b16 %v9769, %v9768
      %v10000 = vpack.c.b16 %v9771, %v9770
      %v10001 = vpack.c.b16 %v9773, %v9772
      %v10002 = vpack.c.b16 %v9775, %v9774
      %v10003 = vpack.c.b16 %v9777, %v9776
      %v10004 = vpack.c.b16 %v9779, %v9778
      %v10005 = vpack.c.b16 %v9781, %v9780
      %v10006 = vpack.c.b16 %v9783, %v9782
      %v10007 = vpack.c.b16 %v9785, %v9784
      %v10008 = vpack.c.b16 %v9787, %v9786
      %v10009 = vpack.c.b16 %v9789, %v9788
      %v10010 = vpack.c.b16 %v9791, %v9790
      %v10011 = vpack.c.b16 %v9793, %v9792
      %v10012 = vpack.c.b16 %v9795, %v9794
      %v10013 = vpack.c.b16 %v9797, %v9796
      %v10014 = vpack.c.b16 %v9799, %v9798
      %v10015 = vpack.c.b16 %v9801, %v9800
      %v10016 = vpack.c.b16 %v9803, %v9802
      %v10017 = vpack.c.b16 %v9805, %v9804
      %v10018 = vpack.c.b16 %v9807, %v9806
      %v10019 = vpack.c.b16 %v9809, %v9808
      %v10020 = vpack.c.b16 %v9811, %v9810
      %v10021 = vpack.c.b16 %v9813, %v9812
      %v10022 = vpack.c.b16 %v9815, %v9814
      %v10023 = vpack.c.b16 %v9817, %v9816
      %v10024 = vpack.c.b16 %v9819, %v9818
      %v10025 = vpack.c.b16 %v9821, %v9820
      %v10026 = vpack.c.b16 %v9823, %v9822
      %v10027 = vpack.c.b16 %v9825, %v9824
      %v10028 = vpack.c.b16 %v9827, %v9826
      %v10029 = vpack.c.b16 %v9829, %v9828
      %v10030 = vpack.c.b16 %v9831, %v9830
      %v10031 = vpack.c.b16 %v9833, %v9832
      %v10032 = vpack.c.b16 %v9835, %v9834
      %v10033 = vpack.c.b16 %v9837, %v9836
      %v10034 = vpack.c.b16 %v9839, %v9838
      %v10035 = vpack.c.b16 %v9841, %v9840
      %v10036 = vpack.c.b16 %v9843, %v9842
      %v10037 = vpack.c.b16 %v9845, %v9844
      %v10038 = vpack.c.b16 %v9847, %v9846
      %v10039 = vpack.c.b16 %v9849, %v9848
      %v10040 = vpack.c.b16 %v9851, %v9850
      %v10041 = vpack.c.b16 %v9853, %v9852
      %v10042 = vpack.c.b16 %v9855, %v9854
      %v10043 = vpack.c.b16 %v9857, %v9856
      %v10044 = vpack.c.b16 %v9859, %v9858
      %v10045 = vpack.c.b16 %v9861, %v9860
      %v10046 = vpack.c.b16 %v9863, %v9862
      %v10047 = vpack.c.b16 %v9865, %v9864
      %v10048 = vpack.c.b16 %v9867, %v9866
      %v10049 = vpack.c.b16 %v9869, %v9868
      %v10050 = vpack.c.b16 %v9871, %v9870
      %v10051 = vpack.c.b16 %v9873, %v9872
      %v10052 = vpack.c.b16 %v9875, %v9874
      %v10053 = vpack.c.b16 %v9877, %v9876
      %v10054 = vpack.c.b16 %v9879, %v9878
      %v10055 = vpack.c.b16 %v9881, %v9880
      %v10056 = vpack.c.b16 %v9883, %v9882
      %v10057 = vpack.c.b16 %v9885, %v9884
      %v10058 = vpack.c.b16 %v9887, %v9886
      %v10059 = vpack.c.b16 %v9889, %v9888
      %v10060 = vpack.c.b16 %v9891, %v9890
      %v10061 = vpack.c.b16 %v9893, %v9892
      %v10062 = vpack.c.b16 %v9895, %v9894
      %v10063 = vpack.c.b16 %v9897, %v9896
      %v10064 = vpack.c.b16 %v9899, %v9898
      %v10065 = vpack.c.b16 %v9901, %v9900
      %v10066 = vpack.c.b16 %v9903, %v9902
      %v10067 = vpack.c.b16 %v9905, %v9904
      %v10068 = vpack.c.b16 %v9907, %v9906
      %v10069 = vpack.c.b16 %v9909, %v9908
      %v10070 = vpack.c.b16 %v9911, %v9910
      %v10071 = vpack.c.b16 %v9913, %v9912
      %v10072 = vpack.c.b16 %v9915, %v9914
      %v10073 = vpack.c.b16 %v9917, %v9916
      %v10074 = vpack.c.b16 %v9919, %v9918
      %v10075 = vpack.c.b16 %v9921, %v9920
      %v10076 = vpack.c.b16 %v9923, %v9922
      %v10077 = vpack.c.b16 %v9925, %v9924
      %v10078 = vpack.c.b16 %v9927, %v9926
      %v10079 = vpack.c.b16 %v9929, %v9928
      %v10080 = vpack.c.b16 %v9931, %v9930
      %v10081 = vpack.c.b16 %v9933, %v9932
      %v10082 = vpack.c.b16 %v9935, %v9934
      %v10083 = vpack.c.b16 %v9937, %v9936
      %v10084 = vpack.c.b16 %v9939, %v9938
      %v10085 = vpack.c.b16 %v9941, %v9940
      %v10086 = vpack.c.b16 %v9943, %v9942
      %v10087 = vpack.c.b16 %v9945, %v9944
      %v10088 = vpack.c.b16 %v9947, %v9946
      %v10089 = vpack.c.b16 %v9949, %v9948
      %v10090 = vpack.c.b16 %v9951, %v9950
      %v10091 = vpack.c.b16 %v9953, %v9952
      %v10092 = vpack.c.b16 %v9955, %v9954
      %v10093 = vpack.c.b16 %v9957, %v9956
      %v10094 = vpack.c.b16 %v9959, %v9958
      %v10095 = vpack.c.b16 %v9961, %v9960
      %v10096 = vpack.c.b16 %v9963, %v9962
      %v10097 = vpack.c.b16 %v9965, %v9964
      %v10098 = vpack.c.b16 %v9967, %v9966
      %v10099 = vpack.c.b16 %v9969, %v9968
      %v10100 = vpack.c.b16 %v9971, %v9970
      %v10101 = vpack.c.b16 %v9973, %v9972
      %10230 = vmatprep.subr.bf16.mxu0 0
      %10231 = vmatpush1.bf16.msra.mxu0 %v9981
      %10232 = vmatprep.subr.bf16.mxu0 0
      %10233 = vmatpush1.bf16.msra.mxu0 %v9980
      %10234 = vmatprep.subr.bf16.mxu0 0
      %10235 = vmatpush1.bf16.msra.mxu0 %v9979
      %10236 = vmatprep.subr.bf16.mxu0 0
      %10237 = vmatpush1.bf16.msra.mxu0 %v9978
      %10238 = vmatprep.subr.bf16.mxu0 0
      %10239 = vmatpush1.bf16.msra.mxu0 %v9977
      %10240 = vmatprep.subr.bf16.mxu0 0
      %10241 = vmatpush1.bf16.msra.mxu0 %v9976
      %10242 = vmatprep.subr.bf16.mxu0 0
      %10243 = vmatpush1.bf16.msra.mxu0 %v9975
      %10244 = vmatprep.subr.bf16.mxu0 0
      %10245 = vmatpush1.bf16.msra.mxu0 %v9974
      %10246 = vmatprep.subr.bf16.mxu0 0
      %10247 = vmatpush2.bf16.msra.mxu0 %v9989
      %10248 = vmatprep.subr.bf16.mxu0 0
      %10249 = vmatpush2.bf16.msra.mxu0 %v9988
      %10250 = vmatprep.subr.bf16.mxu0 0
      %10251 = vmatpush2.bf16.msra.mxu0 %v9987
      %10252 = vmatprep.subr.bf16.mxu0 0
      %10253 = vmatpush2.bf16.msra.mxu0 %v9986
      %10254 = vmatprep.subr.bf16.mxu0 0
      %10255 = vmatpush2.bf16.msra.mxu0 %v9985
      %10256 = vmatprep.subr.bf16.mxu0 0
      %10257 = vmatpush2.bf16.msra.mxu0 %v9984
      %10258 = vmatprep.subr.bf16.mxu0 0
      %10259 = vmatpush2.bf16.msra.mxu0 %v9983
      %10260 = vmatprep.subr.bf16.mxu0 0
      %10261 = vmatpush2.bf16.msra.mxu0 %v9982
      %10262 = vmatprep.mubr.bf16.mxu0 %v9072
      %10263 = vmatmul.mubr.bf16.gmra.mxu0 %v9071
      %v10264 = vpop.f32.mrf.mxu0
      %v10265 = vadd.f32 %v9460, %v10264
      %v10266 = vpop.f32.mrf.mxu0
      %v10267 = vpop.f32.mrf.mxu0
      %v10268 = vadd.f32 %v9460, %v10267
      %v10269 = vpop.f32.mrf.mxu0
      %10270 = vmatprep.mubr.bf16.mxu0 %v9088
      %10271 = vmatmul.mubr.bf16.gmra.mxu0 %v9087
      %v10272 = vpop.f32.mrf.mxu0
      %v10273 = vadd.f32 %v9460, %v10272
      %v10274 = vpop.f32.mrf.mxu0
      %v10275 = vpop.f32.mrf.mxu0
      %v10276 = vadd.f32 %v9460, %v10275
      %v10277 = vpop.f32.mrf.mxu0
      %10278 = vmatprep.mubr.bf16.mxu0 %v9104
      %10279 = vmatmul.mubr.bf16.gmra.mxu0 %v9103
      %v10280 = vpop.f32.mrf.mxu0
      %v10281 = vadd.f32 %v9460, %v10280
      %v10282 = vpop.f32.mrf.mxu0
      %v10283 = vpop.f32.mrf.mxu0
      %v10284 = vadd.f32 %v9460, %v10283
      %v10285 = vpop.f32.mrf.mxu0
      %10286 = vmatprep.mubr.bf16.mxu0 %v9120
      %10287 = vmatmul.mubr.bf16.gmra.mxu0 %v9119
      %v10288 = vpop.f32.mrf.mxu0
      %v10289 = vadd.f32 %v9460, %v10288
      %v10290 = vpop.f32.mrf.mxu0
      %v10291 = vpop.f32.mrf.mxu0
      %v10292 = vadd.f32 %v9460, %v10291
      %v10293 = vpop.f32.mrf.mxu0
      %10294 = vmatprep.mubr.bf16.mxu0 %v9136
      %10295 = vmatmul.mubr.bf16.gmra.mxu0 %v9135
      %v10296 = vpop.f32.mrf.mxu0
      %v10297 = vadd.f32 %v9460, %v10296
      %v10298 = vpop.f32.mrf.mxu0
      %v10299 = vpop.f32.mrf.mxu0
      %v10300 = vadd.f32 %v9460, %v10299
      %v10301 = vpop.f32.mrf.mxu0
      %10302 = vmatprep.mubr.bf16.mxu0 %v9152
      %10303 = vmatmul.mubr.bf16.gmra.mxu0 %v9151
      %v10304 = vpop.f32.mrf.mxu0
      %v10305 = vadd.f32 %v9460, %v10304
      %v10306 = vpop.f32.mrf.mxu0
      %v10307 = vpop.f32.mrf.mxu0
      %v10308 = vadd.f32 %v9460, %v10307
      %v10309 = vpop.f32.mrf.mxu0
      %10310 = vmatprep.mubr.bf16.mxu0 %v9168
      %10311 = vmatmul.mubr.bf16.gmra.mxu0 %v9167
      %v10312 = vpop.f32.mrf.mxu0
      %v10313 = vadd.f32 %v9460, %v10312
      %v10314 = vpop.f32.mrf.mxu0
      %v10315 = vpop.f32.mrf.mxu0
      %v10316 = vadd.f32 %v9460, %v10315
      %v10317 = vpop.f32.mrf.mxu0
      %10318 = vmatprep.mubr.bf16.mxu0 %v9184
      %10319 = vmatmul.mubr.bf16.gmra.mxu0 %v9183
      %v10320 = vpop.f32.mrf.mxu0
      %v10321 = vadd.f32 %v9460, %v10320
      %v10322 = vpop.f32.mrf.mxu0
      %v10323 = vpop.f32.mrf.mxu0
      %v10324 = vadd.f32 %v9460, %v10323
      %v10325 = vpop.f32.mrf.mxu0
      %10326 = vdwg.mxu0
      %10327 = vmatprep.subr.bf16.mxu0 0
      %10328 = vmatpush1.bf16.msra.mxu0 %v9997
      %10329 = vmatprep.subr.bf16.mxu0 0
      %10330 = vmatpush1.bf16.msra.mxu0 %v9996
      %10331 = vmatprep.subr.bf16.mxu0 0
      %10332 = vmatpush1.bf16.msra.mxu0 %v9995
      %10333 = vmatprep.subr.bf16.mxu0 0
      %10334 = vmatpush1.bf16.msra.mxu0 %v9994
      %10335 = vmatprep.subr.bf16.mxu0 0
      %10336 = vmatpush1.bf16.msra.mxu0 %v9993
      %10337 = vmatprep.subr.bf16.mxu0 0
      %10338 = vmatpush1.bf16.msra.mxu0 %v9992
      %10339 = vmatprep.subr.bf16.mxu0 0
      %10340 = vmatpush1.bf16.msra.mxu0 %v9991
      %10341 = vmatprep.subr.bf16.mxu0 0
      %10342 = vmatpush1.bf16.msra.mxu0 %v9990
      %10343 = vmatprep.subr.bf16.mxu0 0
      %10344 = vmatpush2.bf16.msra.mxu0 %v10005
      %10345 = vmatprep.subr.bf16.mxu0 0
      %10346 = vmatpush2.bf16.msra.mxu0 %v10004
      %10347 = vmatprep.subr.bf16.mxu0 0
      %10348 = vmatpush2.bf16.msra.mxu0 %v10003
      %10349 = vmatprep.subr.bf16.mxu0 0
      %10350 = vmatpush2.bf16.msra.mxu0 %v10002
      %10351 = vmatprep.subr.bf16.mxu0 0
      %10352 = vmatpush2.bf16.msra.mxu0 %v10001
      %10353 = vmatprep.subr.bf16.mxu0 0
      %10354 = vmatpush2.bf16.msra.mxu0 %v10000
      %10355 = vmatprep.subr.bf16.mxu0 0
      %10356 = vmatpush2.bf16.msra.mxu0 %v9999
      %10357 = vmatprep.subr.bf16.mxu0 0
      %10358 = vmatpush2.bf16.msra.mxu0 %v9998
      %10359 = vmatprep.mubr.bf16.mxu0 %v9074
      %10360 = vmatmul.mubr.bf16.gmra.mxu0 %v9073
      %v10361 = vpop.f32.mrf.mxu0
      %v10362 = vadd.f32 %v10265, %v10361
      %v10363 = vpop.f32.mrf.mxu0
      %v10364 = vpop.f32.mrf.mxu0
      %v10365 = vadd.f32 %v10268, %v10364
      %v10366 = vpop.f32.mrf.mxu0
      %10367 = vmatprep.mubr.bf16.mxu0 %v9090
      %10368 = vmatmul.mubr.bf16.gmra.mxu0 %v9089
      %v10369 = vpop.f32.mrf.mxu0
      %v10370 = vadd.f32 %v10273, %v10369
      %v10371 = vpop.f32.mrf.mxu0
      %v10372 = vpop.f32.mrf.mxu0
      %v10373 = vadd.f32 %v10276, %v10372
      %v10374 = vpop.f32.mrf.mxu0
      %10375 = vmatprep.mubr.bf16.mxu0 %v9106
      %10376 = vmatmul.mubr.bf16.gmra.mxu0 %v9105
      %v10377 = vpop.f32.mrf.mxu0
      %v10378 = vadd.f32 %v10281, %v10377
      %v10379 = vpop.f32.mrf.mxu0
      %v10380 = vpop.f32.mrf.mxu0
      %v10381 = vadd.f32 %v10284, %v10380
      %v10382 = vpop.f32.mrf.mxu0
      %10383 = vmatprep.mubr.bf16.mxu0 %v9122
      %10384 = vmatmul.mubr.bf16.gmra.mxu0 %v9121
      %v10385 = vpop.f32.mrf.mxu0
      %v10386 = vadd.f32 %v10289, %v10385
      %v10387 = vpop.f32.mrf.mxu0
      %v10388 = vpop.f32.mrf.mxu0
      %v10389 = vadd.f32 %v10292, %v10388
      %v10390 = vpop.f32.mrf.mxu0
      %10391 = vmatprep.mubr.bf16.mxu0 %v9138
      %10392 = vmatmul.mubr.bf16.gmra.mxu0 %v9137
      %v10393 = vpop.f32.mrf.mxu0
      %v10394 = vadd.f32 %v10297, %v10393
      %v10395 = vpop.f32.mrf.mxu0
      %v10396 = vpop.f32.mrf.mxu0
      %v10397 = vadd.f32 %v10300, %v10396
      %v10398 = vpop.f32.mrf.mxu0
      %10399 = vmatprep.mubr.bf16.mxu0 %v9154
      %10400 = vmatmul.mubr.bf16.gmra.mxu0 %v9153
      %v10401 = vpop.f32.mrf.mxu0
      %v10402 = vadd.f32 %v10305, %v10401
      %v10403 = vpop.f32.mrf.mxu0
      %v10404 = vpop.f32.mrf.mxu0
      %v10405 = vadd.f32 %v10308, %v10404
      %v10406 = vpop.f32.mrf.mxu0
      %10407 = vmatprep.mubr.bf16.mxu0 %v9170
      %10408 = vmatmul.mubr.bf16.gmra.mxu0 %v9169
      %v10409 = vpop.f32.mrf.mxu0
      %v10410 = vadd.f32 %v10313, %v10409
      %v10411 = vpop.f32.mrf.mxu0
      %v10412 = vpop.f32.mrf.mxu0
      %v10413 = vadd.f32 %v10316, %v10412
      %v10414 = vpop.f32.mrf.mxu0
      %10415 = vmatprep.mubr.bf16.mxu0 %v9186
      %10416 = vmatmul.mubr.bf16.gmra.mxu0 %v9185
      %v10417 = vpop.f32.mrf.mxu0
      %v10418 = vadd.f32 %v10321, %v10417
      %v10419 = vpop.f32.mrf.mxu0
      %v10420 = vpop.f32.mrf.mxu0
      %v10421 = vadd.f32 %v10324, %v10420
      %v10422 = vpop.f32.mrf.mxu0
      %10423 = vdwg.mxu0
      %10424 = vmatprep.subr.bf16.mxu0 0
      %10425 = vmatpush1.bf16.msra.mxu0 %v10013
      %10426 = vmatprep.subr.bf16.mxu0 0
      %10427 = vmatpush1.bf16.msra.mxu0 %v10012
      %10428 = vmatprep.subr.bf16.mxu0 0
      %10429 = vmatpush1.bf16.msra.mxu0 %v10011
      %10430 = vmatprep.subr.bf16.mxu0 0
      %10431 = vmatpush1.bf16.msra.mxu0 %v10010
      %10432 = vmatprep.subr.bf16.mxu0 0
      %10433 = vmatpush1.bf16.msra.mxu0 %v10009
      %10434 = vmatprep.subr.bf16.mxu0 0
      %10435 = vmatpush1.bf16.msra.mxu0 %v10008
      %10436 = vmatprep.subr.bf16.mxu0 0
      %10437 = vmatpush1.bf16.msra.mxu0 %v10007
      %10438 = vmatprep.subr.bf16.mxu0 0
      %10439 = vmatpush1.bf16.msra.mxu0 %v10006
      %10440 = vmatprep.subr.bf16.mxu0 0
      %10441 = vmatpush2.bf16.msra.mxu0 %v10021
      %10442 = vmatprep.subr.bf16.mxu0 0
      %10443 = vmatpush2.bf16.msra.mxu0 %v10020
      %10444 = vmatprep.subr.bf16.mxu0 0
      %10445 = vmatpush2.bf16.msra.mxu0 %v10019
      %10446 = vmatprep.subr.bf16.mxu0 0
      %10447 = vmatpush2.bf16.msra.mxu0 %v10018
      %10448 = vmatprep.subr.bf16.mxu0 0
      %10449 = vmatpush2.bf16.msra.mxu0 %v10017
      %10450 = vmatprep.subr.bf16.mxu0 0
      %10451 = vmatpush2.bf16.msra.mxu0 %v10016
      %10452 = vmatprep.subr.bf16.mxu0 0
      %10453 = vmatpush2.bf16.msra.mxu0 %v10015
      %10454 = vmatprep.subr.bf16.mxu0 0
      %10455 = vmatpush2.bf16.msra.mxu0 %v10014
      %10456 = vmatprep.mubr.bf16.mxu0 %v9076
      %10457 = vmatmul.mubr.bf16.gmra.mxu0 %v9075
      %v10458 = vpop.f32.mrf.mxu0
      %v10459 = vadd.f32 %v10362, %v10458
      %v10460 = vpop.f32.mrf.mxu0
      %v10461 = vpop.f32.mrf.mxu0
      %v10462 = vadd.f32 %v10365, %v10461
      %v10463 = vpop.f32.mrf.mxu0
      %10464 = vmatprep.mubr.bf16.mxu0 %v9092
      %10465 = vmatmul.mubr.bf16.gmra.mxu0 %v9091
      %v10466 = vpop.f32.mrf.mxu0
      %v10467 = vadd.f32 %v10370, %v10466
      %v10468 = vpop.f32.mrf.mxu0
      %v10469 = vpop.f32.mrf.mxu0
      %v10470 = vadd.f32 %v10373, %v10469
      %v10471 = vpop.f32.mrf.mxu0
      %10472 = vmatprep.mubr.bf16.mxu0 %v9108
      %10473 = vmatmul.mubr.bf16.gmra.mxu0 %v9107
      %v10474 = vpop.f32.mrf.mxu0
      %v10475 = vadd.f32 %v10378, %v10474
      %v10476 = vpop.f32.mrf.mxu0
      %v10477 = vpop.f32.mrf.mxu0
      %v10478 = vadd.f32 %v10381, %v10477
      %v10479 = vpop.f32.mrf.mxu0
      %10480 = vmatprep.mubr.bf16.mxu0 %v9124
      %10481 = vmatmul.mubr.bf16.gmra.mxu0 %v9123
      %v10482 = vpop.f32.mrf.mxu0
      %v10483 = vadd.f32 %v10386, %v10482
      %v10484 = vpop.f32.mrf.mxu0
      %v10485 = vpop.f32.mrf.mxu0
      %v10486 = vadd.f32 %v10389, %v10485
      %v10487 = vpop.f32.mrf.mxu0
      %10488 = vmatprep.mubr.bf16.mxu0 %v9140
      %10489 = vmatmul.mubr.bf16.gmra.mxu0 %v9139
      %v10490 = vpop.f32.mrf.mxu0
      %v10491 = vadd.f32 %v10394, %v10490
      %v10492 = vpop.f32.mrf.mxu0
      %v10493 = vpop.f32.mrf.mxu0
      %v10494 = vadd.f32 %v10397, %v10493
      %v10495 = vpop.f32.mrf.mxu0
      %10496 = vmatprep.mubr.bf16.mxu0 %v9156
      %10497 = vmatmul.mubr.bf16.gmra.mxu0 %v9155
      %v10498 = vpop.f32.mrf.mxu0
      %v10499 = vadd.f32 %v10402, %v10498
      %v10500 = vpop.f32.mrf.mxu0
      %v10501 = vpop.f32.mrf.mxu0
      %v10502 = vadd.f32 %v10405, %v10501
      %v10503 = vpop.f32.mrf.mxu0
      %10504 = vmatprep.mubr.bf16.mxu0 %v9172
      %10505 = vmatmul.mubr.bf16.gmra.mxu0 %v9171
      %v10506 = vpop.f32.mrf.mxu0
      %v10507 = vadd.f32 %v10410, %v10506
      %v10508 = vpop.f32.mrf.mxu0
      %v10509 = vpop.f32.mrf.mxu0
      %v10510 = vadd.f32 %v10413, %v10509
      %v10511 = vpop.f32.mrf.mxu0
      %10512 = vmatprep.mubr.bf16.mxu0 %v9188
      %10513 = vmatmul.mubr.bf16.gmra.mxu0 %v9187
      %v10514 = vpop.f32.mrf.mxu0
      %v10515 = vadd.f32 %v10418, %v10514
      %v10516 = vpop.f32.mrf.mxu0
      %v10517 = vpop.f32.mrf.mxu0
      %v10518 = vadd.f32 %v10421, %v10517
      %v10519 = vpop.f32.mrf.mxu0
      %10520 = vdwg.mxu0
      %10521 = vmatprep.subr.bf16.mxu0 0
      %10522 = vmatpush1.bf16.msra.mxu0 %v10029
      %10523 = vmatprep.subr.bf16.mxu0 0
      %10524 = vmatpush1.bf16.msra.mxu0 %v10028
      %10525 = vmatprep.subr.bf16.mxu0 0
      %10526 = vmatpush1.bf16.msra.mxu0 %v10027
      %10527 = vmatprep.subr.bf16.mxu0 0
      %10528 = vmatpush1.bf16.msra.mxu0 %v10026
      %10529 = vmatprep.subr.bf16.mxu0 0
      %10530 = vmatpush1.bf16.msra.mxu0 %v10025
      %10531 = vmatprep.subr.bf16.mxu0 0
      %10532 = vmatpush1.bf16.msra.mxu0 %v10024
      %10533 = vmatprep.subr.bf16.mxu0 0
      %10534 = vmatpush1.bf16.msra.mxu0 %v10023
      %10535 = vmatprep.subr.bf16.mxu0 0
      %10536 = vmatpush1.bf16.msra.mxu0 %v10022
      %10537 = vmatprep.subr.bf16.mxu0 0
      %10538 = vmatpush2.bf16.msra.mxu0 %v10037
      %10539 = vmatprep.subr.bf16.mxu0 0
      %10540 = vmatpush2.bf16.msra.mxu0 %v10036
      %10541 = vmatprep.subr.bf16.mxu0 0
      %10542 = vmatpush2.bf16.msra.mxu0 %v10035
      %10543 = vmatprep.subr.bf16.mxu0 0
      %10544 = vmatpush2.bf16.msra.mxu0 %v10034
      %10545 = vmatprep.subr.bf16.mxu0 0
      %10546 = vmatpush2.bf16.msra.mxu0 %v10033
      %10547 = vmatprep.subr.bf16.mxu0 0
      %10548 = vmatpush2.bf16.msra.mxu0 %v10032
      %10549 = vmatprep.subr.bf16.mxu0 0
      %10550 = vmatpush2.bf16.msra.mxu0 %v10031
      %10551 = vmatprep.subr.bf16.mxu0 0
      %10552 = vmatpush2.bf16.msra.mxu0 %v10030
      %10553 = vmatprep.mubr.bf16.mxu0 %v9078
      %10554 = vmatmul.mubr.bf16.gmra.mxu0 %v9077
      %v10555 = vpop.f32.mrf.mxu0
      %v10556 = vadd.f32 %v10459, %v10555
      %v10557 = vpop.f32.mrf.mxu0
      %v10558 = vpop.f32.mrf.mxu0
      %v10559 = vadd.f32 %v10462, %v10558
      %v10560 = vpop.f32.mrf.mxu0
      %10561 = vmatprep.mubr.bf16.mxu0 %v9094
      %10562 = vmatmul.mubr.bf16.gmra.mxu0 %v9093
      %v10563 = vpop.f32.mrf.mxu0
      %v10564 = vadd.f32 %v10467, %v10563
      %v10565 = vpop.f32.mrf.mxu0
      %v10566 = vpop.f32.mrf.mxu0
      %v10567 = vadd.f32 %v10470, %v10566
      %v10568 = vpop.f32.mrf.mxu0
      %10569 = vmatprep.mubr.bf16.mxu0 %v9110
      %10570 = vmatmul.mubr.bf16.gmra.mxu0 %v9109
      %v10571 = vpop.f32.mrf.mxu0
      %v10572 = vadd.f32 %v10475, %v10571
      %v10573 = vpop.f32.mrf.mxu0
      %v10574 = vpop.f32.mrf.mxu0
      %v10575 = vadd.f32 %v10478, %v10574
      %v10576 = vpop.f32.mrf.mxu0
      %10577 = vmatprep.mubr.bf16.mxu0 %v9126
      %10578 = vmatmul.mubr.bf16.gmra.mxu0 %v9125
      %v10579 = vpop.f32.mrf.mxu0
      %v10580 = vadd.f32 %v10483, %v10579
      %v10581 = vpop.f32.mrf.mxu0
      %v10582 = vpop.f32.mrf.mxu0
      %v10583 = vadd.f32 %v10486, %v10582
      %v10584 = vpop.f32.mrf.mxu0
      %10585 = vmatprep.mubr.bf16.mxu0 %v9142
      %10586 = vmatmul.mubr.bf16.gmra.mxu0 %v9141
      %v10587 = vpop.f32.mrf.mxu0
      %v10588 = vadd.f32 %v10491, %v10587
      %v10589 = vpop.f32.mrf.mxu0
      %v10590 = vpop.f32.mrf.mxu0
      %v10591 = vadd.f32 %v10494, %v10590
      %v10592 = vpop.f32.mrf.mxu0
      %10593 = vmatprep.mubr.bf16.mxu0 %v9158
      %10594 = vmatmul.mubr.bf16.gmra.mxu0 %v9157
      %v10595 = vpop.f32.mrf.mxu0
      %v10596 = vadd.f32 %v10499, %v10595
      %v10597 = vpop.f32.mrf.mxu0
      %v10598 = vpop.f32.mrf.mxu0
      %v10599 = vadd.f32 %v10502, %v10598
      %v10600 = vpop.f32.mrf.mxu0
      %10601 = vmatprep.mubr.bf16.mxu0 %v9174
      %10602 = vmatmul.mubr.bf16.gmra.mxu0 %v9173
      %v10603 = vpop.f32.mrf.mxu0
      %v10604 = vadd.f32 %v10507, %v10603
      %v10605 = vpop.f32.mrf.mxu0
      %v10606 = vpop.f32.mrf.mxu0
      %v10607 = vadd.f32 %v10510, %v10606
      %v10608 = vpop.f32.mrf.mxu0
      %10609 = vmatprep.mubr.bf16.mxu0 %v9190
      %10610 = vmatmul.mubr.bf16.gmra.mxu0 %v9189
      %v10611 = vpop.f32.mrf.mxu0
      %v10612 = vadd.f32 %v10515, %v10611
      %v10613 = vpop.f32.mrf.mxu0
      %v10614 = vpop.f32.mrf.mxu0
      %v10615 = vadd.f32 %v10518, %v10614
      %v10616 = vpop.f32.mrf.mxu0
      %10617 = vdwg.mxu0
      %10618 = vmatprep.subr.bf16.mxu0 0
      %10619 = vmatpush1.bf16.msra.mxu0 %v10045
      %10620 = vmatprep.subr.bf16.mxu0 0
      %10621 = vmatpush1.bf16.msra.mxu0 %v10044
      %10622 = vmatprep.subr.bf16.mxu0 0
      %10623 = vmatpush1.bf16.msra.mxu0 %v10043
      %10624 = vmatprep.subr.bf16.mxu0 0
      %10625 = vmatpush1.bf16.msra.mxu0 %v10042
      %10626 = vmatprep.subr.bf16.mxu0 0
      %10627 = vmatpush1.bf16.msra.mxu0 %v10041
      %10628 = vmatprep.subr.bf16.mxu0 0
      %10629 = vmatpush1.bf16.msra.mxu0 %v10040
      %10630 = vmatprep.subr.bf16.mxu0 0
      %10631 = vmatpush1.bf16.msra.mxu0 %v10039
      %10632 = vmatprep.subr.bf16.mxu0 0
      %10633 = vmatpush1.bf16.msra.mxu0 %v10038
      %10634 = vmatprep.subr.bf16.mxu0 0
      %10635 = vmatpush2.bf16.msra.mxu0 %v10053
      %10636 = vmatprep.subr.bf16.mxu0 0
      %10637 = vmatpush2.bf16.msra.mxu0 %v10052
      %10638 = vmatprep.subr.bf16.mxu0 0
      %10639 = vmatpush2.bf16.msra.mxu0 %v10051
      %10640 = vmatprep.subr.bf16.mxu0 0
      %10641 = vmatpush2.bf16.msra.mxu0 %v10050
      %10642 = vmatprep.subr.bf16.mxu0 0
      %10643 = vmatpush2.bf16.msra.mxu0 %v10049
      %10644 = vmatprep.subr.bf16.mxu0 0
      %10645 = vmatpush2.bf16.msra.mxu0 %v10048
      %10646 = vmatprep.subr.bf16.mxu0 0
      %10647 = vmatpush2.bf16.msra.mxu0 %v10047
      %10648 = vmatprep.subr.bf16.mxu0 0
      %10649 = vmatpush2.bf16.msra.mxu0 %v10046
      %10650 = vmatprep.mubr.bf16.mxu0 %v9080
      %10651 = vmatmul.mubr.bf16.gmra.mxu0 %v9079
      %v10652 = vpop.f32.mrf.mxu0
      %v10653 = vadd.f32 %v10556, %v10652
      %v10654 = vpop.f32.mrf.mxu0
      %v10655 = vpop.f32.mrf.mxu0
      %v10656 = vadd.f32 %v10559, %v10655
      %v10657 = vpop.f32.mrf.mxu0
      %10658 = vmatprep.mubr.bf16.mxu0 %v9096
      %10659 = vmatmul.mubr.bf16.gmra.mxu0 %v9095
      %v10660 = vpop.f32.mrf.mxu0
      %v10661 = vadd.f32 %v10564, %v10660
      %v10662 = vpop.f32.mrf.mxu0
      %v10663 = vpop.f32.mrf.mxu0
      %v10664 = vadd.f32 %v10567, %v10663
      %v10665 = vpop.f32.mrf.mxu0
      %10666 = vmatprep.mubr.bf16.mxu0 %v9112
      %10667 = vmatmul.mubr.bf16.gmra.mxu0 %v9111
      %v10668 = vpop.f32.mrf.mxu0
      %v10669 = vadd.f32 %v10572, %v10668
      %v10670 = vpop.f32.mrf.mxu0
      %v10671 = vpop.f32.mrf.mxu0
      %v10672 = vadd.f32 %v10575, %v10671
      %v10673 = vpop.f32.mrf.mxu0
      %10674 = vmatprep.mubr.bf16.mxu0 %v9128
      %10675 = vmatmul.mubr.bf16.gmra.mxu0 %v9127
      %v10676 = vpop.f32.mrf.mxu0
      %v10677 = vadd.f32 %v10580, %v10676
      %v10678 = vpop.f32.mrf.mxu0
      %v10679 = vpop.f32.mrf.mxu0
      %v10680 = vadd.f32 %v10583, %v10679
      %v10681 = vpop.f32.mrf.mxu0
      %10682 = vmatprep.mubr.bf16.mxu0 %v9144
      %10683 = vmatmul.mubr.bf16.gmra.mxu0 %v9143
      %v10684 = vpop.f32.mrf.mxu0
      %v10685 = vadd.f32 %v10588, %v10684
      %v10686 = vpop.f32.mrf.mxu0
      %v10687 = vpop.f32.mrf.mxu0
      %v10688 = vadd.f32 %v10591, %v10687
      %v10689 = vpop.f32.mrf.mxu0
      %10690 = vmatprep.mubr.bf16.mxu0 %v9160
      %10691 = vmatmul.mubr.bf16.gmra.mxu0 %v9159
      %v10692 = vpop.f32.mrf.mxu0
      %v10693 = vadd.f32 %v10596, %v10692
      %v10694 = vpop.f32.mrf.mxu0
      %v10695 = vpop.f32.mrf.mxu0
      %v10696 = vadd.f32 %v10599, %v10695
      %v10697 = vpop.f32.mrf.mxu0
      %10698 = vmatprep.mubr.bf16.mxu0 %v9176
      %10699 = vmatmul.mubr.bf16.gmra.mxu0 %v9175
      %v10700 = vpop.f32.mrf.mxu0
      %v10701 = vadd.f32 %v10604, %v10700
      %v10702 = vpop.f32.mrf.mxu0
      %v10703 = vpop.f32.mrf.mxu0
      %v10704 = vadd.f32 %v10607, %v10703
      %v10705 = vpop.f32.mrf.mxu0
      %10706 = vmatprep.mubr.bf16.mxu0 %v9192
      %10707 = vmatmul.mubr.bf16.gmra.mxu0 %v9191
      %v10708 = vpop.f32.mrf.mxu0
      %v10709 = vadd.f32 %v10612, %v10708
      %v10710 = vpop.f32.mrf.mxu0
      %v10711 = vpop.f32.mrf.mxu0
      %v10712 = vadd.f32 %v10615, %v10711
      %v10713 = vpop.f32.mrf.mxu0
      %10714 = vdwg.mxu0
      %10715 = vmatprep.subr.bf16.mxu0 0
      %10716 = vmatpush1.bf16.msra.mxu0 %v10061
      %10717 = vmatprep.subr.bf16.mxu0 0
      %10718 = vmatpush1.bf16.msra.mxu0 %v10060
      %10719 = vmatprep.subr.bf16.mxu0 0
      %10720 = vmatpush1.bf16.msra.mxu0 %v10059
      %10721 = vmatprep.subr.bf16.mxu0 0
      %10722 = vmatpush1.bf16.msra.mxu0 %v10058
      %10723 = vmatprep.subr.bf16.mxu0 0
      %10724 = vmatpush1.bf16.msra.mxu0 %v10057
      %10725 = vmatprep.subr.bf16.mxu0 0
      %10726 = vmatpush1.bf16.msra.mxu0 %v10056
      %10727 = vmatprep.subr.bf16.mxu0 0
      %10728 = vmatpush1.bf16.msra.mxu0 %v10055
      %10729 = vmatprep.subr.bf16.mxu0 0
      %10730 = vmatpush1.bf16.msra.mxu0 %v10054
      %10731 = vmatprep.subr.bf16.mxu0 0
      %10732 = vmatpush2.bf16.msra.mxu0 %v10069
      %10733 = vmatprep.subr.bf16.mxu0 0
      %10734 = vmatpush2.bf16.msra.mxu0 %v10068
      %10735 = vmatprep.subr.bf16.mxu0 0
      %10736 = vmatpush2.bf16.msra.mxu0 %v10067
      %10737 = vmatprep.subr.bf16.mxu0 0
      %10738 = vmatpush2.bf16.msra.mxu0 %v10066
      %10739 = vmatprep.subr.bf16.mxu0 0
      %10740 = vmatpush2.bf16.msra.mxu0 %v10065
      %10741 = vmatprep.subr.bf16.mxu0 0
      %10742 = vmatpush2.bf16.msra.mxu0 %v10064
      %10743 = vmatprep.subr.bf16.mxu0 0
      %10744 = vmatpush2.bf16.msra.mxu0 %v10063
      %10745 = vmatprep.subr.bf16.mxu0 0
      %10746 = vmatpush2.bf16.msra.mxu0 %v10062
      %10747 = vmatprep.mubr.bf16.mxu0 %v9082
      %10748 = vmatmul.mubr.bf16.gmra.mxu0 %v9081
      %v10749 = vpop.f32.mrf.mxu0
      %v10750 = vadd.f32 %v10653, %v10749
      %v10751 = vpop.f32.mrf.mxu0
      %v10752 = vpop.f32.mrf.mxu0
      %v10753 = vadd.f32 %v10656, %v10752
      %v10754 = vpop.f32.mrf.mxu0
      %10755 = vmatprep.mubr.bf16.mxu0 %v9098
      %10756 = vmatmul.mubr.bf16.gmra.mxu0 %v9097
      %v10757 = vpop.f32.mrf.mxu0
      %v10758 = vadd.f32 %v10661, %v10757
      %v10759 = vpop.f32.mrf.mxu0
      %v10760 = vpop.f32.mrf.mxu0
      %v10761 = vadd.f32 %v10664, %v10760
      %v10762 = vpop.f32.mrf.mxu0
      %10763 = vmatprep.mubr.bf16.mxu0 %v9114
      %10764 = vmatmul.mubr.bf16.gmra.mxu0 %v9113
      %v10765 = vpop.f32.mrf.mxu0
      %v10766 = vadd.f32 %v10669, %v10765
      %v10767 = vpop.f32.mrf.mxu0
      %v10768 = vpop.f32.mrf.mxu0
      %v10769 = vadd.f32 %v10672, %v10768
      %v10770 = vpop.f32.mrf.mxu0
      %10771 = vmatprep.mubr.bf16.mxu0 %v9130
      %10772 = vmatmul.mubr.bf16.gmra.mxu0 %v9129
      %v10773 = vpop.f32.mrf.mxu0
      %v10774 = vadd.f32 %v10677, %v10773
      %v10775 = vpop.f32.mrf.mxu0
      %v10776 = vpop.f32.mrf.mxu0
      %v10777 = vadd.f32 %v10680, %v10776
      %v10778 = vpop.f32.mrf.mxu0
      %10779 = vmatprep.mubr.bf16.mxu0 %v9146
      %10780 = vmatmul.mubr.bf16.gmra.mxu0 %v9145
      %v10781 = vpop.f32.mrf.mxu0
      %v10782 = vadd.f32 %v10685, %v10781
      %v10783 = vpop.f32.mrf.mxu0
      %v10784 = vpop.f32.mrf.mxu0
      %v10785 = vadd.f32 %v10688, %v10784
      %v10786 = vpop.f32.mrf.mxu0
      %10787 = vmatprep.mubr.bf16.mxu0 %v9162
      %10788 = vmatmul.mubr.bf16.gmra.mxu0 %v9161
      %v10789 = vpop.f32.mrf.mxu0
      %v10790 = vadd.f32 %v10693, %v10789
      %v10791 = vpop.f32.mrf.mxu0
      %v10792 = vpop.f32.mrf.mxu0
      %v10793 = vadd.f32 %v10696, %v10792
      %v10794 = vpop.f32.mrf.mxu0
      %10795 = vmatprep.mubr.bf16.mxu0 %v9178
      %10796 = vmatmul.mubr.bf16.gmra.mxu0 %v9177
      %v10797 = vpop.f32.mrf.mxu0
      %v10798 = vadd.f32 %v10701, %v10797
      %v10799 = vpop.f32.mrf.mxu0
      %v10800 = vpop.f32.mrf.mxu0
      %v10801 = vadd.f32 %v10704, %v10800
      %v10802 = vpop.f32.mrf.mxu0
      %10803 = vmatprep.mubr.bf16.mxu0 %v9194
      %10804 = vmatmul.mubr.bf16.gmra.mxu0 %v9193
      %v10805 = vpop.f32.mrf.mxu0
      %v10806 = vadd.f32 %v10709, %v10805
      %v10807 = vpop.f32.mrf.mxu0
      %v10808 = vpop.f32.mrf.mxu0
      %v10809 = vadd.f32 %v10712, %v10808
      %v10810 = vpop.f32.mrf.mxu0
      %10811 = vdwg.mxu0
      %10812 = vmatprep.subr.bf16.mxu0 0
      %10813 = vmatpush1.bf16.msra.mxu0 %v10077
      %10814 = vmatprep.subr.bf16.mxu0 0
      %10815 = vmatpush1.bf16.msra.mxu0 %v10076
      %10816 = vmatprep.subr.bf16.mxu0 0
      %10817 = vmatpush1.bf16.msra.mxu0 %v10075
      %10818 = vmatprep.subr.bf16.mxu0 0
      %10819 = vmatpush1.bf16.msra.mxu0 %v10074
      %10820 = vmatprep.subr.bf16.mxu0 0
      %10821 = vmatpush1.bf16.msra.mxu0 %v10073
      %10822 = vmatprep.subr.bf16.mxu0 0
      %10823 = vmatpush1.bf16.msra.mxu0 %v10072
      %10824 = vmatprep.subr.bf16.mxu0 0
      %10825 = vmatpush1.bf16.msra.mxu0 %v10071
      %10826 = vmatprep.subr.bf16.mxu0 0
      %10827 = vmatpush1.bf16.msra.mxu0 %v10070
      %10828 = vmatprep.subr.bf16.mxu0 0
      %10829 = vmatpush2.bf16.msra.mxu0 %v10085
      %10830 = vmatprep.subr.bf16.mxu0 0
      %10831 = vmatpush2.bf16.msra.mxu0 %v10084
      %10832 = vmatprep.subr.bf16.mxu0 0
      %10833 = vmatpush2.bf16.msra.mxu0 %v10083
      %10834 = vmatprep.subr.bf16.mxu0 0
      %10835 = vmatpush2.bf16.msra.mxu0 %v10082
      %10836 = vmatprep.subr.bf16.mxu0 0
      %10837 = vmatpush2.bf16.msra.mxu0 %v10081
      %10838 = vmatprep.subr.bf16.mxu0 0
      %10839 = vmatpush2.bf16.msra.mxu0 %v10080
      %10840 = vmatprep.subr.bf16.mxu0 0
      %10841 = vmatpush2.bf16.msra.mxu0 %v10079
      %10842 = vmatprep.subr.bf16.mxu0 0
      %10843 = vmatpush2.bf16.msra.mxu0 %v10078
      %10844 = vmatprep.mubr.bf16.mxu0 %v9084
      %10845 = vmatmul.mubr.bf16.gmra.mxu0 %v9083
      %v10846 = vpop.f32.mrf.mxu0
      %v10847 = vadd.f32 %v10750, %v10846
      %v10848 = vpop.f32.mrf.mxu0
      %v10849 = vpop.f32.mrf.mxu0
      %v10850 = vadd.f32 %v10753, %v10849
      %v10851 = vpop.f32.mrf.mxu0
      %10852 = vmatprep.mubr.bf16.mxu0 %v9100
      %10853 = vmatmul.mubr.bf16.gmra.mxu0 %v9099
      %v10854 = vpop.f32.mrf.mxu0
      %v10855 = vadd.f32 %v10758, %v10854
      %v10856 = vpop.f32.mrf.mxu0
      %v10857 = vpop.f32.mrf.mxu0
      %v10858 = vadd.f32 %v10761, %v10857
      %v10859 = vpop.f32.mrf.mxu0
      %10860 = vmatprep.mubr.bf16.mxu0 %v9116
      %10861 = vmatmul.mubr.bf16.gmra.mxu0 %v9115
      %v10862 = vpop.f32.mrf.mxu0
      %v10863 = vadd.f32 %v10766, %v10862
      %v10864 = vpop.f32.mrf.mxu0
      %v10865 = vpop.f32.mrf.mxu0
      %v10866 = vadd.f32 %v10769, %v10865
      %v10867 = vpop.f32.mrf.mxu0
      %10868 = vmatprep.mubr.bf16.mxu0 %v9132
      %10869 = vmatmul.mubr.bf16.gmra.mxu0 %v9131
      %v10870 = vpop.f32.mrf.mxu0
      %v10871 = vadd.f32 %v10774, %v10870
      %v10872 = vpop.f32.mrf.mxu0
      %v10873 = vpop.f32.mrf.mxu0
      %v10874 = vadd.f32 %v10777, %v10873
      %v10875 = vpop.f32.mrf.mxu0
      %10876 = vmatprep.mubr.bf16.mxu0 %v9148
      %10877 = vmatmul.mubr.bf16.gmra.mxu0 %v9147
      %v10878 = vpop.f32.mrf.mxu0
      %v10879 = vadd.f32 %v10782, %v10878
      %v10880 = vpop.f32.mrf.mxu0
      %v10881 = vpop.f32.mrf.mxu0
      %v10882 = vadd.f32 %v10785, %v10881
      %v10883 = vpop.f32.mrf.mxu0
      %10884 = vmatprep.mubr.bf16.mxu0 %v9164
      %10885 = vmatmul.mubr.bf16.gmra.mxu0 %v9163
      %v10886 = vpop.f32.mrf.mxu0
      %v10887 = vadd.f32 %v10790, %v10886
      %v10888 = vpop.f32.mrf.mxu0
      %v10889 = vpop.f32.mrf.mxu0
      %v10890 = vadd.f32 %v10793, %v10889
      %v10891 = vpop.f32.mrf.mxu0
      %10892 = vmatprep.mubr.bf16.mxu0 %v9180
      %10893 = vmatmul.mubr.bf16.gmra.mxu0 %v9179
      %v10894 = vpop.f32.mrf.mxu0
      %v10895 = vadd.f32 %v10798, %v10894
      %v10896 = vpop.f32.mrf.mxu0
      %v10897 = vpop.f32.mrf.mxu0
      %v10898 = vadd.f32 %v10801, %v10897
      %v10899 = vpop.f32.mrf.mxu0
      %10900 = vmatprep.mubr.bf16.mxu0 %v9196
      %10901 = vmatmul.mubr.bf16.gmra.mxu0 %v9195
      %v10902 = vpop.f32.mrf.mxu0
      %v10903 = vadd.f32 %v10806, %v10902
      %v10904 = vpop.f32.mrf.mxu0
      %v10905 = vpop.f32.mrf.mxu0
      %v10906 = vadd.f32 %v10809, %v10905
      %v10907 = vpop.f32.mrf.mxu0
      %10908 = vdwg.mxu0
      %10909 = vmatprep.subr.bf16.mxu0 0
      %10910 = vmatpush1.bf16.msra.mxu0 %v10093
      %10911 = vmatprep.subr.bf16.mxu0 0
      %10912 = vmatpush1.bf16.msra.mxu0 %v10092
      %10913 = vmatprep.subr.bf16.mxu0 0
      %10914 = vmatpush1.bf16.msra.mxu0 %v10091
      %10915 = vmatprep.subr.bf16.mxu0 0
      %10916 = vmatpush1.bf16.msra.mxu0 %v10090
      %10917 = vmatprep.subr.bf16.mxu0 0
      %10918 = vmatpush1.bf16.msra.mxu0 %v10089
      %10919 = vmatprep.subr.bf16.mxu0 0
      %10920 = vmatpush1.bf16.msra.mxu0 %v10088
      %10921 = vmatprep.subr.bf16.mxu0 0
      %10922 = vmatpush1.bf16.msra.mxu0 %v10087
      %10923 = vmatprep.subr.bf16.mxu0 0
      %10924 = vmatpush1.bf16.msra.mxu0 %v10086
      %10925 = vmatprep.subr.bf16.mxu0 0
      %10926 = vmatpush2.bf16.msra.mxu0 %v10101
      %10927 = vmatprep.subr.bf16.mxu0 0
      %10928 = vmatpush2.bf16.msra.mxu0 %v10100
      %10929 = vmatprep.subr.bf16.mxu0 0
      %10930 = vmatpush2.bf16.msra.mxu0 %v10099
      %10931 = vmatprep.subr.bf16.mxu0 0
      %10932 = vmatpush2.bf16.msra.mxu0 %v10098
      %10933 = vmatprep.subr.bf16.mxu0 0
      %10934 = vmatpush2.bf16.msra.mxu0 %v10097
      %10935 = vmatprep.subr.bf16.mxu0 0
      %10936 = vmatpush2.bf16.msra.mxu0 %v10096
      %10937 = vmatprep.subr.bf16.mxu0 0
      %10938 = vmatpush2.bf16.msra.mxu0 %v10095
      %10939 = vmatprep.subr.bf16.mxu0 0
      %10940 = vmatpush2.bf16.msra.mxu0 %v10094
      %10941 = vmatprep.mubr.bf16.mxu0 %v9086
      %10942 = vmatmul.mubr.bf16.gmra.mxu0 %v9085
      %v10943 = vpop.f32.mrf.mxu0
      %v10944 = vadd.f32 %v10847, %v10943
      %v10945 = vpop.f32.mrf.mxu0
      %v10946 = vpop.f32.mrf.mxu0
      %v10947 = vadd.f32 %v10850, %v10946
      %v10948 = vpop.f32.mrf.mxu0
      %10949 = vmatprep.mubr.bf16.mxu0 %v9102
      %10950 = vmatmul.mubr.bf16.gmra.mxu0 %v9101
      %v10951 = vpop.f32.mrf.mxu0
      %v10952 = vadd.f32 %v10855, %v10951
      %v10953 = vpop.f32.mrf.mxu0
      %v10954 = vpop.f32.mrf.mxu0
      %v10955 = vadd.f32 %v10858, %v10954
      %v10956 = vpop.f32.mrf.mxu0
      %10957 = vmatprep.mubr.bf16.mxu0 %v9118
      %10958 = vmatmul.mubr.bf16.gmra.mxu0 %v9117
      %v10959 = vpop.f32.mrf.mxu0
      %v10960 = vadd.f32 %v10863, %v10959
      %v10961 = vpop.f32.mrf.mxu0
      %v10962 = vpop.f32.mrf.mxu0
      %v10963 = vadd.f32 %v10866, %v10962
      %v10964 = vpop.f32.mrf.mxu0
      %10965 = vmatprep.mubr.bf16.mxu0 %v9134
      %10966 = vmatmul.mubr.bf16.gmra.mxu0 %v9133
      %v10967 = vpop.f32.mrf.mxu0
      %v10968 = vadd.f32 %v10871, %v10967
      %v10969 = vpop.f32.mrf.mxu0
      %v10970 = vpop.f32.mrf.mxu0
      %v10971 = vadd.f32 %v10874, %v10970
      %v10972 = vpop.f32.mrf.mxu0
      %10973 = vmatprep.mubr.bf16.mxu0 %v9150
      %10974 = vmatmul.mubr.bf16.gmra.mxu0 %v9149
      %v10975 = vpop.f32.mrf.mxu0
      %v10976 = vadd.f32 %v10879, %v10975
      %v10977 = vpop.f32.mrf.mxu0
      %v10978 = vpop.f32.mrf.mxu0
      %v10979 = vadd.f32 %v10882, %v10978
      %v10980 = vpop.f32.mrf.mxu0
      %10981 = vmatprep.mubr.bf16.mxu0 %v9166
      %10982 = vmatmul.mubr.bf16.gmra.mxu0 %v9165
      %v10983 = vpop.f32.mrf.mxu0
      %v10984 = vadd.f32 %v10887, %v10983
      %v10985 = vpop.f32.mrf.mxu0
      %v10986 = vpop.f32.mrf.mxu0
      %v10987 = vadd.f32 %v10890, %v10986
      %v10988 = vpop.f32.mrf.mxu0
      %10989 = vmatprep.mubr.bf16.mxu0 %v9182
      %10990 = vmatmul.mubr.bf16.gmra.mxu0 %v9181
      %v10991 = vpop.f32.mrf.mxu0
      %v10992 = vadd.f32 %v10895, %v10991
      %v10993 = vpop.f32.mrf.mxu0
      %v10994 = vpop.f32.mrf.mxu0
      %v10995 = vadd.f32 %v10898, %v10994
      %v10996 = vpop.f32.mrf.mxu0
      %10997 = vmatprep.mubr.bf16.mxu0 %v9198
      %10998 = vmatmul.mubr.bf16.gmra.mxu0 %v9197
      %v10999 = vpop.f32.mrf.mxu0
      %v11000 = vadd.f32 %v10903, %v10999
      %v11001 = vpop.f32.mrf.mxu0
      %v11002 = vpop.f32.mrf.mxu0
      %v11003 = vadd.f32 %v10906, %v11002
      %v11004 = vpop.f32.mrf.mxu0
      %11005 = vdwg.mxu0
      %v11006 = vmax.f32 %v10944, 0.0
      %v11007 = vmax.f32 %v10947, 0.0
      %v11008 = vmax.f32 %v10952, 0.0
      %v11009 = vmax.f32 %v10955, 0.0
      %v11010 = vmax.f32 %v10960, 0.0
      %v11011 = vmax.f32 %v10963, 0.0
      %v11012 = vmax.f32 %v10968, 0.0
      %v11013 = vmax.f32 %v10971, 0.0
      %v11014 = vmax.f32 %v10976, 0.0
      %v11015 = vmax.f32 %v10979, 0.0
      %v11016 = vmax.f32 %v10984, 0.0
      %v11017 = vmax.f32 %v10987, 0.0
      %v11018 = vmax.f32 %v10992, 0.0
      %v11019 = vmax.f32 %v10995, 0.0
      %v11020 = vmax.f32 %v11000, 0.0
      %v11021 = vmax.f32 %v11003, 0.0
      %11022 = vst [vmem:[%s483] sm:$0xff] %v11006
      %11023 = vst [vmem:[%s483 + $0x8] sm:$0xff] %v11007
      %11024 = vst [vmem:[%s483 + $0x10] sm:$0xff] %v11008
      %11025 = vst [vmem:[%s483 + $0x18] sm:$0xff] %v11009
      %11026 = vst [vmem:[%s483 + $0x20] sm:$0xff] %v11010
      %11027 = vst [vmem:[%s483 + $0x28] sm:$0xff] %v11011
      %11028 = vst [vmem:[%s483 + $0x30] sm:$0xff] %v11012
      %11029 = vst [vmem:[%s483 + $0x38] sm:$0xff] %v11013
      %11030 = vst [vmem:[%s483 + $0x40] sm:$0xff] %v11014
      %11031 = vst [vmem:[%s483 + $0x48] sm:$0xff] %v11015
      %11032 = vst [vmem:[%s483 + $0x50] sm:$0xff] %v11016
      %11033 = vst [vmem:[%s483 + $0x58] sm:$0xff] %v11017
      %11034 = vst [vmem:[%s483 + $0x60] sm:$0xff] %v11018
      %11035 = vst [vmem:[%s483 + $0x68] sm:$0xff] %v11019
      %11036 = vst [vmem:[%s483 + $0x70] sm:$0xff] %v11020
      %11037 = vst [vmem:[%s483 + $0x78] sm:$0xff] %v11021
      %s11038 = smul.u32 16, %s26
      %p11039 = scmp.lt.s32.totalorder %s11038, 31
      %s11040 = scalar_select %p11039, %s11038, 31
      %s11041 = smul.addr %s11040, 8
      %s11042 = scalar_lea.vmem %s13, %s11041
      %s11043 = smul.u32 16, %s26
      %p11044 = scmp.lt.s32.totalorder %s11043, 31
      %s11045 = scalar_select %p11044, %s11043, 31
      %s11046 = smul.addr %s11045, 8
      %s11047 = scalar_lea.vmem %s14, %s11046
      // Predicated region
      $region73: #{ensemble_forward.1} parent=71 // pred_check
        %p11048 = pneg %p322
      $region74: #{ensemble_forward.1} parent=71 // pred_check_branch
        %11050 = sbr.rel (%p11048) target = $region76
      $region75: #{ensemble_forward.1} parent=71 // pred_region
        %s11051 = smul.u32 16, %s26
      $region76: #{ensemble_forward.1} parent=71 // pred_fallthru
        _
      // Predicated region
      $region77: #{ensemble_forward.1} parent=71 // pred_check
        %p11052 = pneg %p348
      $region78: #{ensemble_forward.1} parent=71 // pred_check_branch
        %11054 = sbr.rel (%p11052) target = $region80
      $region79: #{ensemble_forward.1} parent=71 // pred_region
        %s11055 = smul.u32 16, %s26
      $region80: #{ensemble_forward.1} parent=71 // pred_fallthru
        _
    $region72: #{ensemble_forward.1} parent=5 // pred_fallthru
      _
    %p11056 = scmp.le.s32.totalorder 2, %s21
    // Predicated region
    $region81: #{ensemble_forward.1} parent=5 // pred_check
      %p11057 = pneg %p11056
    $region82: #{ensemble_forward.1} parent=5 // pred_check_branch
      %11059 = sbr.rel (%p11057) target = $region84
    $region83: #{ensemble_forward.1} parent=5 // pred_region
      %s11060 = ssub.s32 %s21, 2
      // Predicated region
      $region85: #{ensemble_forward.1} parent=83 // pred_check
        %p11061 = pneg %p328
      $region86: #{ensemble_forward.1} parent=83 // pred_check_branch
        %11063 = sbr.rel (%p11061) target = $region88
      $region87: #{ensemble_forward.1} parent=83 // pred_region
        %s11064 = smul.u32 16, %s27
        %p11065 = scmp.lt.s32.totalorder %s11064, 31
        %s11066 = scalar_select %p11065, %s11064, 31
        %s11067 = smul.addr %s11066, 8
        %s11068 = scalar_lea.vmem %s13, %s11067
      $region88: #{ensemble_forward.1} parent=83 // pred_fallthru
        _
      // Predicated region
      $region89: #{ensemble_forward.1} parent=83 // pred_check
        %p11069 = pneg %p354
      $region90: #{ensemble_forward.1} parent=83 // pred_check_branch
        %11071 = sbr.rel (%p11069) target = $region92
      $region91: #{ensemble_forward.1} parent=83 // pred_region
        %s11072 = smul.u32 16, %s27
        %p11073 = scmp.lt.s32.totalorder %s11072, 31
        %s11074 = scalar_select %p11073, %s11072, 31
        %s11075 = smul.addr %s11074, 8
        %s11076 = scalar_lea.vmem %s14, %s11075
      $region92: #{ensemble_forward.1} parent=83 // pred_fallthru
        _
    $region84: #{ensemble_forward.1} parent=5 // pred_fallthru
      _
  $region6: #{ensemble_forward.1} parent=0 // loop_footer
    %s25 = sadd.s32 1, %s21
  $region7: #{ensemble_forward.1} parent=0 // loop_footer_branch
    %20 = sbr.rel target = $region3
  $region8: #{ensemble_forward.1} parent=0 // loop_exit
    _

</llo_original>
